<compile_context>
chip_gen: v5e
topology: v5e:2x2
jax: 0.10.0
libtpu: 0.0.40
codegen_flags: <defaults>
</compile_context>

<pallas_src>
import functools

import numpy as np
import jax
import jax.numpy as jnp
from jax.experimental import pallas as pl
from jax.experimental.pallas import tpu as pltpu


def prop_kernel(phase_ref, lwy_ref, rwx_ref, lvy_ref, rvx_ref,
                ka_ref, kb_ref, out_ref):
    ph = phase_ref[...]                      # (Ny, Nx) f32 (batch dim squeezed)
    ny, nx = ph.shape

    # H = exp(i*phase), packed vertically as [Hr; Hi] -> (2Ny, Nx) bf16.
    h_v = jnp.concatenate([jnp.cos(ph), jnp.sin(ph)], axis=0).astype(jnp.bfloat16)

    # T = Wy @ H (row DFT): packed bf16 MXU dot, f32 accumulate. (2Ny, Nx)
    t_v = jnp.dot(lwy_ref[...], h_v, preferred_element_type=jnp.float32)

    # Restack vertical -> horizontal [Tr | Ti]; cast first, then concat (bf16 copy only).
    t_bf = t_v.astype(jnp.bfloat16)
    t_h = jnp.concatenate([t_bf[:ny, :], t_bf[ny:, :]], axis=1)      # (Ny, 2Nx)

    # F = T @ Wx (column DFT) -> (Ny, 2Nx) = [Fr | Fi], f32.
    f_h = jnp.dot(t_h, rwx_ref[...], preferred_element_type=jnp.float32)

    # G = F * K (complex), kept in packed horizontal layout:
    #   [Fr|Fi]*[kr|kr] + [Fi|Fr]*[-ki|ki] = [Fr*kr-Fi*ki | Fi*kr+Fr*ki]
    # roll does the half-swap on the XLU slot (no slices/concats materialized).
    g_h = f_h * ka_ref[...] + pltpu.roll(f_h, shift=nx, axis=1) * kb_ref[...]

    # Inverse reordered as Vy @ (G @ Vx): right-mult Vx while still horizontal.
    p_h = jnp.dot(g_h.astype(jnp.bfloat16), rvx_ref[...],
                  preferred_element_type=jnp.float32)                # (Ny, 2Nx)

    # Single restack horizontal -> vertical (bf16), then left-mult Vy.
    p_bf = p_h.astype(jnp.bfloat16)
    p_v = jnp.concatenate([p_bf[:, :nx], p_bf[:, nx:]], axis=0)      # (2Ny, Nx)
    uu = jnp.dot(lvy_ref[...], p_v, preferred_element_type=jnp.float32)  # (2Ny, Nx)

    # intensity = |Ud|^2, read straight from the vertical packing.
    # (torch.angle output Id1 is computed but unused by the module.)
    u_r = uu[:ny, :]
    u_i = uu[ny:, :]
    out_ref[...] = u_r * u_r + u_i * u_i


def _dft_cos_sin(n):
    """cos/sin of the DFT angle matrix, built in float64 on host."""
    k = np.arange(n, dtype=np.int64)
    ang = 2.0 * np.pi * ((np.outer(k, k) % n).astype(np.float64)) / float(n)
    return np.cos(ang), np.sin(ang)


def _transfer_kernel(Ny, Nx, dx, dy, lam, dist):
    # torch.range is endpoint-inclusive: values 1-N/2 .. N/2  (length N)
    qx = np.arange(1.0 - Nx / 2.0, Nx / 2.0 + 1.0, 1.0, dtype=np.float64)
    qy = np.arange(1.0 - Ny / 2.0, Ny / 2.0 + 1.0, 1.0, dtype=np.float64)
    y, x = np.meshgrid(qy, qx, indexing="ij")   # torch.meshgrid default is 'ij'
    r = (2.0 * np.pi * x / (dx * Nx)) ** 2 + (2.0 * np.pi * y / (dy * Ny)) ** 2
    k = 2.0 * np.pi / lam
    # Clamp evanescent frequencies (k^2 < r) to 0 instead of NaN (the torch
    # reference would NaN there); a no-op for the default parameters.
    phi = np.sqrt(np.maximum(k * k - r, 0.0)) * dist
    return np.cos(phi), -np.sin(phi)    # kernel = exp(-i*phi)


@functools.lru_cache(maxsize=8)
def _build_prop(B, Ny, Nx, dx, dy, lam, dist):
    cy, sy = _dft_cos_sin(Ny)
    cx, sx = _dft_cos_sin(Nx)

    # Forward DFT W = C - iS, inverse (unscaled) V = C + iS, packed as single
    # real block matrices for left-/right-multiplication.
    lwy = np.block([[cy, sy], [-sy, cy]])     # left-mult by Wy
    rwx = np.block([[cx, -sx], [sx, cx]])     # right-mult by Wx
    lvy = np.block([[cy, -sy], [sy, cy]])     # left-mult by Vy
    rvx = np.block([[cx, sx], [-sx, cx]])     # right-mult by Vx

    kr, ki = _transfer_kernel(Ny, Nx, dx, dy, lam, dist)
    # Fold ifftshift/fftshift pair into one fftshift of K, and fold the
    # 1/(Ny*Nx) ifft2 normalization into the same (f32) constant.  Stored in
    # packed horizontal layout for the roll-based complex multiply.
    ks = np.fft.fftshift(kr + 1j * ki) / float(Ny * Nx)
    ka = np.concatenate([ks.real, ks.real], axis=1)     # (Ny, 2Nx)
    kb = np.concatenate([-ks.imag, ks.imag], axis=1)    # (Ny, 2Nx)

    consts = (
        jnp.asarray(lwy, dtype=jnp.bfloat16),
        jnp.asarray(rwx, dtype=jnp.bfloat16),
        jnp.asarray(lvy, dtype=jnp.bfloat16),
        jnp.asarray(rvx, dtype=jnp.bfloat16),
        jnp.asarray(ka, dtype=jnp.float32),
        jnp.asarray(kb, dtype=jnp.float32),
    )
    const_bytes = sum(int(np.prod(c.shape)) * c.dtype.itemsize for c in consts)

    # Constant operands: fixed block index every grid step -> DMA'd once,
    # VMEM-resident across the whole batch loop.
    const_specs = [pl.BlockSpec(c.shape, lambda b: (0, 0)) for c in consts]

    in_specs = [pl.BlockSpec((None, Ny, Nx), lambda b: (b, 0, 0))] + const_specs
    out_spec = pl.BlockSpec((None, Ny, Nx), lambda b: (b, 0, 0))

    # ~0.9 MiB of constants + <1 MiB of per-image blocks/intermediates at
    # N=128, comfortably inside every generation's scoped VMEM limit.
    # TODO(synk): for N >= ~1024 (v7x, 64 MiB VMEM) / N >= ~2048 (v5e/v6e),
    # tile the DFT contraction over a grid axis with a pl.when-zeroed f32
    # accumulator (keeping packed dims multiples of 256 on v6e/v7x, 128 on
    # v5e) and set pltpu.CompilerParams(vmem_limit_bytes=...) explicitly.
    cost = pl.CostEstimate(
        flops=int(B * (16 * Ny * Ny * Nx + 16 * Ny * Nx * Nx)),
        transcendentals=int(B * 2 * Ny * Nx),
        bytes_accessed=int(const_bytes + B * (2 * Ny * Nx * 4)),
    )

    call = pl.pallas_call(
        prop_kernel,
        out_shape=jax.ShapeDtypeStruct((B, Ny, Nx), jnp.float32),
        grid=(B,),
        in_specs=in_specs,
        out_specs=out_spec,
        compiler_params=pltpu.CompilerParams(
            dimension_semantics=("parallel",)),   # splits batch across v7x's 2 TCs
        cost_estimate=cost,
    )

    @jax.jit
    def run(img_phase):
        return call(img_phase.astype(jnp.float32), *consts)

    return run


def prop_forward(img_phase, dx=2.2e-06, dy=2.2e-06, lam=5.32e-07, dist=0.0788):
    squeeze = (img_phase.ndim == 2)
    if squeeze:
        img_phase = img_phase[None]
    B, Ny, Nx = img_phase.shape
    run = _build_prop(int(B), int(Ny), int(Nx), float(dx), float(dy),
                      float(lam), float(dist))
    out = run(img_phase)
    return out[0] if squeeze else out


if __name__ == "__main__":
    B, Ny, Nx = 2, 128, 128
    key = jax.random.PRNGKey(0)
    img_phase = jax.random.uniform(key, (B, Ny, Nx), jnp.float32,
                                   minval=0.0, maxval=2.0 * jnp.pi)

    out = jax.block_until_ready(prop_forward(img_phase))

    # Pure-JAX reference (complex FFT path, mirroring the torch module).
    kr, ki = _transfer_kernel(Ny, Nx, 2.2e-06, 2.2e-06, 5.32e-07, 0.0788)
    kern = jnp.asarray(kr + 1j * ki, dtype=jnp.complex64)
    H = jnp.exp(1j * img_phase)
    F = jnp.fft.ifftshift(jnp.fft.fft2(H, axes=(-2, -1)), axes=(-2, -1))
    G = jnp.fft.fftshift(F * kern[None, :, :], axes=(-2, -1))
    Ud = jnp.fft.ifft2(G, axes=(-2, -1))
    ref = (jnp.abs(Ud) ** 2).astype(jnp.float32)

    diff = jnp.abs(out - ref)
    tol = 5e-2 + 5e-2 * jnp.abs(ref)   # bf16 MXU data path -> percent-level accuracy
    max_err = float(jnp.max(diff))
    assert bool(jnp.all(diff <= tol)), f"max abs err too large: {max_err}"
    print("KERNEL_OK")
</pallas_src>

<mosaic_0001>
module attributes {stable_mosaic.version = 11 : i64} {
  func.func @prop_kernel(%arg0: i32, %arg1: memref<1x128x128xf32, #tpu.memory_space<vmem>>, %arg2: memref<256x256xbf16, #tpu.memory_space<vmem>>, %arg3: memref<256x256xbf16, #tpu.memory_space<vmem>>, %arg4: memref<256x256xbf16, #tpu.memory_space<vmem>>, %arg5: memref<256x256xbf16, #tpu.memory_space<vmem>>, %arg6: memref<128x256xf32, #tpu.memory_space<vmem>>, %arg7: memref<128x256xf32, #tpu.memory_space<vmem>>, %arg8: memref<1x128x128xf32, #tpu.memory_space<vmem>>) attributes {dimension_semantics = [#tpu.dimension_semantics<parallel>], iteration_bounds = array<i64: 2>, scalar_prefetch = 0 : i64, scratch_operands = 0 : i64, tpu.core_type = #tpu.core_type<tc>, window_params = [{transform_indices = @transform_0, window_bounds = array<i64: 1, 128, 128>}, {pipeline_mode = #tpu.pipeline_mode<synchronous>, transform_indices = @transform_1, window_bounds = array<i64: 256, 256>}, {pipeline_mode = #tpu.pipeline_mode<synchronous>, transform_indices = @transform_2, window_bounds = array<i64: 256, 256>}, {pipeline_mode = #tpu.pipeline_mode<synchronous>, transform_indices = @transform_3, window_bounds = array<i64: 256, 256>}, {pipeline_mode = #tpu.pipeline_mode<synchronous>, transform_indices = @transform_4, window_bounds = array<i64: 256, 256>}, {pipeline_mode = #tpu.pipeline_mode<synchronous>, transform_indices = @transform_5, window_bounds = array<i64: 128, 256>}, {pipeline_mode = #tpu.pipeline_mode<synchronous>, transform_indices = @transform_6, window_bounds = array<i64: 128, 256>}, {transform_indices = @transform_7, window_bounds = array<i64: 1, 128, 128>}]} {
    %c0 = arith.constant 0 : index
    %c0_0 = arith.constant 0 : index
    %c0_1 = arith.constant 0 : index
    %0 = vector.load %arg1[%c0, %c0_0, %c0_1] : memref<1x128x128xf32, #tpu.memory_space<vmem>>, vector<1x128x128xf32>
    %1 = vector.shape_cast %0 : vector<1x128x128xf32> to vector<128x128xf32>
    %2 = math.cos %1 : vector<128x128xf32>
    %3 = math.sin %1 : vector<128x128xf32>
    %4 = tpu.concatenate %2, %3 in 0 : vector<128x128xf32>, vector<128x128xf32> -> vector<256x128xf32>
    %5 = arith.truncf %4 : vector<256x128xf32> to vector<256x128xbf16>
    %c0_2 = arith.constant 0 : index
    %c0_3 = arith.constant 0 : index
    %6 = vector.load %arg2[%c0_2, %c0_3] : memref<256x256xbf16, #tpu.memory_space<vmem>>, vector<256x256xbf16>
    %cst = arith.constant dense<0.000000e+00> : vector<256x128xf32>
    %7 = tpu.matmul %6, %5, %cst {dimension_numbers = #tpu.dot_dimension_numbers<[1], [0], [0], [1], [0, 0, 1, 1], [], []>} : vector<256x256xbf16>, vector<256x128xbf16>, vector<256x128xf32> -> vector<256x128xf32>
    %8 = arith.truncf %7 : vector<256x128xf32> to vector<256x128xbf16>
    %9 = vector.extract_strided_slice %8 {offsets = [0, 0], sizes = [128, 128], strides = [1, 1]} : vector<256x128xbf16> to vector<128x128xbf16>
    %10 = vector.extract_strided_slice %8 {offsets = [128, 0], sizes = [128, 128], strides = [1, 1]} : vector<256x128xbf16> to vector<128x128xbf16>
    %11 = tpu.concatenate %9, %10 in 1 : vector<128x128xbf16>, vector<128x128xbf16> -> vector<128x256xbf16>
    %c0_4 = arith.constant 0 : index
    %c0_5 = arith.constant 0 : index
    %12 = vector.load %arg3[%c0_4, %c0_5] : memref<256x256xbf16, #tpu.memory_space<vmem>>, vector<256x256xbf16>
    %cst_6 = arith.constant dense<0.000000e+00> : vector<128x256xf32>
    %13 = tpu.matmul %11, %12, %cst_6 {dimension_numbers = #tpu.dot_dimension_numbers<[1], [0], [0], [1], [0, 0, 1, 1], [], []>} : vector<128x256xbf16>, vector<256x256xbf16>, vector<128x256xf32> -> vector<128x256xf32>
    %c0_7 = arith.constant 0 : index
    %c0_8 = arith.constant 0 : index
    %14 = vector.load %arg6[%c0_7, %c0_8] : memref<128x256xf32, #tpu.memory_space<vmem>>, vector<128x256xf32>
    %15 = arith.mulf %13, %14 : vector<128x256xf32>
    %c128_i32 = arith.constant 128 : i32
    %16 = tpu.dynamic_rotate %13 by %c128_i32 dim 1 : vector<128x256xf32>, i32 -> vector<128x256xf32>
    %c0_9 = arith.constant 0 : index
    %c0_10 = arith.constant 0 : index
    %17 = vector.load %arg7[%c0_9, %c0_10] : memref<128x256xf32, #tpu.memory_space<vmem>>, vector<128x256xf32>
    %18 = arith.mulf %16, %17 : vector<128x256xf32>
    %19 = arith.addf %15, %18 : vector<128x256xf32>
    %20 = arith.truncf %19 : vector<128x256xf32> to vector<128x256xbf16>
    %c0_11 = arith.constant 0 : index
    %c0_12 = arith.constant 0 : index
    %21 = vector.load %arg5[%c0_11, %c0_12] : memref<256x256xbf16, #tpu.memory_space<vmem>>, vector<256x256xbf16>
    %cst_13 = arith.constant dense<0.000000e+00> : vector<128x256xf32>
    %22 = tpu.matmul %20, %21, %cst_13 {dimension_numbers = #tpu.dot_dimension_numbers<[1], [0], [0], [1], [0, 0, 1, 1], [], []>} : vector<128x256xbf16>, vector<256x256xbf16>, vector<128x256xf32> -> vector<128x256xf32>
    %23 = arith.truncf %22 : vector<128x256xf32> to vector<128x256xbf16>
    %24 = vector.extract_strided_slice %23 {offsets = [0, 0], sizes = [128, 128], strides = [1, 1]} : vector<128x256xbf16> to vector<128x128xbf16>
    %25 = vector.extract_strided_slice %23 {offsets = [0, 128], sizes = [128, 128], strides = [1, 1]} : vector<128x256xbf16> to vector<128x128xbf16>
    %26 = tpu.concatenate %24, %25 in 0 : vector<128x128xbf16>, vector<128x128xbf16> -> vector<256x128xbf16>
    %c0_14 = arith.constant 0 : index
    %c0_15 = arith.constant 0 : index
    %27 = vector.load %arg4[%c0_14, %c0_15] : memref<256x256xbf16, #tpu.memory_space<vmem>>, vector<256x256xbf16>
    %cst_16 = arith.constant dense<0.000000e+00> : vector<256x128xf32>
    %28 = tpu.matmul %27, %26, %cst_16 {dimension_numbers = #tpu.dot_dimension_numbers<[1], [0], [0], [1], [0, 0, 1, 1], [], []>} : vector<256x256xbf16>, vector<256x128xbf16>, vector<256x128xf32> -> vector<256x128xf32>
    %29 = vector.extract_strided_slice %28 {offsets = [0, 0], sizes = [128, 128], strides = [1, 1]} : vector<256x128xf32> to vector<128x128xf32>
    %30 = vector.extract_strided_slice %28 {offsets = [128, 0], sizes = [128, 128], strides = [1, 1]} : vector<256x128xf32> to vector<128x128xf32>
    %31 = arith.mulf %29, %29 : vector<128x128xf32>
    %32 = arith.mulf %30, %30 : vector<128x128xf32>
    %33 = arith.addf %31, %32 : vector<128x128xf32>
    %c0_17 = arith.constant 0 : index
    %c0_18 = arith.constant 0 : index
    %c0_19 = arith.constant 0 : index
    %34 = vector.load %arg8[%c0_17, %c0_18, %c0_19] : memref<1x128x128xf32, #tpu.memory_space<vmem>>, vector<1x128x128xf32>
    %35 = vector.shape_cast %34 : vector<1x128x128xf32> to vector<128x128xf32>
    %36 = vector.shape_cast %33 : vector<128x128xf32> to vector<1x128x128xf32>
    tpu.vector_store %arg8[%c0_17, %c0_18, %c0_19], %36 {strides = array<i32>} : memref<1x128x128xf32, #tpu.memory_space<vmem>>, vector<1x128x128xf32>,
    return
  }
  func.func @transform_0(%arg0: i32) -> (i32, i32, i32) {
    %c0_i32 = arith.constant 0 : i32
    %c0_i32_0 = arith.constant 0 : i32
    %c0_i32_1 = arith.constant 0 : i32
    return %arg0, %c0_i32, %c0_i32_0 : i32, i32, i32
  }
  func.func @transform_1(%arg0: i32) -> (i32, i32) {
    %c0_i32 = arith.constant 0 : i32
    %c0_i32_0 = arith.constant 0 : i32
    %c0_i32_1 = arith.constant 0 : i32
    return %c0_i32, %c0_i32_0 : i32, i32
  }
  func.func @transform_2(%arg0: i32) -> (i32, i32) {
    %c0_i32 = arith.constant 0 : i32
    %c0_i32_0 = arith.constant 0 : i32
    %c0_i32_1 = arith.constant 0 : i32
    return %c0_i32, %c0_i32_0 : i32, i32
  }
  func.func @transform_3(%arg0: i32) -> (i32, i32) {
    %c0_i32 = arith.constant 0 : i32
    %c0_i32_0 = arith.constant 0 : i32
    %c0_i32_1 = arith.constant 0 : i32
    return %c0_i32, %c0_i32_0 : i32, i32
  }
  func.func @transform_4(%arg0: i32) -> (i32, i32) {
    %c0_i32 = arith.constant 0 : i32
    %c0_i32_0 = arith.constant 0 : i32
    %c0_i32_1 = arith.constant 0 : i32
    return %c0_i32, %c0_i32_0 : i32, i32
  }
  func.func @transform_5(%arg0: i32) -> (i32, i32) {
    %c0_i32 = arith.constant 0 : i32
    %c0_i32_0 = arith.constant 0 : i32
    %c0_i32_1 = arith.constant 0 : i32
    return %c0_i32, %c0_i32_0 : i32, i32
  }
  func.func @transform_6(%arg0: i32) -> (i32, i32) {
    %c0_i32 = arith.constant 0 : i32
    %c0_i32_0 = arith.constant 0 : i32
    %c0_i32_1 = arith.constant 0 : i32
    return %c0_i32, %c0_i32_0 : i32, i32
  }
  func.func @transform_7(%arg0: i32) -> (i32, i32, i32) {
    %c0_i32 = arith.constant 0 : i32
    %c0_i32_0 = arith.constant 0 : i32
    %c0_i32_1 = arith.constant 0 : i32
    return %arg0, %c0_i32, %c0_i32_0 : i32, i32, i32
  }
}

</mosaic_0001>

<llo_original>
// kernel: run.1
$region0: #{run.1}
  #allocation0 [shape = 'u32[]', space=smem, size = 0x4, offset = 0x4, fixed_abs, tag = 'smem constant byte address 0x4 - core index']
  #allocation1 [shape = 'u32[72,128]{1,0:T(1,128)}', space=vmem, size = 0x9000, scoped, tag = 'internal scratch']
  %s0 = inlined_call_operand.hbm [shape: f32[2,128,128], index: 0, kind: input, shape index: {}]
  %s1 = inlined_call_operand.hbm [shape: bf16[256,256], index: 1, kind: input, shape index: {}, may-alias: {1,4}]
  %s2 = inlined_call_operand.hbm [shape: bf16[256,256], index: 2, kind: input, shape index: {}, may-alias: {2,3}]
  %s3 = inlined_call_operand.hbm [shape: bf16[256,256], index: 3, kind: input, shape index: {}, may-alias: {2,3}]
  %s4 = inlined_call_operand.hbm [shape: bf16[256,256], index: 4, kind: input, shape index: {}, may-alias: {1,4}]
  %s5 = inlined_call_operand.hbm [shape: f32[128,256], index: 5, kind: input, shape index: {}]
  %s6 = inlined_call_operand.hbm [shape: f32[128,256], index: 6, kind: input, shape index: {}]
  %s7 = inlined_call_operand.hbm [shape: f32[2,128,128], index: 7, kind: output, shape index: {}]
  %s8 = sld [smem:[#allocation0]]
  $region89: #{run.1} parent=0
    _
  %s10 = ssub.s32 1, %s8
  %s11 = scalar_select 0, %s10, %s8
  $region1: #{run.1} parent=0
    #allocation2 [shape = 'u8[131072]{0}', space=vmem, size = 0x20000, scoped, tag = 'input window, operand 0']
    #allocation3 [shape = 's32[2]{0}', space=sflag, size = 0x8, scoped, tag = 'scoped memory for run.1']
    #allocation4 [shape = 's32[2]{0}', space=sflag, size = 0x8, scoped, tag = 'scoped memory for run.1']
    #allocation5 [shape = 'u8[131072]{0}', space=vmem, size = 0x20000, scoped, tag = 'input window, operand 1, single buffered']
    #allocation6 [shape = 's32[1]{0}', space=sflag, size = 0x4, scoped, tag = 'scoped memory for run.1']
    #allocation7 [shape = 'u8[131072]{0}', space=vmem, size = 0x20000, scoped, tag = 'input window, operand 2, single buffered']
    #allocation8 [shape = 'u8[131072]{0}', space=vmem, size = 0x20000, scoped, tag = 'input window, operand 3, single buffered']
    #allocation9 [shape = 's32[1]{0}', space=sflag, size = 0x4, scoped, tag = 'scoped memory for run.1']
    #allocation10 [shape = 'u8[131072]{0}', space=vmem, size = 0x20000, scoped, tag = 'input window, operand 4, single buffered']
    #allocation11 [shape = 'u8[131072]{0}', space=vmem, size = 0x20000, scoped, tag = 'input window, operand 5, single buffered']
    #allocation12 [shape = 's32[1]{0}', space=sflag, size = 0x4, scoped, tag = 'scoped memory for run.1']
    #allocation13 [shape = 'u8[131072]{0}', space=vmem, size = 0x20000, scoped, tag = 'input window, operand 6, single buffered']
    #allocation14 [shape = 'u8[131072]{0}', space=vmem, size = 0x20000, scoped, tag = 'output window, operand 0']
    %12 = vsyncpa [#allocation3], 0
    %s13 = scalar_lea.sflag [#allocation3], 1
    %14 = vsyncpa %s13, 0
    %15 = vsyncpa [#allocation6], 0
    %16 = vsyncpa [#allocation9], 0
    %17 = vsyncpa [#allocation12], 0
    %18 = vsyncpa [#allocation4], 0
    %s19 = scalar_lea.sflag [#allocation4], 1
    %20 = vsyncpa %s19, 0
    loop: start=0, step=1, limit=4
    $region2: #{run.1} parent=1 // loop_pre_header
      _
    $region3: #{run.1} parent=1 // loop_header
      %s22 = sphi 0, %s26
      %p23 = scmp.ge.s32.totalorder %s22, 4
      %s32 = sphi 0, %s34
      %s35 = sphi 0, %s32
      %s36 = sphi 0, %s35
      %s52 = sphi 0, %s36
      %s56 = sphi 0, %s56
      %s58 = sphi 0, %s56
      %s59 = sphi 0, %s58
      %s73 = sphi 0, %s59
      %s77 = sphi 0, %s77
      %s79 = sphi 0, %s77
      %s80 = sphi 0, %s79
      %s94 = sphi 0, %s80
      %s98 = sphi 0, %s98
      %s100 = sphi 0, %s98
      %s101 = sphi 0, %s100
      %s115 = sphi 0, %s101
      %s119 = sphi 0, %s119
      %s121 = sphi 0, %s119
      %s122 = sphi 0, %s121
      %s136 = sphi 0, %s122
      %s140 = sphi 0, %s140
      %s142 = sphi 0, %s140
      %s143 = sphi 0, %s142
      %s157 = sphi 0, %s143
      %s161 = sphi 0, %s161
      %s163 = sphi 0, %s161
      %s164 = sphi 0, %s163
      %s178 = sphi 0, %s164
      %s184 = sphi 0, %s186
      %s187 = sphi 0, %s184
      %s188 = sphi 0, %s187
      %s204 = sphi 0, %s188
    $region4: #{run.1} parent=1 // loop_header_branch
      %25 = sbr.rel (%p23) target = $region8
    $region5: #{run.1} parent=1 // loop_body
      %s27 = ssub.s32 %s22, 1
      %s28 = ssub.s32 %s22, 2
      %s29 = sadd.s32 %s22, 1
      %s30 = ssub.s32 %s22, %s29
      %p31 = scmp.eq.s32.totalorder %s30, 0
      %s33 = sadd.s32 %s32, 1
      %s34 = scalar_select %p31, %s32, %s33
      %p37 = pneg %p31
      %p38 = scmp.eq.s32.totalorder %s22, 1
      %p39 = por %p37, %p38
      %p40 = scmp.ne.s32.totalorder %s32, %s35
      %p41 = scmp.eq.s32.totalorder %s22, 0
      %p42 = por %p40, %p41
      %p43 = scmp.ne.s32.totalorder %s32, %s35
      %p44 = scmp.eq.s32.totalorder %s27, 1
      %p45 = por %p43, %p44
      %p46 = scmp.ne.s32.totalorder %s35, %s36
      %p47 = scmp.eq.s32.totalorder %s27, 0
      %p48 = por %p46, %p47
      %p49 = scmp.ne.s32.totalorder %s35, %s36
      %p50 = scmp.eq.s32.totalorder %s28, 1
      %p51 = por %p49, %p50
      %p53 = scmp.ne.s32.totalorder %s36, %s52
      %p54 = scmp.eq.s32.totalorder %s28, 0
      %p55 = por %p53, %p54
      %s57 = sadd.s32 %s56, 1
      %p60 = scmp.eq.s32.totalorder %s22, 1
      %p61 = scmp.ne.s32.totalorder %s56, %s58
      %p62 = scmp.eq.s32.totalorder %s22, 0
      %p63 = por %p61, %p62
      %p64 = scmp.ne.s32.totalorder %s56, %s58
      %p65 = scmp.eq.s32.totalorder %s27, 1
      %p66 = por %p64, %p65
      %p67 = scmp.ne.s32.totalorder %s58, %s59
      %p68 = scmp.eq.s32.totalorder %s27, 0
      %p69 = por %p67, %p68
      %p70 = scmp.ne.s32.totalorder %s58, %s59
      %p71 = scmp.eq.s32.totalorder %s28, 1
      %p72 = por %p70, %p71
      %p74 = scmp.ne.s32.totalorder %s59, %s73
      %p75 = scmp.eq.s32.totalorder %s28, 0
      %p76 = por %p74, %p75
      %s78 = sadd.s32 %s77, 1
      %p81 = scmp.eq.s32.totalorder %s22, 1
      %p82 = scmp.ne.s32.totalorder %s77, %s79
      %p83 = scmp.eq.s32.totalorder %s22, 0
      %p84 = por %p82, %p83
      %p85 = scmp.ne.s32.totalorder %s77, %s79
      %p86 = scmp.eq.s32.totalorder %s27, 1
      %p87 = por %p85, %p86
      %p88 = scmp.ne.s32.totalorder %s79, %s80
      %p89 = scmp.eq.s32.totalorder %s27, 0
      %p90 = por %p88, %p89
      %p91 = scmp.ne.s32.totalorder %s79, %s80
      %p92 = scmp.eq.s32.totalorder %s28, 1
      %p93 = por %p91, %p92
      %p95 = scmp.ne.s32.totalorder %s80, %s94
      %p96 = scmp.eq.s32.totalorder %s28, 0
      %p97 = por %p95, %p96
      %s99 = sadd.s32 %s98, 1
      %p102 = scmp.eq.s32.totalorder %s22, 1
      %p103 = scmp.ne.s32.totalorder %s98, %s100
      %p104 = scmp.eq.s32.totalorder %s22, 0
      %p105 = por %p103, %p104
      %p106 = scmp.ne.s32.totalorder %s98, %s100
      %p107 = scmp.eq.s32.totalorder %s27, 1
      %p108 = por %p106, %p107
      %p109 = scmp.ne.s32.totalorder %s100, %s101
      %p110 = scmp.eq.s32.totalorder %s27, 0
      %p111 = por %p109, %p110
      %p112 = scmp.ne.s32.totalorder %s100, %s101
      %p113 = scmp.eq.s32.totalorder %s28, 1
      %p114 = por %p112, %p113
      %p116 = scmp.ne.s32.totalorder %s101, %s115
      %p117 = scmp.eq.s32.totalorder %s28, 0
      %p118 = por %p116, %p117
      %s120 = sadd.s32 %s119, 1
      %p123 = scmp.eq.s32.totalorder %s22, 1
      %p124 = scmp.ne.s32.totalorder %s119, %s121
      %p125 = scmp.eq.s32.totalorder %s22, 0
      %p126 = por %p124, %p125
      %p127 = scmp.ne.s32.totalorder %s119, %s121
      %p128 = scmp.eq.s32.totalorder %s27, 1
      %p129 = por %p127, %p128
      %p130 = scmp.ne.s32.totalorder %s121, %s122
      %p131 = scmp.eq.s32.totalorder %s27, 0
      %p132 = por %p130, %p131
      %p133 = scmp.ne.s32.totalorder %s121, %s122
      %p134 = scmp.eq.s32.totalorder %s28, 1
      %p135 = por %p133, %p134
      %p137 = scmp.ne.s32.totalorder %s122, %s136
      %p138 = scmp.eq.s32.totalorder %s28, 0
      %p139 = por %p137, %p138
      %s141 = sadd.s32 %s140, 1
      %p144 = scmp.eq.s32.totalorder %s22, 1
      %p145 = scmp.ne.s32.totalorder %s140, %s142
      %p146 = scmp.eq.s32.totalorder %s22, 0
      %p147 = por %p145, %p146
      %p148 = scmp.ne.s32.totalorder %s140, %s142
      %p149 = scmp.eq.s32.totalorder %s27, 1
      %p150 = por %p148, %p149
      %p151 = scmp.ne.s32.totalorder %s142, %s143
      %p152 = scmp.eq.s32.totalorder %s27, 0
      %p153 = por %p151, %p152
      %p154 = scmp.ne.s32.totalorder %s142, %s143
      %p155 = scmp.eq.s32.totalorder %s28, 1
      %p156 = por %p154, %p155
      %p158 = scmp.ne.s32.totalorder %s143, %s157
      %p159 = scmp.eq.s32.totalorder %s28, 0
      %p160 = por %p158, %p159
      %s162 = sadd.s32 %s161, 1
      %p165 = scmp.eq.s32.totalorder %s22, 1
      %p166 = scmp.ne.s32.totalorder %s161, %s163
      %p167 = scmp.eq.s32.totalorder %s22, 0
      %p168 = por %p166, %p167
      %p169 = scmp.ne.s32.totalorder %s161, %s163
      %p170 = scmp.eq.s32.totalorder %s27, 1
      %p171 = por %p169, %p170
      %p172 = scmp.ne.s32.totalorder %s163, %s164
      %p173 = scmp.eq.s32.totalorder %s27, 0
      %p174 = por %p172, %p173
      %p175 = scmp.ne.s32.totalorder %s163, %s164
      %p176 = scmp.eq.s32.totalorder %s28, 1
      %p177 = por %p175, %p176
      %p179 = scmp.ne.s32.totalorder %s164, %s178
      %p180 = scmp.eq.s32.totalorder %s28, 0
      %p181 = por %p179, %p180
      %s182 = ssub.s32 %s22, %s29
      %p183 = scmp.eq.s32.totalorder %s182, 0
      %s185 = sadd.s32 %s184, 1
      %s186 = scalar_select %p183, %s184, %s185
      %p189 = pneg %p183
      %p190 = scmp.eq.s32.totalorder %s22, 1
      %p191 = por %p189, %p190
      %p192 = scmp.ne.s32.totalorder %s184, %s187
      %p193 = scmp.eq.s32.totalorder %s22, 0
      %p194 = por %p192, %p193
      %p195 = scmp.ne.s32.totalorder %s184, %s187
      %p196 = scmp.eq.s32.totalorder %s27, 1
      %p197 = por %p195, %p196
      %p198 = scmp.ne.s32.totalorder %s187, %s188
      %p199 = scmp.eq.s32.totalorder %s27, 0
      %p200 = por %p198, %p199
      %p201 = scmp.ne.s32.totalorder %s187, %s188
      %p202 = scmp.eq.s32.totalorder %s28, 1
      %p203 = por %p201, %p202
      %p205 = scmp.ne.s32.totalorder %s188, %s204
      %p206 = scmp.eq.s32.totalorder %s28, 0
      %p207 = por %p205, %p206
      %p208 = scmp.le.s32.totalorder 1, %s22
      %p209 = scmp.lt.s32.totalorder %s22, 3
      %p210 = pnand %p208, %p209
      %p211 = pneg %p210
      // Predicated region
      $region9: #{run.1} parent=5 // pred_check
        _
      $region10: #{run.1} parent=5 // pred_check_branch
        %213 = sbr.rel (%p210) target = $region12
      $region11: #{run.1} parent=5 // pred_region
        %s214 = ssub.s32 %s22, 1
        // Predicated region
        $region13: #{run.1} parent=11 // pred_check
          %p215 = pneg %p69
        $region14: #{run.1} parent=11 // pred_check_branch
          %217 = sbr.rel (%p215) target = $region16
        $region15: #{run.1} parent=11 // pred_region
          %219 = vsyncadd [#allocation6], 0
          %s220 = sshll.u32 %s1, 4
          %s221 = int_to_ptr.hbm [resolvable:$true] %s220
          %s222 = sshll.u32 [#allocation5], 4
          %s223 = int_to_ptr.vmem [resolvable:$true] %s222
          %228 = dma.hbm_to_vmem [thread:$0]  %s221, 4096, %s223, [#allocation6], 128, 128, 8
        $region16: #{run.1} parent=11 // pred_fallthru
          _
        // Predicated region
        $region17: #{run.1} parent=11 // pred_check
          %p229 = pneg %p90
        $region18: #{run.1} parent=11 // pred_check_branch
          %231 = sbr.rel (%p229) target = $region20
        $region19: #{run.1} parent=11 // pred_region
          %233 = vsyncadd [#allocation6], 0
          %s234 = sshll.u32 %s2, 4
          %s235 = int_to_ptr.hbm [resolvable:$true] %s234
          %s236 = sshll.u32 [#allocation7], 4
          %s237 = int_to_ptr.vmem [resolvable:$true] %s236
          %242 = dma.hbm_to_vmem [thread:$0]  %s235, 4096, %s237, [#allocation6], 128, 128, 8
        $region20: #{run.1} parent=11 // pred_fallthru
          _
        // Predicated region
        $region21: #{run.1} parent=11 // pred_check
          %p243 = pneg %p111
        $region22: #{run.1} parent=11 // pred_check_branch
          %245 = sbr.rel (%p243) target = $region24
        $region23: #{run.1} parent=11 // pred_region
          %247 = vsyncadd [#allocation9], 0
          %s248 = sshll.u32 %s3, 4
          %s249 = int_to_ptr.hbm [resolvable:$true] %s248
          %s250 = sshll.u32 [#allocation8], 4
          %s251 = int_to_ptr.vmem [resolvable:$true] %s250
          %256 = dma.hbm_to_vmem [thread:$0]  %s249, 4096, %s251, [#allocation9], 128, 128, 8
        $region24: #{run.1} parent=11 // pred_fallthru
          _
        // Predicated region
        $region25: #{run.1} parent=11 // pred_check
          %p257 = pneg %p132
        $region26: #{run.1} parent=11 // pred_check_branch
          %259 = sbr.rel (%p257) target = $region28
        $region27: #{run.1} parent=11 // pred_region
          %261 = vsyncadd [#allocation9], 0
          %s262 = sshll.u32 %s4, 4
          %s263 = int_to_ptr.hbm [resolvable:$true] %s262
          %s264 = sshll.u32 [#allocation10], 4
          %s265 = int_to_ptr.vmem [resolvable:$true] %s264
          %270 = dma.hbm_to_vmem [thread:$0]  %s263, 4096, %s265, [#allocation9], 128, 128, 8
        $region28: #{run.1} parent=11 // pred_fallthru
          _
        // Predicated region
        $region29: #{run.1} parent=11 // pred_check
          %p271 = pneg %p153
        $region30: #{run.1} parent=11 // pred_check_branch
          %273 = sbr.rel (%p271) target = $region32
        $region31: #{run.1} parent=11 // pred_region
          %275 = vsyncadd [#allocation12], 0
          %s276 = sshll.u32 %s5, 4
          %s277 = int_to_ptr.hbm [resolvable:$true] %s276
          %s278 = sshll.u32 [#allocation11], 4
          %s279 = int_to_ptr.vmem [resolvable:$true] %s278
          %284 = dma.hbm_to_vmem [thread:$0]  %s277, 4096, %s279, [#allocation12], 256, 256, 16
        $region32: #{run.1} parent=11 // pred_fallthru
          _
        // Predicated region
        $region33: #{run.1} parent=11 // pred_check
          %p285 = pneg %p174
        $region34: #{run.1} parent=11 // pred_check_branch
          %287 = sbr.rel (%p285) target = $region36
        $region35: #{run.1} parent=11 // pred_region
          %289 = vsyncadd [#allocation12], 0
          %s290 = sshll.u32 %s6, 4
          %s291 = int_to_ptr.hbm [resolvable:$true] %s290
          %s292 = sshll.u32 [#allocation13], 4
          %s293 = int_to_ptr.vmem [resolvable:$true] %s292
          %298 = dma.hbm_to_vmem [thread:$0]  %s291, 4096, %s293, [#allocation12], 256, 256, 16
        $region36: #{run.1} parent=11 // pred_fallthru
          _
      $region12: #{run.1} parent=5 // pred_fallthru
        _
      %p299 = scmp.lt.s32.totalorder %s22, 2
      // Predicated region
      $region37: #{run.1} parent=5 // pred_check
        %p300 = pneg %p299
      $region38: #{run.1} parent=5 // pred_check_branch
        %302 = sbr.rel (%p300) target = $region40
      $region39: #{run.1} parent=5 // pred_region
        // Predicated region
        $region41: #{run.1} parent=39 // pred_check
          %p303 = pneg %p42
        $region42: #{run.1} parent=39 // pred_check_branch
          %305 = sbr.rel (%p303) target = $region44
        $region43: #{run.1} parent=39 // pred_region
          %s306 = sand.u32 %s32, 1
          %s307 = scalar_lea.sflag [#allocation3], %s306
          %s308 = sand.u32 %s32, 1
          %s309 = smul.addr %s308, 128
          %s310 = scalar_lea.vmem [#allocation2], %s309
          %312 = vsyncadd %s307, 0
          %s313 = smul.addr %s22, 16
          %s314 = smul.addr %s313, 8
          %s315 = scalar_lea.hbm %s0, %s314
          %s316 = sshll.u32 %s315, 4
          %s317 = int_to_ptr.hbm [resolvable:$true] %s316
          %s318 = sshll.u32 %s310, 4
          %s319 = int_to_ptr.vmem [resolvable:$true] %s318
          %324 = dma.hbm_to_vmem [thread:$0]  %s317, 2048, %s319, %s307, 128, 128, 8
        $region44: #{run.1} parent=39 // pred_fallthru
          _
      $region40: #{run.1} parent=5 // pred_fallthru
        _
      %p325 = scmp.le.s32.totalorder 1, %s22
      %p326 = scmp.lt.s32.totalorder %s22, 3
      %p327 = pnand %p325, %p326
      %p328 = pneg %p327
      // Predicated region
      $region45: #{run.1} parent=5 // pred_check
        _
      $region46: #{run.1} parent=5 // pred_check_branch
        %330 = sbr.rel (%p327) target = $region48
      $region47: #{run.1} parent=5 // pred_region
        %s331 = ssub.s32 %s22, 1
        %s332 = sand.u32 %s35, 1
        %s333 = scalar_lea.sflag [#allocation3], %s332
        %s334 = sand.u32 %s35, 1
        %s335 = smul.addr %s334, 128
        %s336 = scalar_lea.vmem [#allocation2], %s335
        // Predicated region
        $region49: #{run.1} parent=47 // pred_check
          %p337 = pneg %p48
        $region50: #{run.1} parent=47 // pred_check_branch
          %339 = sbr.rel (%p337) target = $region52
        $region51: #{run.1} parent=47 // pred_region
          %341 = dma.done %s333, 2048
        $region52: #{run.1} parent=47 // pred_fallthru
          _
        // Predicated region
        $region53: #{run.1} parent=47 // pred_check
          %p342 = pneg %p69
        $region54: #{run.1} parent=47 // pred_check_branch
          %344 = sbr.rel (%p342) target = $region56
        $region55: #{run.1} parent=47 // pred_region
          %346 = dma.done [#allocation6], 4096
        $region56: #{run.1} parent=47 // pred_fallthru
          _
        // Predicated region
        $region57: #{run.1} parent=47 // pred_check
          %p347 = pneg %p90
        $region58: #{run.1} parent=47 // pred_check_branch
          %349 = sbr.rel (%p347) target = $region60
        $region59: #{run.1} parent=47 // pred_region
          %351 = dma.done [#allocation6], 4096
        $region60: #{run.1} parent=47 // pred_fallthru
          _
        // Predicated region
        $region61: #{run.1} parent=47 // pred_check
          %p352 = pneg %p111
        $region62: #{run.1} parent=47 // pred_check_branch
          %354 = sbr.rel (%p352) target = $region64
        $region63: #{run.1} parent=47 // pred_region
          %356 = dma.done [#allocation9], 4096
        $region64: #{run.1} parent=47 // pred_fallthru
          _
        // Predicated region
        $region65: #{run.1} parent=47 // pred_check
          %p357 = pneg %p132
        $region66: #{run.1} parent=47 // pred_check_branch
          %359 = sbr.rel (%p357) target = $region68
        $region67: #{run.1} parent=47 // pred_region
          %361 = dma.done [#allocation9], 4096
        $region68: #{run.1} parent=47 // pred_fallthru
          _
        // Predicated region
        $region69: #{run.1} parent=47 // pred_check
          %p362 = pneg %p153
        $region70: #{run.1} parent=47 // pred_check_branch
          %364 = sbr.rel (%p362) target = $region72
        $region71: #{run.1} parent=47 // pred_region
          %366 = dma.done [#allocation12], 4096
        $region72: #{run.1} parent=47 // pred_fallthru
          _
        // Predicated region
        $region73: #{run.1} parent=47 // pred_check
          %p367 = pneg %p174
        $region74: #{run.1} parent=47 // pred_check_branch
          %369 = sbr.rel (%p367) target = $region76
        $region75: #{run.1} parent=47 // pred_region
          %371 = dma.done [#allocation12], 4096
        $region76: #{run.1} parent=47 // pred_fallthru
          _
        %s372 = sand.u32 %s35, 1
        %s373 = scalar_lea.sflag [#allocation3], %s372
        %s374 = sand.u32 %s35, 1
        %s375 = smul.addr %s374, 128
        %s376 = scalar_lea.vmem [#allocation2], %s375
        %p377 = pneg %p48
        %p378 = pneg %p45
        %p379 = pneg %p69
        %p380 = pneg %p66
        %p381 = pneg %p90
        %p382 = pneg %p87
        %p383 = pneg %p111
        %p384 = pneg %p108
        %p385 = pneg %p132
        %p386 = pneg %p129
        %p387 = pneg %p153
        %p388 = pneg %p150
        %p389 = pneg %p174
        %p390 = pneg %p171
        %p391 = pneg %p200
        %p392 = pneg %p197
        %s393 = sand.u32 %s187, 1
        %s394 = scalar_lea.sflag [#allocation4], %s393
        %s395 = sand.u32 %s187, 1
        %s396 = smul.addr %s395, 128
        %s397 = scalar_lea.vmem [#allocation14], %s396
        %v398 = vld [vmem:[%s336] sm:$0xff]
        %v399 = vld [vmem:[%s336 + $0x8] sm:$0xff]
        %v400 = vld [vmem:[%s336 + $0x10] sm:$0xff]
        %v401 = vld [vmem:[%s336 + $0x18] sm:$0xff]
        %v402 = vld [vmem:[%s336 + $0x20] sm:$0xff]
        %v403 = vld [vmem:[%s336 + $0x28] sm:$0xff]
        %v404 = vld [vmem:[%s336 + $0x30] sm:$0xff]
        %v405 = vld [vmem:[%s336 + $0x38] sm:$0xff]
        %v406 = vld [vmem:[%s336 + $0x40] sm:$0xff]
        %v407 = vld [vmem:[%s336 + $0x48] sm:$0xff]
        %v408 = vld [vmem:[%s336 + $0x50] sm:$0xff]
        %v409 = vld [vmem:[%s336 + $0x58] sm:$0xff]
        %v410 = vld [vmem:[%s336 + $0x60] sm:$0xff]
        %v411 = vld [vmem:[%s336 + $0x68] sm:$0xff]
        %v412 = vld [vmem:[%s336 + $0x70] sm:$0xff]
        %v413 = vld [vmem:[%s336 + $0x78] sm:$0xff]
        %v414 = vand.u32 2147483647, %v398
        %vm415 = vcmp.le.f32.partialorder %v414, 0.7853982
        %vm416 = vcmp.lt.s32.totalorder %v398, 0
        %v417 = vand.u32 %v398, 2139095040
        %v418 = vshrl.u32 %v417, 23
        %v419 = vsub.s32 %v418, 127
        %v420 = vand.u32 2147483647, %v398
        %v421 = vand.u32 %v420, 8388607
        %v422 = vor.u32 %v421, 8388608
        %v423 = vsub.s32 0, %v422
        %v424 = vadd.s32 %v419, 1
        %vm425 = vcmp.gt.s32.totalorder %v424, 0
        %v426 = vsel %vm425, %v424, 0
        %v427 = vshrl.u32 %v426, 5
        %v428 = vand.u32 %v426, 31
        %v429 = vsub.s32 32, %v428
        %v430 = vshrl.u32 683565275, %v429
        %v431 = vshll.u32 683565275, %v428
        %v432 = vshrl.u32 2475754826, %v429
        %v433 = vor.u32 %v431, %v432
        %v434 = vshll.u32 2475754826, %v428
        %v435 = vshrl.u32 2131351028, %v429
        %v436 = vor.u32 %v434, %v435
        %v437 = vshll.u32 2131351028, %v428
        %v438 = vshrl.u32 2102212464, %v429
        %v439 = vor.u32 %v437, %v438
        %v440 = vshll.u32 2102212464, %v428
        %v441 = vshrl.u32 920167782, %v429
        %v442 = vor.u32 %v440, %v441
        %v443 = vshll.u32 920167782, %v428
        %v444 = vshrl.u32 1326507024, %v429
        %v445 = vor.u32 %v443, %v444
        %vm446 = vcmp.lt.s32.totalorder %v427, 1
        %vm447 = vcmp.lt.s32.totalorder %v427, 2
        %vm448 = vcmp.lt.s32.totalorder %v427, 3
        %vm449 = vcmp.lt.s32.totalorder %v427, 4
        %v450 = vsel %vm446, %v430, %v433
        %v451 = vsel %vm449, %v439, 2102212464
        %v452 = vsel %vm448, %v436, %v451
        %v453 = vsel %vm447, %v450, %v452
        %v454 = vsel %vm446, %v433, %v436
        %v455 = vsel %vm449, %v442, 920167782
        %v456 = vsel %vm448, %v439, %v455
        %v457 = vsel %vm447, %v454, %v456
        %v458 = vsel %vm446, %v436, %v439
        %v459 = vsel %vm449, %v445, 1326507024
        %v460 = vsel %vm448, %v442, %v459
        %v461 = vsel %vm447, %v458, %v460
        %v462 = vshll.u32 %v422, 8
        %v463 = vand.u32 %v462, 65535
        %v464 = vshrl.u32 %v462, 16
        %v465 = vand.u32 %v461, 65535
        %v466 = vshrl.u32 %v461, 16
        %v467 = vmul.u32 %v463, %v465
        %v468 = vmul.u32 %v463, %v466
        %v469 = vmul.u32 %v464, %v465
        %v470 = vmul.u32 %v464, %v466
        %v471 = vshll.u32 %v468, 16
        %v472 = vshrl.u32 %v468, 16
        %v473 = vshll.u32 %v469, 16
        %v474 = vshrl.u32 %v469, 16
        %vm475 = vc.u32 %v467, %v471
        %v476 = vsel %vm475, 1, 0
        %v477 = vadd.s32 %v467, %v471
        %v478 = vadd.s32 %v470, %v476
        %vm479 = vc.u32 %v477, %v473
        %v480 = vsel %vm479, 1, 0
        %v481 = vadd.s32 %v477, %v473
        %v482 = vadd.s32 %v478, %v480
        %v483 = vadd.s32 %v482, %v472
        %v484 = vadd.s32 %v483, %v474
        %v485 = vand.u32 %v462, 65535
        %v486 = vshrl.u32 %v462, 16
        %v487 = vand.u32 %v457, 65535
        %v488 = vshrl.u32 %v457, 16
        %v489 = vmul.u32 %v485, %v487
        %v490 = vmul.u32 %v485, %v488
        %v491 = vmul.u32 %v486, %v487
        %v492 = vmul.u32 %v486, %v488
        %v493 = vshll.u32 %v490, 16
        %v494 = vshrl.u32 %v490, 16
        %v495 = vshll.u32 %v491, 16
        %v496 = vshrl.u32 %v491, 16
        %vm497 = vc.u32 %v489, %v493
        %v498 = vsel %vm497, 1, 0
        %v499 = vadd.s32 %v489, %v493
        %v500 = vadd.s32 %v492, %v498
        %vm501 = vc.u32 %v499, %v495
        %v502 = vsel %vm501, 1, 0
        %v503 = vadd.s32 %v499, %v495
        %v504 = vadd.s32 %v500, %v502
        %v505 = vadd.s32 %v504, %v494
        %v506 = vadd.s32 %v505, %v496
        %v507 = vmul.u32 %v462, %v453
        %v508 = vadd.s32 %v484, %v503
        %vm509 = vc.u32 %v484, %v503
        %v510 = vadd.s32 %v506, 1
        %v511 = vsel %vm509, %v510, %v506
        %v512 = vadd.s32 %v507, %v511
        %v513 = vadd.s32 %v512, 536870912
        %v514 = vshrl.u32 %v513, 30
        %v515 = vshll.u32 %v514, 30
        %v516 = vsub.s32 %v512, %v515
        %vm517 = vcmp.lt.s32.totalorder %v516, 0
        %v518 = vsub.s32 0, %v516
        %v519 = vsel %vm517, %v518, %v516
        %v520 = vclz %v519
        %v521 = vsub.s32 %v520, 2
        %vm522 = vcmp.gt.s32.totalorder 0, %v521
        %v523 = vsel %vm522, 0, %v521
        %v524 = vsub.s32 32, %v523
        %v525 = vshll.u32 %v516, %v523
        %v526 = vshrl.u32 %v508, %v524
        %v527 = vor.u32 %v525, %v526
        %v528 = vsub.s32 4294967266, %v523
        %v529 = vadd.s32 %v528, 127
        %v530 = vshll.u32 %v529, 23
        %v531 = vor.u32 4788187, %v530
        %v532 = vand.u32 2147483647, %v531
        %v534 = vcvt.s32.f32 %v527
        %v535 = vmul.f32 %v534, %v532
        %v536 = vxor.u32 %v535, 2147483648
        %v537 = vsel %vm416, %v536, %v535
        %v538 = vsub.s32 4, %v514
        %v539 = vsel %vm416, %v538, %v514
        %v540 = vsel %vm415, %v398, %v537
        %v541 = vsel %vm415, 0, %v539
        %v542 = vmul.f32 %v540, %v540
        %v543 = vmul.f32 %v542, -0.001358992
        %v544 = vadd.f32 %v543, 0.041655596
        %v545 = vmul.f32 %v542, %v544
        %v546 = vadd.f32 %v545, -0.4999988
        %v547 = vmul.f32 %v542, %v546
        %v548 = vadd.f32 1.0, %v547
        %v549 = vmul.f32 %v540, %v540
        %v550 = vmul.f32 %v549, -0.00019511016
        %v551 = vadd.f32 %v550, 0.008332121
        %v552 = vmul.f32 %v549, %v551
        %v553 = vadd.f32 %v552, -0.16666654
        %v554 = vmul.f32 %v549, %v553
        %v555 = vadd.f32 %v554, 1.0
        %v556 = vmul.f32 %v555, %v540
        %vm557 = vweird.f32 %v398
        %v558 = vand.u32 %v541, 3
        %vm559 = vcmp.lt.s32.totalorder %v558, 2
        %vm560 = vcmp.eq.s32.totalorder %v558, 0
        %v561 = vxor.u32 %v556, 2147483648
        %v562 = vsel %vm560, %v548, %v561
        %vm563 = vcmp.eq.s32.totalorder %v558, 2
        %v564 = vxor.u32 %v548, 2147483648
        %v565 = vsel %vm563, %v564, %v556
        %v566 = vsel %vm559, %v562, %v565
        %v567 = vsel %vm557, nan, %v566
        %v568 = vand.u32 2147483647, %v399
        %vm569 = vcmp.le.f32.partialorder %v568, 0.7853982
        %vm570 = vcmp.lt.s32.totalorder %v399, 0
        %v571 = vand.u32 %v399, 2139095040
        %v572 = vshrl.u32 %v571, 23
        %v573 = vsub.s32 %v572, 127
        %v574 = vand.u32 2147483647, %v399
        %v575 = vand.u32 %v574, 8388607
        %v576 = vor.u32 %v575, 8388608
        %v577 = vsub.s32 0, %v576
        %v578 = vadd.s32 %v573, 1
        %vm579 = vcmp.gt.s32.totalorder %v578, 0
        %v580 = vsel %vm579, %v578, 0
        %v581 = vshrl.u32 %v580, 5
        %v582 = vand.u32 %v580, 31
        %v583 = vsub.s32 32, %v582
        %v584 = vshrl.u32 683565275, %v583
        %v585 = vshll.u32 683565275, %v582
        %v586 = vshrl.u32 2475754826, %v583
        %v587 = vor.u32 %v585, %v586
        %v588 = vshll.u32 2475754826, %v582
        %v589 = vshrl.u32 2131351028, %v583
        %v590 = vor.u32 %v588, %v589
        %v591 = vshll.u32 2131351028, %v582
        %v592 = vshrl.u32 2102212464, %v583
        %v593 = vor.u32 %v591, %v592
        %v594 = vshll.u32 2102212464, %v582
        %v595 = vshrl.u32 920167782, %v583
        %v596 = vor.u32 %v594, %v595
        %v597 = vshll.u32 920167782, %v582
        %v598 = vshrl.u32 1326507024, %v583
        %v599 = vor.u32 %v597, %v598
        %vm600 = vcmp.lt.s32.totalorder %v581, 1
        %vm601 = vcmp.lt.s32.totalorder %v581, 2
        %vm602 = vcmp.lt.s32.totalorder %v581, 3
        %vm603 = vcmp.lt.s32.totalorder %v581, 4
        %v604 = vsel %vm600, %v584, %v587
        %v605 = vsel %vm603, %v593, 2102212464
        %v606 = vsel %vm602, %v590, %v605
        %v607 = vsel %vm601, %v604, %v606
        %v608 = vsel %vm600, %v587, %v590
        %v609 = vsel %vm603, %v596, 920167782
        %v610 = vsel %vm602, %v593, %v609
        %v611 = vsel %vm601, %v608, %v610
        %v612 = vsel %vm600, %v590, %v593
        %v613 = vsel %vm603, %v599, 1326507024
        %v614 = vsel %vm602, %v596, %v613
        %v615 = vsel %vm601, %v612, %v614
        %v616 = vshll.u32 %v576, 8
        %v617 = vand.u32 %v616, 65535
        %v618 = vshrl.u32 %v616, 16
        %v619 = vand.u32 %v615, 65535
        %v620 = vshrl.u32 %v615, 16
        %v621 = vmul.u32 %v617, %v619
        %v622 = vmul.u32 %v617, %v620
        %v623 = vmul.u32 %v618, %v619
        %v624 = vmul.u32 %v618, %v620
        %v625 = vshll.u32 %v622, 16
        %v626 = vshrl.u32 %v622, 16
        %v627 = vshll.u32 %v623, 16
        %v628 = vshrl.u32 %v623, 16
        %vm629 = vc.u32 %v621, %v625
        %v630 = vsel %vm629, 1, 0
        %v631 = vadd.s32 %v621, %v625
        %v632 = vadd.s32 %v624, %v630
        %vm633 = vc.u32 %v631, %v627
        %v634 = vsel %vm633, 1, 0
        %v635 = vadd.s32 %v631, %v627
        %v636 = vadd.s32 %v632, %v634
        %v637 = vadd.s32 %v636, %v626
        %v638 = vadd.s32 %v637, %v628
        %v639 = vand.u32 %v616, 65535
        %v640 = vshrl.u32 %v616, 16
        %v641 = vand.u32 %v611, 65535
        %v642 = vshrl.u32 %v611, 16
        %v643 = vmul.u32 %v639, %v641
        %v644 = vmul.u32 %v639, %v642
        %v645 = vmul.u32 %v640, %v641
        %v646 = vmul.u32 %v640, %v642
        %v647 = vshll.u32 %v644, 16
        %v648 = vshrl.u32 %v644, 16
        %v649 = vshll.u32 %v645, 16
        %v650 = vshrl.u32 %v645, 16
        %vm651 = vc.u32 %v643, %v647
        %v652 = vsel %vm651, 1, 0
        %v653 = vadd.s32 %v643, %v647
        %v654 = vadd.s32 %v646, %v652
        %vm655 = vc.u32 %v653, %v649
        %v656 = vsel %vm655, 1, 0
        %v657 = vadd.s32 %v653, %v649
        %v658 = vadd.s32 %v654, %v656
        %v659 = vadd.s32 %v658, %v648
        %v660 = vadd.s32 %v659, %v650
        %v661 = vmul.u32 %v616, %v607
        %v662 = vadd.s32 %v638, %v657
        %vm663 = vc.u32 %v638, %v657
        %v664 = vadd.s32 %v660, 1
        %v665 = vsel %vm663, %v664, %v660
        %v666 = vadd.s32 %v661, %v665
        %v667 = vadd.s32 %v666, 536870912
        %v668 = vshrl.u32 %v667, 30
        %v669 = vshll.u32 %v668, 30
        %v670 = vsub.s32 %v666, %v669
        %vm671 = vcmp.lt.s32.totalorder %v670, 0
        %v672 = vsub.s32 0, %v670
        %v673 = vsel %vm671, %v672, %v670
        %v674 = vclz %v673
        %v675 = vsub.s32 %v674, 2
        %vm676 = vcmp.gt.s32.totalorder 0, %v675
        %v677 = vsel %vm676, 0, %v675
        %v678 = vsub.s32 32, %v677
        %v679 = vshll.u32 %v670, %v677
        %v680 = vshrl.u32 %v662, %v678
        %v681 = vor.u32 %v679, %v680
        %v682 = vsub.s32 4294967266, %v677
        %v683 = vadd.s32 %v682, 127
        %v684 = vshll.u32 %v683, 23
        %v685 = vor.u32 4788187, %v684
        %v686 = vand.u32 2147483647, %v685
        %v688 = vcvt.s32.f32 %v681
        %v689 = vmul.f32 %v688, %v686
        %v690 = vxor.u32 %v689, 2147483648
        %v691 = vsel %vm570, %v690, %v689
        %v692 = vsub.s32 4, %v668
        %v693 = vsel %vm570, %v692, %v668
        %v694 = vsel %vm569, %v399, %v691
        %v695 = vsel %vm569, 0, %v693
        %v696 = vmul.f32 %v694, %v694
        %v697 = vmul.f32 %v696, -0.001358992
        %v698 = vadd.f32 %v697, 0.041655596
        %v699 = vmul.f32 %v696, %v698
        %v700 = vadd.f32 %v699, -0.4999988
        %v701 = vmul.f32 %v696, %v700
        %v702 = vadd.f32 1.0, %v701
        %v703 = vmul.f32 %v694, %v694
        %v704 = vmul.f32 %v703, -0.00019511016
        %v705 = vadd.f32 %v704, 0.008332121
        %v706 = vmul.f32 %v703, %v705
        %v707 = vadd.f32 %v706, -0.16666654
        %v708 = vmul.f32 %v703, %v707
        %v709 = vadd.f32 %v708, 1.0
        %v710 = vmul.f32 %v709, %v694
        %vm711 = vweird.f32 %v399
        %v712 = vand.u32 %v695, 3
        %vm713 = vcmp.lt.s32.totalorder %v712, 2
        %vm714 = vcmp.eq.s32.totalorder %v712, 0
        %v715 = vxor.u32 %v710, 2147483648
        %v716 = vsel %vm714, %v702, %v715
        %vm717 = vcmp.eq.s32.totalorder %v712, 2
        %v718 = vxor.u32 %v702, 2147483648
        %v719 = vsel %vm717, %v718, %v710
        %v720 = vsel %vm713, %v716, %v719
        %v721 = vsel %vm711, nan, %v720
        %v722 = vand.u32 2147483647, %v400
        %vm723 = vcmp.le.f32.partialorder %v722, 0.7853982
        %vm724 = vcmp.lt.s32.totalorder %v400, 0
        %v725 = vand.u32 %v400, 2139095040
        %v726 = vshrl.u32 %v725, 23
        %v727 = vsub.s32 %v726, 127
        %v728 = vand.u32 2147483647, %v400
        %v729 = vand.u32 %v728, 8388607
        %v730 = vor.u32 %v729, 8388608
        %v731 = vsub.s32 0, %v730
        %v732 = vadd.s32 %v727, 1
        %vm733 = vcmp.gt.s32.totalorder %v732, 0
        %v734 = vsel %vm733, %v732, 0
        %v735 = vshrl.u32 %v734, 5
        %v736 = vand.u32 %v734, 31
        %v737 = vsub.s32 32, %v736
        %v738 = vshrl.u32 683565275, %v737
        %v739 = vshll.u32 683565275, %v736
        %v740 = vshrl.u32 2475754826, %v737
        %v741 = vor.u32 %v739, %v740
        %v742 = vshll.u32 2475754826, %v736
        %v743 = vshrl.u32 2131351028, %v737
        %v744 = vor.u32 %v742, %v743
        %v745 = vshll.u32 2131351028, %v736
        %v746 = vshrl.u32 2102212464, %v737
        %v747 = vor.u32 %v745, %v746
        %v748 = vshll.u32 2102212464, %v736
        %v749 = vshrl.u32 920167782, %v737
        %v750 = vor.u32 %v748, %v749
        %v751 = vshll.u32 920167782, %v736
        %v752 = vshrl.u32 1326507024, %v737
        %v753 = vor.u32 %v751, %v752
        %vm754 = vcmp.lt.s32.totalorder %v735, 1
        %vm755 = vcmp.lt.s32.totalorder %v735, 2
        %vm756 = vcmp.lt.s32.totalorder %v735, 3
        %vm757 = vcmp.lt.s32.totalorder %v735, 4
        %v758 = vsel %vm754, %v738, %v741
        %v759 = vsel %vm757, %v747, 2102212464
        %v760 = vsel %vm756, %v744, %v759
        %v761 = vsel %vm755, %v758, %v760
        %v762 = vsel %vm754, %v741, %v744
        %v763 = vsel %vm757, %v750, 920167782
        %v764 = vsel %vm756, %v747, %v763
        %v765 = vsel %vm755, %v762, %v764
        %v766 = vsel %vm754, %v744, %v747
        %v767 = vsel %vm757, %v753, 1326507024
        %v768 = vsel %vm756, %v750, %v767
        %v769 = vsel %vm755, %v766, %v768
        %v770 = vshll.u32 %v730, 8
        %v771 = vand.u32 %v770, 65535
        %v772 = vshrl.u32 %v770, 16
        %v773 = vand.u32 %v769, 65535
        %v774 = vshrl.u32 %v769, 16
        %v775 = vmul.u32 %v771, %v773
        %v776 = vmul.u32 %v771, %v774
        %v777 = vmul.u32 %v772, %v773
        %v778 = vmul.u32 %v772, %v774
        %v779 = vshll.u32 %v776, 16
        %v780 = vshrl.u32 %v776, 16
        %v781 = vshll.u32 %v777, 16
        %v782 = vshrl.u32 %v777, 16
        %vm783 = vc.u32 %v775, %v779
        %v784 = vsel %vm783, 1, 0
        %v785 = vadd.s32 %v775, %v779
        %v786 = vadd.s32 %v778, %v784
        %vm787 = vc.u32 %v785, %v781
        %v788 = vsel %vm787, 1, 0
        %v789 = vadd.s32 %v785, %v781
        %v790 = vadd.s32 %v786, %v788
        %v791 = vadd.s32 %v790, %v780
        %v792 = vadd.s32 %v791, %v782
        %v793 = vand.u32 %v770, 65535
        %v794 = vshrl.u32 %v770, 16
        %v795 = vand.u32 %v765, 65535
        %v796 = vshrl.u32 %v765, 16
        %v797 = vmul.u32 %v793, %v795
        %v798 = vmul.u32 %v793, %v796
        %v799 = vmul.u32 %v794, %v795
        %v800 = vmul.u32 %v794, %v796
        %v801 = vshll.u32 %v798, 16
        %v802 = vshrl.u32 %v798, 16
        %v803 = vshll.u32 %v799, 16
        %v804 = vshrl.u32 %v799, 16
        %vm805 = vc.u32 %v797, %v801
        %v806 = vsel %vm805, 1, 0
        %v807 = vadd.s32 %v797, %v801
        %v808 = vadd.s32 %v800, %v806
        %vm809 = vc.u32 %v807, %v803
        %v810 = vsel %vm809, 1, 0
        %v811 = vadd.s32 %v807, %v803
        %v812 = vadd.s32 %v808, %v810
        %v813 = vadd.s32 %v812, %v802
        %v814 = vadd.s32 %v813, %v804
        %v815 = vmul.u32 %v770, %v761
        %v816 = vadd.s32 %v792, %v811
        %vm817 = vc.u32 %v792, %v811
        %v818 = vadd.s32 %v814, 1
        %v819 = vsel %vm817, %v818, %v814
        %v820 = vadd.s32 %v815, %v819
        %v821 = vadd.s32 %v820, 536870912
        %v822 = vshrl.u32 %v821, 30
        %v823 = vshll.u32 %v822, 30
        %v824 = vsub.s32 %v820, %v823
        %vm825 = vcmp.lt.s32.totalorder %v824, 0
        %v826 = vsub.s32 0, %v824
        %v827 = vsel %vm825, %v826, %v824
        %v828 = vclz %v827
        %v829 = vsub.s32 %v828, 2
        %vm830 = vcmp.gt.s32.totalorder 0, %v829
        %v831 = vsel %vm830, 0, %v829
        %v832 = vsub.s32 32, %v831
        %v833 = vshll.u32 %v824, %v831
        %v834 = vshrl.u32 %v816, %v832
        %v835 = vor.u32 %v833, %v834
        %v836 = vsub.s32 4294967266, %v831
        %v837 = vadd.s32 %v836, 127
        %v838 = vshll.u32 %v837, 23
        %v839 = vor.u32 4788187, %v838
        %v840 = vand.u32 2147483647, %v839
        %v842 = vcvt.s32.f32 %v835
        %v843 = vmul.f32 %v842, %v840
        %v844 = vxor.u32 %v843, 2147483648
        %v845 = vsel %vm724, %v844, %v843
        %v846 = vsub.s32 4, %v822
        %v847 = vsel %vm724, %v846, %v822
        %v848 = vsel %vm723, %v400, %v845
        %v849 = vsel %vm723, 0, %v847
        %v850 = vmul.f32 %v848, %v848
        %v851 = vmul.f32 %v850, -0.001358992
        %v852 = vadd.f32 %v851, 0.041655596
        %v853 = vmul.f32 %v850, %v852
        %v854 = vadd.f32 %v853, -0.4999988
        %v855 = vmul.f32 %v850, %v854
        %v856 = vadd.f32 1.0, %v855
        %v857 = vmul.f32 %v848, %v848
        %v858 = vmul.f32 %v857, -0.00019511016
        %v859 = vadd.f32 %v858, 0.008332121
        %v860 = vmul.f32 %v857, %v859
        %v861 = vadd.f32 %v860, -0.16666654
        %v862 = vmul.f32 %v857, %v861
        %v863 = vadd.f32 %v862, 1.0
        %v864 = vmul.f32 %v863, %v848
        %vm865 = vweird.f32 %v400
        %v866 = vand.u32 %v849, 3
        %vm867 = vcmp.lt.s32.totalorder %v866, 2
        %vm868 = vcmp.eq.s32.totalorder %v866, 0
        %v869 = vxor.u32 %v864, 2147483648
        %v870 = vsel %vm868, %v856, %v869
        %vm871 = vcmp.eq.s32.totalorder %v866, 2
        %v872 = vxor.u32 %v856, 2147483648
        %v873 = vsel %vm871, %v872, %v864
        %v874 = vsel %vm867, %v870, %v873
        %v875 = vsel %vm865, nan, %v874
        %v876 = vand.u32 2147483647, %v401
        %vm877 = vcmp.le.f32.partialorder %v876, 0.7853982
        %vm878 = vcmp.lt.s32.totalorder %v401, 0
        %v879 = vand.u32 %v401, 2139095040
        %v880 = vshrl.u32 %v879, 23
        %v881 = vsub.s32 %v880, 127
        %v882 = vand.u32 2147483647, %v401
        %v883 = vand.u32 %v882, 8388607
        %v884 = vor.u32 %v883, 8388608
        %v885 = vsub.s32 0, %v884
        %v886 = vadd.s32 %v881, 1
        %vm887 = vcmp.gt.s32.totalorder %v886, 0
        %v888 = vsel %vm887, %v886, 0
        %v889 = vshrl.u32 %v888, 5
        %v890 = vand.u32 %v888, 31
        %v891 = vsub.s32 32, %v890
        %v892 = vshrl.u32 683565275, %v891
        %v893 = vshll.u32 683565275, %v890
        %v894 = vshrl.u32 2475754826, %v891
        %v895 = vor.u32 %v893, %v894
        %v896 = vshll.u32 2475754826, %v890
        %v897 = vshrl.u32 2131351028, %v891
        %v898 = vor.u32 %v896, %v897
        %v899 = vshll.u32 2131351028, %v890
        %v900 = vshrl.u32 2102212464, %v891
        %v901 = vor.u32 %v899, %v900
        %v902 = vshll.u32 2102212464, %v890
        %v903 = vshrl.u32 920167782, %v891
        %v904 = vor.u32 %v902, %v903
        %v905 = vshll.u32 920167782, %v890
        %v906 = vshrl.u32 1326507024, %v891
        %v907 = vor.u32 %v905, %v906
        %vm908 = vcmp.lt.s32.totalorder %v889, 1
        %vm909 = vcmp.lt.s32.totalorder %v889, 2
        %vm910 = vcmp.lt.s32.totalorder %v889, 3
        %vm911 = vcmp.lt.s32.totalorder %v889, 4
        %v912 = vsel %vm908, %v892, %v895
        %v913 = vsel %vm911, %v901, 2102212464
        %v914 = vsel %vm910, %v898, %v913
        %v915 = vsel %vm909, %v912, %v914
        %v916 = vsel %vm908, %v895, %v898
        %v917 = vsel %vm911, %v904, 920167782
        %v918 = vsel %vm910, %v901, %v917
        %v919 = vsel %vm909, %v916, %v918
        %v920 = vsel %vm908, %v898, %v901
        %v921 = vsel %vm911, %v907, 1326507024
        %v922 = vsel %vm910, %v904, %v921
        %v923 = vsel %vm909, %v920, %v922
        %v924 = vshll.u32 %v884, 8
        %v925 = vand.u32 %v924, 65535
        %v926 = vshrl.u32 %v924, 16
        %v927 = vand.u32 %v923, 65535
        %v928 = vshrl.u32 %v923, 16
        %v929 = vmul.u32 %v925, %v927
        %v930 = vmul.u32 %v925, %v928
        %v931 = vmul.u32 %v926, %v927
        %v932 = vmul.u32 %v926, %v928
        %v933 = vshll.u32 %v930, 16
        %v934 = vshrl.u32 %v930, 16
        %v935 = vshll.u32 %v931, 16
        %v936 = vshrl.u32 %v931, 16
        %vm937 = vc.u32 %v929, %v933
        %v938 = vsel %vm937, 1, 0
        %v939 = vadd.s32 %v929, %v933
        %v940 = vadd.s32 %v932, %v938
        %vm941 = vc.u32 %v939, %v935
        %v942 = vsel %vm941, 1, 0
        %v943 = vadd.s32 %v939, %v935
        %v944 = vadd.s32 %v940, %v942
        %v945 = vadd.s32 %v944, %v934
        %v946 = vadd.s32 %v945, %v936
        %v947 = vand.u32 %v924, 65535
        %v948 = vshrl.u32 %v924, 16
        %v949 = vand.u32 %v919, 65535
        %v950 = vshrl.u32 %v919, 16
        %v951 = vmul.u32 %v947, %v949
        %v952 = vmul.u32 %v947, %v950
        %v953 = vmul.u32 %v948, %v949
        %v954 = vmul.u32 %v948, %v950
        %v955 = vshll.u32 %v952, 16
        %v956 = vshrl.u32 %v952, 16
        %v957 = vshll.u32 %v953, 16
        %v958 = vshrl.u32 %v953, 16
        %vm959 = vc.u32 %v951, %v955
        %v960 = vsel %vm959, 1, 0
        %v961 = vadd.s32 %v951, %v955
        %v962 = vadd.s32 %v954, %v960
        %vm963 = vc.u32 %v961, %v957
        %v964 = vsel %vm963, 1, 0
        %v965 = vadd.s32 %v961, %v957
        %v966 = vadd.s32 %v962, %v964
        %v967 = vadd.s32 %v966, %v956
        %v968 = vadd.s32 %v967, %v958
        %v969 = vmul.u32 %v924, %v915
        %v970 = vadd.s32 %v946, %v965
        %vm971 = vc.u32 %v946, %v965
        %v972 = vadd.s32 %v968, 1
        %v973 = vsel %vm971, %v972, %v968
        %v974 = vadd.s32 %v969, %v973
        %v975 = vadd.s32 %v974, 536870912
        %v976 = vshrl.u32 %v975, 30
        %v977 = vshll.u32 %v976, 30
        %v978 = vsub.s32 %v974, %v977
        %vm979 = vcmp.lt.s32.totalorder %v978, 0
        %v980 = vsub.s32 0, %v978
        %v981 = vsel %vm979, %v980, %v978
        %v982 = vclz %v981
        %v983 = vsub.s32 %v982, 2
        %vm984 = vcmp.gt.s32.totalorder 0, %v983
        %v985 = vsel %vm984, 0, %v983
        %v986 = vsub.s32 32, %v985
        %v987 = vshll.u32 %v978, %v985
        %v988 = vshrl.u32 %v970, %v986
        %v989 = vor.u32 %v987, %v988
        %v990 = vsub.s32 4294967266, %v985
        %v991 = vadd.s32 %v990, 127
        %v992 = vshll.u32 %v991, 23
        %v993 = vor.u32 4788187, %v992
        %v994 = vand.u32 2147483647, %v993
        %v996 = vcvt.s32.f32 %v989
        %v997 = vmul.f32 %v996, %v994
        %v998 = vxor.u32 %v997, 2147483648
        %v999 = vsel %vm878, %v998, %v997
        %v1000 = vsub.s32 4, %v976
        %v1001 = vsel %vm878, %v1000, %v976
        %v1002 = vsel %vm877, %v401, %v999
        %v1003 = vsel %vm877, 0, %v1001
        %v1004 = vmul.f32 %v1002, %v1002
        %v1005 = vmul.f32 %v1004, -0.001358992
        %v1006 = vadd.f32 %v1005, 0.041655596
        %v1007 = vmul.f32 %v1004, %v1006
        %v1008 = vadd.f32 %v1007, -0.4999988
        %v1009 = vmul.f32 %v1004, %v1008
        %v1010 = vadd.f32 1.0, %v1009
        %v1011 = vmul.f32 %v1002, %v1002
        %v1012 = vmul.f32 %v1011, -0.00019511016
        %v1013 = vadd.f32 %v1012, 0.008332121
        %v1014 = vmul.f32 %v1011, %v1013
        %v1015 = vadd.f32 %v1014, -0.16666654
        %v1016 = vmul.f32 %v1011, %v1015
        %v1017 = vadd.f32 %v1016, 1.0
        %v1018 = vmul.f32 %v1017, %v1002
        %vm1019 = vweird.f32 %v401
        %v1020 = vand.u32 %v1003, 3
        %vm1021 = vcmp.lt.s32.totalorder %v1020, 2
        %vm1022 = vcmp.eq.s32.totalorder %v1020, 0
        %v1023 = vxor.u32 %v1018, 2147483648
        %v1024 = vsel %vm1022, %v1010, %v1023
        %vm1025 = vcmp.eq.s32.totalorder %v1020, 2
        %v1026 = vxor.u32 %v1010, 2147483648
        %v1027 = vsel %vm1025, %v1026, %v1018
        %v1028 = vsel %vm1021, %v1024, %v1027
        %v1029 = vsel %vm1019, nan, %v1028
        %v1030 = vand.u32 2147483647, %v402
        %vm1031 = vcmp.le.f32.partialorder %v1030, 0.7853982
        %vm1032 = vcmp.lt.s32.totalorder %v402, 0
        %v1033 = vand.u32 %v402, 2139095040
        %v1034 = vshrl.u32 %v1033, 23
        %v1035 = vsub.s32 %v1034, 127
        %v1036 = vand.u32 2147483647, %v402
        %v1037 = vand.u32 %v1036, 8388607
        %v1038 = vor.u32 %v1037, 8388608
        %v1039 = vsub.s32 0, %v1038
        %v1040 = vadd.s32 %v1035, 1
        %vm1041 = vcmp.gt.s32.totalorder %v1040, 0
        %v1042 = vsel %vm1041, %v1040, 0
        %v1043 = vshrl.u32 %v1042, 5
        %v1044 = vand.u32 %v1042, 31
        %v1045 = vsub.s32 32, %v1044
        %v1046 = vshrl.u32 683565275, %v1045
        %v1047 = vshll.u32 683565275, %v1044
        %v1048 = vshrl.u32 2475754826, %v1045
        %v1049 = vor.u32 %v1047, %v1048
        %v1050 = vshll.u32 2475754826, %v1044
        %v1051 = vshrl.u32 2131351028, %v1045
        %v1052 = vor.u32 %v1050, %v1051
        %v1053 = vshll.u32 2131351028, %v1044
        %v1054 = vshrl.u32 2102212464, %v1045
        %v1055 = vor.u32 %v1053, %v1054
        %v1056 = vshll.u32 2102212464, %v1044
        %v1057 = vshrl.u32 920167782, %v1045
        %v1058 = vor.u32 %v1056, %v1057
        %v1059 = vshll.u32 920167782, %v1044
        %v1060 = vshrl.u32 1326507024, %v1045
        %v1061 = vor.u32 %v1059, %v1060
        %vm1062 = vcmp.lt.s32.totalorder %v1043, 1
        %vm1063 = vcmp.lt.s32.totalorder %v1043, 2
        %vm1064 = vcmp.lt.s32.totalorder %v1043, 3
        %vm1065 = vcmp.lt.s32.totalorder %v1043, 4
        %v1066 = vsel %vm1062, %v1046, %v1049
        %v1067 = vsel %vm1065, %v1055, 2102212464
        %v1068 = vsel %vm1064, %v1052, %v1067
        %v1069 = vsel %vm1063, %v1066, %v1068
        %v1070 = vsel %vm1062, %v1049, %v1052
        %v1071 = vsel %vm1065, %v1058, 920167782
        %v1072 = vsel %vm1064, %v1055, %v1071
        %v1073 = vsel %vm1063, %v1070, %v1072
        %v1074 = vsel %vm1062, %v1052, %v1055
        %v1075 = vsel %vm1065, %v1061, 1326507024
        %v1076 = vsel %vm1064, %v1058, %v1075
        %v1077 = vsel %vm1063, %v1074, %v1076
        %v1078 = vshll.u32 %v1038, 8
        %v1079 = vand.u32 %v1078, 65535
        %v1080 = vshrl.u32 %v1078, 16
        %v1081 = vand.u32 %v1077, 65535
        %v1082 = vshrl.u32 %v1077, 16
        %v1083 = vmul.u32 %v1079, %v1081
        %v1084 = vmul.u32 %v1079, %v1082
        %v1085 = vmul.u32 %v1080, %v1081
        %v1086 = vmul.u32 %v1080, %v1082
        %v1087 = vshll.u32 %v1084, 16
        %v1088 = vshrl.u32 %v1084, 16
        %v1089 = vshll.u32 %v1085, 16
        %v1090 = vshrl.u32 %v1085, 16
        %vm1091 = vc.u32 %v1083, %v1087
        %v1092 = vsel %vm1091, 1, 0
        %v1093 = vadd.s32 %v1083, %v1087
        %v1094 = vadd.s32 %v1086, %v1092
        %vm1095 = vc.u32 %v1093, %v1089
        %v1096 = vsel %vm1095, 1, 0
        %v1097 = vadd.s32 %v1093, %v1089
        %v1098 = vadd.s32 %v1094, %v1096
        %v1099 = vadd.s32 %v1098, %v1088
        %v1100 = vadd.s32 %v1099, %v1090
        %v1101 = vand.u32 %v1078, 65535
        %v1102 = vshrl.u32 %v1078, 16
        %v1103 = vand.u32 %v1073, 65535
        %v1104 = vshrl.u32 %v1073, 16
        %v1105 = vmul.u32 %v1101, %v1103
        %v1106 = vmul.u32 %v1101, %v1104
        %v1107 = vmul.u32 %v1102, %v1103
        %v1108 = vmul.u32 %v1102, %v1104
        %v1109 = vshll.u32 %v1106, 16
        %v1110 = vshrl.u32 %v1106, 16
        %v1111 = vshll.u32 %v1107, 16
        %v1112 = vshrl.u32 %v1107, 16
        %vm1113 = vc.u32 %v1105, %v1109
        %v1114 = vsel %vm1113, 1, 0
        %v1115 = vadd.s32 %v1105, %v1109
        %v1116 = vadd.s32 %v1108, %v1114
        %vm1117 = vc.u32 %v1115, %v1111
        %v1118 = vsel %vm1117, 1, 0
        %v1119 = vadd.s32 %v1115, %v1111
        %v1120 = vadd.s32 %v1116, %v1118
        %v1121 = vadd.s32 %v1120, %v1110
        %v1122 = vadd.s32 %v1121, %v1112
        %v1123 = vmul.u32 %v1078, %v1069
        %v1124 = vadd.s32 %v1100, %v1119
        %vm1125 = vc.u32 %v1100, %v1119
        %v1126 = vadd.s32 %v1122, 1
        %v1127 = vsel %vm1125, %v1126, %v1122
        %v1128 = vadd.s32 %v1123, %v1127
        %v1129 = vadd.s32 %v1128, 536870912
        %v1130 = vshrl.u32 %v1129, 30
        %v1131 = vshll.u32 %v1130, 30
        %v1132 = vsub.s32 %v1128, %v1131
        %vm1133 = vcmp.lt.s32.totalorder %v1132, 0
        %v1134 = vsub.s32 0, %v1132
        %v1135 = vsel %vm1133, %v1134, %v1132
        %v1136 = vclz %v1135
        %v1137 = vsub.s32 %v1136, 2
        %vm1138 = vcmp.gt.s32.totalorder 0, %v1137
        %v1139 = vsel %vm1138, 0, %v1137
        %v1140 = vsub.s32 32, %v1139
        %v1141 = vshll.u32 %v1132, %v1139
        %v1142 = vshrl.u32 %v1124, %v1140
        %v1143 = vor.u32 %v1141, %v1142
        %v1144 = vsub.s32 4294967266, %v1139
        %v1145 = vadd.s32 %v1144, 127
        %v1146 = vshll.u32 %v1145, 23
        %v1147 = vor.u32 4788187, %v1146
        %v1148 = vand.u32 2147483647, %v1147
        %v1150 = vcvt.s32.f32 %v1143
        %v1151 = vmul.f32 %v1150, %v1148
        %v1152 = vxor.u32 %v1151, 2147483648
        %v1153 = vsel %vm1032, %v1152, %v1151
        %v1154 = vsub.s32 4, %v1130
        %v1155 = vsel %vm1032, %v1154, %v1130
        %v1156 = vsel %vm1031, %v402, %v1153
        %v1157 = vsel %vm1031, 0, %v1155
        %v1158 = vmul.f32 %v1156, %v1156
        %v1159 = vmul.f32 %v1158, -0.001358992
        %v1160 = vadd.f32 %v1159, 0.041655596
        %v1161 = vmul.f32 %v1158, %v1160
        %v1162 = vadd.f32 %v1161, -0.4999988
        %v1163 = vmul.f32 %v1158, %v1162
        %v1164 = vadd.f32 1.0, %v1163
        %v1165 = vmul.f32 %v1156, %v1156
        %v1166 = vmul.f32 %v1165, -0.00019511016
        %v1167 = vadd.f32 %v1166, 0.008332121
        %v1168 = vmul.f32 %v1165, %v1167
        %v1169 = vadd.f32 %v1168, -0.16666654
        %v1170 = vmul.f32 %v1165, %v1169
        %v1171 = vadd.f32 %v1170, 1.0
        %v1172 = vmul.f32 %v1171, %v1156
        %vm1173 = vweird.f32 %v402
        %v1174 = vand.u32 %v1157, 3
        %vm1175 = vcmp.lt.s32.totalorder %v1174, 2
        %vm1176 = vcmp.eq.s32.totalorder %v1174, 0
        %v1177 = vxor.u32 %v1172, 2147483648
        %v1178 = vsel %vm1176, %v1164, %v1177
        %vm1179 = vcmp.eq.s32.totalorder %v1174, 2
        %v1180 = vxor.u32 %v1164, 2147483648
        %v1181 = vsel %vm1179, %v1180, %v1172
        %v1182 = vsel %vm1175, %v1178, %v1181
        %v1183 = vsel %vm1173, nan, %v1182
        %v1184 = vand.u32 2147483647, %v403
        %vm1185 = vcmp.le.f32.partialorder %v1184, 0.7853982
        %vm1186 = vcmp.lt.s32.totalorder %v403, 0
        %v1187 = vand.u32 %v403, 2139095040
        %v1188 = vshrl.u32 %v1187, 23
        %v1189 = vsub.s32 %v1188, 127
        %v1190 = vand.u32 2147483647, %v403
        %v1191 = vand.u32 %v1190, 8388607
        %v1192 = vor.u32 %v1191, 8388608
        %v1193 = vsub.s32 0, %v1192
        %v1194 = vadd.s32 %v1189, 1
        %vm1195 = vcmp.gt.s32.totalorder %v1194, 0
        %v1196 = vsel %vm1195, %v1194, 0
        %v1197 = vshrl.u32 %v1196, 5
        %v1198 = vand.u32 %v1196, 31
        %v1199 = vsub.s32 32, %v1198
        %v1200 = vshrl.u32 683565275, %v1199
        %v1201 = vshll.u32 683565275, %v1198
        %v1202 = vshrl.u32 2475754826, %v1199
        %v1203 = vor.u32 %v1201, %v1202
        %v1204 = vshll.u32 2475754826, %v1198
        %v1205 = vshrl.u32 2131351028, %v1199
        %v1206 = vor.u32 %v1204, %v1205
        %v1207 = vshll.u32 2131351028, %v1198
        %v1208 = vshrl.u32 2102212464, %v1199
        %v1209 = vor.u32 %v1207, %v1208
        %v1210 = vshll.u32 2102212464, %v1198
        %v1211 = vshrl.u32 920167782, %v1199
        %v1212 = vor.u32 %v1210, %v1211
        %v1213 = vshll.u32 920167782, %v1198
        %v1214 = vshrl.u32 1326507024, %v1199
        %v1215 = vor.u32 %v1213, %v1214
        %vm1216 = vcmp.lt.s32.totalorder %v1197, 1
        %vm1217 = vcmp.lt.s32.totalorder %v1197, 2
        %vm1218 = vcmp.lt.s32.totalorder %v1197, 3
        %vm1219 = vcmp.lt.s32.totalorder %v1197, 4
        %v1220 = vsel %vm1216, %v1200, %v1203
        %v1221 = vsel %vm1219, %v1209, 2102212464
        %v1222 = vsel %vm1218, %v1206, %v1221
        %v1223 = vsel %vm1217, %v1220, %v1222
        %v1224 = vsel %vm1216, %v1203, %v1206
        %v1225 = vsel %vm1219, %v1212, 920167782
        %v1226 = vsel %vm1218, %v1209, %v1225
        %v1227 = vsel %vm1217, %v1224, %v1226
        %v1228 = vsel %vm1216, %v1206, %v1209
        %v1229 = vsel %vm1219, %v1215, 1326507024
        %v1230 = vsel %vm1218, %v1212, %v1229
        %v1231 = vsel %vm1217, %v1228, %v1230
        %v1232 = vshll.u32 %v1192, 8
        %v1233 = vand.u32 %v1232, 65535
        %v1234 = vshrl.u32 %v1232, 16
        %v1235 = vand.u32 %v1231, 65535
        %v1236 = vshrl.u32 %v1231, 16
        %v1237 = vmul.u32 %v1233, %v1235
        %v1238 = vmul.u32 %v1233, %v1236
        %v1239 = vmul.u32 %v1234, %v1235
        %v1240 = vmul.u32 %v1234, %v1236
        %v1241 = vshll.u32 %v1238, 16
        %v1242 = vshrl.u32 %v1238, 16
        %v1243 = vshll.u32 %v1239, 16
        %v1244 = vshrl.u32 %v1239, 16
        %vm1245 = vc.u32 %v1237, %v1241
        %v1246 = vsel %vm1245, 1, 0
        %v1247 = vadd.s32 %v1237, %v1241
        %v1248 = vadd.s32 %v1240, %v1246
        %vm1249 = vc.u32 %v1247, %v1243
        %v1250 = vsel %vm1249, 1, 0
        %v1251 = vadd.s32 %v1247, %v1243
        %v1252 = vadd.s32 %v1248, %v1250
        %v1253 = vadd.s32 %v1252, %v1242
        %v1254 = vadd.s32 %v1253, %v1244
        %v1255 = vand.u32 %v1232, 65535
        %v1256 = vshrl.u32 %v1232, 16
        %v1257 = vand.u32 %v1227, 65535
        %v1258 = vshrl.u32 %v1227, 16
        %v1259 = vmul.u32 %v1255, %v1257
        %v1260 = vmul.u32 %v1255, %v1258
        %v1261 = vmul.u32 %v1256, %v1257
        %v1262 = vmul.u32 %v1256, %v1258
        %v1263 = vshll.u32 %v1260, 16
        %v1264 = vshrl.u32 %v1260, 16
        %v1265 = vshll.u32 %v1261, 16
        %v1266 = vshrl.u32 %v1261, 16
        %vm1267 = vc.u32 %v1259, %v1263
        %v1268 = vsel %vm1267, 1, 0
        %v1269 = vadd.s32 %v1259, %v1263
        %v1270 = vadd.s32 %v1262, %v1268
        %vm1271 = vc.u32 %v1269, %v1265
        %v1272 = vsel %vm1271, 1, 0
        %v1273 = vadd.s32 %v1269, %v1265
        %v1274 = vadd.s32 %v1270, %v1272
        %v1275 = vadd.s32 %v1274, %v1264
        %v1276 = vadd.s32 %v1275, %v1266
        %v1277 = vmul.u32 %v1232, %v1223
        %v1278 = vadd.s32 %v1254, %v1273
        %vm1279 = vc.u32 %v1254, %v1273
        %v1280 = vadd.s32 %v1276, 1
        %v1281 = vsel %vm1279, %v1280, %v1276
        %v1282 = vadd.s32 %v1277, %v1281
        %v1283 = vadd.s32 %v1282, 536870912
        %v1284 = vshrl.u32 %v1283, 30
        %v1285 = vshll.u32 %v1284, 30
        %v1286 = vsub.s32 %v1282, %v1285
        %vm1287 = vcmp.lt.s32.totalorder %v1286, 0
        %v1288 = vsub.s32 0, %v1286
        %v1289 = vsel %vm1287, %v1288, %v1286
        %v1290 = vclz %v1289
        %v1291 = vsub.s32 %v1290, 2
        %vm1292 = vcmp.gt.s32.totalorder 0, %v1291
        %v1293 = vsel %vm1292, 0, %v1291
        %v1294 = vsub.s32 32, %v1293
        %v1295 = vshll.u32 %v1286, %v1293
        %v1296 = vshrl.u32 %v1278, %v1294
        %v1297 = vor.u32 %v1295, %v1296
        %v1298 = vsub.s32 4294967266, %v1293
        %v1299 = vadd.s32 %v1298, 127
        %v1300 = vshll.u32 %v1299, 23
        %v1301 = vor.u32 4788187, %v1300
        %v1302 = vand.u32 2147483647, %v1301
        %v1304 = vcvt.s32.f32 %v1297
        %v1305 = vmul.f32 %v1304, %v1302
        %v1306 = vxor.u32 %v1305, 2147483648
        %v1307 = vsel %vm1186, %v1306, %v1305
        %v1308 = vsub.s32 4, %v1284
        %v1309 = vsel %vm1186, %v1308, %v1284
        %v1310 = vsel %vm1185, %v403, %v1307
        %v1311 = vsel %vm1185, 0, %v1309
        %v1312 = vmul.f32 %v1310, %v1310
        %v1313 = vmul.f32 %v1312, -0.001358992
        %v1314 = vadd.f32 %v1313, 0.041655596
        %v1315 = vmul.f32 %v1312, %v1314
        %v1316 = vadd.f32 %v1315, -0.4999988
        %v1317 = vmul.f32 %v1312, %v1316
        %v1318 = vadd.f32 1.0, %v1317
        %v1319 = vmul.f32 %v1310, %v1310
        %v1320 = vmul.f32 %v1319, -0.00019511016
        %v1321 = vadd.f32 %v1320, 0.008332121
        %v1322 = vmul.f32 %v1319, %v1321
        %v1323 = vadd.f32 %v1322, -0.16666654
        %v1324 = vmul.f32 %v1319, %v1323
        %v1325 = vadd.f32 %v1324, 1.0
        %v1326 = vmul.f32 %v1325, %v1310
        %vm1327 = vweird.f32 %v403
        %v1328 = vand.u32 %v1311, 3
        %vm1329 = vcmp.lt.s32.totalorder %v1328, 2
        %vm1330 = vcmp.eq.s32.totalorder %v1328, 0
        %v1331 = vxor.u32 %v1326, 2147483648
        %v1332 = vsel %vm1330, %v1318, %v1331
        %vm1333 = vcmp.eq.s32.totalorder %v1328, 2
        %v1334 = vxor.u32 %v1318, 2147483648
        %v1335 = vsel %vm1333, %v1334, %v1326
        %v1336 = vsel %vm1329, %v1332, %v1335
        %v1337 = vsel %vm1327, nan, %v1336
        %v1338 = vand.u32 2147483647, %v404
        %vm1339 = vcmp.le.f32.partialorder %v1338, 0.7853982
        %vm1340 = vcmp.lt.s32.totalorder %v404, 0
        %v1341 = vand.u32 %v404, 2139095040
        %v1342 = vshrl.u32 %v1341, 23
        %v1343 = vsub.s32 %v1342, 127
        %v1344 = vand.u32 2147483647, %v404
        %v1345 = vand.u32 %v1344, 8388607
        %v1346 = vor.u32 %v1345, 8388608
        %v1347 = vsub.s32 0, %v1346
        %v1348 = vadd.s32 %v1343, 1
        %vm1349 = vcmp.gt.s32.totalorder %v1348, 0
        %v1350 = vsel %vm1349, %v1348, 0
        %v1351 = vshrl.u32 %v1350, 5
        %v1352 = vand.u32 %v1350, 31
        %v1353 = vsub.s32 32, %v1352
        %v1354 = vshrl.u32 683565275, %v1353
        %v1355 = vshll.u32 683565275, %v1352
        %v1356 = vshrl.u32 2475754826, %v1353
        %v1357 = vor.u32 %v1355, %v1356
        %v1358 = vshll.u32 2475754826, %v1352
        %v1359 = vshrl.u32 2131351028, %v1353
        %v1360 = vor.u32 %v1358, %v1359
        %v1361 = vshll.u32 2131351028, %v1352
        %v1362 = vshrl.u32 2102212464, %v1353
        %v1363 = vor.u32 %v1361, %v1362
        %v1364 = vshll.u32 2102212464, %v1352
        %v1365 = vshrl.u32 920167782, %v1353
        %v1366 = vor.u32 %v1364, %v1365
        %v1367 = vshll.u32 920167782, %v1352
        %v1368 = vshrl.u32 1326507024, %v1353
        %v1369 = vor.u32 %v1367, %v1368
        %vm1370 = vcmp.lt.s32.totalorder %v1351, 1
        %vm1371 = vcmp.lt.s32.totalorder %v1351, 2
        %vm1372 = vcmp.lt.s32.totalorder %v1351, 3
        %vm1373 = vcmp.lt.s32.totalorder %v1351, 4
        %v1374 = vsel %vm1370, %v1354, %v1357
        %v1375 = vsel %vm1373, %v1363, 2102212464
        %v1376 = vsel %vm1372, %v1360, %v1375
        %v1377 = vsel %vm1371, %v1374, %v1376
        %v1378 = vsel %vm1370, %v1357, %v1360
        %v1379 = vsel %vm1373, %v1366, 920167782
        %v1380 = vsel %vm1372, %v1363, %v1379
        %v1381 = vsel %vm1371, %v1378, %v1380
        %v1382 = vsel %vm1370, %v1360, %v1363
        %v1383 = vsel %vm1373, %v1369, 1326507024
        %v1384 = vsel %vm1372, %v1366, %v1383
        %v1385 = vsel %vm1371, %v1382, %v1384
        %v1386 = vshll.u32 %v1346, 8
        %v1387 = vand.u32 %v1386, 65535
        %v1388 = vshrl.u32 %v1386, 16
        %v1389 = vand.u32 %v1385, 65535
        %v1390 = vshrl.u32 %v1385, 16
        %v1391 = vmul.u32 %v1387, %v1389
        %v1392 = vmul.u32 %v1387, %v1390
        %v1393 = vmul.u32 %v1388, %v1389
        %v1394 = vmul.u32 %v1388, %v1390
        %v1395 = vshll.u32 %v1392, 16
        %v1396 = vshrl.u32 %v1392, 16
        %v1397 = vshll.u32 %v1393, 16
        %v1398 = vshrl.u32 %v1393, 16
        %vm1399 = vc.u32 %v1391, %v1395
        %v1400 = vsel %vm1399, 1, 0
        %v1401 = vadd.s32 %v1391, %v1395
        %v1402 = vadd.s32 %v1394, %v1400
        %vm1403 = vc.u32 %v1401, %v1397
        %v1404 = vsel %vm1403, 1, 0
        %v1405 = vadd.s32 %v1401, %v1397
        %v1406 = vadd.s32 %v1402, %v1404
        %v1407 = vadd.s32 %v1406, %v1396
        %v1408 = vadd.s32 %v1407, %v1398
        %v1409 = vand.u32 %v1386, 65535
        %v1410 = vshrl.u32 %v1386, 16
        %v1411 = vand.u32 %v1381, 65535
        %v1412 = vshrl.u32 %v1381, 16
        %v1413 = vmul.u32 %v1409, %v1411
        %v1414 = vmul.u32 %v1409, %v1412
        %v1415 = vmul.u32 %v1410, %v1411
        %v1416 = vmul.u32 %v1410, %v1412
        %v1417 = vshll.u32 %v1414, 16
        %v1418 = vshrl.u32 %v1414, 16
        %v1419 = vshll.u32 %v1415, 16
        %v1420 = vshrl.u32 %v1415, 16
        %vm1421 = vc.u32 %v1413, %v1417
        %v1422 = vsel %vm1421, 1, 0
        %v1423 = vadd.s32 %v1413, %v1417
        %v1424 = vadd.s32 %v1416, %v1422
        %vm1425 = vc.u32 %v1423, %v1419
        %v1426 = vsel %vm1425, 1, 0
        %v1427 = vadd.s32 %v1423, %v1419
        %v1428 = vadd.s32 %v1424, %v1426
        %v1429 = vadd.s32 %v1428, %v1418
        %v1430 = vadd.s32 %v1429, %v1420
        %v1431 = vmul.u32 %v1386, %v1377
        %v1432 = vadd.s32 %v1408, %v1427
        %vm1433 = vc.u32 %v1408, %v1427
        %v1434 = vadd.s32 %v1430, 1
        %v1435 = vsel %vm1433, %v1434, %v1430
        %v1436 = vadd.s32 %v1431, %v1435
        %v1437 = vadd.s32 %v1436, 536870912
        %v1438 = vshrl.u32 %v1437, 30
        %v1439 = vshll.u32 %v1438, 30
        %v1440 = vsub.s32 %v1436, %v1439
        %vm1441 = vcmp.lt.s32.totalorder %v1440, 0
        %v1442 = vsub.s32 0, %v1440
        %v1443 = vsel %vm1441, %v1442, %v1440
        %v1444 = vclz %v1443
        %v1445 = vsub.s32 %v1444, 2
        %vm1446 = vcmp.gt.s32.totalorder 0, %v1445
        %v1447 = vsel %vm1446, 0, %v1445
        %v1448 = vsub.s32 32, %v1447
        %v1449 = vshll.u32 %v1440, %v1447
        %v1450 = vshrl.u32 %v1432, %v1448
        %v1451 = vor.u32 %v1449, %v1450
        %v1452 = vsub.s32 4294967266, %v1447
        %v1453 = vadd.s32 %v1452, 127
        %v1454 = vshll.u32 %v1453, 23
        %v1455 = vor.u32 4788187, %v1454
        %v1456 = vand.u32 2147483647, %v1455
        %v1458 = vcvt.s32.f32 %v1451
        %v1459 = vmul.f32 %v1458, %v1456
        %v1460 = vxor.u32 %v1459, 2147483648
        %v1461 = vsel %vm1340, %v1460, %v1459
        %v1462 = vsub.s32 4, %v1438
        %v1463 = vsel %vm1340, %v1462, %v1438
        %v1464 = vsel %vm1339, %v404, %v1461
        %v1465 = vsel %vm1339, 0, %v1463
        %v1466 = vmul.f32 %v1464, %v1464
        %v1467 = vmul.f32 %v1466, -0.001358992
        %v1468 = vadd.f32 %v1467, 0.041655596
        %v1469 = vmul.f32 %v1466, %v1468
        %v1470 = vadd.f32 %v1469, -0.4999988
        %v1471 = vmul.f32 %v1466, %v1470
        %v1472 = vadd.f32 1.0, %v1471
        %v1473 = vmul.f32 %v1464, %v1464
        %v1474 = vmul.f32 %v1473, -0.00019511016
        %v1475 = vadd.f32 %v1474, 0.008332121
        %v1476 = vmul.f32 %v1473, %v1475
        %v1477 = vadd.f32 %v1476, -0.16666654
        %v1478 = vmul.f32 %v1473, %v1477
        %v1479 = vadd.f32 %v1478, 1.0
        %v1480 = vmul.f32 %v1479, %v1464
        %vm1481 = vweird.f32 %v404
        %v1482 = vand.u32 %v1465, 3
        %vm1483 = vcmp.lt.s32.totalorder %v1482, 2
        %vm1484 = vcmp.eq.s32.totalorder %v1482, 0
        %v1485 = vxor.u32 %v1480, 2147483648
        %v1486 = vsel %vm1484, %v1472, %v1485
        %vm1487 = vcmp.eq.s32.totalorder %v1482, 2
        %v1488 = vxor.u32 %v1472, 2147483648
        %v1489 = vsel %vm1487, %v1488, %v1480
        %v1490 = vsel %vm1483, %v1486, %v1489
        %v1491 = vsel %vm1481, nan, %v1490
        %v1492 = vand.u32 2147483647, %v405
        %vm1493 = vcmp.le.f32.partialorder %v1492, 0.7853982
        %vm1494 = vcmp.lt.s32.totalorder %v405, 0
        %v1495 = vand.u32 %v405, 2139095040
        %v1496 = vshrl.u32 %v1495, 23
        %v1497 = vsub.s32 %v1496, 127
        %v1498 = vand.u32 2147483647, %v405
        %v1499 = vand.u32 %v1498, 8388607
        %v1500 = vor.u32 %v1499, 8388608
        %v1501 = vsub.s32 0, %v1500
        %v1502 = vadd.s32 %v1497, 1
        %vm1503 = vcmp.gt.s32.totalorder %v1502, 0
        %v1504 = vsel %vm1503, %v1502, 0
        %v1505 = vshrl.u32 %v1504, 5
        %v1506 = vand.u32 %v1504, 31
        %v1507 = vsub.s32 32, %v1506
        %v1508 = vshrl.u32 683565275, %v1507
        %v1509 = vshll.u32 683565275, %v1506
        %v1510 = vshrl.u32 2475754826, %v1507
        %v1511 = vor.u32 %v1509, %v1510
        %v1512 = vshll.u32 2475754826, %v1506
        %v1513 = vshrl.u32 2131351028, %v1507
        %v1514 = vor.u32 %v1512, %v1513
        %v1515 = vshll.u32 2131351028, %v1506
        %v1516 = vshrl.u32 2102212464, %v1507
        %v1517 = vor.u32 %v1515, %v1516
        %v1518 = vshll.u32 2102212464, %v1506
        %v1519 = vshrl.u32 920167782, %v1507
        %v1520 = vor.u32 %v1518, %v1519
        %v1521 = vshll.u32 920167782, %v1506
        %v1522 = vshrl.u32 1326507024, %v1507
        %v1523 = vor.u32 %v1521, %v1522
        %vm1524 = vcmp.lt.s32.totalorder %v1505, 1
        %vm1525 = vcmp.lt.s32.totalorder %v1505, 2
        %vm1526 = vcmp.lt.s32.totalorder %v1505, 3
        %vm1527 = vcmp.lt.s32.totalorder %v1505, 4
        %v1528 = vsel %vm1524, %v1508, %v1511
        %v1529 = vsel %vm1527, %v1517, 2102212464
        %v1530 = vsel %vm1526, %v1514, %v1529
        %v1531 = vsel %vm1525, %v1528, %v1530
        %v1532 = vsel %vm1524, %v1511, %v1514
        %v1533 = vsel %vm1527, %v1520, 920167782
        %v1534 = vsel %vm1526, %v1517, %v1533
        %v1535 = vsel %vm1525, %v1532, %v1534
        %v1536 = vsel %vm1524, %v1514, %v1517
        %v1537 = vsel %vm1527, %v1523, 1326507024
        %v1538 = vsel %vm1526, %v1520, %v1537
        %v1539 = vsel %vm1525, %v1536, %v1538
        %v1540 = vshll.u32 %v1500, 8
        %v1541 = vand.u32 %v1540, 65535
        %v1542 = vshrl.u32 %v1540, 16
        %v1543 = vand.u32 %v1539, 65535
        %v1544 = vshrl.u32 %v1539, 16
        %v1545 = vmul.u32 %v1541, %v1543
        %v1546 = vmul.u32 %v1541, %v1544
        %v1547 = vmul.u32 %v1542, %v1543
        %v1548 = vmul.u32 %v1542, %v1544
        %v1549 = vshll.u32 %v1546, 16
        %v1550 = vshrl.u32 %v1546, 16
        %v1551 = vshll.u32 %v1547, 16
        %v1552 = vshrl.u32 %v1547, 16
        %vm1553 = vc.u32 %v1545, %v1549
        %v1554 = vsel %vm1553, 1, 0
        %v1555 = vadd.s32 %v1545, %v1549
        %v1556 = vadd.s32 %v1548, %v1554
        %vm1557 = vc.u32 %v1555, %v1551
        %v1558 = vsel %vm1557, 1, 0
        %v1559 = vadd.s32 %v1555, %v1551
        %v1560 = vadd.s32 %v1556, %v1558
        %v1561 = vadd.s32 %v1560, %v1550
        %v1562 = vadd.s32 %v1561, %v1552
        %v1563 = vand.u32 %v1540, 65535
        %v1564 = vshrl.u32 %v1540, 16
        %v1565 = vand.u32 %v1535, 65535
        %v1566 = vshrl.u32 %v1535, 16
        %v1567 = vmul.u32 %v1563, %v1565
        %v1568 = vmul.u32 %v1563, %v1566
        %v1569 = vmul.u32 %v1564, %v1565
        %v1570 = vmul.u32 %v1564, %v1566
        %v1571 = vshll.u32 %v1568, 16
        %v1572 = vshrl.u32 %v1568, 16
        %v1573 = vshll.u32 %v1569, 16
        %v1574 = vshrl.u32 %v1569, 16
        %vm1575 = vc.u32 %v1567, %v1571
        %v1576 = vsel %vm1575, 1, 0
        %v1577 = vadd.s32 %v1567, %v1571
        %v1578 = vadd.s32 %v1570, %v1576
        %vm1579 = vc.u32 %v1577, %v1573
        %v1580 = vsel %vm1579, 1, 0
        %v1581 = vadd.s32 %v1577, %v1573
        %v1582 = vadd.s32 %v1578, %v1580
        %v1583 = vadd.s32 %v1582, %v1572
        %v1584 = vadd.s32 %v1583, %v1574
        %v1585 = vmul.u32 %v1540, %v1531
        %v1586 = vadd.s32 %v1562, %v1581
        %vm1587 = vc.u32 %v1562, %v1581
        %v1588 = vadd.s32 %v1584, 1
        %v1589 = vsel %vm1587, %v1588, %v1584
        %v1590 = vadd.s32 %v1585, %v1589
        %v1591 = vadd.s32 %v1590, 536870912
        %v1592 = vshrl.u32 %v1591, 30
        %v1593 = vshll.u32 %v1592, 30
        %v1594 = vsub.s32 %v1590, %v1593
        %vm1595 = vcmp.lt.s32.totalorder %v1594, 0
        %v1596 = vsub.s32 0, %v1594
        %v1597 = vsel %vm1595, %v1596, %v1594
        %v1598 = vclz %v1597
        %v1599 = vsub.s32 %v1598, 2
        %vm1600 = vcmp.gt.s32.totalorder 0, %v1599
        %v1601 = vsel %vm1600, 0, %v1599
        %v1602 = vsub.s32 32, %v1601
        %v1603 = vshll.u32 %v1594, %v1601
        %v1604 = vshrl.u32 %v1586, %v1602
        %v1605 = vor.u32 %v1603, %v1604
        %v1606 = vsub.s32 4294967266, %v1601
        %v1607 = vadd.s32 %v1606, 127
        %v1608 = vshll.u32 %v1607, 23
        %v1609 = vor.u32 4788187, %v1608
        %v1610 = vand.u32 2147483647, %v1609
        %v1612 = vcvt.s32.f32 %v1605
        %v1613 = vmul.f32 %v1612, %v1610
        %v1614 = vxor.u32 %v1613, 2147483648
        %v1615 = vsel %vm1494, %v1614, %v1613
        %v1616 = vsub.s32 4, %v1592
        %v1617 = vsel %vm1494, %v1616, %v1592
        %v1618 = vsel %vm1493, %v405, %v1615
        %v1619 = vsel %vm1493, 0, %v1617
        %v1620 = vmul.f32 %v1618, %v1618
        %v1621 = vmul.f32 %v1620, -0.001358992
        %v1622 = vadd.f32 %v1621, 0.041655596
        %v1623 = vmul.f32 %v1620, %v1622
        %v1624 = vadd.f32 %v1623, -0.4999988
        %v1625 = vmul.f32 %v1620, %v1624
        %v1626 = vadd.f32 1.0, %v1625
        %v1627 = vmul.f32 %v1618, %v1618
        %v1628 = vmul.f32 %v1627, -0.00019511016
        %v1629 = vadd.f32 %v1628, 0.008332121
        %v1630 = vmul.f32 %v1627, %v1629
        %v1631 = vadd.f32 %v1630, -0.16666654
        %v1632 = vmul.f32 %v1627, %v1631
        %v1633 = vadd.f32 %v1632, 1.0
        %v1634 = vmul.f32 %v1633, %v1618
        %vm1635 = vweird.f32 %v405
        %v1636 = vand.u32 %v1619, 3
        %vm1637 = vcmp.lt.s32.totalorder %v1636, 2
        %vm1638 = vcmp.eq.s32.totalorder %v1636, 0
        %v1639 = vxor.u32 %v1634, 2147483648
        %v1640 = vsel %vm1638, %v1626, %v1639
        %vm1641 = vcmp.eq.s32.totalorder %v1636, 2
        %v1642 = vxor.u32 %v1626, 2147483648
        %v1643 = vsel %vm1641, %v1642, %v1634
        %v1644 = vsel %vm1637, %v1640, %v1643
        %v1645 = vsel %vm1635, nan, %v1644
        %v1646 = vand.u32 2147483647, %v406
        %vm1647 = vcmp.le.f32.partialorder %v1646, 0.7853982
        %vm1648 = vcmp.lt.s32.totalorder %v406, 0
        %v1649 = vand.u32 %v406, 2139095040
        %v1650 = vshrl.u32 %v1649, 23
        %v1651 = vsub.s32 %v1650, 127
        %v1652 = vand.u32 2147483647, %v406
        %v1653 = vand.u32 %v1652, 8388607
        %v1654 = vor.u32 %v1653, 8388608
        %v1655 = vsub.s32 0, %v1654
        %v1656 = vadd.s32 %v1651, 1
        %vm1657 = vcmp.gt.s32.totalorder %v1656, 0
        %v1658 = vsel %vm1657, %v1656, 0
        %v1659 = vshrl.u32 %v1658, 5
        %v1660 = vand.u32 %v1658, 31
        %v1661 = vsub.s32 32, %v1660
        %v1662 = vshrl.u32 683565275, %v1661
        %v1663 = vshll.u32 683565275, %v1660
        %v1664 = vshrl.u32 2475754826, %v1661
        %v1665 = vor.u32 %v1663, %v1664
        %v1666 = vshll.u32 2475754826, %v1660
        %v1667 = vshrl.u32 2131351028, %v1661
        %v1668 = vor.u32 %v1666, %v1667
        %v1669 = vshll.u32 2131351028, %v1660
        %v1670 = vshrl.u32 2102212464, %v1661
        %v1671 = vor.u32 %v1669, %v1670
        %v1672 = vshll.u32 2102212464, %v1660
        %v1673 = vshrl.u32 920167782, %v1661
        %v1674 = vor.u32 %v1672, %v1673
        %v1675 = vshll.u32 920167782, %v1660
        %v1676 = vshrl.u32 1326507024, %v1661
        %v1677 = vor.u32 %v1675, %v1676
        %vm1678 = vcmp.lt.s32.totalorder %v1659, 1
        %vm1679 = vcmp.lt.s32.totalorder %v1659, 2
        %vm1680 = vcmp.lt.s32.totalorder %v1659, 3
        %vm1681 = vcmp.lt.s32.totalorder %v1659, 4
        %v1682 = vsel %vm1678, %v1662, %v1665
        %v1683 = vsel %vm1681, %v1671, 2102212464
        %v1684 = vsel %vm1680, %v1668, %v1683
        %v1685 = vsel %vm1679, %v1682, %v1684
        %v1686 = vsel %vm1678, %v1665, %v1668
        %v1687 = vsel %vm1681, %v1674, 920167782
        %v1688 = vsel %vm1680, %v1671, %v1687
        %v1689 = vsel %vm1679, %v1686, %v1688
        %v1690 = vsel %vm1678, %v1668, %v1671
        %v1691 = vsel %vm1681, %v1677, 1326507024
        %v1692 = vsel %vm1680, %v1674, %v1691
        %v1693 = vsel %vm1679, %v1690, %v1692
        %v1694 = vshll.u32 %v1654, 8
        %v1695 = vand.u32 %v1694, 65535
        %v1696 = vshrl.u32 %v1694, 16
        %v1697 = vand.u32 %v1693, 65535
        %v1698 = vshrl.u32 %v1693, 16
        %v1699 = vmul.u32 %v1695, %v1697
        %v1700 = vmul.u32 %v1695, %v1698
        %v1701 = vmul.u32 %v1696, %v1697
        %v1702 = vmul.u32 %v1696, %v1698
        %v1703 = vshll.u32 %v1700, 16
        %v1704 = vshrl.u32 %v1700, 16
        %v1705 = vshll.u32 %v1701, 16
        %v1706 = vshrl.u32 %v1701, 16
        %vm1707 = vc.u32 %v1699, %v1703
        %v1708 = vsel %vm1707, 1, 0
        %v1709 = vadd.s32 %v1699, %v1703
        %v1710 = vadd.s32 %v1702, %v1708
        %vm1711 = vc.u32 %v1709, %v1705
        %v1712 = vsel %vm1711, 1, 0
        %v1713 = vadd.s32 %v1709, %v1705
        %v1714 = vadd.s32 %v1710, %v1712
        %v1715 = vadd.s32 %v1714, %v1704
        %v1716 = vadd.s32 %v1715, %v1706
        %v1717 = vand.u32 %v1694, 65535
        %v1718 = vshrl.u32 %v1694, 16
        %v1719 = vand.u32 %v1689, 65535
        %v1720 = vshrl.u32 %v1689, 16
        %v1721 = vmul.u32 %v1717, %v1719
        %v1722 = vmul.u32 %v1717, %v1720
        %v1723 = vmul.u32 %v1718, %v1719
        %v1724 = vmul.u32 %v1718, %v1720
        %v1725 = vshll.u32 %v1722, 16
        %v1726 = vshrl.u32 %v1722, 16
        %v1727 = vshll.u32 %v1723, 16
        %v1728 = vshrl.u32 %v1723, 16
        %vm1729 = vc.u32 %v1721, %v1725
        %v1730 = vsel %vm1729, 1, 0
        %v1731 = vadd.s32 %v1721, %v1725
        %v1732 = vadd.s32 %v1724, %v1730
        %vm1733 = vc.u32 %v1731, %v1727
        %v1734 = vsel %vm1733, 1, 0
        %v1735 = vadd.s32 %v1731, %v1727
        %v1736 = vadd.s32 %v1732, %v1734
        %v1737 = vadd.s32 %v1736, %v1726
        %v1738 = vadd.s32 %v1737, %v1728
        %v1739 = vmul.u32 %v1694, %v1685
        %v1740 = vadd.s32 %v1716, %v1735
        %vm1741 = vc.u32 %v1716, %v1735
        %v1742 = vadd.s32 %v1738, 1
        %v1743 = vsel %vm1741, %v1742, %v1738
        %v1744 = vadd.s32 %v1739, %v1743
        %v1745 = vadd.s32 %v1744, 536870912
        %v1746 = vshrl.u32 %v1745, 30
        %v1747 = vshll.u32 %v1746, 30
        %v1748 = vsub.s32 %v1744, %v1747
        %vm1749 = vcmp.lt.s32.totalorder %v1748, 0
        %v1750 = vsub.s32 0, %v1748
        %v1751 = vsel %vm1749, %v1750, %v1748
        %v1752 = vclz %v1751
        %v1753 = vsub.s32 %v1752, 2
        %vm1754 = vcmp.gt.s32.totalorder 0, %v1753
        %v1755 = vsel %vm1754, 0, %v1753
        %v1756 = vsub.s32 32, %v1755
        %v1757 = vshll.u32 %v1748, %v1755
        %v1758 = vshrl.u32 %v1740, %v1756
        %v1759 = vor.u32 %v1757, %v1758
        %v1760 = vsub.s32 4294967266, %v1755
        %v1761 = vadd.s32 %v1760, 127
        %v1762 = vshll.u32 %v1761, 23
        %v1763 = vor.u32 4788187, %v1762
        %v1764 = vand.u32 2147483647, %v1763
        %v1766 = vcvt.s32.f32 %v1759
        %v1767 = vmul.f32 %v1766, %v1764
        %v1768 = vxor.u32 %v1767, 2147483648
        %v1769 = vsel %vm1648, %v1768, %v1767
        %v1770 = vsub.s32 4, %v1746
        %v1771 = vsel %vm1648, %v1770, %v1746
        %v1772 = vsel %vm1647, %v406, %v1769
        %v1773 = vsel %vm1647, 0, %v1771
        %v1774 = vmul.f32 %v1772, %v1772
        %v1775 = vmul.f32 %v1774, -0.001358992
        %v1776 = vadd.f32 %v1775, 0.041655596
        %v1777 = vmul.f32 %v1774, %v1776
        %v1778 = vadd.f32 %v1777, -0.4999988
        %v1779 = vmul.f32 %v1774, %v1778
        %v1780 = vadd.f32 1.0, %v1779
        %v1781 = vmul.f32 %v1772, %v1772
        %v1782 = vmul.f32 %v1781, -0.00019511016
        %v1783 = vadd.f32 %v1782, 0.008332121
        %v1784 = vmul.f32 %v1781, %v1783
        %v1785 = vadd.f32 %v1784, -0.16666654
        %v1786 = vmul.f32 %v1781, %v1785
        %v1787 = vadd.f32 %v1786, 1.0
        %v1788 = vmul.f32 %v1787, %v1772
        %vm1789 = vweird.f32 %v406
        %v1790 = vand.u32 %v1773, 3
        %vm1791 = vcmp.lt.s32.totalorder %v1790, 2
        %vm1792 = vcmp.eq.s32.totalorder %v1790, 0
        %v1793 = vxor.u32 %v1788, 2147483648
        %v1794 = vsel %vm1792, %v1780, %v1793
        %vm1795 = vcmp.eq.s32.totalorder %v1790, 2
        %v1796 = vxor.u32 %v1780, 2147483648
        %v1797 = vsel %vm1795, %v1796, %v1788
        %v1798 = vsel %vm1791, %v1794, %v1797
        %v1799 = vsel %vm1789, nan, %v1798
        %v1800 = vand.u32 2147483647, %v407
        %vm1801 = vcmp.le.f32.partialorder %v1800, 0.7853982
        %vm1802 = vcmp.lt.s32.totalorder %v407, 0
        %v1803 = vand.u32 %v407, 2139095040
        %v1804 = vshrl.u32 %v1803, 23
        %v1805 = vsub.s32 %v1804, 127
        %v1806 = vand.u32 2147483647, %v407
        %v1807 = vand.u32 %v1806, 8388607
        %v1808 = vor.u32 %v1807, 8388608
        %v1809 = vsub.s32 0, %v1808
        %v1810 = vadd.s32 %v1805, 1
        %vm1811 = vcmp.gt.s32.totalorder %v1810, 0
        %v1812 = vsel %vm1811, %v1810, 0
        %v1813 = vshrl.u32 %v1812, 5
        %v1814 = vand.u32 %v1812, 31
        %v1815 = vsub.s32 32, %v1814
        %v1816 = vshrl.u32 683565275, %v1815
        %v1817 = vshll.u32 683565275, %v1814
        %v1818 = vshrl.u32 2475754826, %v1815
        %v1819 = vor.u32 %v1817, %v1818
        %v1820 = vshll.u32 2475754826, %v1814
        %v1821 = vshrl.u32 2131351028, %v1815
        %v1822 = vor.u32 %v1820, %v1821
        %v1823 = vshll.u32 2131351028, %v1814
        %v1824 = vshrl.u32 2102212464, %v1815
        %v1825 = vor.u32 %v1823, %v1824
        %v1826 = vshll.u32 2102212464, %v1814
        %v1827 = vshrl.u32 920167782, %v1815
        %v1828 = vor.u32 %v1826, %v1827
        %v1829 = vshll.u32 920167782, %v1814
        %v1830 = vshrl.u32 1326507024, %v1815
        %v1831 = vor.u32 %v1829, %v1830
        %vm1832 = vcmp.lt.s32.totalorder %v1813, 1
        %vm1833 = vcmp.lt.s32.totalorder %v1813, 2
        %vm1834 = vcmp.lt.s32.totalorder %v1813, 3
        %vm1835 = vcmp.lt.s32.totalorder %v1813, 4
        %v1836 = vsel %vm1832, %v1816, %v1819
        %v1837 = vsel %vm1835, %v1825, 2102212464
        %v1838 = vsel %vm1834, %v1822, %v1837
        %v1839 = vsel %vm1833, %v1836, %v1838
        %v1840 = vsel %vm1832, %v1819, %v1822
        %v1841 = vsel %vm1835, %v1828, 920167782
        %v1842 = vsel %vm1834, %v1825, %v1841
        %v1843 = vsel %vm1833, %v1840, %v1842
        %v1844 = vsel %vm1832, %v1822, %v1825
        %v1845 = vsel %vm1835, %v1831, 1326507024
        %v1846 = vsel %vm1834, %v1828, %v1845
        %v1847 = vsel %vm1833, %v1844, %v1846
        %v1848 = vshll.u32 %v1808, 8
        %v1849 = vand.u32 %v1848, 65535
        %v1850 = vshrl.u32 %v1848, 16
        %v1851 = vand.u32 %v1847, 65535
        %v1852 = vshrl.u32 %v1847, 16
        %v1853 = vmul.u32 %v1849, %v1851
        %v1854 = vmul.u32 %v1849, %v1852
        %v1855 = vmul.u32 %v1850, %v1851
        %v1856 = vmul.u32 %v1850, %v1852
        %v1857 = vshll.u32 %v1854, 16
        %v1858 = vshrl.u32 %v1854, 16
        %v1859 = vshll.u32 %v1855, 16
        %v1860 = vshrl.u32 %v1855, 16
        %vm1861 = vc.u32 %v1853, %v1857
        %v1862 = vsel %vm1861, 1, 0
        %v1863 = vadd.s32 %v1853, %v1857
        %v1864 = vadd.s32 %v1856, %v1862
        %vm1865 = vc.u32 %v1863, %v1859
        %v1866 = vsel %vm1865, 1, 0
        %v1867 = vadd.s32 %v1863, %v1859
        %v1868 = vadd.s32 %v1864, %v1866
        %v1869 = vadd.s32 %v1868, %v1858
        %v1870 = vadd.s32 %v1869, %v1860
        %v1871 = vand.u32 %v1848, 65535
        %v1872 = vshrl.u32 %v1848, 16
        %v1873 = vand.u32 %v1843, 65535
        %v1874 = vshrl.u32 %v1843, 16
        %v1875 = vmul.u32 %v1871, %v1873
        %v1876 = vmul.u32 %v1871, %v1874
        %v1877 = vmul.u32 %v1872, %v1873
        %v1878 = vmul.u32 %v1872, %v1874
        %v1879 = vshll.u32 %v1876, 16
        %v1880 = vshrl.u32 %v1876, 16
        %v1881 = vshll.u32 %v1877, 16
        %v1882 = vshrl.u32 %v1877, 16
        %vm1883 = vc.u32 %v1875, %v1879
        %v1884 = vsel %vm1883, 1, 0
        %v1885 = vadd.s32 %v1875, %v1879
        %v1886 = vadd.s32 %v1878, %v1884
        %vm1887 = vc.u32 %v1885, %v1881
        %v1888 = vsel %vm1887, 1, 0
        %v1889 = vadd.s32 %v1885, %v1881
        %v1890 = vadd.s32 %v1886, %v1888
        %v1891 = vadd.s32 %v1890, %v1880
        %v1892 = vadd.s32 %v1891, %v1882
        %v1893 = vmul.u32 %v1848, %v1839
        %v1894 = vadd.s32 %v1870, %v1889
        %vm1895 = vc.u32 %v1870, %v1889
        %v1896 = vadd.s32 %v1892, 1
        %v1897 = vsel %vm1895, %v1896, %v1892
        %v1898 = vadd.s32 %v1893, %v1897
        %v1899 = vadd.s32 %v1898, 536870912
        %v1900 = vshrl.u32 %v1899, 30
        %v1901 = vshll.u32 %v1900, 30
        %v1902 = vsub.s32 %v1898, %v1901
        %vm1903 = vcmp.lt.s32.totalorder %v1902, 0
        %v1904 = vsub.s32 0, %v1902
        %v1905 = vsel %vm1903, %v1904, %v1902
        %v1906 = vclz %v1905
        %v1907 = vsub.s32 %v1906, 2
        %vm1908 = vcmp.gt.s32.totalorder 0, %v1907
        %v1909 = vsel %vm1908, 0, %v1907
        %v1910 = vsub.s32 32, %v1909
        %v1911 = vshll.u32 %v1902, %v1909
        %v1912 = vshrl.u32 %v1894, %v1910
        %v1913 = vor.u32 %v1911, %v1912
        %v1914 = vsub.s32 4294967266, %v1909
        %v1915 = vadd.s32 %v1914, 127
        %v1916 = vshll.u32 %v1915, 23
        %v1917 = vor.u32 4788187, %v1916
        %v1918 = vand.u32 2147483647, %v1917
        %v1920 = vcvt.s32.f32 %v1913
        %v1921 = vmul.f32 %v1920, %v1918
        %v1922 = vxor.u32 %v1921, 2147483648
        %v1923 = vsel %vm1802, %v1922, %v1921
        %v1924 = vsub.s32 4, %v1900
        %v1925 = vsel %vm1802, %v1924, %v1900
        %v1926 = vsel %vm1801, %v407, %v1923
        %v1927 = vsel %vm1801, 0, %v1925
        %v1928 = vmul.f32 %v1926, %v1926
        %v1929 = vmul.f32 %v1928, -0.001358992
        %v1930 = vadd.f32 %v1929, 0.041655596
        %v1931 = vmul.f32 %v1928, %v1930
        %v1932 = vadd.f32 %v1931, -0.4999988
        %v1933 = vmul.f32 %v1928, %v1932
        %v1934 = vadd.f32 1.0, %v1933
        %v1935 = vmul.f32 %v1926, %v1926
        %v1936 = vmul.f32 %v1935, -0.00019511016
        %v1937 = vadd.f32 %v1936, 0.008332121
        %v1938 = vmul.f32 %v1935, %v1937
        %v1939 = vadd.f32 %v1938, -0.16666654
        %v1940 = vmul.f32 %v1935, %v1939
        %v1941 = vadd.f32 %v1940, 1.0
        %v1942 = vmul.f32 %v1941, %v1926
        %vm1943 = vweird.f32 %v407
        %v1944 = vand.u32 %v1927, 3
        %vm1945 = vcmp.lt.s32.totalorder %v1944, 2
        %vm1946 = vcmp.eq.s32.totalorder %v1944, 0
        %v1947 = vxor.u32 %v1942, 2147483648
        %v1948 = vsel %vm1946, %v1934, %v1947
        %vm1949 = vcmp.eq.s32.totalorder %v1944, 2
        %v1950 = vxor.u32 %v1934, 2147483648
        %v1951 = vsel %vm1949, %v1950, %v1942
        %v1952 = vsel %vm1945, %v1948, %v1951
        %v1953 = vsel %vm1943, nan, %v1952
        %v1954 = vand.u32 2147483647, %v408
        %vm1955 = vcmp.le.f32.partialorder %v1954, 0.7853982
        %vm1956 = vcmp.lt.s32.totalorder %v408, 0
        %v1957 = vand.u32 %v408, 2139095040
        %v1958 = vshrl.u32 %v1957, 23
        %v1959 = vsub.s32 %v1958, 127
        %v1960 = vand.u32 2147483647, %v408
        %v1961 = vand.u32 %v1960, 8388607
        %v1962 = vor.u32 %v1961, 8388608
        %v1963 = vsub.s32 0, %v1962
        %v1964 = vadd.s32 %v1959, 1
        %vm1965 = vcmp.gt.s32.totalorder %v1964, 0
        %v1966 = vsel %vm1965, %v1964, 0
        %v1967 = vshrl.u32 %v1966, 5
        %v1968 = vand.u32 %v1966, 31
        %v1969 = vsub.s32 32, %v1968
        %v1970 = vshrl.u32 683565275, %v1969
        %v1971 = vshll.u32 683565275, %v1968
        %v1972 = vshrl.u32 2475754826, %v1969
        %v1973 = vor.u32 %v1971, %v1972
        %v1974 = vshll.u32 2475754826, %v1968
        %v1975 = vshrl.u32 2131351028, %v1969
        %v1976 = vor.u32 %v1974, %v1975
        %v1977 = vshll.u32 2131351028, %v1968
        %v1978 = vshrl.u32 2102212464, %v1969
        %v1979 = vor.u32 %v1977, %v1978
        %v1980 = vshll.u32 2102212464, %v1968
        %v1981 = vshrl.u32 920167782, %v1969
        %v1982 = vor.u32 %v1980, %v1981
        %v1983 = vshll.u32 920167782, %v1968
        %v1984 = vshrl.u32 1326507024, %v1969
        %v1985 = vor.u32 %v1983, %v1984
        %vm1986 = vcmp.lt.s32.totalorder %v1967, 1
        %vm1987 = vcmp.lt.s32.totalorder %v1967, 2
        %vm1988 = vcmp.lt.s32.totalorder %v1967, 3
        %vm1989 = vcmp.lt.s32.totalorder %v1967, 4
        %v1990 = vsel %vm1986, %v1970, %v1973
        %v1991 = vsel %vm1989, %v1979, 2102212464
        %v1992 = vsel %vm1988, %v1976, %v1991
        %v1993 = vsel %vm1987, %v1990, %v1992
        %v1994 = vsel %vm1986, %v1973, %v1976
        %v1995 = vsel %vm1989, %v1982, 920167782
        %v1996 = vsel %vm1988, %v1979, %v1995
        %v1997 = vsel %vm1987, %v1994, %v1996
        %v1998 = vsel %vm1986, %v1976, %v1979
        %v1999 = vsel %vm1989, %v1985, 1326507024
        %v2000 = vsel %vm1988, %v1982, %v1999
        %v2001 = vsel %vm1987, %v1998, %v2000
        %v2002 = vshll.u32 %v1962, 8
        %v2003 = vand.u32 %v2002, 65535
        %v2004 = vshrl.u32 %v2002, 16
        %v2005 = vand.u32 %v2001, 65535
        %v2006 = vshrl.u32 %v2001, 16
        %v2007 = vmul.u32 %v2003, %v2005
        %v2008 = vmul.u32 %v2003, %v2006
        %v2009 = vmul.u32 %v2004, %v2005
        %v2010 = vmul.u32 %v2004, %v2006
        %v2011 = vshll.u32 %v2008, 16
        %v2012 = vshrl.u32 %v2008, 16
        %v2013 = vshll.u32 %v2009, 16
        %v2014 = vshrl.u32 %v2009, 16
        %vm2015 = vc.u32 %v2007, %v2011
        %v2016 = vsel %vm2015, 1, 0
        %v2017 = vadd.s32 %v2007, %v2011
        %v2018 = vadd.s32 %v2010, %v2016
        %vm2019 = vc.u32 %v2017, %v2013
        %v2020 = vsel %vm2019, 1, 0
        %v2021 = vadd.s32 %v2017, %v2013
        %v2022 = vadd.s32 %v2018, %v2020
        %v2023 = vadd.s32 %v2022, %v2012
        %v2024 = vadd.s32 %v2023, %v2014
        %v2025 = vand.u32 %v2002, 65535
        %v2026 = vshrl.u32 %v2002, 16
        %v2027 = vand.u32 %v1997, 65535
        %v2028 = vshrl.u32 %v1997, 16
        %v2029 = vmul.u32 %v2025, %v2027
        %v2030 = vmul.u32 %v2025, %v2028
        %v2031 = vmul.u32 %v2026, %v2027
        %v2032 = vmul.u32 %v2026, %v2028
        %v2033 = vshll.u32 %v2030, 16
        %v2034 = vshrl.u32 %v2030, 16
        %v2035 = vshll.u32 %v2031, 16
        %v2036 = vshrl.u32 %v2031, 16
        %vm2037 = vc.u32 %v2029, %v2033
        %v2038 = vsel %vm2037, 1, 0
        %v2039 = vadd.s32 %v2029, %v2033
        %v2040 = vadd.s32 %v2032, %v2038
        %vm2041 = vc.u32 %v2039, %v2035
        %v2042 = vsel %vm2041, 1, 0
        %v2043 = vadd.s32 %v2039, %v2035
        %v2044 = vadd.s32 %v2040, %v2042
        %v2045 = vadd.s32 %v2044, %v2034
        %v2046 = vadd.s32 %v2045, %v2036
        %v2047 = vmul.u32 %v2002, %v1993
        %v2048 = vadd.s32 %v2024, %v2043
        %vm2049 = vc.u32 %v2024, %v2043
        %v2050 = vadd.s32 %v2046, 1
        %v2051 = vsel %vm2049, %v2050, %v2046
        %v2052 = vadd.s32 %v2047, %v2051
        %v2053 = vadd.s32 %v2052, 536870912
        %v2054 = vshrl.u32 %v2053, 30
        %v2055 = vshll.u32 %v2054, 30
        %v2056 = vsub.s32 %v2052, %v2055
        %vm2057 = vcmp.lt.s32.totalorder %v2056, 0
        %v2058 = vsub.s32 0, %v2056
        %v2059 = vsel %vm2057, %v2058, %v2056
        %v2060 = vclz %v2059
        %v2061 = vsub.s32 %v2060, 2
        %vm2062 = vcmp.gt.s32.totalorder 0, %v2061
        %v2063 = vsel %vm2062, 0, %v2061
        %v2064 = vsub.s32 32, %v2063
        %v2065 = vshll.u32 %v2056, %v2063
        %v2066 = vshrl.u32 %v2048, %v2064
        %v2067 = vor.u32 %v2065, %v2066
        %v2068 = vsub.s32 4294967266, %v2063
        %v2069 = vadd.s32 %v2068, 127
        %v2070 = vshll.u32 %v2069, 23
        %v2071 = vor.u32 4788187, %v2070
        %v2072 = vand.u32 2147483647, %v2071
        %v2074 = vcvt.s32.f32 %v2067
        %v2075 = vmul.f32 %v2074, %v2072
        %v2076 = vxor.u32 %v2075, 2147483648
        %v2077 = vsel %vm1956, %v2076, %v2075
        %v2078 = vsub.s32 4, %v2054
        %v2079 = vsel %vm1956, %v2078, %v2054
        %v2080 = vsel %vm1955, %v408, %v2077
        %v2081 = vsel %vm1955, 0, %v2079
        %v2082 = vmul.f32 %v2080, %v2080
        %v2083 = vmul.f32 %v2082, -0.001358992
        %v2084 = vadd.f32 %v2083, 0.041655596
        %v2085 = vmul.f32 %v2082, %v2084
        %v2086 = vadd.f32 %v2085, -0.4999988
        %v2087 = vmul.f32 %v2082, %v2086
        %v2088 = vadd.f32 1.0, %v2087
        %v2089 = vmul.f32 %v2080, %v2080
        %v2090 = vmul.f32 %v2089, -0.00019511016
        %v2091 = vadd.f32 %v2090, 0.008332121
        %v2092 = vmul.f32 %v2089, %v2091
        %v2093 = vadd.f32 %v2092, -0.16666654
        %v2094 = vmul.f32 %v2089, %v2093
        %v2095 = vadd.f32 %v2094, 1.0
        %v2096 = vmul.f32 %v2095, %v2080
        %vm2097 = vweird.f32 %v408
        %v2098 = vand.u32 %v2081, 3
        %vm2099 = vcmp.lt.s32.totalorder %v2098, 2
        %vm2100 = vcmp.eq.s32.totalorder %v2098, 0
        %v2101 = vxor.u32 %v2096, 2147483648
        %v2102 = vsel %vm2100, %v2088, %v2101
        %vm2103 = vcmp.eq.s32.totalorder %v2098, 2
        %v2104 = vxor.u32 %v2088, 2147483648
        %v2105 = vsel %vm2103, %v2104, %v2096
        %v2106 = vsel %vm2099, %v2102, %v2105
        %v2107 = vsel %vm2097, nan, %v2106
        %v2108 = vand.u32 2147483647, %v409
        %vm2109 = vcmp.le.f32.partialorder %v2108, 0.7853982
        %vm2110 = vcmp.lt.s32.totalorder %v409, 0
        %v2111 = vand.u32 %v409, 2139095040
        %v2112 = vshrl.u32 %v2111, 23
        %v2113 = vsub.s32 %v2112, 127
        %v2114 = vand.u32 2147483647, %v409
        %v2115 = vand.u32 %v2114, 8388607
        %v2116 = vor.u32 %v2115, 8388608
        %v2117 = vsub.s32 0, %v2116
        %v2118 = vadd.s32 %v2113, 1
        %vm2119 = vcmp.gt.s32.totalorder %v2118, 0
        %v2120 = vsel %vm2119, %v2118, 0
        %v2121 = vshrl.u32 %v2120, 5
        %v2122 = vand.u32 %v2120, 31
        %v2123 = vsub.s32 32, %v2122
        %v2124 = vshrl.u32 683565275, %v2123
        %v2125 = vshll.u32 683565275, %v2122
        %v2126 = vshrl.u32 2475754826, %v2123
        %v2127 = vor.u32 %v2125, %v2126
        %v2128 = vshll.u32 2475754826, %v2122
        %v2129 = vshrl.u32 2131351028, %v2123
        %v2130 = vor.u32 %v2128, %v2129
        %v2131 = vshll.u32 2131351028, %v2122
        %v2132 = vshrl.u32 2102212464, %v2123
        %v2133 = vor.u32 %v2131, %v2132
        %v2134 = vshll.u32 2102212464, %v2122
        %v2135 = vshrl.u32 920167782, %v2123
        %v2136 = vor.u32 %v2134, %v2135
        %v2137 = vshll.u32 920167782, %v2122
        %v2138 = vshrl.u32 1326507024, %v2123
        %v2139 = vor.u32 %v2137, %v2138
        %vm2140 = vcmp.lt.s32.totalorder %v2121, 1
        %vm2141 = vcmp.lt.s32.totalorder %v2121, 2
        %vm2142 = vcmp.lt.s32.totalorder %v2121, 3
        %vm2143 = vcmp.lt.s32.totalorder %v2121, 4
        %v2144 = vsel %vm2140, %v2124, %v2127
        %v2145 = vsel %vm2143, %v2133, 2102212464
        %v2146 = vsel %vm2142, %v2130, %v2145
        %v2147 = vsel %vm2141, %v2144, %v2146
        %v2148 = vsel %vm2140, %v2127, %v2130
        %v2149 = vsel %vm2143, %v2136, 920167782
        %v2150 = vsel %vm2142, %v2133, %v2149
        %v2151 = vsel %vm2141, %v2148, %v2150
        %v2152 = vsel %vm2140, %v2130, %v2133
        %v2153 = vsel %vm2143, %v2139, 1326507024
        %v2154 = vsel %vm2142, %v2136, %v2153
        %v2155 = vsel %vm2141, %v2152, %v2154
        %v2156 = vshll.u32 %v2116, 8
        %v2157 = vand.u32 %v2156, 65535
        %v2158 = vshrl.u32 %v2156, 16
        %v2159 = vand.u32 %v2155, 65535
        %v2160 = vshrl.u32 %v2155, 16
        %v2161 = vmul.u32 %v2157, %v2159
        %v2162 = vmul.u32 %v2157, %v2160
        %v2163 = vmul.u32 %v2158, %v2159
        %v2164 = vmul.u32 %v2158, %v2160
        %v2165 = vshll.u32 %v2162, 16
        %v2166 = vshrl.u32 %v2162, 16
        %v2167 = vshll.u32 %v2163, 16
        %v2168 = vshrl.u32 %v2163, 16
        %vm2169 = vc.u32 %v2161, %v2165
        %v2170 = vsel %vm2169, 1, 0
        %v2171 = vadd.s32 %v2161, %v2165
        %v2172 = vadd.s32 %v2164, %v2170
        %vm2173 = vc.u32 %v2171, %v2167
        %v2174 = vsel %vm2173, 1, 0
        %v2175 = vadd.s32 %v2171, %v2167
        %v2176 = vadd.s32 %v2172, %v2174
        %v2177 = vadd.s32 %v2176, %v2166
        %v2178 = vadd.s32 %v2177, %v2168
        %v2179 = vand.u32 %v2156, 65535
        %v2180 = vshrl.u32 %v2156, 16
        %v2181 = vand.u32 %v2151, 65535
        %v2182 = vshrl.u32 %v2151, 16
        %v2183 = vmul.u32 %v2179, %v2181
        %v2184 = vmul.u32 %v2179, %v2182
        %v2185 = vmul.u32 %v2180, %v2181
        %v2186 = vmul.u32 %v2180, %v2182
        %v2187 = vshll.u32 %v2184, 16
        %v2188 = vshrl.u32 %v2184, 16
        %v2189 = vshll.u32 %v2185, 16
        %v2190 = vshrl.u32 %v2185, 16
        %vm2191 = vc.u32 %v2183, %v2187
        %v2192 = vsel %vm2191, 1, 0
        %v2193 = vadd.s32 %v2183, %v2187
        %v2194 = vadd.s32 %v2186, %v2192
        %vm2195 = vc.u32 %v2193, %v2189
        %v2196 = vsel %vm2195, 1, 0
        %v2197 = vadd.s32 %v2193, %v2189
        %v2198 = vadd.s32 %v2194, %v2196
        %v2199 = vadd.s32 %v2198, %v2188
        %v2200 = vadd.s32 %v2199, %v2190
        %v2201 = vmul.u32 %v2156, %v2147
        %v2202 = vadd.s32 %v2178, %v2197
        %vm2203 = vc.u32 %v2178, %v2197
        %v2204 = vadd.s32 %v2200, 1
        %v2205 = vsel %vm2203, %v2204, %v2200
        %v2206 = vadd.s32 %v2201, %v2205
        %v2207 = vadd.s32 %v2206, 536870912
        %v2208 = vshrl.u32 %v2207, 30
        %v2209 = vshll.u32 %v2208, 30
        %v2210 = vsub.s32 %v2206, %v2209
        %vm2211 = vcmp.lt.s32.totalorder %v2210, 0
        %v2212 = vsub.s32 0, %v2210
        %v2213 = vsel %vm2211, %v2212, %v2210
        %v2214 = vclz %v2213
        %v2215 = vsub.s32 %v2214, 2
        %vm2216 = vcmp.gt.s32.totalorder 0, %v2215
        %v2217 = vsel %vm2216, 0, %v2215
        %v2218 = vsub.s32 32, %v2217
        %v2219 = vshll.u32 %v2210, %v2217
        %v2220 = vshrl.u32 %v2202, %v2218
        %v2221 = vor.u32 %v2219, %v2220
        %v2222 = vsub.s32 4294967266, %v2217
        %v2223 = vadd.s32 %v2222, 127
        %v2224 = vshll.u32 %v2223, 23
        %v2225 = vor.u32 4788187, %v2224
        %v2226 = vand.u32 2147483647, %v2225
        %v2228 = vcvt.s32.f32 %v2221
        %v2229 = vmul.f32 %v2228, %v2226
        %v2230 = vxor.u32 %v2229, 2147483648
        %v2231 = vsel %vm2110, %v2230, %v2229
        %v2232 = vsub.s32 4, %v2208
        %v2233 = vsel %vm2110, %v2232, %v2208
        %v2234 = vsel %vm2109, %v409, %v2231
        %v2235 = vsel %vm2109, 0, %v2233
        %v2236 = vmul.f32 %v2234, %v2234
        %v2237 = vmul.f32 %v2236, -0.001358992
        %v2238 = vadd.f32 %v2237, 0.041655596
        %v2239 = vmul.f32 %v2236, %v2238
        %v2240 = vadd.f32 %v2239, -0.4999988
        %v2241 = vmul.f32 %v2236, %v2240
        %v2242 = vadd.f32 1.0, %v2241
        %v2243 = vmul.f32 %v2234, %v2234
        %v2244 = vmul.f32 %v2243, -0.00019511016
        %v2245 = vadd.f32 %v2244, 0.008332121
        %v2246 = vmul.f32 %v2243, %v2245
        %v2247 = vadd.f32 %v2246, -0.16666654
        %v2248 = vmul.f32 %v2243, %v2247
        %v2249 = vadd.f32 %v2248, 1.0
        %v2250 = vmul.f32 %v2249, %v2234
        %vm2251 = vweird.f32 %v409
        %v2252 = vand.u32 %v2235, 3
        %vm2253 = vcmp.lt.s32.totalorder %v2252, 2
        %vm2254 = vcmp.eq.s32.totalorder %v2252, 0
        %v2255 = vxor.u32 %v2250, 2147483648
        %v2256 = vsel %vm2254, %v2242, %v2255
        %vm2257 = vcmp.eq.s32.totalorder %v2252, 2
        %v2258 = vxor.u32 %v2242, 2147483648
        %v2259 = vsel %vm2257, %v2258, %v2250
        %v2260 = vsel %vm2253, %v2256, %v2259
        %v2261 = vsel %vm2251, nan, %v2260
        %v2262 = vand.u32 2147483647, %v410
        %vm2263 = vcmp.le.f32.partialorder %v2262, 0.7853982
        %vm2264 = vcmp.lt.s32.totalorder %v410, 0
        %v2265 = vand.u32 %v410, 2139095040
        %v2266 = vshrl.u32 %v2265, 23
        %v2267 = vsub.s32 %v2266, 127
        %v2268 = vand.u32 2147483647, %v410
        %v2269 = vand.u32 %v2268, 8388607
        %v2270 = vor.u32 %v2269, 8388608
        %v2271 = vsub.s32 0, %v2270
        %v2272 = vadd.s32 %v2267, 1
        %vm2273 = vcmp.gt.s32.totalorder %v2272, 0
        %v2274 = vsel %vm2273, %v2272, 0
        %v2275 = vshrl.u32 %v2274, 5
        %v2276 = vand.u32 %v2274, 31
        %v2277 = vsub.s32 32, %v2276
        %v2278 = vshrl.u32 683565275, %v2277
        %v2279 = vshll.u32 683565275, %v2276
        %v2280 = vshrl.u32 2475754826, %v2277
        %v2281 = vor.u32 %v2279, %v2280
        %v2282 = vshll.u32 2475754826, %v2276
        %v2283 = vshrl.u32 2131351028, %v2277
        %v2284 = vor.u32 %v2282, %v2283
        %v2285 = vshll.u32 2131351028, %v2276
        %v2286 = vshrl.u32 2102212464, %v2277
        %v2287 = vor.u32 %v2285, %v2286
        %v2288 = vshll.u32 2102212464, %v2276
        %v2289 = vshrl.u32 920167782, %v2277
        %v2290 = vor.u32 %v2288, %v2289
        %v2291 = vshll.u32 920167782, %v2276
        %v2292 = vshrl.u32 1326507024, %v2277
        %v2293 = vor.u32 %v2291, %v2292
        %vm2294 = vcmp.lt.s32.totalorder %v2275, 1
        %vm2295 = vcmp.lt.s32.totalorder %v2275, 2
        %vm2296 = vcmp.lt.s32.totalorder %v2275, 3
        %vm2297 = vcmp.lt.s32.totalorder %v2275, 4
        %v2298 = vsel %vm2294, %v2278, %v2281
        %v2299 = vsel %vm2297, %v2287, 2102212464
        %v2300 = vsel %vm2296, %v2284, %v2299
        %v2301 = vsel %vm2295, %v2298, %v2300
        %v2302 = vsel %vm2294, %v2281, %v2284
        %v2303 = vsel %vm2297, %v2290, 920167782
        %v2304 = vsel %vm2296, %v2287, %v2303
        %v2305 = vsel %vm2295, %v2302, %v2304
        %v2306 = vsel %vm2294, %v2284, %v2287
        %v2307 = vsel %vm2297, %v2293, 1326507024
        %v2308 = vsel %vm2296, %v2290, %v2307
        %v2309 = vsel %vm2295, %v2306, %v2308
        %v2310 = vshll.u32 %v2270, 8
        %v2311 = vand.u32 %v2310, 65535
        %v2312 = vshrl.u32 %v2310, 16
        %v2313 = vand.u32 %v2309, 65535
        %v2314 = vshrl.u32 %v2309, 16
        %v2315 = vmul.u32 %v2311, %v2313
        %v2316 = vmul.u32 %v2311, %v2314
        %v2317 = vmul.u32 %v2312, %v2313
        %v2318 = vmul.u32 %v2312, %v2314
        %v2319 = vshll.u32 %v2316, 16
        %v2320 = vshrl.u32 %v2316, 16
        %v2321 = vshll.u32 %v2317, 16
        %v2322 = vshrl.u32 %v2317, 16
        %vm2323 = vc.u32 %v2315, %v2319
        %v2324 = vsel %vm2323, 1, 0
        %v2325 = vadd.s32 %v2315, %v2319
        %v2326 = vadd.s32 %v2318, %v2324
        %vm2327 = vc.u32 %v2325, %v2321
        %v2328 = vsel %vm2327, 1, 0
        %v2329 = vadd.s32 %v2325, %v2321
        %v2330 = vadd.s32 %v2326, %v2328
        %v2331 = vadd.s32 %v2330, %v2320
        %v2332 = vadd.s32 %v2331, %v2322
        %v2333 = vand.u32 %v2310, 65535
        %v2334 = vshrl.u32 %v2310, 16
        %v2335 = vand.u32 %v2305, 65535
        %v2336 = vshrl.u32 %v2305, 16
        %v2337 = vmul.u32 %v2333, %v2335
        %v2338 = vmul.u32 %v2333, %v2336
        %v2339 = vmul.u32 %v2334, %v2335
        %v2340 = vmul.u32 %v2334, %v2336
        %v2341 = vshll.u32 %v2338, 16
        %v2342 = vshrl.u32 %v2338, 16
        %v2343 = vshll.u32 %v2339, 16
        %v2344 = vshrl.u32 %v2339, 16
        %vm2345 = vc.u32 %v2337, %v2341
        %v2346 = vsel %vm2345, 1, 0
        %v2347 = vadd.s32 %v2337, %v2341
        %v2348 = vadd.s32 %v2340, %v2346
        %vm2349 = vc.u32 %v2347, %v2343
        %v2350 = vsel %vm2349, 1, 0
        %v2351 = vadd.s32 %v2347, %v2343
        %v2352 = vadd.s32 %v2348, %v2350
        %v2353 = vadd.s32 %v2352, %v2342
        %v2354 = vadd.s32 %v2353, %v2344
        %v2355 = vmul.u32 %v2310, %v2301
        %v2356 = vadd.s32 %v2332, %v2351
        %vm2357 = vc.u32 %v2332, %v2351
        %v2358 = vadd.s32 %v2354, 1
        %v2359 = vsel %vm2357, %v2358, %v2354
        %v2360 = vadd.s32 %v2355, %v2359
        %v2361 = vadd.s32 %v2360, 536870912
        %v2362 = vshrl.u32 %v2361, 30
        %v2363 = vshll.u32 %v2362, 30
        %v2364 = vsub.s32 %v2360, %v2363
        %vm2365 = vcmp.lt.s32.totalorder %v2364, 0
        %v2366 = vsub.s32 0, %v2364
        %v2367 = vsel %vm2365, %v2366, %v2364
        %v2368 = vclz %v2367
        %v2369 = vsub.s32 %v2368, 2
        %vm2370 = vcmp.gt.s32.totalorder 0, %v2369
        %v2371 = vsel %vm2370, 0, %v2369
        %v2372 = vsub.s32 32, %v2371
        %v2373 = vshll.u32 %v2364, %v2371
        %v2374 = vshrl.u32 %v2356, %v2372
        %v2375 = vor.u32 %v2373, %v2374
        %v2376 = vsub.s32 4294967266, %v2371
        %v2377 = vadd.s32 %v2376, 127
        %v2378 = vshll.u32 %v2377, 23
        %v2379 = vor.u32 4788187, %v2378
        %v2380 = vand.u32 2147483647, %v2379
        %v2382 = vcvt.s32.f32 %v2375
        %v2383 = vmul.f32 %v2382, %v2380
        %v2384 = vxor.u32 %v2383, 2147483648
        %v2385 = vsel %vm2264, %v2384, %v2383
        %v2386 = vsub.s32 4, %v2362
        %v2387 = vsel %vm2264, %v2386, %v2362
        %v2388 = vsel %vm2263, %v410, %v2385
        %v2389 = vsel %vm2263, 0, %v2387
        %v2390 = vmul.f32 %v2388, %v2388
        %v2391 = vmul.f32 %v2390, -0.001358992
        %v2392 = vadd.f32 %v2391, 0.041655596
        %v2393 = vmul.f32 %v2390, %v2392
        %v2394 = vadd.f32 %v2393, -0.4999988
        %v2395 = vmul.f32 %v2390, %v2394
        %v2396 = vadd.f32 1.0, %v2395
        %v2397 = vmul.f32 %v2388, %v2388
        %v2398 = vmul.f32 %v2397, -0.00019511016
        %v2399 = vadd.f32 %v2398, 0.008332121
        %v2400 = vmul.f32 %v2397, %v2399
        %v2401 = vadd.f32 %v2400, -0.16666654
        %v2402 = vmul.f32 %v2397, %v2401
        %v2403 = vadd.f32 %v2402, 1.0
        %v2404 = vmul.f32 %v2403, %v2388
        %vm2405 = vweird.f32 %v410
        %v2406 = vand.u32 %v2389, 3
        %vm2407 = vcmp.lt.s32.totalorder %v2406, 2
        %vm2408 = vcmp.eq.s32.totalorder %v2406, 0
        %v2409 = vxor.u32 %v2404, 2147483648
        %v2410 = vsel %vm2408, %v2396, %v2409
        %vm2411 = vcmp.eq.s32.totalorder %v2406, 2
        %v2412 = vxor.u32 %v2396, 2147483648
        %v2413 = vsel %vm2411, %v2412, %v2404
        %v2414 = vsel %vm2407, %v2410, %v2413
        %v2415 = vsel %vm2405, nan, %v2414
        %v2416 = vand.u32 2147483647, %v411
        %vm2417 = vcmp.le.f32.partialorder %v2416, 0.7853982
        %vm2418 = vcmp.lt.s32.totalorder %v411, 0
        %v2419 = vand.u32 %v411, 2139095040
        %v2420 = vshrl.u32 %v2419, 23
        %v2421 = vsub.s32 %v2420, 127
        %v2422 = vand.u32 2147483647, %v411
        %v2423 = vand.u32 %v2422, 8388607
        %v2424 = vor.u32 %v2423, 8388608
        %v2425 = vsub.s32 0, %v2424
        %v2426 = vadd.s32 %v2421, 1
        %vm2427 = vcmp.gt.s32.totalorder %v2426, 0
        %v2428 = vsel %vm2427, %v2426, 0
        %v2429 = vshrl.u32 %v2428, 5
        %v2430 = vand.u32 %v2428, 31
        %v2431 = vsub.s32 32, %v2430
        %v2432 = vshrl.u32 683565275, %v2431
        %v2433 = vshll.u32 683565275, %v2430
        %v2434 = vshrl.u32 2475754826, %v2431
        %v2435 = vor.u32 %v2433, %v2434
        %v2436 = vshll.u32 2475754826, %v2430
        %v2437 = vshrl.u32 2131351028, %v2431
        %v2438 = vor.u32 %v2436, %v2437
        %v2439 = vshll.u32 2131351028, %v2430
        %v2440 = vshrl.u32 2102212464, %v2431
        %v2441 = vor.u32 %v2439, %v2440
        %v2442 = vshll.u32 2102212464, %v2430
        %v2443 = vshrl.u32 920167782, %v2431
        %v2444 = vor.u32 %v2442, %v2443
        %v2445 = vshll.u32 920167782, %v2430
        %v2446 = vshrl.u32 1326507024, %v2431
        %v2447 = vor.u32 %v2445, %v2446
        %vm2448 = vcmp.lt.s32.totalorder %v2429, 1
        %vm2449 = vcmp.lt.s32.totalorder %v2429, 2
        %vm2450 = vcmp.lt.s32.totalorder %v2429, 3
        %vm2451 = vcmp.lt.s32.totalorder %v2429, 4
        %v2452 = vsel %vm2448, %v2432, %v2435
        %v2453 = vsel %vm2451, %v2441, 2102212464
        %v2454 = vsel %vm2450, %v2438, %v2453
        %v2455 = vsel %vm2449, %v2452, %v2454
        %v2456 = vsel %vm2448, %v2435, %v2438
        %v2457 = vsel %vm2451, %v2444, 920167782
        %v2458 = vsel %vm2450, %v2441, %v2457
        %v2459 = vsel %vm2449, %v2456, %v2458
        %v2460 = vsel %vm2448, %v2438, %v2441
        %v2461 = vsel %vm2451, %v2447, 1326507024
        %v2462 = vsel %vm2450, %v2444, %v2461
        %v2463 = vsel %vm2449, %v2460, %v2462
        %v2464 = vshll.u32 %v2424, 8
        %v2465 = vand.u32 %v2464, 65535
        %v2466 = vshrl.u32 %v2464, 16
        %v2467 = vand.u32 %v2463, 65535
        %v2468 = vshrl.u32 %v2463, 16
        %v2469 = vmul.u32 %v2465, %v2467
        %v2470 = vmul.u32 %v2465, %v2468
        %v2471 = vmul.u32 %v2466, %v2467
        %v2472 = vmul.u32 %v2466, %v2468
        %v2473 = vshll.u32 %v2470, 16
        %v2474 = vshrl.u32 %v2470, 16
        %v2475 = vshll.u32 %v2471, 16
        %v2476 = vshrl.u32 %v2471, 16
        %vm2477 = vc.u32 %v2469, %v2473
        %v2478 = vsel %vm2477, 1, 0
        %v2479 = vadd.s32 %v2469, %v2473
        %v2480 = vadd.s32 %v2472, %v2478
        %vm2481 = vc.u32 %v2479, %v2475
        %v2482 = vsel %vm2481, 1, 0
        %v2483 = vadd.s32 %v2479, %v2475
        %v2484 = vadd.s32 %v2480, %v2482
        %v2485 = vadd.s32 %v2484, %v2474
        %v2486 = vadd.s32 %v2485, %v2476
        %v2487 = vand.u32 %v2464, 65535
        %v2488 = vshrl.u32 %v2464, 16
        %v2489 = vand.u32 %v2459, 65535
        %v2490 = vshrl.u32 %v2459, 16
        %v2491 = vmul.u32 %v2487, %v2489
        %v2492 = vmul.u32 %v2487, %v2490
        %v2493 = vmul.u32 %v2488, %v2489
        %v2494 = vmul.u32 %v2488, %v2490
        %v2495 = vshll.u32 %v2492, 16
        %v2496 = vshrl.u32 %v2492, 16
        %v2497 = vshll.u32 %v2493, 16
        %v2498 = vshrl.u32 %v2493, 16
        %vm2499 = vc.u32 %v2491, %v2495
        %v2500 = vsel %vm2499, 1, 0
        %v2501 = vadd.s32 %v2491, %v2495
        %v2502 = vadd.s32 %v2494, %v2500
        %vm2503 = vc.u32 %v2501, %v2497
        %v2504 = vsel %vm2503, 1, 0
        %v2505 = vadd.s32 %v2501, %v2497
        %v2506 = vadd.s32 %v2502, %v2504
        %v2507 = vadd.s32 %v2506, %v2496
        %v2508 = vadd.s32 %v2507, %v2498
        %v2509 = vmul.u32 %v2464, %v2455
        %v2510 = vadd.s32 %v2486, %v2505
        %vm2511 = vc.u32 %v2486, %v2505
        %v2512 = vadd.s32 %v2508, 1
        %v2513 = vsel %vm2511, %v2512, %v2508
        %v2514 = vadd.s32 %v2509, %v2513
        %v2515 = vadd.s32 %v2514, 536870912
        %v2516 = vshrl.u32 %v2515, 30
        %v2517 = vshll.u32 %v2516, 30
        %v2518 = vsub.s32 %v2514, %v2517
        %vm2519 = vcmp.lt.s32.totalorder %v2518, 0
        %v2520 = vsub.s32 0, %v2518
        %v2521 = vsel %vm2519, %v2520, %v2518
        %v2522 = vclz %v2521
        %v2523 = vsub.s32 %v2522, 2
        %vm2524 = vcmp.gt.s32.totalorder 0, %v2523
        %v2525 = vsel %vm2524, 0, %v2523
        %v2526 = vsub.s32 32, %v2525
        %v2527 = vshll.u32 %v2518, %v2525
        %v2528 = vshrl.u32 %v2510, %v2526
        %v2529 = vor.u32 %v2527, %v2528
        %v2530 = vsub.s32 4294967266, %v2525
        %v2531 = vadd.s32 %v2530, 127
        %v2532 = vshll.u32 %v2531, 23
        %v2533 = vor.u32 4788187, %v2532
        %v2534 = vand.u32 2147483647, %v2533
        %v2536 = vcvt.s32.f32 %v2529
        %v2537 = vmul.f32 %v2536, %v2534
        %v2538 = vxor.u32 %v2537, 2147483648
        %v2539 = vsel %vm2418, %v2538, %v2537
        %v2540 = vsub.s32 4, %v2516
        %v2541 = vsel %vm2418, %v2540, %v2516
        %v2542 = vsel %vm2417, %v411, %v2539
        %v2543 = vsel %vm2417, 0, %v2541
        %v2544 = vmul.f32 %v2542, %v2542
        %v2545 = vmul.f32 %v2544, -0.001358992
        %v2546 = vadd.f32 %v2545, 0.041655596
        %v2547 = vmul.f32 %v2544, %v2546
        %v2548 = vadd.f32 %v2547, -0.4999988
        %v2549 = vmul.f32 %v2544, %v2548
        %v2550 = vadd.f32 1.0, %v2549
        %v2551 = vmul.f32 %v2542, %v2542
        %v2552 = vmul.f32 %v2551, -0.00019511016
        %v2553 = vadd.f32 %v2552, 0.008332121
        %v2554 = vmul.f32 %v2551, %v2553
        %v2555 = vadd.f32 %v2554, -0.16666654
        %v2556 = vmul.f32 %v2551, %v2555
        %v2557 = vadd.f32 %v2556, 1.0
        %v2558 = vmul.f32 %v2557, %v2542
        %vm2559 = vweird.f32 %v411
        %v2560 = vand.u32 %v2543, 3
        %vm2561 = vcmp.lt.s32.totalorder %v2560, 2
        %vm2562 = vcmp.eq.s32.totalorder %v2560, 0
        %v2563 = vxor.u32 %v2558, 2147483648
        %v2564 = vsel %vm2562, %v2550, %v2563
        %vm2565 = vcmp.eq.s32.totalorder %v2560, 2
        %v2566 = vxor.u32 %v2550, 2147483648
        %v2567 = vsel %vm2565, %v2566, %v2558
        %v2568 = vsel %vm2561, %v2564, %v2567
        %v2569 = vsel %vm2559, nan, %v2568
        %v2570 = vand.u32 2147483647, %v412
        %vm2571 = vcmp.le.f32.partialorder %v2570, 0.7853982
        %vm2572 = vcmp.lt.s32.totalorder %v412, 0
        %v2573 = vand.u32 %v412, 2139095040
        %v2574 = vshrl.u32 %v2573, 23
        %v2575 = vsub.s32 %v2574, 127
        %v2576 = vand.u32 2147483647, %v412
        %v2577 = vand.u32 %v2576, 8388607
        %v2578 = vor.u32 %v2577, 8388608
        %v2579 = vsub.s32 0, %v2578
        %v2580 = vadd.s32 %v2575, 1
        %vm2581 = vcmp.gt.s32.totalorder %v2580, 0
        %v2582 = vsel %vm2581, %v2580, 0
        %v2583 = vshrl.u32 %v2582, 5
        %v2584 = vand.u32 %v2582, 31
        %v2585 = vsub.s32 32, %v2584
        %v2586 = vshrl.u32 683565275, %v2585
        %v2587 = vshll.u32 683565275, %v2584
        %v2588 = vshrl.u32 2475754826, %v2585
        %v2589 = vor.u32 %v2587, %v2588
        %v2590 = vshll.u32 2475754826, %v2584
        %v2591 = vshrl.u32 2131351028, %v2585
        %v2592 = vor.u32 %v2590, %v2591
        %v2593 = vshll.u32 2131351028, %v2584
        %v2594 = vshrl.u32 2102212464, %v2585
        %v2595 = vor.u32 %v2593, %v2594
        %v2596 = vshll.u32 2102212464, %v2584
        %v2597 = vshrl.u32 920167782, %v2585
        %v2598 = vor.u32 %v2596, %v2597
        %v2599 = vshll.u32 920167782, %v2584
        %v2600 = vshrl.u32 1326507024, %v2585
        %v2601 = vor.u32 %v2599, %v2600
        %vm2602 = vcmp.lt.s32.totalorder %v2583, 1
        %vm2603 = vcmp.lt.s32.totalorder %v2583, 2
        %vm2604 = vcmp.lt.s32.totalorder %v2583, 3
        %vm2605 = vcmp.lt.s32.totalorder %v2583, 4
        %v2606 = vsel %vm2602, %v2586, %v2589
        %v2607 = vsel %vm2605, %v2595, 2102212464
        %v2608 = vsel %vm2604, %v2592, %v2607
        %v2609 = vsel %vm2603, %v2606, %v2608
        %v2610 = vsel %vm2602, %v2589, %v2592
        %v2611 = vsel %vm2605, %v2598, 920167782
        %v2612 = vsel %vm2604, %v2595, %v2611
        %v2613 = vsel %vm2603, %v2610, %v2612
        %v2614 = vsel %vm2602, %v2592, %v2595
        %v2615 = vsel %vm2605, %v2601, 1326507024
        %v2616 = vsel %vm2604, %v2598, %v2615
        %v2617 = vsel %vm2603, %v2614, %v2616
        %v2618 = vshll.u32 %v2578, 8
        %v2619 = vand.u32 %v2618, 65535
        %v2620 = vshrl.u32 %v2618, 16
        %v2621 = vand.u32 %v2617, 65535
        %v2622 = vshrl.u32 %v2617, 16
        %v2623 = vmul.u32 %v2619, %v2621
        %v2624 = vmul.u32 %v2619, %v2622
        %v2625 = vmul.u32 %v2620, %v2621
        %v2626 = vmul.u32 %v2620, %v2622
        %v2627 = vshll.u32 %v2624, 16
        %v2628 = vshrl.u32 %v2624, 16
        %v2629 = vshll.u32 %v2625, 16
        %v2630 = vshrl.u32 %v2625, 16
        %vm2631 = vc.u32 %v2623, %v2627
        %v2632 = vsel %vm2631, 1, 0
        %v2633 = vadd.s32 %v2623, %v2627
        %v2634 = vadd.s32 %v2626, %v2632
        %vm2635 = vc.u32 %v2633, %v2629
        %v2636 = vsel %vm2635, 1, 0
        %v2637 = vadd.s32 %v2633, %v2629
        %v2638 = vadd.s32 %v2634, %v2636
        %v2639 = vadd.s32 %v2638, %v2628
        %v2640 = vadd.s32 %v2639, %v2630
        %v2641 = vand.u32 %v2618, 65535
        %v2642 = vshrl.u32 %v2618, 16
        %v2643 = vand.u32 %v2613, 65535
        %v2644 = vshrl.u32 %v2613, 16
        %v2645 = vmul.u32 %v2641, %v2643
        %v2646 = vmul.u32 %v2641, %v2644
        %v2647 = vmul.u32 %v2642, %v2643
        %v2648 = vmul.u32 %v2642, %v2644
        %v2649 = vshll.u32 %v2646, 16
        %v2650 = vshrl.u32 %v2646, 16
        %v2651 = vshll.u32 %v2647, 16
        %v2652 = vshrl.u32 %v2647, 16
        %vm2653 = vc.u32 %v2645, %v2649
        %v2654 = vsel %vm2653, 1, 0
        %v2655 = vadd.s32 %v2645, %v2649
        %v2656 = vadd.s32 %v2648, %v2654
        %vm2657 = vc.u32 %v2655, %v2651
        %v2658 = vsel %vm2657, 1, 0
        %v2659 = vadd.s32 %v2655, %v2651
        %v2660 = vadd.s32 %v2656, %v2658
        %v2661 = vadd.s32 %v2660, %v2650
        %v2662 = vadd.s32 %v2661, %v2652
        %v2663 = vmul.u32 %v2618, %v2609
        %v2664 = vadd.s32 %v2640, %v2659
        %vm2665 = vc.u32 %v2640, %v2659
        %v2666 = vadd.s32 %v2662, 1
        %v2667 = vsel %vm2665, %v2666, %v2662
        %v2668 = vadd.s32 %v2663, %v2667
        %v2669 = vadd.s32 %v2668, 536870912
        %v2670 = vshrl.u32 %v2669, 30
        %v2671 = vshll.u32 %v2670, 30
        %v2672 = vsub.s32 %v2668, %v2671
        %vm2673 = vcmp.lt.s32.totalorder %v2672, 0
        %v2674 = vsub.s32 0, %v2672
        %v2675 = vsel %vm2673, %v2674, %v2672
        %v2676 = vclz %v2675
        %v2677 = vsub.s32 %v2676, 2
        %vm2678 = vcmp.gt.s32.totalorder 0, %v2677
        %v2679 = vsel %vm2678, 0, %v2677
        %v2680 = vsub.s32 32, %v2679
        %v2681 = vshll.u32 %v2672, %v2679
        %v2682 = vshrl.u32 %v2664, %v2680
        %v2683 = vor.u32 %v2681, %v2682
        %v2684 = vsub.s32 4294967266, %v2679
        %v2685 = vadd.s32 %v2684, 127
        %v2686 = vshll.u32 %v2685, 23
        %v2687 = vor.u32 4788187, %v2686
        %v2688 = vand.u32 2147483647, %v2687
        %v2690 = vcvt.s32.f32 %v2683
        %v2691 = vmul.f32 %v2690, %v2688
        %v2692 = vxor.u32 %v2691, 2147483648
        %v2693 = vsel %vm2572, %v2692, %v2691
        %v2694 = vsub.s32 4, %v2670
        %v2695 = vsel %vm2572, %v2694, %v2670
        %v2696 = vsel %vm2571, %v412, %v2693
        %v2697 = vsel %vm2571, 0, %v2695
        %v2698 = vmul.f32 %v2696, %v2696
        %v2699 = vmul.f32 %v2698, -0.001358992
        %v2700 = vadd.f32 %v2699, 0.041655596
        %v2701 = vmul.f32 %v2698, %v2700
        %v2702 = vadd.f32 %v2701, -0.4999988
        %v2703 = vmul.f32 %v2698, %v2702
        %v2704 = vadd.f32 1.0, %v2703
        %v2705 = vmul.f32 %v2696, %v2696
        %v2706 = vmul.f32 %v2705, -0.00019511016
        %v2707 = vadd.f32 %v2706, 0.008332121
        %v2708 = vmul.f32 %v2705, %v2707
        %v2709 = vadd.f32 %v2708, -0.16666654
        %v2710 = vmul.f32 %v2705, %v2709
        %v2711 = vadd.f32 %v2710, 1.0
        %v2712 = vmul.f32 %v2711, %v2696
        %vm2713 = vweird.f32 %v412
        %v2714 = vand.u32 %v2697, 3
        %vm2715 = vcmp.lt.s32.totalorder %v2714, 2
        %vm2716 = vcmp.eq.s32.totalorder %v2714, 0
        %v2717 = vxor.u32 %v2712, 2147483648
        %v2718 = vsel %vm2716, %v2704, %v2717
        %vm2719 = vcmp.eq.s32.totalorder %v2714, 2
        %v2720 = vxor.u32 %v2704, 2147483648
        %v2721 = vsel %vm2719, %v2720, %v2712
        %v2722 = vsel %vm2715, %v2718, %v2721
        %v2723 = vsel %vm2713, nan, %v2722
        %v2724 = vand.u32 2147483647, %v413
        %vm2725 = vcmp.le.f32.partialorder %v2724, 0.7853982
        %vm2726 = vcmp.lt.s32.totalorder %v413, 0
        %v2727 = vand.u32 %v413, 2139095040
        %v2728 = vshrl.u32 %v2727, 23
        %v2729 = vsub.s32 %v2728, 127
        %v2730 = vand.u32 2147483647, %v413
        %v2731 = vand.u32 %v2730, 8388607
        %v2732 = vor.u32 %v2731, 8388608
        %v2733 = vsub.s32 0, %v2732
        %v2734 = vadd.s32 %v2729, 1
        %vm2735 = vcmp.gt.s32.totalorder %v2734, 0
        %v2736 = vsel %vm2735, %v2734, 0
        %v2737 = vshrl.u32 %v2736, 5
        %v2738 = vand.u32 %v2736, 31
        %v2739 = vsub.s32 32, %v2738
        %v2740 = vshrl.u32 683565275, %v2739
        %v2741 = vshll.u32 683565275, %v2738
        %v2742 = vshrl.u32 2475754826, %v2739
        %v2743 = vor.u32 %v2741, %v2742
        %v2744 = vshll.u32 2475754826, %v2738
        %v2745 = vshrl.u32 2131351028, %v2739
        %v2746 = vor.u32 %v2744, %v2745
        %v2747 = vshll.u32 2131351028, %v2738
        %v2748 = vshrl.u32 2102212464, %v2739
        %v2749 = vor.u32 %v2747, %v2748
        %v2750 = vshll.u32 2102212464, %v2738
        %v2751 = vshrl.u32 920167782, %v2739
        %v2752 = vor.u32 %v2750, %v2751
        %v2753 = vshll.u32 920167782, %v2738
        %v2754 = vshrl.u32 1326507024, %v2739
        %v2755 = vor.u32 %v2753, %v2754
        %vm2756 = vcmp.lt.s32.totalorder %v2737, 1
        %vm2757 = vcmp.lt.s32.totalorder %v2737, 2
        %vm2758 = vcmp.lt.s32.totalorder %v2737, 3
        %vm2759 = vcmp.lt.s32.totalorder %v2737, 4
        %v2760 = vsel %vm2756, %v2740, %v2743
        %v2761 = vsel %vm2759, %v2749, 2102212464
        %v2762 = vsel %vm2758, %v2746, %v2761
        %v2763 = vsel %vm2757, %v2760, %v2762
        %v2764 = vsel %vm2756, %v2743, %v2746
        %v2765 = vsel %vm2759, %v2752, 920167782
        %v2766 = vsel %vm2758, %v2749, %v2765
        %v2767 = vsel %vm2757, %v2764, %v2766
        %v2768 = vsel %vm2756, %v2746, %v2749
        %v2769 = vsel %vm2759, %v2755, 1326507024
        %v2770 = vsel %vm2758, %v2752, %v2769
        %v2771 = vsel %vm2757, %v2768, %v2770
        %v2772 = vshll.u32 %v2732, 8
        %v2773 = vand.u32 %v2772, 65535
        %v2774 = vshrl.u32 %v2772, 16
        %v2775 = vand.u32 %v2771, 65535
        %v2776 = vshrl.u32 %v2771, 16
        %v2777 = vmul.u32 %v2773, %v2775
        %v2778 = vmul.u32 %v2773, %v2776
        %v2779 = vmul.u32 %v2774, %v2775
        %v2780 = vmul.u32 %v2774, %v2776
        %v2781 = vshll.u32 %v2778, 16
        %v2782 = vshrl.u32 %v2778, 16
        %v2783 = vshll.u32 %v2779, 16
        %v2784 = vshrl.u32 %v2779, 16
        %vm2785 = vc.u32 %v2777, %v2781
        %v2786 = vsel %vm2785, 1, 0
        %v2787 = vadd.s32 %v2777, %v2781
        %v2788 = vadd.s32 %v2780, %v2786
        %vm2789 = vc.u32 %v2787, %v2783
        %v2790 = vsel %vm2789, 1, 0
        %v2791 = vadd.s32 %v2787, %v2783
        %v2792 = vadd.s32 %v2788, %v2790
        %v2793 = vadd.s32 %v2792, %v2782
        %v2794 = vadd.s32 %v2793, %v2784
        %v2795 = vand.u32 %v2772, 65535
        %v2796 = vshrl.u32 %v2772, 16
        %v2797 = vand.u32 %v2767, 65535
        %v2798 = vshrl.u32 %v2767, 16
        %v2799 = vmul.u32 %v2795, %v2797
        %v2800 = vmul.u32 %v2795, %v2798
        %v2801 = vmul.u32 %v2796, %v2797
        %v2802 = vmul.u32 %v2796, %v2798
        %v2803 = vshll.u32 %v2800, 16
        %v2804 = vshrl.u32 %v2800, 16
        %v2805 = vshll.u32 %v2801, 16
        %v2806 = vshrl.u32 %v2801, 16
        %vm2807 = vc.u32 %v2799, %v2803
        %v2808 = vsel %vm2807, 1, 0
        %v2809 = vadd.s32 %v2799, %v2803
        %v2810 = vadd.s32 %v2802, %v2808
        %vm2811 = vc.u32 %v2809, %v2805
        %v2812 = vsel %vm2811, 1, 0
        %v2813 = vadd.s32 %v2809, %v2805
        %v2814 = vadd.s32 %v2810, %v2812
        %v2815 = vadd.s32 %v2814, %v2804
        %v2816 = vadd.s32 %v2815, %v2806
        %v2817 = vmul.u32 %v2772, %v2763
        %v2818 = vadd.s32 %v2794, %v2813
        %vm2819 = vc.u32 %v2794, %v2813
        %v2820 = vadd.s32 %v2816, 1
        %v2821 = vsel %vm2819, %v2820, %v2816
        %v2822 = vadd.s32 %v2817, %v2821
        %v2823 = vadd.s32 %v2822, 536870912
        %v2824 = vshrl.u32 %v2823, 30
        %v2825 = vshll.u32 %v2824, 30
        %v2826 = vsub.s32 %v2822, %v2825
        %vm2827 = vcmp.lt.s32.totalorder %v2826, 0
        %v2828 = vsub.s32 0, %v2826
        %v2829 = vsel %vm2827, %v2828, %v2826
        %v2830 = vclz %v2829
        %v2831 = vsub.s32 %v2830, 2
        %vm2832 = vcmp.gt.s32.totalorder 0, %v2831
        %v2833 = vsel %vm2832, 0, %v2831
        %v2834 = vsub.s32 32, %v2833
        %v2835 = vshll.u32 %v2826, %v2833
        %v2836 = vshrl.u32 %v2818, %v2834
        %v2837 = vor.u32 %v2835, %v2836
        %v2838 = vsub.s32 4294967266, %v2833
        %v2839 = vadd.s32 %v2838, 127
        %v2840 = vshll.u32 %v2839, 23
        %v2841 = vor.u32 4788187, %v2840
        %v2842 = vand.u32 2147483647, %v2841
        %v2844 = vcvt.s32.f32 %v2837
        %v2845 = vmul.f32 %v2844, %v2842
        %v2846 = vxor.u32 %v2845, 2147483648
        %v2847 = vsel %vm2726, %v2846, %v2845
        %v2848 = vsub.s32 4, %v2824
        %v2849 = vsel %vm2726, %v2848, %v2824
        %v2850 = vsel %vm2725, %v413, %v2847
        %v2851 = vsel %vm2725, 0, %v2849
        %v2852 = vmul.f32 %v2850, %v2850
        %v2853 = vmul.f32 %v2852, -0.001358992
        %v2854 = vadd.f32 %v2853, 0.041655596
        %v2855 = vmul.f32 %v2852, %v2854
        %v2856 = vadd.f32 %v2855, -0.4999988
        %v2857 = vmul.f32 %v2852, %v2856
        %v2858 = vadd.f32 1.0, %v2857
        %v2859 = vmul.f32 %v2850, %v2850
        %v2860 = vmul.f32 %v2859, -0.00019511016
        %v2861 = vadd.f32 %v2860, 0.008332121
        %v2862 = vmul.f32 %v2859, %v2861
        %v2863 = vadd.f32 %v2862, -0.16666654
        %v2864 = vmul.f32 %v2859, %v2863
        %v2865 = vadd.f32 %v2864, 1.0
        %v2866 = vmul.f32 %v2865, %v2850
        %vm2867 = vweird.f32 %v413
        %v2868 = vand.u32 %v2851, 3
        %vm2869 = vcmp.lt.s32.totalorder %v2868, 2
        %vm2870 = vcmp.eq.s32.totalorder %v2868, 0
        %v2871 = vxor.u32 %v2866, 2147483648
        %v2872 = vsel %vm2870, %v2858, %v2871
        %vm2873 = vcmp.eq.s32.totalorder %v2868, 2
        %v2874 = vxor.u32 %v2858, 2147483648
        %v2875 = vsel %vm2873, %v2874, %v2866
        %v2876 = vsel %vm2869, %v2872, %v2875
        %v2877 = vsel %vm2867, nan, %v2876
        %v2878 = vand.u32 2147483647, %v398
        %vm2879 = vcmp.le.f32.partialorder %v2878, 0.7853982
        %vm2880 = vcmp.lt.s32.totalorder %v398, 0
        %v2881 = vand.u32 %v398, 2139095040
        %v2882 = vshrl.u32 %v2881, 23
        %v2883 = vsub.s32 %v2882, 127
        %v2884 = vand.u32 2147483647, %v398
        %v2885 = vand.u32 %v2884, 8388607
        %v2886 = vor.u32 %v2885, 8388608
        %v2887 = vsub.s32 0, %v2886
        %v2888 = vadd.s32 %v2883, 1
        %vm2889 = vcmp.gt.s32.totalorder %v2888, 0
        %v2890 = vsel %vm2889, %v2888, 0
        %v2891 = vshrl.u32 %v2890, 5
        %v2892 = vand.u32 %v2890, 31
        %v2893 = vsub.s32 32, %v2892
        %v2894 = vshrl.u32 683565275, %v2893
        %v2895 = vshll.u32 683565275, %v2892
        %v2896 = vshrl.u32 2475754826, %v2893
        %v2897 = vor.u32 %v2895, %v2896
        %v2898 = vshll.u32 2475754826, %v2892
        %v2899 = vshrl.u32 2131351028, %v2893
        %v2900 = vor.u32 %v2898, %v2899
        %v2901 = vshll.u32 2131351028, %v2892
        %v2902 = vshrl.u32 2102212464, %v2893
        %v2903 = vor.u32 %v2901, %v2902
        %v2904 = vshll.u32 2102212464, %v2892
        %v2905 = vshrl.u32 920167782, %v2893
        %v2906 = vor.u32 %v2904, %v2905
        %v2907 = vshll.u32 920167782, %v2892
        %v2908 = vshrl.u32 1326507024, %v2893
        %v2909 = vor.u32 %v2907, %v2908
        %vm2910 = vcmp.lt.s32.totalorder %v2891, 1
        %vm2911 = vcmp.lt.s32.totalorder %v2891, 2
        %vm2912 = vcmp.lt.s32.totalorder %v2891, 3
        %vm2913 = vcmp.lt.s32.totalorder %v2891, 4
        %v2914 = vsel %vm2910, %v2894, %v2897
        %v2915 = vsel %vm2913, %v2903, 2102212464
        %v2916 = vsel %vm2912, %v2900, %v2915
        %v2917 = vsel %vm2911, %v2914, %v2916
        %v2918 = vsel %vm2910, %v2897, %v2900
        %v2919 = vsel %vm2913, %v2906, 920167782
        %v2920 = vsel %vm2912, %v2903, %v2919
        %v2921 = vsel %vm2911, %v2918, %v2920
        %v2922 = vsel %vm2910, %v2900, %v2903
        %v2923 = vsel %vm2913, %v2909, 1326507024
        %v2924 = vsel %vm2912, %v2906, %v2923
        %v2925 = vsel %vm2911, %v2922, %v2924
        %v2926 = vshll.u32 %v2886, 8
        %v2927 = vand.u32 %v2926, 65535
        %v2928 = vshrl.u32 %v2926, 16
        %v2929 = vand.u32 %v2925, 65535
        %v2930 = vshrl.u32 %v2925, 16
        %v2931 = vmul.u32 %v2927, %v2929
        %v2932 = vmul.u32 %v2927, %v2930
        %v2933 = vmul.u32 %v2928, %v2929
        %v2934 = vmul.u32 %v2928, %v2930
        %v2935 = vshll.u32 %v2932, 16
        %v2936 = vshrl.u32 %v2932, 16
        %v2937 = vshll.u32 %v2933, 16
        %v2938 = vshrl.u32 %v2933, 16
        %vm2939 = vc.u32 %v2931, %v2935
        %v2940 = vsel %vm2939, 1, 0
        %v2941 = vadd.s32 %v2931, %v2935
        %v2942 = vadd.s32 %v2934, %v2940
        %vm2943 = vc.u32 %v2941, %v2937
        %v2944 = vsel %vm2943, 1, 0
        %v2945 = vadd.s32 %v2941, %v2937
        %v2946 = vadd.s32 %v2942, %v2944
        %v2947 = vadd.s32 %v2946, %v2936
        %v2948 = vadd.s32 %v2947, %v2938
        %v2949 = vand.u32 %v2926, 65535
        %v2950 = vshrl.u32 %v2926, 16
        %v2951 = vand.u32 %v2921, 65535
        %v2952 = vshrl.u32 %v2921, 16
        %v2953 = vmul.u32 %v2949, %v2951
        %v2954 = vmul.u32 %v2949, %v2952
        %v2955 = vmul.u32 %v2950, %v2951
        %v2956 = vmul.u32 %v2950, %v2952
        %v2957 = vshll.u32 %v2954, 16
        %v2958 = vshrl.u32 %v2954, 16
        %v2959 = vshll.u32 %v2955, 16
        %v2960 = vshrl.u32 %v2955, 16
        %vm2961 = vc.u32 %v2953, %v2957
        %v2962 = vsel %vm2961, 1, 0
        %v2963 = vadd.s32 %v2953, %v2957
        %v2964 = vadd.s32 %v2956, %v2962
        %vm2965 = vc.u32 %v2963, %v2959
        %v2966 = vsel %vm2965, 1, 0
        %v2967 = vadd.s32 %v2963, %v2959
        %v2968 = vadd.s32 %v2964, %v2966
        %v2969 = vadd.s32 %v2968, %v2958
        %v2970 = vadd.s32 %v2969, %v2960
        %v2971 = vmul.u32 %v2926, %v2917
        %v2972 = vadd.s32 %v2948, %v2967
        %vm2973 = vc.u32 %v2948, %v2967
        %v2974 = vadd.s32 %v2970, 1
        %v2975 = vsel %vm2973, %v2974, %v2970
        %v2976 = vadd.s32 %v2971, %v2975
        %v2977 = vadd.s32 %v2976, 536870912
        %v2978 = vshrl.u32 %v2977, 30
        %v2979 = vshll.u32 %v2978, 30
        %v2980 = vsub.s32 %v2976, %v2979
        %vm2981 = vcmp.lt.s32.totalorder %v2980, 0
        %v2982 = vsub.s32 0, %v2980
        %v2983 = vsel %vm2981, %v2982, %v2980
        %v2984 = vclz %v2983
        %v2985 = vsub.s32 %v2984, 2
        %vm2986 = vcmp.gt.s32.totalorder 0, %v2985
        %v2987 = vsel %vm2986, 0, %v2985
        %v2988 = vsub.s32 32, %v2987
        %v2989 = vshll.u32 %v2980, %v2987
        %v2990 = vshrl.u32 %v2972, %v2988
        %v2991 = vor.u32 %v2989, %v2990
        %v2992 = vsub.s32 4294967266, %v2987
        %v2993 = vadd.s32 %v2992, 127
        %v2994 = vshll.u32 %v2993, 23
        %v2995 = vor.u32 4788187, %v2994
        %v2996 = vand.u32 2147483647, %v2995
        %v2998 = vcvt.s32.f32 %v2991
        %v2999 = vmul.f32 %v2998, %v2996
        %v3000 = vxor.u32 %v2999, 2147483648
        %v3001 = vsel %vm2880, %v3000, %v2999
        %v3002 = vsub.s32 4, %v2978
        %v3003 = vsel %vm2880, %v3002, %v2978
        %v3004 = vsel %vm2879, %v398, %v3001
        %v3005 = vsel %vm2879, 0, %v3003
        %v3006 = vmul.f32 %v3004, %v3004
        %v3007 = vmul.f32 %v3006, -0.001358992
        %v3008 = vadd.f32 %v3007, 0.041655596
        %v3009 = vmul.f32 %v3006, %v3008
        %v3010 = vadd.f32 %v3009, -0.4999988
        %v3011 = vmul.f32 %v3006, %v3010
        %v3012 = vadd.f32 1.0, %v3011
        %v3013 = vmul.f32 %v3004, %v3004
        %v3014 = vmul.f32 %v3013, -0.00019511016
        %v3015 = vadd.f32 %v3014, 0.008332121
        %v3016 = vmul.f32 %v3013, %v3015
        %v3017 = vadd.f32 %v3016, -0.16666654
        %v3018 = vmul.f32 %v3013, %v3017
        %v3019 = vadd.f32 %v3018, 1.0
        %v3020 = vmul.f32 %v3019, %v3004
        %vm3021 = vweird.f32 %v398
        %v3022 = vadd.s32 %v3005, 3
        %v3023 = vand.u32 %v3022, 3
        %vm3024 = vcmp.lt.s32.totalorder %v3023, 2
        %vm3025 = vcmp.eq.s32.totalorder %v3023, 0
        %v3026 = vxor.u32 %v3020, 2147483648
        %v3027 = vsel %vm3025, %v3012, %v3026
        %vm3028 = vcmp.eq.s32.totalorder %v3023, 2
        %v3029 = vxor.u32 %v3012, 2147483648
        %v3030 = vsel %vm3028, %v3029, %v3020
        %v3031 = vsel %vm3024, %v3027, %v3030
        %v3032 = vsel %vm3021, nan, %v3031
        %v3033 = vand.u32 2147483647, %v399
        %vm3034 = vcmp.le.f32.partialorder %v3033, 0.7853982
        %vm3035 = vcmp.lt.s32.totalorder %v399, 0
        %v3036 = vand.u32 %v399, 2139095040
        %v3037 = vshrl.u32 %v3036, 23
        %v3038 = vsub.s32 %v3037, 127
        %v3039 = vand.u32 2147483647, %v399
        %v3040 = vand.u32 %v3039, 8388607
        %v3041 = vor.u32 %v3040, 8388608
        %v3042 = vsub.s32 0, %v3041
        %v3043 = vadd.s32 %v3038, 1
        %vm3044 = vcmp.gt.s32.totalorder %v3043, 0
        %v3045 = vsel %vm3044, %v3043, 0
        %v3046 = vshrl.u32 %v3045, 5
        %v3047 = vand.u32 %v3045, 31
        %v3048 = vsub.s32 32, %v3047
        %v3049 = vshrl.u32 683565275, %v3048
        %v3050 = vshll.u32 683565275, %v3047
        %v3051 = vshrl.u32 2475754826, %v3048
        %v3052 = vor.u32 %v3050, %v3051
        %v3053 = vshll.u32 2475754826, %v3047
        %v3054 = vshrl.u32 2131351028, %v3048
        %v3055 = vor.u32 %v3053, %v3054
        %v3056 = vshll.u32 2131351028, %v3047
        %v3057 = vshrl.u32 2102212464, %v3048
        %v3058 = vor.u32 %v3056, %v3057
        %v3059 = vshll.u32 2102212464, %v3047
        %v3060 = vshrl.u32 920167782, %v3048
        %v3061 = vor.u32 %v3059, %v3060
        %v3062 = vshll.u32 920167782, %v3047
        %v3063 = vshrl.u32 1326507024, %v3048
        %v3064 = vor.u32 %v3062, %v3063
        %vm3065 = vcmp.lt.s32.totalorder %v3046, 1
        %vm3066 = vcmp.lt.s32.totalorder %v3046, 2
        %vm3067 = vcmp.lt.s32.totalorder %v3046, 3
        %vm3068 = vcmp.lt.s32.totalorder %v3046, 4
        %v3069 = vsel %vm3065, %v3049, %v3052
        %v3070 = vsel %vm3068, %v3058, 2102212464
        %v3071 = vsel %vm3067, %v3055, %v3070
        %v3072 = vsel %vm3066, %v3069, %v3071
        %v3073 = vsel %vm3065, %v3052, %v3055
        %v3074 = vsel %vm3068, %v3061, 920167782
        %v3075 = vsel %vm3067, %v3058, %v3074
        %v3076 = vsel %vm3066, %v3073, %v3075
        %v3077 = vsel %vm3065, %v3055, %v3058
        %v3078 = vsel %vm3068, %v3064, 1326507024
        %v3079 = vsel %vm3067, %v3061, %v3078
        %v3080 = vsel %vm3066, %v3077, %v3079
        %v3081 = vshll.u32 %v3041, 8
        %v3082 = vand.u32 %v3081, 65535
        %v3083 = vshrl.u32 %v3081, 16
        %v3084 = vand.u32 %v3080, 65535
        %v3085 = vshrl.u32 %v3080, 16
        %v3086 = vmul.u32 %v3082, %v3084
        %v3087 = vmul.u32 %v3082, %v3085
        %v3088 = vmul.u32 %v3083, %v3084
        %v3089 = vmul.u32 %v3083, %v3085
        %v3090 = vshll.u32 %v3087, 16
        %v3091 = vshrl.u32 %v3087, 16
        %v3092 = vshll.u32 %v3088, 16
        %v3093 = vshrl.u32 %v3088, 16
        %vm3094 = vc.u32 %v3086, %v3090
        %v3095 = vsel %vm3094, 1, 0
        %v3096 = vadd.s32 %v3086, %v3090
        %v3097 = vadd.s32 %v3089, %v3095
        %vm3098 = vc.u32 %v3096, %v3092
        %v3099 = vsel %vm3098, 1, 0
        %v3100 = vadd.s32 %v3096, %v3092
        %v3101 = vadd.s32 %v3097, %v3099
        %v3102 = vadd.s32 %v3101, %v3091
        %v3103 = vadd.s32 %v3102, %v3093
        %v3104 = vand.u32 %v3081, 65535
        %v3105 = vshrl.u32 %v3081, 16
        %v3106 = vand.u32 %v3076, 65535
        %v3107 = vshrl.u32 %v3076, 16
        %v3108 = vmul.u32 %v3104, %v3106
        %v3109 = vmul.u32 %v3104, %v3107
        %v3110 = vmul.u32 %v3105, %v3106
        %v3111 = vmul.u32 %v3105, %v3107
        %v3112 = vshll.u32 %v3109, 16
        %v3113 = vshrl.u32 %v3109, 16
        %v3114 = vshll.u32 %v3110, 16
        %v3115 = vshrl.u32 %v3110, 16
        %vm3116 = vc.u32 %v3108, %v3112
        %v3117 = vsel %vm3116, 1, 0
        %v3118 = vadd.s32 %v3108, %v3112
        %v3119 = vadd.s32 %v3111, %v3117
        %vm3120 = vc.u32 %v3118, %v3114
        %v3121 = vsel %vm3120, 1, 0
        %v3122 = vadd.s32 %v3118, %v3114
        %v3123 = vadd.s32 %v3119, %v3121
        %v3124 = vadd.s32 %v3123, %v3113
        %v3125 = vadd.s32 %v3124, %v3115
        %v3126 = vmul.u32 %v3081, %v3072
        %v3127 = vadd.s32 %v3103, %v3122
        %vm3128 = vc.u32 %v3103, %v3122
        %v3129 = vadd.s32 %v3125, 1
        %v3130 = vsel %vm3128, %v3129, %v3125
        %v3131 = vadd.s32 %v3126, %v3130
        %v3132 = vadd.s32 %v3131, 536870912
        %v3133 = vshrl.u32 %v3132, 30
        %v3134 = vshll.u32 %v3133, 30
        %v3135 = vsub.s32 %v3131, %v3134
        %vm3136 = vcmp.lt.s32.totalorder %v3135, 0
        %v3137 = vsub.s32 0, %v3135
        %v3138 = vsel %vm3136, %v3137, %v3135
        %v3139 = vclz %v3138
        %v3140 = vsub.s32 %v3139, 2
        %vm3141 = vcmp.gt.s32.totalorder 0, %v3140
        %v3142 = vsel %vm3141, 0, %v3140
        %v3143 = vsub.s32 32, %v3142
        %v3144 = vshll.u32 %v3135, %v3142
        %v3145 = vshrl.u32 %v3127, %v3143
        %v3146 = vor.u32 %v3144, %v3145
        %v3147 = vsub.s32 4294967266, %v3142
        %v3148 = vadd.s32 %v3147, 127
        %v3149 = vshll.u32 %v3148, 23
        %v3150 = vor.u32 4788187, %v3149
        %v3151 = vand.u32 2147483647, %v3150
        %v3153 = vcvt.s32.f32 %v3146
        %v3154 = vmul.f32 %v3153, %v3151
        %v3155 = vxor.u32 %v3154, 2147483648
        %v3156 = vsel %vm3035, %v3155, %v3154
        %v3157 = vsub.s32 4, %v3133
        %v3158 = vsel %vm3035, %v3157, %v3133
        %v3159 = vsel %vm3034, %v399, %v3156
        %v3160 = vsel %vm3034, 0, %v3158
        %v3161 = vmul.f32 %v3159, %v3159
        %v3162 = vmul.f32 %v3161, -0.001358992
        %v3163 = vadd.f32 %v3162, 0.041655596
        %v3164 = vmul.f32 %v3161, %v3163
        %v3165 = vadd.f32 %v3164, -0.4999988
        %v3166 = vmul.f32 %v3161, %v3165
        %v3167 = vadd.f32 1.0, %v3166
        %v3168 = vmul.f32 %v3159, %v3159
        %v3169 = vmul.f32 %v3168, -0.00019511016
        %v3170 = vadd.f32 %v3169, 0.008332121
        %v3171 = vmul.f32 %v3168, %v3170
        %v3172 = vadd.f32 %v3171, -0.16666654
        %v3173 = vmul.f32 %v3168, %v3172
        %v3174 = vadd.f32 %v3173, 1.0
        %v3175 = vmul.f32 %v3174, %v3159
        %vm3176 = vweird.f32 %v399
        %v3177 = vadd.s32 %v3160, 3
        %v3178 = vand.u32 %v3177, 3
        %vm3179 = vcmp.lt.s32.totalorder %v3178, 2
        %vm3180 = vcmp.eq.s32.totalorder %v3178, 0
        %v3181 = vxor.u32 %v3175, 2147483648
        %v3182 = vsel %vm3180, %v3167, %v3181
        %vm3183 = vcmp.eq.s32.totalorder %v3178, 2
        %v3184 = vxor.u32 %v3167, 2147483648
        %v3185 = vsel %vm3183, %v3184, %v3175
        %v3186 = vsel %vm3179, %v3182, %v3185
        %v3187 = vsel %vm3176, nan, %v3186
        %v3188 = vand.u32 2147483647, %v400
        %vm3189 = vcmp.le.f32.partialorder %v3188, 0.7853982
        %vm3190 = vcmp.lt.s32.totalorder %v400, 0
        %v3191 = vand.u32 %v400, 2139095040
        %v3192 = vshrl.u32 %v3191, 23
        %v3193 = vsub.s32 %v3192, 127
        %v3194 = vand.u32 2147483647, %v400
        %v3195 = vand.u32 %v3194, 8388607
        %v3196 = vor.u32 %v3195, 8388608
        %v3197 = vsub.s32 0, %v3196
        %v3198 = vadd.s32 %v3193, 1
        %vm3199 = vcmp.gt.s32.totalorder %v3198, 0
        %v3200 = vsel %vm3199, %v3198, 0
        %v3201 = vshrl.u32 %v3200, 5
        %v3202 = vand.u32 %v3200, 31
        %v3203 = vsub.s32 32, %v3202
        %v3204 = vshrl.u32 683565275, %v3203
        %v3205 = vshll.u32 683565275, %v3202
        %v3206 = vshrl.u32 2475754826, %v3203
        %v3207 = vor.u32 %v3205, %v3206
        %v3208 = vshll.u32 2475754826, %v3202
        %v3209 = vshrl.u32 2131351028, %v3203
        %v3210 = vor.u32 %v3208, %v3209
        %v3211 = vshll.u32 2131351028, %v3202
        %v3212 = vshrl.u32 2102212464, %v3203
        %v3213 = vor.u32 %v3211, %v3212
        %v3214 = vshll.u32 2102212464, %v3202
        %v3215 = vshrl.u32 920167782, %v3203
        %v3216 = vor.u32 %v3214, %v3215
        %v3217 = vshll.u32 920167782, %v3202
        %v3218 = vshrl.u32 1326507024, %v3203
        %v3219 = vor.u32 %v3217, %v3218
        %vm3220 = vcmp.lt.s32.totalorder %v3201, 1
        %vm3221 = vcmp.lt.s32.totalorder %v3201, 2
        %vm3222 = vcmp.lt.s32.totalorder %v3201, 3
        %vm3223 = vcmp.lt.s32.totalorder %v3201, 4
        %v3224 = vsel %vm3220, %v3204, %v3207
        %v3225 = vsel %vm3223, %v3213, 2102212464
        %v3226 = vsel %vm3222, %v3210, %v3225
        %v3227 = vsel %vm3221, %v3224, %v3226
        %v3228 = vsel %vm3220, %v3207, %v3210
        %v3229 = vsel %vm3223, %v3216, 920167782
        %v3230 = vsel %vm3222, %v3213, %v3229
        %v3231 = vsel %vm3221, %v3228, %v3230
        %v3232 = vsel %vm3220, %v3210, %v3213
        %v3233 = vsel %vm3223, %v3219, 1326507024
        %v3234 = vsel %vm3222, %v3216, %v3233
        %v3235 = vsel %vm3221, %v3232, %v3234
        %v3236 = vshll.u32 %v3196, 8
        %v3237 = vand.u32 %v3236, 65535
        %v3238 = vshrl.u32 %v3236, 16
        %v3239 = vand.u32 %v3235, 65535
        %v3240 = vshrl.u32 %v3235, 16
        %v3241 = vmul.u32 %v3237, %v3239
        %v3242 = vmul.u32 %v3237, %v3240
        %v3243 = vmul.u32 %v3238, %v3239
        %v3244 = vmul.u32 %v3238, %v3240
        %v3245 = vshll.u32 %v3242, 16
        %v3246 = vshrl.u32 %v3242, 16
        %v3247 = vshll.u32 %v3243, 16
        %v3248 = vshrl.u32 %v3243, 16
        %vm3249 = vc.u32 %v3241, %v3245
        %v3250 = vsel %vm3249, 1, 0
        %v3251 = vadd.s32 %v3241, %v3245
        %v3252 = vadd.s32 %v3244, %v3250
        %vm3253 = vc.u32 %v3251, %v3247
        %v3254 = vsel %vm3253, 1, 0
        %v3255 = vadd.s32 %v3251, %v3247
        %v3256 = vadd.s32 %v3252, %v3254
        %v3257 = vadd.s32 %v3256, %v3246
        %v3258 = vadd.s32 %v3257, %v3248
        %v3259 = vand.u32 %v3236, 65535
        %v3260 = vshrl.u32 %v3236, 16
        %v3261 = vand.u32 %v3231, 65535
        %v3262 = vshrl.u32 %v3231, 16
        %v3263 = vmul.u32 %v3259, %v3261
        %v3264 = vmul.u32 %v3259, %v3262
        %v3265 = vmul.u32 %v3260, %v3261
        %v3266 = vmul.u32 %v3260, %v3262
        %v3267 = vshll.u32 %v3264, 16
        %v3268 = vshrl.u32 %v3264, 16
        %v3269 = vshll.u32 %v3265, 16
        %v3270 = vshrl.u32 %v3265, 16
        %vm3271 = vc.u32 %v3263, %v3267
        %v3272 = vsel %vm3271, 1, 0
        %v3273 = vadd.s32 %v3263, %v3267
        %v3274 = vadd.s32 %v3266, %v3272
        %vm3275 = vc.u32 %v3273, %v3269
        %v3276 = vsel %vm3275, 1, 0
        %v3277 = vadd.s32 %v3273, %v3269
        %v3278 = vadd.s32 %v3274, %v3276
        %v3279 = vadd.s32 %v3278, %v3268
        %v3280 = vadd.s32 %v3279, %v3270
        %v3281 = vmul.u32 %v3236, %v3227
        %v3282 = vadd.s32 %v3258, %v3277
        %vm3283 = vc.u32 %v3258, %v3277
        %v3284 = vadd.s32 %v3280, 1
        %v3285 = vsel %vm3283, %v3284, %v3280
        %v3286 = vadd.s32 %v3281, %v3285
        %v3287 = vadd.s32 %v3286, 536870912
        %v3288 = vshrl.u32 %v3287, 30
        %v3289 = vshll.u32 %v3288, 30
        %v3290 = vsub.s32 %v3286, %v3289
        %vm3291 = vcmp.lt.s32.totalorder %v3290, 0
        %v3292 = vsub.s32 0, %v3290
        %v3293 = vsel %vm3291, %v3292, %v3290
        %v3294 = vclz %v3293
        %v3295 = vsub.s32 %v3294, 2
        %vm3296 = vcmp.gt.s32.totalorder 0, %v3295
        %v3297 = vsel %vm3296, 0, %v3295
        %v3298 = vsub.s32 32, %v3297
        %v3299 = vshll.u32 %v3290, %v3297
        %v3300 = vshrl.u32 %v3282, %v3298
        %v3301 = vor.u32 %v3299, %v3300
        %v3302 = vsub.s32 4294967266, %v3297
        %v3303 = vadd.s32 %v3302, 127
        %v3304 = vshll.u32 %v3303, 23
        %v3305 = vor.u32 4788187, %v3304
        %v3306 = vand.u32 2147483647, %v3305
        %v3308 = vcvt.s32.f32 %v3301
        %v3309 = vmul.f32 %v3308, %v3306
        %v3310 = vxor.u32 %v3309, 2147483648
        %v3311 = vsel %vm3190, %v3310, %v3309
        %v3312 = vsub.s32 4, %v3288
        %v3313 = vsel %vm3190, %v3312, %v3288
        %v3314 = vsel %vm3189, %v400, %v3311
        %v3315 = vsel %vm3189, 0, %v3313
        %v3316 = vmul.f32 %v3314, %v3314
        %v3317 = vmul.f32 %v3316, -0.001358992
        %v3318 = vadd.f32 %v3317, 0.041655596
        %v3319 = vmul.f32 %v3316, %v3318
        %v3320 = vadd.f32 %v3319, -0.4999988
        %v3321 = vmul.f32 %v3316, %v3320
        %v3322 = vadd.f32 1.0, %v3321
        %v3323 = vmul.f32 %v3314, %v3314
        %v3324 = vmul.f32 %v3323, -0.00019511016
        %v3325 = vadd.f32 %v3324, 0.008332121
        %v3326 = vmul.f32 %v3323, %v3325
        %v3327 = vadd.f32 %v3326, -0.16666654
        %v3328 = vmul.f32 %v3323, %v3327
        %v3329 = vadd.f32 %v3328, 1.0
        %v3330 = vmul.f32 %v3329, %v3314
        %vm3331 = vweird.f32 %v400
        %v3332 = vadd.s32 %v3315, 3
        %v3333 = vand.u32 %v3332, 3
        %vm3334 = vcmp.lt.s32.totalorder %v3333, 2
        %vm3335 = vcmp.eq.s32.totalorder %v3333, 0
        %v3336 = vxor.u32 %v3330, 2147483648
        %v3337 = vsel %vm3335, %v3322, %v3336
        %vm3338 = vcmp.eq.s32.totalorder %v3333, 2
        %v3339 = vxor.u32 %v3322, 2147483648
        %v3340 = vsel %vm3338, %v3339, %v3330
        %v3341 = vsel %vm3334, %v3337, %v3340
        %v3342 = vsel %vm3331, nan, %v3341
        %v3343 = vand.u32 2147483647, %v401
        %vm3344 = vcmp.le.f32.partialorder %v3343, 0.7853982
        %vm3345 = vcmp.lt.s32.totalorder %v401, 0
        %v3346 = vand.u32 %v401, 2139095040
        %v3347 = vshrl.u32 %v3346, 23
        %v3348 = vsub.s32 %v3347, 127
        %v3349 = vand.u32 2147483647, %v401
        %v3350 = vand.u32 %v3349, 8388607
        %v3351 = vor.u32 %v3350, 8388608
        %v3352 = vsub.s32 0, %v3351
        %v3353 = vadd.s32 %v3348, 1
        %vm3354 = vcmp.gt.s32.totalorder %v3353, 0
        %v3355 = vsel %vm3354, %v3353, 0
        %v3356 = vshrl.u32 %v3355, 5
        %v3357 = vand.u32 %v3355, 31
        %v3358 = vsub.s32 32, %v3357
        %v3359 = vshrl.u32 683565275, %v3358
        %v3360 = vshll.u32 683565275, %v3357
        %v3361 = vshrl.u32 2475754826, %v3358
        %v3362 = vor.u32 %v3360, %v3361
        %v3363 = vshll.u32 2475754826, %v3357
        %v3364 = vshrl.u32 2131351028, %v3358
        %v3365 = vor.u32 %v3363, %v3364
        %v3366 = vshll.u32 2131351028, %v3357
        %v3367 = vshrl.u32 2102212464, %v3358
        %v3368 = vor.u32 %v3366, %v3367
        %v3369 = vshll.u32 2102212464, %v3357
        %v3370 = vshrl.u32 920167782, %v3358
        %v3371 = vor.u32 %v3369, %v3370
        %v3372 = vshll.u32 920167782, %v3357
        %v3373 = vshrl.u32 1326507024, %v3358
        %v3374 = vor.u32 %v3372, %v3373
        %vm3375 = vcmp.lt.s32.totalorder %v3356, 1
        %vm3376 = vcmp.lt.s32.totalorder %v3356, 2
        %vm3377 = vcmp.lt.s32.totalorder %v3356, 3
        %vm3378 = vcmp.lt.s32.totalorder %v3356, 4
        %v3379 = vsel %vm3375, %v3359, %v3362
        %v3380 = vsel %vm3378, %v3368, 2102212464
        %v3381 = vsel %vm3377, %v3365, %v3380
        %v3382 = vsel %vm3376, %v3379, %v3381
        %v3383 = vsel %vm3375, %v3362, %v3365
        %v3384 = vsel %vm3378, %v3371, 920167782
        %v3385 = vsel %vm3377, %v3368, %v3384
        %v3386 = vsel %vm3376, %v3383, %v3385
        %v3387 = vsel %vm3375, %v3365, %v3368
        %v3388 = vsel %vm3378, %v3374, 1326507024
        %v3389 = vsel %vm3377, %v3371, %v3388
        %v3390 = vsel %vm3376, %v3387, %v3389
        %v3391 = vshll.u32 %v3351, 8
        %v3392 = vand.u32 %v3391, 65535
        %v3393 = vshrl.u32 %v3391, 16
        %v3394 = vand.u32 %v3390, 65535
        %v3395 = vshrl.u32 %v3390, 16
        %v3396 = vmul.u32 %v3392, %v3394
        %v3397 = vmul.u32 %v3392, %v3395
        %v3398 = vmul.u32 %v3393, %v3394
        %v3399 = vmul.u32 %v3393, %v3395
        %v3400 = vshll.u32 %v3397, 16
        %v3401 = vshrl.u32 %v3397, 16
        %v3402 = vshll.u32 %v3398, 16
        %v3403 = vshrl.u32 %v3398, 16
        %vm3404 = vc.u32 %v3396, %v3400
        %v3405 = vsel %vm3404, 1, 0
        %v3406 = vadd.s32 %v3396, %v3400
        %v3407 = vadd.s32 %v3399, %v3405
        %vm3408 = vc.u32 %v3406, %v3402
        %v3409 = vsel %vm3408, 1, 0
        %v3410 = vadd.s32 %v3406, %v3402
        %v3411 = vadd.s32 %v3407, %v3409
        %v3412 = vadd.s32 %v3411, %v3401
        %v3413 = vadd.s32 %v3412, %v3403
        %v3414 = vand.u32 %v3391, 65535
        %v3415 = vshrl.u32 %v3391, 16
        %v3416 = vand.u32 %v3386, 65535
        %v3417 = vshrl.u32 %v3386, 16
        %v3418 = vmul.u32 %v3414, %v3416
        %v3419 = vmul.u32 %v3414, %v3417
        %v3420 = vmul.u32 %v3415, %v3416
        %v3421 = vmul.u32 %v3415, %v3417
        %v3422 = vshll.u32 %v3419, 16
        %v3423 = vshrl.u32 %v3419, 16
        %v3424 = vshll.u32 %v3420, 16
        %v3425 = vshrl.u32 %v3420, 16
        %vm3426 = vc.u32 %v3418, %v3422
        %v3427 = vsel %vm3426, 1, 0
        %v3428 = vadd.s32 %v3418, %v3422
        %v3429 = vadd.s32 %v3421, %v3427
        %vm3430 = vc.u32 %v3428, %v3424
        %v3431 = vsel %vm3430, 1, 0
        %v3432 = vadd.s32 %v3428, %v3424
        %v3433 = vadd.s32 %v3429, %v3431
        %v3434 = vadd.s32 %v3433, %v3423
        %v3435 = vadd.s32 %v3434, %v3425
        %v3436 = vmul.u32 %v3391, %v3382
        %v3437 = vadd.s32 %v3413, %v3432
        %vm3438 = vc.u32 %v3413, %v3432
        %v3439 = vadd.s32 %v3435, 1
        %v3440 = vsel %vm3438, %v3439, %v3435
        %v3441 = vadd.s32 %v3436, %v3440
        %v3442 = vadd.s32 %v3441, 536870912
        %v3443 = vshrl.u32 %v3442, 30
        %v3444 = vshll.u32 %v3443, 30
        %v3445 = vsub.s32 %v3441, %v3444
        %vm3446 = vcmp.lt.s32.totalorder %v3445, 0
        %v3447 = vsub.s32 0, %v3445
        %v3448 = vsel %vm3446, %v3447, %v3445
        %v3449 = vclz %v3448
        %v3450 = vsub.s32 %v3449, 2
        %vm3451 = vcmp.gt.s32.totalorder 0, %v3450
        %v3452 = vsel %vm3451, 0, %v3450
        %v3453 = vsub.s32 32, %v3452
        %v3454 = vshll.u32 %v3445, %v3452
        %v3455 = vshrl.u32 %v3437, %v3453
        %v3456 = vor.u32 %v3454, %v3455
        %v3457 = vsub.s32 4294967266, %v3452
        %v3458 = vadd.s32 %v3457, 127
        %v3459 = vshll.u32 %v3458, 23
        %v3460 = vor.u32 4788187, %v3459
        %v3461 = vand.u32 2147483647, %v3460
        %v3463 = vcvt.s32.f32 %v3456
        %v3464 = vmul.f32 %v3463, %v3461
        %v3465 = vxor.u32 %v3464, 2147483648
        %v3466 = vsel %vm3345, %v3465, %v3464
        %v3467 = vsub.s32 4, %v3443
        %v3468 = vsel %vm3345, %v3467, %v3443
        %v3469 = vsel %vm3344, %v401, %v3466
        %v3470 = vsel %vm3344, 0, %v3468
        %v3471 = vmul.f32 %v3469, %v3469
        %v3472 = vmul.f32 %v3471, -0.001358992
        %v3473 = vadd.f32 %v3472, 0.041655596
        %v3474 = vmul.f32 %v3471, %v3473
        %v3475 = vadd.f32 %v3474, -0.4999988
        %v3476 = vmul.f32 %v3471, %v3475
        %v3477 = vadd.f32 1.0, %v3476
        %v3478 = vmul.f32 %v3469, %v3469
        %v3479 = vmul.f32 %v3478, -0.00019511016
        %v3480 = vadd.f32 %v3479, 0.008332121
        %v3481 = vmul.f32 %v3478, %v3480
        %v3482 = vadd.f32 %v3481, -0.16666654
        %v3483 = vmul.f32 %v3478, %v3482
        %v3484 = vadd.f32 %v3483, 1.0
        %v3485 = vmul.f32 %v3484, %v3469
        %vm3486 = vweird.f32 %v401
        %v3487 = vadd.s32 %v3470, 3
        %v3488 = vand.u32 %v3487, 3
        %vm3489 = vcmp.lt.s32.totalorder %v3488, 2
        %vm3490 = vcmp.eq.s32.totalorder %v3488, 0
        %v3491 = vxor.u32 %v3485, 2147483648
        %v3492 = vsel %vm3490, %v3477, %v3491
        %vm3493 = vcmp.eq.s32.totalorder %v3488, 2
        %v3494 = vxor.u32 %v3477, 2147483648
        %v3495 = vsel %vm3493, %v3494, %v3485
        %v3496 = vsel %vm3489, %v3492, %v3495
        %v3497 = vsel %vm3486, nan, %v3496
        %v3498 = vand.u32 2147483647, %v402
        %vm3499 = vcmp.le.f32.partialorder %v3498, 0.7853982
        %vm3500 = vcmp.lt.s32.totalorder %v402, 0
        %v3501 = vand.u32 %v402, 2139095040
        %v3502 = vshrl.u32 %v3501, 23
        %v3503 = vsub.s32 %v3502, 127
        %v3504 = vand.u32 2147483647, %v402
        %v3505 = vand.u32 %v3504, 8388607
        %v3506 = vor.u32 %v3505, 8388608
        %v3507 = vsub.s32 0, %v3506
        %v3508 = vadd.s32 %v3503, 1
        %vm3509 = vcmp.gt.s32.totalorder %v3508, 0
        %v3510 = vsel %vm3509, %v3508, 0
        %v3511 = vshrl.u32 %v3510, 5
        %v3512 = vand.u32 %v3510, 31
        %v3513 = vsub.s32 32, %v3512
        %v3514 = vshrl.u32 683565275, %v3513
        %v3515 = vshll.u32 683565275, %v3512
        %v3516 = vshrl.u32 2475754826, %v3513
        %v3517 = vor.u32 %v3515, %v3516
        %v3518 = vshll.u32 2475754826, %v3512
        %v3519 = vshrl.u32 2131351028, %v3513
        %v3520 = vor.u32 %v3518, %v3519
        %v3521 = vshll.u32 2131351028, %v3512
        %v3522 = vshrl.u32 2102212464, %v3513
        %v3523 = vor.u32 %v3521, %v3522
        %v3524 = vshll.u32 2102212464, %v3512
        %v3525 = vshrl.u32 920167782, %v3513
        %v3526 = vor.u32 %v3524, %v3525
        %v3527 = vshll.u32 920167782, %v3512
        %v3528 = vshrl.u32 1326507024, %v3513
        %v3529 = vor.u32 %v3527, %v3528
        %vm3530 = vcmp.lt.s32.totalorder %v3511, 1
        %vm3531 = vcmp.lt.s32.totalorder %v3511, 2
        %vm3532 = vcmp.lt.s32.totalorder %v3511, 3
        %vm3533 = vcmp.lt.s32.totalorder %v3511, 4
        %v3534 = vsel %vm3530, %v3514, %v3517
        %v3535 = vsel %vm3533, %v3523, 2102212464
        %v3536 = vsel %vm3532, %v3520, %v3535
        %v3537 = vsel %vm3531, %v3534, %v3536
        %v3538 = vsel %vm3530, %v3517, %v3520
        %v3539 = vsel %vm3533, %v3526, 920167782
        %v3540 = vsel %vm3532, %v3523, %v3539
        %v3541 = vsel %vm3531, %v3538, %v3540
        %v3542 = vsel %vm3530, %v3520, %v3523
        %v3543 = vsel %vm3533, %v3529, 1326507024
        %v3544 = vsel %vm3532, %v3526, %v3543
        %v3545 = vsel %vm3531, %v3542, %v3544
        %v3546 = vshll.u32 %v3506, 8
        %v3547 = vand.u32 %v3546, 65535
        %v3548 = vshrl.u32 %v3546, 16
        %v3549 = vand.u32 %v3545, 65535
        %v3550 = vshrl.u32 %v3545, 16
        %v3551 = vmul.u32 %v3547, %v3549
        %v3552 = vmul.u32 %v3547, %v3550
        %v3553 = vmul.u32 %v3548, %v3549
        %v3554 = vmul.u32 %v3548, %v3550
        %v3555 = vshll.u32 %v3552, 16
        %v3556 = vshrl.u32 %v3552, 16
        %v3557 = vshll.u32 %v3553, 16
        %v3558 = vshrl.u32 %v3553, 16
        %vm3559 = vc.u32 %v3551, %v3555
        %v3560 = vsel %vm3559, 1, 0
        %v3561 = vadd.s32 %v3551, %v3555
        %v3562 = vadd.s32 %v3554, %v3560
        %vm3563 = vc.u32 %v3561, %v3557
        %v3564 = vsel %vm3563, 1, 0
        %v3565 = vadd.s32 %v3561, %v3557
        %v3566 = vadd.s32 %v3562, %v3564
        %v3567 = vadd.s32 %v3566, %v3556
        %v3568 = vadd.s32 %v3567, %v3558
        %v3569 = vand.u32 %v3546, 65535
        %v3570 = vshrl.u32 %v3546, 16
        %v3571 = vand.u32 %v3541, 65535
        %v3572 = vshrl.u32 %v3541, 16
        %v3573 = vmul.u32 %v3569, %v3571
        %v3574 = vmul.u32 %v3569, %v3572
        %v3575 = vmul.u32 %v3570, %v3571
        %v3576 = vmul.u32 %v3570, %v3572
        %v3577 = vshll.u32 %v3574, 16
        %v3578 = vshrl.u32 %v3574, 16
        %v3579 = vshll.u32 %v3575, 16
        %v3580 = vshrl.u32 %v3575, 16
        %vm3581 = vc.u32 %v3573, %v3577
        %v3582 = vsel %vm3581, 1, 0
        %v3583 = vadd.s32 %v3573, %v3577
        %v3584 = vadd.s32 %v3576, %v3582
        %vm3585 = vc.u32 %v3583, %v3579
        %v3586 = vsel %vm3585, 1, 0
        %v3587 = vadd.s32 %v3583, %v3579
        %v3588 = vadd.s32 %v3584, %v3586
        %v3589 = vadd.s32 %v3588, %v3578
        %v3590 = vadd.s32 %v3589, %v3580
        %v3591 = vmul.u32 %v3546, %v3537
        %v3592 = vadd.s32 %v3568, %v3587
        %vm3593 = vc.u32 %v3568, %v3587
        %v3594 = vadd.s32 %v3590, 1
        %v3595 = vsel %vm3593, %v3594, %v3590
        %v3596 = vadd.s32 %v3591, %v3595
        %v3597 = vadd.s32 %v3596, 536870912
        %v3598 = vshrl.u32 %v3597, 30
        %v3599 = vshll.u32 %v3598, 30
        %v3600 = vsub.s32 %v3596, %v3599
        %vm3601 = vcmp.lt.s32.totalorder %v3600, 0
        %v3602 = vsub.s32 0, %v3600
        %v3603 = vsel %vm3601, %v3602, %v3600
        %v3604 = vclz %v3603
        %v3605 = vsub.s32 %v3604, 2
        %vm3606 = vcmp.gt.s32.totalorder 0, %v3605
        %v3607 = vsel %vm3606, 0, %v3605
        %v3608 = vsub.s32 32, %v3607
        %v3609 = vshll.u32 %v3600, %v3607
        %v3610 = vshrl.u32 %v3592, %v3608
        %v3611 = vor.u32 %v3609, %v3610
        %v3612 = vsub.s32 4294967266, %v3607
        %v3613 = vadd.s32 %v3612, 127
        %v3614 = vshll.u32 %v3613, 23
        %v3615 = vor.u32 4788187, %v3614
        %v3616 = vand.u32 2147483647, %v3615
        %v3618 = vcvt.s32.f32 %v3611
        %v3619 = vmul.f32 %v3618, %v3616
        %v3620 = vxor.u32 %v3619, 2147483648
        %v3621 = vsel %vm3500, %v3620, %v3619
        %v3622 = vsub.s32 4, %v3598
        %v3623 = vsel %vm3500, %v3622, %v3598
        %v3624 = vsel %vm3499, %v402, %v3621
        %v3625 = vsel %vm3499, 0, %v3623
        %v3626 = vmul.f32 %v3624, %v3624
        %v3627 = vmul.f32 %v3626, -0.001358992
        %v3628 = vadd.f32 %v3627, 0.041655596
        %v3629 = vmul.f32 %v3626, %v3628
        %v3630 = vadd.f32 %v3629, -0.4999988
        %v3631 = vmul.f32 %v3626, %v3630
        %v3632 = vadd.f32 1.0, %v3631
        %v3633 = vmul.f32 %v3624, %v3624
        %v3634 = vmul.f32 %v3633, -0.00019511016
        %v3635 = vadd.f32 %v3634, 0.008332121
        %v3636 = vmul.f32 %v3633, %v3635
        %v3637 = vadd.f32 %v3636, -0.16666654
        %v3638 = vmul.f32 %v3633, %v3637
        %v3639 = vadd.f32 %v3638, 1.0
        %v3640 = vmul.f32 %v3639, %v3624
        %vm3641 = vweird.f32 %v402
        %v3642 = vadd.s32 %v3625, 3
        %v3643 = vand.u32 %v3642, 3
        %vm3644 = vcmp.lt.s32.totalorder %v3643, 2
        %vm3645 = vcmp.eq.s32.totalorder %v3643, 0
        %v3646 = vxor.u32 %v3640, 2147483648
        %v3647 = vsel %vm3645, %v3632, %v3646
        %vm3648 = vcmp.eq.s32.totalorder %v3643, 2
        %v3649 = vxor.u32 %v3632, 2147483648
        %v3650 = vsel %vm3648, %v3649, %v3640
        %v3651 = vsel %vm3644, %v3647, %v3650
        %v3652 = vsel %vm3641, nan, %v3651
        %v3653 = vand.u32 2147483647, %v403
        %vm3654 = vcmp.le.f32.partialorder %v3653, 0.7853982
        %vm3655 = vcmp.lt.s32.totalorder %v403, 0
        %v3656 = vand.u32 %v403, 2139095040
        %v3657 = vshrl.u32 %v3656, 23
        %v3658 = vsub.s32 %v3657, 127
        %v3659 = vand.u32 2147483647, %v403
        %v3660 = vand.u32 %v3659, 8388607
        %v3661 = vor.u32 %v3660, 8388608
        %v3662 = vsub.s32 0, %v3661
        %v3663 = vadd.s32 %v3658, 1
        %vm3664 = vcmp.gt.s32.totalorder %v3663, 0
        %v3665 = vsel %vm3664, %v3663, 0
        %v3666 = vshrl.u32 %v3665, 5
        %v3667 = vand.u32 %v3665, 31
        %v3668 = vsub.s32 32, %v3667
        %v3669 = vshrl.u32 683565275, %v3668
        %v3670 = vshll.u32 683565275, %v3667
        %v3671 = vshrl.u32 2475754826, %v3668
        %v3672 = vor.u32 %v3670, %v3671
        %v3673 = vshll.u32 2475754826, %v3667
        %v3674 = vshrl.u32 2131351028, %v3668
        %v3675 = vor.u32 %v3673, %v3674
        %v3676 = vshll.u32 2131351028, %v3667
        %v3677 = vshrl.u32 2102212464, %v3668
        %v3678 = vor.u32 %v3676, %v3677
        %v3679 = vshll.u32 2102212464, %v3667
        %v3680 = vshrl.u32 920167782, %v3668
        %v3681 = vor.u32 %v3679, %v3680
        %v3682 = vshll.u32 920167782, %v3667
        %v3683 = vshrl.u32 1326507024, %v3668
        %v3684 = vor.u32 %v3682, %v3683
        %vm3685 = vcmp.lt.s32.totalorder %v3666, 1
        %vm3686 = vcmp.lt.s32.totalorder %v3666, 2
        %vm3687 = vcmp.lt.s32.totalorder %v3666, 3
        %vm3688 = vcmp.lt.s32.totalorder %v3666, 4
        %v3689 = vsel %vm3685, %v3669, %v3672
        %v3690 = vsel %vm3688, %v3678, 2102212464
        %v3691 = vsel %vm3687, %v3675, %v3690
        %v3692 = vsel %vm3686, %v3689, %v3691
        %v3693 = vsel %vm3685, %v3672, %v3675
        %v3694 = vsel %vm3688, %v3681, 920167782
        %v3695 = vsel %vm3687, %v3678, %v3694
        %v3696 = vsel %vm3686, %v3693, %v3695
        %v3697 = vsel %vm3685, %v3675, %v3678
        %v3698 = vsel %vm3688, %v3684, 1326507024
        %v3699 = vsel %vm3687, %v3681, %v3698
        %v3700 = vsel %vm3686, %v3697, %v3699
        %v3701 = vshll.u32 %v3661, 8
        %v3702 = vand.u32 %v3701, 65535
        %v3703 = vshrl.u32 %v3701, 16
        %v3704 = vand.u32 %v3700, 65535
        %v3705 = vshrl.u32 %v3700, 16
        %v3706 = vmul.u32 %v3702, %v3704
        %v3707 = vmul.u32 %v3702, %v3705
        %v3708 = vmul.u32 %v3703, %v3704
        %v3709 = vmul.u32 %v3703, %v3705
        %v3710 = vshll.u32 %v3707, 16
        %v3711 = vshrl.u32 %v3707, 16
        %v3712 = vshll.u32 %v3708, 16
        %v3713 = vshrl.u32 %v3708, 16
        %vm3714 = vc.u32 %v3706, %v3710
        %v3715 = vsel %vm3714, 1, 0
        %v3716 = vadd.s32 %v3706, %v3710
        %v3717 = vadd.s32 %v3709, %v3715
        %vm3718 = vc.u32 %v3716, %v3712
        %v3719 = vsel %vm3718, 1, 0
        %v3720 = vadd.s32 %v3716, %v3712
        %v3721 = vadd.s32 %v3717, %v3719
        %v3722 = vadd.s32 %v3721, %v3711
        %v3723 = vadd.s32 %v3722, %v3713
        %v3724 = vand.u32 %v3701, 65535
        %v3725 = vshrl.u32 %v3701, 16
        %v3726 = vand.u32 %v3696, 65535
        %v3727 = vshrl.u32 %v3696, 16
        %v3728 = vmul.u32 %v3724, %v3726
        %v3729 = vmul.u32 %v3724, %v3727
        %v3730 = vmul.u32 %v3725, %v3726
        %v3731 = vmul.u32 %v3725, %v3727
        %v3732 = vshll.u32 %v3729, 16
        %v3733 = vshrl.u32 %v3729, 16
        %v3734 = vshll.u32 %v3730, 16
        %v3735 = vshrl.u32 %v3730, 16
        %vm3736 = vc.u32 %v3728, %v3732
        %v3737 = vsel %vm3736, 1, 0
        %v3738 = vadd.s32 %v3728, %v3732
        %v3739 = vadd.s32 %v3731, %v3737
        %vm3740 = vc.u32 %v3738, %v3734
        %v3741 = vsel %vm3740, 1, 0
        %v3742 = vadd.s32 %v3738, %v3734
        %v3743 = vadd.s32 %v3739, %v3741
        %v3744 = vadd.s32 %v3743, %v3733
        %v3745 = vadd.s32 %v3744, %v3735
        %v3746 = vmul.u32 %v3701, %v3692
        %v3747 = vadd.s32 %v3723, %v3742
        %vm3748 = vc.u32 %v3723, %v3742
        %v3749 = vadd.s32 %v3745, 1
        %v3750 = vsel %vm3748, %v3749, %v3745
        %v3751 = vadd.s32 %v3746, %v3750
        %v3752 = vadd.s32 %v3751, 536870912
        %v3753 = vshrl.u32 %v3752, 30
        %v3754 = vshll.u32 %v3753, 30
        %v3755 = vsub.s32 %v3751, %v3754
        %vm3756 = vcmp.lt.s32.totalorder %v3755, 0
        %v3757 = vsub.s32 0, %v3755
        %v3758 = vsel %vm3756, %v3757, %v3755
        %v3759 = vclz %v3758
        %v3760 = vsub.s32 %v3759, 2
        %vm3761 = vcmp.gt.s32.totalorder 0, %v3760
        %v3762 = vsel %vm3761, 0, %v3760
        %v3763 = vsub.s32 32, %v3762
        %v3764 = vshll.u32 %v3755, %v3762
        %v3765 = vshrl.u32 %v3747, %v3763
        %v3766 = vor.u32 %v3764, %v3765
        %v3767 = vsub.s32 4294967266, %v3762
        %v3768 = vadd.s32 %v3767, 127
        %v3769 = vshll.u32 %v3768, 23
        %v3770 = vor.u32 4788187, %v3769
        %v3771 = vand.u32 2147483647, %v3770
        %v3773 = vcvt.s32.f32 %v3766
        %v3774 = vmul.f32 %v3773, %v3771
        %v3775 = vxor.u32 %v3774, 2147483648
        %v3776 = vsel %vm3655, %v3775, %v3774
        %v3777 = vsub.s32 4, %v3753
        %v3778 = vsel %vm3655, %v3777, %v3753
        %v3779 = vsel %vm3654, %v403, %v3776
        %v3780 = vsel %vm3654, 0, %v3778
        %v3781 = vmul.f32 %v3779, %v3779
        %v3782 = vmul.f32 %v3781, -0.001358992
        %v3783 = vadd.f32 %v3782, 0.041655596
        %v3784 = vmul.f32 %v3781, %v3783
        %v3785 = vadd.f32 %v3784, -0.4999988
        %v3786 = vmul.f32 %v3781, %v3785
        %v3787 = vadd.f32 1.0, %v3786
        %v3788 = vmul.f32 %v3779, %v3779
        %v3789 = vmul.f32 %v3788, -0.00019511016
        %v3790 = vadd.f32 %v3789, 0.008332121
        %v3791 = vmul.f32 %v3788, %v3790
        %v3792 = vadd.f32 %v3791, -0.16666654
        %v3793 = vmul.f32 %v3788, %v3792
        %v3794 = vadd.f32 %v3793, 1.0
        %v3795 = vmul.f32 %v3794, %v3779
        %vm3796 = vweird.f32 %v403
        %v3797 = vadd.s32 %v3780, 3
        %v3798 = vand.u32 %v3797, 3
        %vm3799 = vcmp.lt.s32.totalorder %v3798, 2
        %vm3800 = vcmp.eq.s32.totalorder %v3798, 0
        %v3801 = vxor.u32 %v3795, 2147483648
        %v3802 = vsel %vm3800, %v3787, %v3801
        %vm3803 = vcmp.eq.s32.totalorder %v3798, 2
        %v3804 = vxor.u32 %v3787, 2147483648
        %v3805 = vsel %vm3803, %v3804, %v3795
        %v3806 = vsel %vm3799, %v3802, %v3805
        %v3807 = vsel %vm3796, nan, %v3806
        %v3808 = vand.u32 2147483647, %v404
        %vm3809 = vcmp.le.f32.partialorder %v3808, 0.7853982
        %vm3810 = vcmp.lt.s32.totalorder %v404, 0
        %v3811 = vand.u32 %v404, 2139095040
        %v3812 = vshrl.u32 %v3811, 23
        %v3813 = vsub.s32 %v3812, 127
        %v3814 = vand.u32 2147483647, %v404
        %v3815 = vand.u32 %v3814, 8388607
        %v3816 = vor.u32 %v3815, 8388608
        %v3817 = vsub.s32 0, %v3816
        %v3818 = vadd.s32 %v3813, 1
        %vm3819 = vcmp.gt.s32.totalorder %v3818, 0
        %v3820 = vsel %vm3819, %v3818, 0
        %v3821 = vshrl.u32 %v3820, 5
        %v3822 = vand.u32 %v3820, 31
        %v3823 = vsub.s32 32, %v3822
        %v3824 = vshrl.u32 683565275, %v3823
        %v3825 = vshll.u32 683565275, %v3822
        %v3826 = vshrl.u32 2475754826, %v3823
        %v3827 = vor.u32 %v3825, %v3826
        %v3828 = vshll.u32 2475754826, %v3822
        %v3829 = vshrl.u32 2131351028, %v3823
        %v3830 = vor.u32 %v3828, %v3829
        %v3831 = vshll.u32 2131351028, %v3822
        %v3832 = vshrl.u32 2102212464, %v3823
        %v3833 = vor.u32 %v3831, %v3832
        %v3834 = vshll.u32 2102212464, %v3822
        %v3835 = vshrl.u32 920167782, %v3823
        %v3836 = vor.u32 %v3834, %v3835
        %v3837 = vshll.u32 920167782, %v3822
        %v3838 = vshrl.u32 1326507024, %v3823
        %v3839 = vor.u32 %v3837, %v3838
        %vm3840 = vcmp.lt.s32.totalorder %v3821, 1
        %vm3841 = vcmp.lt.s32.totalorder %v3821, 2
        %vm3842 = vcmp.lt.s32.totalorder %v3821, 3
        %vm3843 = vcmp.lt.s32.totalorder %v3821, 4
        %v3844 = vsel %vm3840, %v3824, %v3827
        %v3845 = vsel %vm3843, %v3833, 2102212464
        %v3846 = vsel %vm3842, %v3830, %v3845
        %v3847 = vsel %vm3841, %v3844, %v3846
        %v3848 = vsel %vm3840, %v3827, %v3830
        %v3849 = vsel %vm3843, %v3836, 920167782
        %v3850 = vsel %vm3842, %v3833, %v3849
        %v3851 = vsel %vm3841, %v3848, %v3850
        %v3852 = vsel %vm3840, %v3830, %v3833
        %v3853 = vsel %vm3843, %v3839, 1326507024
        %v3854 = vsel %vm3842, %v3836, %v3853
        %v3855 = vsel %vm3841, %v3852, %v3854
        %v3856 = vshll.u32 %v3816, 8
        %v3857 = vand.u32 %v3856, 65535
        %v3858 = vshrl.u32 %v3856, 16
        %v3859 = vand.u32 %v3855, 65535
        %v3860 = vshrl.u32 %v3855, 16
        %v3861 = vmul.u32 %v3857, %v3859
        %v3862 = vmul.u32 %v3857, %v3860
        %v3863 = vmul.u32 %v3858, %v3859
        %v3864 = vmul.u32 %v3858, %v3860
        %v3865 = vshll.u32 %v3862, 16
        %v3866 = vshrl.u32 %v3862, 16
        %v3867 = vshll.u32 %v3863, 16
        %v3868 = vshrl.u32 %v3863, 16
        %vm3869 = vc.u32 %v3861, %v3865
        %v3870 = vsel %vm3869, 1, 0
        %v3871 = vadd.s32 %v3861, %v3865
        %v3872 = vadd.s32 %v3864, %v3870
        %vm3873 = vc.u32 %v3871, %v3867
        %v3874 = vsel %vm3873, 1, 0
        %v3875 = vadd.s32 %v3871, %v3867
        %v3876 = vadd.s32 %v3872, %v3874
        %v3877 = vadd.s32 %v3876, %v3866
        %v3878 = vadd.s32 %v3877, %v3868
        %v3879 = vand.u32 %v3856, 65535
        %v3880 = vshrl.u32 %v3856, 16
        %v3881 = vand.u32 %v3851, 65535
        %v3882 = vshrl.u32 %v3851, 16
        %v3883 = vmul.u32 %v3879, %v3881
        %v3884 = vmul.u32 %v3879, %v3882
        %v3885 = vmul.u32 %v3880, %v3881
        %v3886 = vmul.u32 %v3880, %v3882
        %v3887 = vshll.u32 %v3884, 16
        %v3888 = vshrl.u32 %v3884, 16
        %v3889 = vshll.u32 %v3885, 16
        %v3890 = vshrl.u32 %v3885, 16
        %vm3891 = vc.u32 %v3883, %v3887
        %v3892 = vsel %vm3891, 1, 0
        %v3893 = vadd.s32 %v3883, %v3887
        %v3894 = vadd.s32 %v3886, %v3892
        %vm3895 = vc.u32 %v3893, %v3889
        %v3896 = vsel %vm3895, 1, 0
        %v3897 = vadd.s32 %v3893, %v3889
        %v3898 = vadd.s32 %v3894, %v3896
        %v3899 = vadd.s32 %v3898, %v3888
        %v3900 = vadd.s32 %v3899, %v3890
        %v3901 = vmul.u32 %v3856, %v3847
        %v3902 = vadd.s32 %v3878, %v3897
        %vm3903 = vc.u32 %v3878, %v3897
        %v3904 = vadd.s32 %v3900, 1
        %v3905 = vsel %vm3903, %v3904, %v3900
        %v3906 = vadd.s32 %v3901, %v3905
        %v3907 = vadd.s32 %v3906, 536870912
        %v3908 = vshrl.u32 %v3907, 30
        %v3909 = vshll.u32 %v3908, 30
        %v3910 = vsub.s32 %v3906, %v3909
        %vm3911 = vcmp.lt.s32.totalorder %v3910, 0
        %v3912 = vsub.s32 0, %v3910
        %v3913 = vsel %vm3911, %v3912, %v3910
        %v3914 = vclz %v3913
        %v3915 = vsub.s32 %v3914, 2
        %vm3916 = vcmp.gt.s32.totalorder 0, %v3915
        %v3917 = vsel %vm3916, 0, %v3915
        %v3918 = vsub.s32 32, %v3917
        %v3919 = vshll.u32 %v3910, %v3917
        %v3920 = vshrl.u32 %v3902, %v3918
        %v3921 = vor.u32 %v3919, %v3920
        %v3922 = vsub.s32 4294967266, %v3917
        %v3923 = vadd.s32 %v3922, 127
        %v3924 = vshll.u32 %v3923, 23
        %v3925 = vor.u32 4788187, %v3924
        %v3926 = vand.u32 2147483647, %v3925
        %v3928 = vcvt.s32.f32 %v3921
        %v3929 = vmul.f32 %v3928, %v3926
        %v3930 = vxor.u32 %v3929, 2147483648
        %v3931 = vsel %vm3810, %v3930, %v3929
        %v3932 = vsub.s32 4, %v3908
        %v3933 = vsel %vm3810, %v3932, %v3908
        %v3934 = vsel %vm3809, %v404, %v3931
        %v3935 = vsel %vm3809, 0, %v3933
        %v3936 = vmul.f32 %v3934, %v3934
        %v3937 = vmul.f32 %v3936, -0.001358992
        %v3938 = vadd.f32 %v3937, 0.041655596
        %v3939 = vmul.f32 %v3936, %v3938
        %v3940 = vadd.f32 %v3939, -0.4999988
        %v3941 = vmul.f32 %v3936, %v3940
        %v3942 = vadd.f32 1.0, %v3941
        %v3943 = vmul.f32 %v3934, %v3934
        %v3944 = vmul.f32 %v3943, -0.00019511016
        %v3945 = vadd.f32 %v3944, 0.008332121
        %v3946 = vmul.f32 %v3943, %v3945
        %v3947 = vadd.f32 %v3946, -0.16666654
        %v3948 = vmul.f32 %v3943, %v3947
        %v3949 = vadd.f32 %v3948, 1.0
        %v3950 = vmul.f32 %v3949, %v3934
        %vm3951 = vweird.f32 %v404
        %v3952 = vadd.s32 %v3935, 3
        %v3953 = vand.u32 %v3952, 3
        %vm3954 = vcmp.lt.s32.totalorder %v3953, 2
        %vm3955 = vcmp.eq.s32.totalorder %v3953, 0
        %v3956 = vxor.u32 %v3950, 2147483648
        %v3957 = vsel %vm3955, %v3942, %v3956
        %vm3958 = vcmp.eq.s32.totalorder %v3953, 2
        %v3959 = vxor.u32 %v3942, 2147483648
        %v3960 = vsel %vm3958, %v3959, %v3950
        %v3961 = vsel %vm3954, %v3957, %v3960
        %v3962 = vsel %vm3951, nan, %v3961
        %v3963 = vand.u32 2147483647, %v405
        %vm3964 = vcmp.le.f32.partialorder %v3963, 0.7853982
        %vm3965 = vcmp.lt.s32.totalorder %v405, 0
        %v3966 = vand.u32 %v405, 2139095040
        %v3967 = vshrl.u32 %v3966, 23
        %v3968 = vsub.s32 %v3967, 127
        %v3969 = vand.u32 2147483647, %v405
        %v3970 = vand.u32 %v3969, 8388607
        %v3971 = vor.u32 %v3970, 8388608
        %v3972 = vsub.s32 0, %v3971
        %v3973 = vadd.s32 %v3968, 1
        %vm3974 = vcmp.gt.s32.totalorder %v3973, 0
        %v3975 = vsel %vm3974, %v3973, 0
        %v3976 = vshrl.u32 %v3975, 5
        %v3977 = vand.u32 %v3975, 31
        %v3978 = vsub.s32 32, %v3977
        %v3979 = vshrl.u32 683565275, %v3978
        %v3980 = vshll.u32 683565275, %v3977
        %v3981 = vshrl.u32 2475754826, %v3978
        %v3982 = vor.u32 %v3980, %v3981
        %v3983 = vshll.u32 2475754826, %v3977
        %v3984 = vshrl.u32 2131351028, %v3978
        %v3985 = vor.u32 %v3983, %v3984
        %v3986 = vshll.u32 2131351028, %v3977
        %v3987 = vshrl.u32 2102212464, %v3978
        %v3988 = vor.u32 %v3986, %v3987
        %v3989 = vshll.u32 2102212464, %v3977
        %v3990 = vshrl.u32 920167782, %v3978
        %v3991 = vor.u32 %v3989, %v3990
        %v3992 = vshll.u32 920167782, %v3977
        %v3993 = vshrl.u32 1326507024, %v3978
        %v3994 = vor.u32 %v3992, %v3993
        %vm3995 = vcmp.lt.s32.totalorder %v3976, 1
        %vm3996 = vcmp.lt.s32.totalorder %v3976, 2
        %vm3997 = vcmp.lt.s32.totalorder %v3976, 3
        %vm3998 = vcmp.lt.s32.totalorder %v3976, 4
        %v3999 = vsel %vm3995, %v3979, %v3982
        %v4000 = vsel %vm3998, %v3988, 2102212464
        %v4001 = vsel %vm3997, %v3985, %v4000
        %v4002 = vsel %vm3996, %v3999, %v4001
        %v4003 = vsel %vm3995, %v3982, %v3985
        %v4004 = vsel %vm3998, %v3991, 920167782
        %v4005 = vsel %vm3997, %v3988, %v4004
        %v4006 = vsel %vm3996, %v4003, %v4005
        %v4007 = vsel %vm3995, %v3985, %v3988
        %v4008 = vsel %vm3998, %v3994, 1326507024
        %v4009 = vsel %vm3997, %v3991, %v4008
        %v4010 = vsel %vm3996, %v4007, %v4009
        %v4011 = vshll.u32 %v3971, 8
        %v4012 = vand.u32 %v4011, 65535
        %v4013 = vshrl.u32 %v4011, 16
        %v4014 = vand.u32 %v4010, 65535
        %v4015 = vshrl.u32 %v4010, 16
        %v4016 = vmul.u32 %v4012, %v4014
        %v4017 = vmul.u32 %v4012, %v4015
        %v4018 = vmul.u32 %v4013, %v4014
        %v4019 = vmul.u32 %v4013, %v4015
        %v4020 = vshll.u32 %v4017, 16
        %v4021 = vshrl.u32 %v4017, 16
        %v4022 = vshll.u32 %v4018, 16
        %v4023 = vshrl.u32 %v4018, 16
        %vm4024 = vc.u32 %v4016, %v4020
        %v4025 = vsel %vm4024, 1, 0
        %v4026 = vadd.s32 %v4016, %v4020
        %v4027 = vadd.s32 %v4019, %v4025
        %vm4028 = vc.u32 %v4026, %v4022
        %v4029 = vsel %vm4028, 1, 0
        %v4030 = vadd.s32 %v4026, %v4022
        %v4031 = vadd.s32 %v4027, %v4029
        %v4032 = vadd.s32 %v4031, %v4021
        %v4033 = vadd.s32 %v4032, %v4023
        %v4034 = vand.u32 %v4011, 65535
        %v4035 = vshrl.u32 %v4011, 16
        %v4036 = vand.u32 %v4006, 65535
        %v4037 = vshrl.u32 %v4006, 16
        %v4038 = vmul.u32 %v4034, %v4036
        %v4039 = vmul.u32 %v4034, %v4037
        %v4040 = vmul.u32 %v4035, %v4036
        %v4041 = vmul.u32 %v4035, %v4037
        %v4042 = vshll.u32 %v4039, 16
        %v4043 = vshrl.u32 %v4039, 16
        %v4044 = vshll.u32 %v4040, 16
        %v4045 = vshrl.u32 %v4040, 16
        %vm4046 = vc.u32 %v4038, %v4042
        %v4047 = vsel %vm4046, 1, 0
        %v4048 = vadd.s32 %v4038, %v4042
        %v4049 = vadd.s32 %v4041, %v4047
        %vm4050 = vc.u32 %v4048, %v4044
        %v4051 = vsel %vm4050, 1, 0
        %v4052 = vadd.s32 %v4048, %v4044
        %v4053 = vadd.s32 %v4049, %v4051
        %v4054 = vadd.s32 %v4053, %v4043
        %v4055 = vadd.s32 %v4054, %v4045
        %v4056 = vmul.u32 %v4011, %v4002
        %v4057 = vadd.s32 %v4033, %v4052
        %vm4058 = vc.u32 %v4033, %v4052
        %v4059 = vadd.s32 %v4055, 1
        %v4060 = vsel %vm4058, %v4059, %v4055
        %v4061 = vadd.s32 %v4056, %v4060
        %v4062 = vadd.s32 %v4061, 536870912
        %v4063 = vshrl.u32 %v4062, 30
        %v4064 = vshll.u32 %v4063, 30
        %v4065 = vsub.s32 %v4061, %v4064
        %vm4066 = vcmp.lt.s32.totalorder %v4065, 0
        %v4067 = vsub.s32 0, %v4065
        %v4068 = vsel %vm4066, %v4067, %v4065
        %v4069 = vclz %v4068
        %v4070 = vsub.s32 %v4069, 2
        %vm4071 = vcmp.gt.s32.totalorder 0, %v4070
        %v4072 = vsel %vm4071, 0, %v4070
        %v4073 = vsub.s32 32, %v4072
        %v4074 = vshll.u32 %v4065, %v4072
        %v4075 = vshrl.u32 %v4057, %v4073
        %v4076 = vor.u32 %v4074, %v4075
        %v4077 = vsub.s32 4294967266, %v4072
        %v4078 = vadd.s32 %v4077, 127
        %v4079 = vshll.u32 %v4078, 23
        %v4080 = vor.u32 4788187, %v4079
        %v4081 = vand.u32 2147483647, %v4080
        %v4083 = vcvt.s32.f32 %v4076
        %v4084 = vmul.f32 %v4083, %v4081
        %v4085 = vxor.u32 %v4084, 2147483648
        %v4086 = vsel %vm3965, %v4085, %v4084
        %v4087 = vsub.s32 4, %v4063
        %v4088 = vsel %vm3965, %v4087, %v4063
        %v4089 = vsel %vm3964, %v405, %v4086
        %v4090 = vsel %vm3964, 0, %v4088
        %v4091 = vmul.f32 %v4089, %v4089
        %v4092 = vmul.f32 %v4091, -0.001358992
        %v4093 = vadd.f32 %v4092, 0.041655596
        %v4094 = vmul.f32 %v4091, %v4093
        %v4095 = vadd.f32 %v4094, -0.4999988
        %v4096 = vmul.f32 %v4091, %v4095
        %v4097 = vadd.f32 1.0, %v4096
        %v4098 = vmul.f32 %v4089, %v4089
        %v4099 = vmul.f32 %v4098, -0.00019511016
        %v4100 = vadd.f32 %v4099, 0.008332121
        %v4101 = vmul.f32 %v4098, %v4100
        %v4102 = vadd.f32 %v4101, -0.16666654
        %v4103 = vmul.f32 %v4098, %v4102
        %v4104 = vadd.f32 %v4103, 1.0
        %v4105 = vmul.f32 %v4104, %v4089
        %vm4106 = vweird.f32 %v405
        %v4107 = vadd.s32 %v4090, 3
        %v4108 = vand.u32 %v4107, 3
        %vm4109 = vcmp.lt.s32.totalorder %v4108, 2
        %vm4110 = vcmp.eq.s32.totalorder %v4108, 0
        %v4111 = vxor.u32 %v4105, 2147483648
        %v4112 = vsel %vm4110, %v4097, %v4111
        %vm4113 = vcmp.eq.s32.totalorder %v4108, 2
        %v4114 = vxor.u32 %v4097, 2147483648
        %v4115 = vsel %vm4113, %v4114, %v4105
        %v4116 = vsel %vm4109, %v4112, %v4115
        %v4117 = vsel %vm4106, nan, %v4116
        %v4118 = vand.u32 2147483647, %v406
        %vm4119 = vcmp.le.f32.partialorder %v4118, 0.7853982
        %vm4120 = vcmp.lt.s32.totalorder %v406, 0
        %v4121 = vand.u32 %v406, 2139095040
        %v4122 = vshrl.u32 %v4121, 23
        %v4123 = vsub.s32 %v4122, 127
        %v4124 = vand.u32 2147483647, %v406
        %v4125 = vand.u32 %v4124, 8388607
        %v4126 = vor.u32 %v4125, 8388608
        %v4127 = vsub.s32 0, %v4126
        %v4128 = vadd.s32 %v4123, 1
        %vm4129 = vcmp.gt.s32.totalorder %v4128, 0
        %v4130 = vsel %vm4129, %v4128, 0
        %v4131 = vshrl.u32 %v4130, 5
        %v4132 = vand.u32 %v4130, 31
        %v4133 = vsub.s32 32, %v4132
        %v4134 = vshrl.u32 683565275, %v4133
        %v4135 = vshll.u32 683565275, %v4132
        %v4136 = vshrl.u32 2475754826, %v4133
        %v4137 = vor.u32 %v4135, %v4136
        %v4138 = vshll.u32 2475754826, %v4132
        %v4139 = vshrl.u32 2131351028, %v4133
        %v4140 = vor.u32 %v4138, %v4139
        %v4141 = vshll.u32 2131351028, %v4132
        %v4142 = vshrl.u32 2102212464, %v4133
        %v4143 = vor.u32 %v4141, %v4142
        %v4144 = vshll.u32 2102212464, %v4132
        %v4145 = vshrl.u32 920167782, %v4133
        %v4146 = vor.u32 %v4144, %v4145
        %v4147 = vshll.u32 920167782, %v4132
        %v4148 = vshrl.u32 1326507024, %v4133
        %v4149 = vor.u32 %v4147, %v4148
        %vm4150 = vcmp.lt.s32.totalorder %v4131, 1
        %vm4151 = vcmp.lt.s32.totalorder %v4131, 2
        %vm4152 = vcmp.lt.s32.totalorder %v4131, 3
        %vm4153 = vcmp.lt.s32.totalorder %v4131, 4
        %v4154 = vsel %vm4150, %v4134, %v4137
        %v4155 = vsel %vm4153, %v4143, 2102212464
        %v4156 = vsel %vm4152, %v4140, %v4155
        %v4157 = vsel %vm4151, %v4154, %v4156
        %v4158 = vsel %vm4150, %v4137, %v4140
        %v4159 = vsel %vm4153, %v4146, 920167782
        %v4160 = vsel %vm4152, %v4143, %v4159
        %v4161 = vsel %vm4151, %v4158, %v4160
        %v4162 = vsel %vm4150, %v4140, %v4143
        %v4163 = vsel %vm4153, %v4149, 1326507024
        %v4164 = vsel %vm4152, %v4146, %v4163
        %v4165 = vsel %vm4151, %v4162, %v4164
        %v4166 = vshll.u32 %v4126, 8
        %v4167 = vand.u32 %v4166, 65535
        %v4168 = vshrl.u32 %v4166, 16
        %v4169 = vand.u32 %v4165, 65535
        %v4170 = vshrl.u32 %v4165, 16
        %v4171 = vmul.u32 %v4167, %v4169
        %v4172 = vmul.u32 %v4167, %v4170
        %v4173 = vmul.u32 %v4168, %v4169
        %v4174 = vmul.u32 %v4168, %v4170
        %v4175 = vshll.u32 %v4172, 16
        %v4176 = vshrl.u32 %v4172, 16
        %v4177 = vshll.u32 %v4173, 16
        %v4178 = vshrl.u32 %v4173, 16
        %vm4179 = vc.u32 %v4171, %v4175
        %v4180 = vsel %vm4179, 1, 0
        %v4181 = vadd.s32 %v4171, %v4175
        %v4182 = vadd.s32 %v4174, %v4180
        %vm4183 = vc.u32 %v4181, %v4177
        %v4184 = vsel %vm4183, 1, 0
        %v4185 = vadd.s32 %v4181, %v4177
        %v4186 = vadd.s32 %v4182, %v4184
        %v4187 = vadd.s32 %v4186, %v4176
        %v4188 = vadd.s32 %v4187, %v4178
        %v4189 = vand.u32 %v4166, 65535
        %v4190 = vshrl.u32 %v4166, 16
        %v4191 = vand.u32 %v4161, 65535
        %v4192 = vshrl.u32 %v4161, 16
        %v4193 = vmul.u32 %v4189, %v4191
        %v4194 = vmul.u32 %v4189, %v4192
        %v4195 = vmul.u32 %v4190, %v4191
        %v4196 = vmul.u32 %v4190, %v4192
        %v4197 = vshll.u32 %v4194, 16
        %v4198 = vshrl.u32 %v4194, 16
        %v4199 = vshll.u32 %v4195, 16
        %v4200 = vshrl.u32 %v4195, 16
        %vm4201 = vc.u32 %v4193, %v4197
        %v4202 = vsel %vm4201, 1, 0
        %v4203 = vadd.s32 %v4193, %v4197
        %v4204 = vadd.s32 %v4196, %v4202
        %vm4205 = vc.u32 %v4203, %v4199
        %v4206 = vsel %vm4205, 1, 0
        %v4207 = vadd.s32 %v4203, %v4199
        %v4208 = vadd.s32 %v4204, %v4206
        %v4209 = vadd.s32 %v4208, %v4198
        %v4210 = vadd.s32 %v4209, %v4200
        %v4211 = vmul.u32 %v4166, %v4157
        %v4212 = vadd.s32 %v4188, %v4207
        %vm4213 = vc.u32 %v4188, %v4207
        %v4214 = vadd.s32 %v4210, 1
        %v4215 = vsel %vm4213, %v4214, %v4210
        %v4216 = vadd.s32 %v4211, %v4215
        %v4217 = vadd.s32 %v4216, 536870912
        %v4218 = vshrl.u32 %v4217, 30
        %v4219 = vshll.u32 %v4218, 30
        %v4220 = vsub.s32 %v4216, %v4219
        %vm4221 = vcmp.lt.s32.totalorder %v4220, 0
        %v4222 = vsub.s32 0, %v4220
        %v4223 = vsel %vm4221, %v4222, %v4220
        %v4224 = vclz %v4223
        %v4225 = vsub.s32 %v4224, 2
        %vm4226 = vcmp.gt.s32.totalorder 0, %v4225
        %v4227 = vsel %vm4226, 0, %v4225
        %v4228 = vsub.s32 32, %v4227
        %v4229 = vshll.u32 %v4220, %v4227
        %v4230 = vshrl.u32 %v4212, %v4228
        %v4231 = vor.u32 %v4229, %v4230
        %v4232 = vsub.s32 4294967266, %v4227
        %v4233 = vadd.s32 %v4232, 127
        %v4234 = vshll.u32 %v4233, 23
        %v4235 = vor.u32 4788187, %v4234
        %v4236 = vand.u32 2147483647, %v4235
        %v4238 = vcvt.s32.f32 %v4231
        %v4239 = vmul.f32 %v4238, %v4236
        %v4240 = vxor.u32 %v4239, 2147483648
        %v4241 = vsel %vm4120, %v4240, %v4239
        %v4242 = vsub.s32 4, %v4218
        %v4243 = vsel %vm4120, %v4242, %v4218
        %v4244 = vsel %vm4119, %v406, %v4241
        %v4245 = vsel %vm4119, 0, %v4243
        %v4246 = vmul.f32 %v4244, %v4244
        %v4247 = vmul.f32 %v4246, -0.001358992
        %v4248 = vadd.f32 %v4247, 0.041655596
        %v4249 = vmul.f32 %v4246, %v4248
        %v4250 = vadd.f32 %v4249, -0.4999988
        %v4251 = vmul.f32 %v4246, %v4250
        %v4252 = vadd.f32 1.0, %v4251
        %v4253 = vmul.f32 %v4244, %v4244
        %v4254 = vmul.f32 %v4253, -0.00019511016
        %v4255 = vadd.f32 %v4254, 0.008332121
        %v4256 = vmul.f32 %v4253, %v4255
        %v4257 = vadd.f32 %v4256, -0.16666654
        %v4258 = vmul.f32 %v4253, %v4257
        %v4259 = vadd.f32 %v4258, 1.0
        %v4260 = vmul.f32 %v4259, %v4244
        %vm4261 = vweird.f32 %v406
        %v4262 = vadd.s32 %v4245, 3
        %v4263 = vand.u32 %v4262, 3
        %vm4264 = vcmp.lt.s32.totalorder %v4263, 2
        %vm4265 = vcmp.eq.s32.totalorder %v4263, 0
        %v4266 = vxor.u32 %v4260, 2147483648
        %v4267 = vsel %vm4265, %v4252, %v4266
        %vm4268 = vcmp.eq.s32.totalorder %v4263, 2
        %v4269 = vxor.u32 %v4252, 2147483648
        %v4270 = vsel %vm4268, %v4269, %v4260
        %v4271 = vsel %vm4264, %v4267, %v4270
        %v4272 = vsel %vm4261, nan, %v4271
        %v4273 = vand.u32 2147483647, %v407
        %vm4274 = vcmp.le.f32.partialorder %v4273, 0.7853982
        %vm4275 = vcmp.lt.s32.totalorder %v407, 0
        %v4276 = vand.u32 %v407, 2139095040
        %v4277 = vshrl.u32 %v4276, 23
        %v4278 = vsub.s32 %v4277, 127
        %v4279 = vand.u32 2147483647, %v407
        %v4280 = vand.u32 %v4279, 8388607
        %v4281 = vor.u32 %v4280, 8388608
        %v4282 = vsub.s32 0, %v4281
        %v4283 = vadd.s32 %v4278, 1
        %vm4284 = vcmp.gt.s32.totalorder %v4283, 0
        %v4285 = vsel %vm4284, %v4283, 0
        %v4286 = vshrl.u32 %v4285, 5
        %v4287 = vand.u32 %v4285, 31
        %v4288 = vsub.s32 32, %v4287
        %v4289 = vshrl.u32 683565275, %v4288
        %v4290 = vshll.u32 683565275, %v4287
        %v4291 = vshrl.u32 2475754826, %v4288
        %v4292 = vor.u32 %v4290, %v4291
        %v4293 = vshll.u32 2475754826, %v4287
        %v4294 = vshrl.u32 2131351028, %v4288
        %v4295 = vor.u32 %v4293, %v4294
        %v4296 = vshll.u32 2131351028, %v4287
        %v4297 = vshrl.u32 2102212464, %v4288
        %v4298 = vor.u32 %v4296, %v4297
        %v4299 = vshll.u32 2102212464, %v4287
        %v4300 = vshrl.u32 920167782, %v4288
        %v4301 = vor.u32 %v4299, %v4300
        %v4302 = vshll.u32 920167782, %v4287
        %v4303 = vshrl.u32 1326507024, %v4288
        %v4304 = vor.u32 %v4302, %v4303
        %vm4305 = vcmp.lt.s32.totalorder %v4286, 1
        %vm4306 = vcmp.lt.s32.totalorder %v4286, 2
        %vm4307 = vcmp.lt.s32.totalorder %v4286, 3
        %vm4308 = vcmp.lt.s32.totalorder %v4286, 4
        %v4309 = vsel %vm4305, %v4289, %v4292
        %v4310 = vsel %vm4308, %v4298, 2102212464
        %v4311 = vsel %vm4307, %v4295, %v4310
        %v4312 = vsel %vm4306, %v4309, %v4311
        %v4313 = vsel %vm4305, %v4292, %v4295
        %v4314 = vsel %vm4308, %v4301, 920167782
        %v4315 = vsel %vm4307, %v4298, %v4314
        %v4316 = vsel %vm4306, %v4313, %v4315
        %v4317 = vsel %vm4305, %v4295, %v4298
        %v4318 = vsel %vm4308, %v4304, 1326507024
        %v4319 = vsel %vm4307, %v4301, %v4318
        %v4320 = vsel %vm4306, %v4317, %v4319
        %v4321 = vshll.u32 %v4281, 8
        %v4322 = vand.u32 %v4321, 65535
        %v4323 = vshrl.u32 %v4321, 16
        %v4324 = vand.u32 %v4320, 65535
        %v4325 = vshrl.u32 %v4320, 16
        %v4326 = vmul.u32 %v4322, %v4324
        %v4327 = vmul.u32 %v4322, %v4325
        %v4328 = vmul.u32 %v4323, %v4324
        %v4329 = vmul.u32 %v4323, %v4325
        %v4330 = vshll.u32 %v4327, 16
        %v4331 = vshrl.u32 %v4327, 16
        %v4332 = vshll.u32 %v4328, 16
        %v4333 = vshrl.u32 %v4328, 16
        %vm4334 = vc.u32 %v4326, %v4330
        %v4335 = vsel %vm4334, 1, 0
        %v4336 = vadd.s32 %v4326, %v4330
        %v4337 = vadd.s32 %v4329, %v4335
        %vm4338 = vc.u32 %v4336, %v4332
        %v4339 = vsel %vm4338, 1, 0
        %v4340 = vadd.s32 %v4336, %v4332
        %v4341 = vadd.s32 %v4337, %v4339
        %v4342 = vadd.s32 %v4341, %v4331
        %v4343 = vadd.s32 %v4342, %v4333
        %v4344 = vand.u32 %v4321, 65535
        %v4345 = vshrl.u32 %v4321, 16
        %v4346 = vand.u32 %v4316, 65535
        %v4347 = vshrl.u32 %v4316, 16
        %v4348 = vmul.u32 %v4344, %v4346
        %v4349 = vmul.u32 %v4344, %v4347
        %v4350 = vmul.u32 %v4345, %v4346
        %v4351 = vmul.u32 %v4345, %v4347
        %v4352 = vshll.u32 %v4349, 16
        %v4353 = vshrl.u32 %v4349, 16
        %v4354 = vshll.u32 %v4350, 16
        %v4355 = vshrl.u32 %v4350, 16
        %vm4356 = vc.u32 %v4348, %v4352
        %v4357 = vsel %vm4356, 1, 0
        %v4358 = vadd.s32 %v4348, %v4352
        %v4359 = vadd.s32 %v4351, %v4357
        %vm4360 = vc.u32 %v4358, %v4354
        %v4361 = vsel %vm4360, 1, 0
        %v4362 = vadd.s32 %v4358, %v4354
        %v4363 = vadd.s32 %v4359, %v4361
        %v4364 = vadd.s32 %v4363, %v4353
        %v4365 = vadd.s32 %v4364, %v4355
        %v4366 = vmul.u32 %v4321, %v4312
        %v4367 = vadd.s32 %v4343, %v4362
        %vm4368 = vc.u32 %v4343, %v4362
        %v4369 = vadd.s32 %v4365, 1
        %v4370 = vsel %vm4368, %v4369, %v4365
        %v4371 = vadd.s32 %v4366, %v4370
        %v4372 = vadd.s32 %v4371, 536870912
        %v4373 = vshrl.u32 %v4372, 30
        %v4374 = vshll.u32 %v4373, 30
        %v4375 = vsub.s32 %v4371, %v4374
        %vm4376 = vcmp.lt.s32.totalorder %v4375, 0
        %v4377 = vsub.s32 0, %v4375
        %v4378 = vsel %vm4376, %v4377, %v4375
        %v4379 = vclz %v4378
        %v4380 = vsub.s32 %v4379, 2
        %vm4381 = vcmp.gt.s32.totalorder 0, %v4380
        %v4382 = vsel %vm4381, 0, %v4380
        %v4383 = vsub.s32 32, %v4382
        %v4384 = vshll.u32 %v4375, %v4382
        %v4385 = vshrl.u32 %v4367, %v4383
        %v4386 = vor.u32 %v4384, %v4385
        %v4387 = vsub.s32 4294967266, %v4382
        %v4388 = vadd.s32 %v4387, 127
        %v4389 = vshll.u32 %v4388, 23
        %v4390 = vor.u32 4788187, %v4389
        %v4391 = vand.u32 2147483647, %v4390
        %v4393 = vcvt.s32.f32 %v4386
        %v4394 = vmul.f32 %v4393, %v4391
        %v4395 = vxor.u32 %v4394, 2147483648
        %v4396 = vsel %vm4275, %v4395, %v4394
        %v4397 = vsub.s32 4, %v4373
        %v4398 = vsel %vm4275, %v4397, %v4373
        %v4399 = vsel %vm4274, %v407, %v4396
        %v4400 = vsel %vm4274, 0, %v4398
        %v4401 = vmul.f32 %v4399, %v4399
        %v4402 = vmul.f32 %v4401, -0.001358992
        %v4403 = vadd.f32 %v4402, 0.041655596
        %v4404 = vmul.f32 %v4401, %v4403
        %v4405 = vadd.f32 %v4404, -0.4999988
        %v4406 = vmul.f32 %v4401, %v4405
        %v4407 = vadd.f32 1.0, %v4406
        %v4408 = vmul.f32 %v4399, %v4399
        %v4409 = vmul.f32 %v4408, -0.00019511016
        %v4410 = vadd.f32 %v4409, 0.008332121
        %v4411 = vmul.f32 %v4408, %v4410
        %v4412 = vadd.f32 %v4411, -0.16666654
        %v4413 = vmul.f32 %v4408, %v4412
        %v4414 = vadd.f32 %v4413, 1.0
        %v4415 = vmul.f32 %v4414, %v4399
        %vm4416 = vweird.f32 %v407
        %v4417 = vadd.s32 %v4400, 3
        %v4418 = vand.u32 %v4417, 3
        %vm4419 = vcmp.lt.s32.totalorder %v4418, 2
        %vm4420 = vcmp.eq.s32.totalorder %v4418, 0
        %v4421 = vxor.u32 %v4415, 2147483648
        %v4422 = vsel %vm4420, %v4407, %v4421
        %vm4423 = vcmp.eq.s32.totalorder %v4418, 2
        %v4424 = vxor.u32 %v4407, 2147483648
        %v4425 = vsel %vm4423, %v4424, %v4415
        %v4426 = vsel %vm4419, %v4422, %v4425
        %v4427 = vsel %vm4416, nan, %v4426
        %v4428 = vand.u32 2147483647, %v408
        %vm4429 = vcmp.le.f32.partialorder %v4428, 0.7853982
        %vm4430 = vcmp.lt.s32.totalorder %v408, 0
        %v4431 = vand.u32 %v408, 2139095040
        %v4432 = vshrl.u32 %v4431, 23
        %v4433 = vsub.s32 %v4432, 127
        %v4434 = vand.u32 2147483647, %v408
        %v4435 = vand.u32 %v4434, 8388607
        %v4436 = vor.u32 %v4435, 8388608
        %v4437 = vsub.s32 0, %v4436
        %v4438 = vadd.s32 %v4433, 1
        %vm4439 = vcmp.gt.s32.totalorder %v4438, 0
        %v4440 = vsel %vm4439, %v4438, 0
        %v4441 = vshrl.u32 %v4440, 5
        %v4442 = vand.u32 %v4440, 31
        %v4443 = vsub.s32 32, %v4442
        %v4444 = vshrl.u32 683565275, %v4443
        %v4445 = vshll.u32 683565275, %v4442
        %v4446 = vshrl.u32 2475754826, %v4443
        %v4447 = vor.u32 %v4445, %v4446
        %v4448 = vshll.u32 2475754826, %v4442
        %v4449 = vshrl.u32 2131351028, %v4443
        %v4450 = vor.u32 %v4448, %v4449
        %v4451 = vshll.u32 2131351028, %v4442
        %v4452 = vshrl.u32 2102212464, %v4443
        %v4453 = vor.u32 %v4451, %v4452
        %v4454 = vshll.u32 2102212464, %v4442
        %v4455 = vshrl.u32 920167782, %v4443
        %v4456 = vor.u32 %v4454, %v4455
        %v4457 = vshll.u32 920167782, %v4442
        %v4458 = vshrl.u32 1326507024, %v4443
        %v4459 = vor.u32 %v4457, %v4458
        %vm4460 = vcmp.lt.s32.totalorder %v4441, 1
        %vm4461 = vcmp.lt.s32.totalorder %v4441, 2
        %vm4462 = vcmp.lt.s32.totalorder %v4441, 3
        %vm4463 = vcmp.lt.s32.totalorder %v4441, 4
        %v4464 = vsel %vm4460, %v4444, %v4447
        %v4465 = vsel %vm4463, %v4453, 2102212464
        %v4466 = vsel %vm4462, %v4450, %v4465
        %v4467 = vsel %vm4461, %v4464, %v4466
        %v4468 = vsel %vm4460, %v4447, %v4450
        %v4469 = vsel %vm4463, %v4456, 920167782
        %v4470 = vsel %vm4462, %v4453, %v4469
        %v4471 = vsel %vm4461, %v4468, %v4470
        %v4472 = vsel %vm4460, %v4450, %v4453
        %v4473 = vsel %vm4463, %v4459, 1326507024
        %v4474 = vsel %vm4462, %v4456, %v4473
        %v4475 = vsel %vm4461, %v4472, %v4474
        %v4476 = vshll.u32 %v4436, 8
        %v4477 = vand.u32 %v4476, 65535
        %v4478 = vshrl.u32 %v4476, 16
        %v4479 = vand.u32 %v4475, 65535
        %v4480 = vshrl.u32 %v4475, 16
        %v4481 = vmul.u32 %v4477, %v4479
        %v4482 = vmul.u32 %v4477, %v4480
        %v4483 = vmul.u32 %v4478, %v4479
        %v4484 = vmul.u32 %v4478, %v4480
        %v4485 = vshll.u32 %v4482, 16
        %v4486 = vshrl.u32 %v4482, 16
        %v4487 = vshll.u32 %v4483, 16
        %v4488 = vshrl.u32 %v4483, 16
        %vm4489 = vc.u32 %v4481, %v4485
        %v4490 = vsel %vm4489, 1, 0
        %v4491 = vadd.s32 %v4481, %v4485
        %v4492 = vadd.s32 %v4484, %v4490
        %vm4493 = vc.u32 %v4491, %v4487
        %v4494 = vsel %vm4493, 1, 0
        %v4495 = vadd.s32 %v4491, %v4487
        %v4496 = vadd.s32 %v4492, %v4494
        %v4497 = vadd.s32 %v4496, %v4486
        %v4498 = vadd.s32 %v4497, %v4488
        %v4499 = vand.u32 %v4476, 65535
        %v4500 = vshrl.u32 %v4476, 16
        %v4501 = vand.u32 %v4471, 65535
        %v4502 = vshrl.u32 %v4471, 16
        %v4503 = vmul.u32 %v4499, %v4501
        %v4504 = vmul.u32 %v4499, %v4502
        %v4505 = vmul.u32 %v4500, %v4501
        %v4506 = vmul.u32 %v4500, %v4502
        %v4507 = vshll.u32 %v4504, 16
        %v4508 = vshrl.u32 %v4504, 16
        %v4509 = vshll.u32 %v4505, 16
        %v4510 = vshrl.u32 %v4505, 16
        %vm4511 = vc.u32 %v4503, %v4507
        %v4512 = vsel %vm4511, 1, 0
        %v4513 = vadd.s32 %v4503, %v4507
        %v4514 = vadd.s32 %v4506, %v4512
        %vm4515 = vc.u32 %v4513, %v4509
        %v4516 = vsel %vm4515, 1, 0
        %v4517 = vadd.s32 %v4513, %v4509
        %v4518 = vadd.s32 %v4514, %v4516
        %v4519 = vadd.s32 %v4518, %v4508
        %v4520 = vadd.s32 %v4519, %v4510
        %v4521 = vmul.u32 %v4476, %v4467
        %v4522 = vadd.s32 %v4498, %v4517
        %vm4523 = vc.u32 %v4498, %v4517
        %v4524 = vadd.s32 %v4520, 1
        %v4525 = vsel %vm4523, %v4524, %v4520
        %v4526 = vadd.s32 %v4521, %v4525
        %v4527 = vadd.s32 %v4526, 536870912
        %v4528 = vshrl.u32 %v4527, 30
        %v4529 = vshll.u32 %v4528, 30
        %v4530 = vsub.s32 %v4526, %v4529
        %vm4531 = vcmp.lt.s32.totalorder %v4530, 0
        %v4532 = vsub.s32 0, %v4530
        %v4533 = vsel %vm4531, %v4532, %v4530
        %v4534 = vclz %v4533
        %v4535 = vsub.s32 %v4534, 2
        %vm4536 = vcmp.gt.s32.totalorder 0, %v4535
        %v4537 = vsel %vm4536, 0, %v4535
        %v4538 = vsub.s32 32, %v4537
        %v4539 = vshll.u32 %v4530, %v4537
        %v4540 = vshrl.u32 %v4522, %v4538
        %v4541 = vor.u32 %v4539, %v4540
        %v4542 = vsub.s32 4294967266, %v4537
        %v4543 = vadd.s32 %v4542, 127
        %v4544 = vshll.u32 %v4543, 23
        %v4545 = vor.u32 4788187, %v4544
        %v4546 = vand.u32 2147483647, %v4545
        %v4548 = vcvt.s32.f32 %v4541
        %v4549 = vmul.f32 %v4548, %v4546
        %v4550 = vxor.u32 %v4549, 2147483648
        %v4551 = vsel %vm4430, %v4550, %v4549
        %v4552 = vsub.s32 4, %v4528
        %v4553 = vsel %vm4430, %v4552, %v4528
        %v4554 = vsel %vm4429, %v408, %v4551
        %v4555 = vsel %vm4429, 0, %v4553
        %v4556 = vmul.f32 %v4554, %v4554
        %v4557 = vmul.f32 %v4556, -0.001358992
        %v4558 = vadd.f32 %v4557, 0.041655596
        %v4559 = vmul.f32 %v4556, %v4558
        %v4560 = vadd.f32 %v4559, -0.4999988
        %v4561 = vmul.f32 %v4556, %v4560
        %v4562 = vadd.f32 1.0, %v4561
        %v4563 = vmul.f32 %v4554, %v4554
        %v4564 = vmul.f32 %v4563, -0.00019511016
        %v4565 = vadd.f32 %v4564, 0.008332121
        %v4566 = vmul.f32 %v4563, %v4565
        %v4567 = vadd.f32 %v4566, -0.16666654
        %v4568 = vmul.f32 %v4563, %v4567
        %v4569 = vadd.f32 %v4568, 1.0
        %v4570 = vmul.f32 %v4569, %v4554
        %vm4571 = vweird.f32 %v408
        %v4572 = vadd.s32 %v4555, 3
        %v4573 = vand.u32 %v4572, 3
        %vm4574 = vcmp.lt.s32.totalorder %v4573, 2
        %vm4575 = vcmp.eq.s32.totalorder %v4573, 0
        %v4576 = vxor.u32 %v4570, 2147483648
        %v4577 = vsel %vm4575, %v4562, %v4576
        %vm4578 = vcmp.eq.s32.totalorder %v4573, 2
        %v4579 = vxor.u32 %v4562, 2147483648
        %v4580 = vsel %vm4578, %v4579, %v4570
        %v4581 = vsel %vm4574, %v4577, %v4580
        %v4582 = vsel %vm4571, nan, %v4581
        %v4583 = vand.u32 2147483647, %v409
        %vm4584 = vcmp.le.f32.partialorder %v4583, 0.7853982
        %vm4585 = vcmp.lt.s32.totalorder %v409, 0
        %v4586 = vand.u32 %v409, 2139095040
        %v4587 = vshrl.u32 %v4586, 23
        %v4588 = vsub.s32 %v4587, 127
        %v4589 = vand.u32 2147483647, %v409
        %v4590 = vand.u32 %v4589, 8388607
        %v4591 = vor.u32 %v4590, 8388608
        %v4592 = vsub.s32 0, %v4591
        %v4593 = vadd.s32 %v4588, 1
        %vm4594 = vcmp.gt.s32.totalorder %v4593, 0
        %v4595 = vsel %vm4594, %v4593, 0
        %v4596 = vshrl.u32 %v4595, 5
        %v4597 = vand.u32 %v4595, 31
        %v4598 = vsub.s32 32, %v4597
        %v4599 = vshrl.u32 683565275, %v4598
        %v4600 = vshll.u32 683565275, %v4597
        %v4601 = vshrl.u32 2475754826, %v4598
        %v4602 = vor.u32 %v4600, %v4601
        %v4603 = vshll.u32 2475754826, %v4597
        %v4604 = vshrl.u32 2131351028, %v4598
        %v4605 = vor.u32 %v4603, %v4604
        %v4606 = vshll.u32 2131351028, %v4597
        %v4607 = vshrl.u32 2102212464, %v4598
        %v4608 = vor.u32 %v4606, %v4607
        %v4609 = vshll.u32 2102212464, %v4597
        %v4610 = vshrl.u32 920167782, %v4598
        %v4611 = vor.u32 %v4609, %v4610
        %v4612 = vshll.u32 920167782, %v4597
        %v4613 = vshrl.u32 1326507024, %v4598
        %v4614 = vor.u32 %v4612, %v4613
        %vm4615 = vcmp.lt.s32.totalorder %v4596, 1
        %vm4616 = vcmp.lt.s32.totalorder %v4596, 2
        %vm4617 = vcmp.lt.s32.totalorder %v4596, 3
        %vm4618 = vcmp.lt.s32.totalorder %v4596, 4
        %v4619 = vsel %vm4615, %v4599, %v4602
        %v4620 = vsel %vm4618, %v4608, 2102212464
        %v4621 = vsel %vm4617, %v4605, %v4620
        %v4622 = vsel %vm4616, %v4619, %v4621
        %v4623 = vsel %vm4615, %v4602, %v4605
        %v4624 = vsel %vm4618, %v4611, 920167782
        %v4625 = vsel %vm4617, %v4608, %v4624
        %v4626 = vsel %vm4616, %v4623, %v4625
        %v4627 = vsel %vm4615, %v4605, %v4608
        %v4628 = vsel %vm4618, %v4614, 1326507024
        %v4629 = vsel %vm4617, %v4611, %v4628
        %v4630 = vsel %vm4616, %v4627, %v4629
        %v4631 = vshll.u32 %v4591, 8
        %v4632 = vand.u32 %v4631, 65535
        %v4633 = vshrl.u32 %v4631, 16
        %v4634 = vand.u32 %v4630, 65535
        %v4635 = vshrl.u32 %v4630, 16
        %v4636 = vmul.u32 %v4632, %v4634
        %v4637 = vmul.u32 %v4632, %v4635
        %v4638 = vmul.u32 %v4633, %v4634
        %v4639 = vmul.u32 %v4633, %v4635
        %v4640 = vshll.u32 %v4637, 16
        %v4641 = vshrl.u32 %v4637, 16
        %v4642 = vshll.u32 %v4638, 16
        %v4643 = vshrl.u32 %v4638, 16
        %vm4644 = vc.u32 %v4636, %v4640
        %v4645 = vsel %vm4644, 1, 0
        %v4646 = vadd.s32 %v4636, %v4640
        %v4647 = vadd.s32 %v4639, %v4645
        %vm4648 = vc.u32 %v4646, %v4642
        %v4649 = vsel %vm4648, 1, 0
        %v4650 = vadd.s32 %v4646, %v4642
        %v4651 = vadd.s32 %v4647, %v4649
        %v4652 = vadd.s32 %v4651, %v4641
        %v4653 = vadd.s32 %v4652, %v4643
        %v4654 = vand.u32 %v4631, 65535
        %v4655 = vshrl.u32 %v4631, 16
        %v4656 = vand.u32 %v4626, 65535
        %v4657 = vshrl.u32 %v4626, 16
        %v4658 = vmul.u32 %v4654, %v4656
        %v4659 = vmul.u32 %v4654, %v4657
        %v4660 = vmul.u32 %v4655, %v4656
        %v4661 = vmul.u32 %v4655, %v4657
        %v4662 = vshll.u32 %v4659, 16
        %v4663 = vshrl.u32 %v4659, 16
        %v4664 = vshll.u32 %v4660, 16
        %v4665 = vshrl.u32 %v4660, 16
        %vm4666 = vc.u32 %v4658, %v4662
        %v4667 = vsel %vm4666, 1, 0
        %v4668 = vadd.s32 %v4658, %v4662
        %v4669 = vadd.s32 %v4661, %v4667
        %vm4670 = vc.u32 %v4668, %v4664
        %v4671 = vsel %vm4670, 1, 0
        %v4672 = vadd.s32 %v4668, %v4664
        %v4673 = vadd.s32 %v4669, %v4671
        %v4674 = vadd.s32 %v4673, %v4663
        %v4675 = vadd.s32 %v4674, %v4665
        %v4676 = vmul.u32 %v4631, %v4622
        %v4677 = vadd.s32 %v4653, %v4672
        %vm4678 = vc.u32 %v4653, %v4672
        %v4679 = vadd.s32 %v4675, 1
        %v4680 = vsel %vm4678, %v4679, %v4675
        %v4681 = vadd.s32 %v4676, %v4680
        %v4682 = vadd.s32 %v4681, 536870912
        %v4683 = vshrl.u32 %v4682, 30
        %v4684 = vshll.u32 %v4683, 30
        %v4685 = vsub.s32 %v4681, %v4684
        %vm4686 = vcmp.lt.s32.totalorder %v4685, 0
        %v4687 = vsub.s32 0, %v4685
        %v4688 = vsel %vm4686, %v4687, %v4685
        %v4689 = vclz %v4688
        %v4690 = vsub.s32 %v4689, 2
        %vm4691 = vcmp.gt.s32.totalorder 0, %v4690
        %v4692 = vsel %vm4691, 0, %v4690
        %v4693 = vsub.s32 32, %v4692
        %v4694 = vshll.u32 %v4685, %v4692
        %v4695 = vshrl.u32 %v4677, %v4693
        %v4696 = vor.u32 %v4694, %v4695
        %v4697 = vsub.s32 4294967266, %v4692
        %v4698 = vadd.s32 %v4697, 127
        %v4699 = vshll.u32 %v4698, 23
        %v4700 = vor.u32 4788187, %v4699
        %v4701 = vand.u32 2147483647, %v4700
        %v4703 = vcvt.s32.f32 %v4696
        %v4704 = vmul.f32 %v4703, %v4701
        %v4705 = vxor.u32 %v4704, 2147483648
        %v4706 = vsel %vm4585, %v4705, %v4704
        %v4707 = vsub.s32 4, %v4683
        %v4708 = vsel %vm4585, %v4707, %v4683
        %v4709 = vsel %vm4584, %v409, %v4706
        %v4710 = vsel %vm4584, 0, %v4708
        %v4711 = vmul.f32 %v4709, %v4709
        %v4712 = vmul.f32 %v4711, -0.001358992
        %v4713 = vadd.f32 %v4712, 0.041655596
        %v4714 = vmul.f32 %v4711, %v4713
        %v4715 = vadd.f32 %v4714, -0.4999988
        %v4716 = vmul.f32 %v4711, %v4715
        %v4717 = vadd.f32 1.0, %v4716
        %v4718 = vmul.f32 %v4709, %v4709
        %v4719 = vmul.f32 %v4718, -0.00019511016
        %v4720 = vadd.f32 %v4719, 0.008332121
        %v4721 = vmul.f32 %v4718, %v4720
        %v4722 = vadd.f32 %v4721, -0.16666654
        %v4723 = vmul.f32 %v4718, %v4722
        %v4724 = vadd.f32 %v4723, 1.0
        %v4725 = vmul.f32 %v4724, %v4709
        %vm4726 = vweird.f32 %v409
        %v4727 = vadd.s32 %v4710, 3
        %v4728 = vand.u32 %v4727, 3
        %vm4729 = vcmp.lt.s32.totalorder %v4728, 2
        %vm4730 = vcmp.eq.s32.totalorder %v4728, 0
        %v4731 = vxor.u32 %v4725, 2147483648
        %v4732 = vsel %vm4730, %v4717, %v4731
        %vm4733 = vcmp.eq.s32.totalorder %v4728, 2
        %v4734 = vxor.u32 %v4717, 2147483648
        %v4735 = vsel %vm4733, %v4734, %v4725
        %v4736 = vsel %vm4729, %v4732, %v4735
        %v4737 = vsel %vm4726, nan, %v4736
        %v4738 = vand.u32 2147483647, %v410
        %vm4739 = vcmp.le.f32.partialorder %v4738, 0.7853982
        %vm4740 = vcmp.lt.s32.totalorder %v410, 0
        %v4741 = vand.u32 %v410, 2139095040
        %v4742 = vshrl.u32 %v4741, 23
        %v4743 = vsub.s32 %v4742, 127
        %v4744 = vand.u32 2147483647, %v410
        %v4745 = vand.u32 %v4744, 8388607
        %v4746 = vor.u32 %v4745, 8388608
        %v4747 = vsub.s32 0, %v4746
        %v4748 = vadd.s32 %v4743, 1
        %vm4749 = vcmp.gt.s32.totalorder %v4748, 0
        %v4750 = vsel %vm4749, %v4748, 0
        %v4751 = vshrl.u32 %v4750, 5
        %v4752 = vand.u32 %v4750, 31
        %v4753 = vsub.s32 32, %v4752
        %v4754 = vshrl.u32 683565275, %v4753
        %v4755 = vshll.u32 683565275, %v4752
        %v4756 = vshrl.u32 2475754826, %v4753
        %v4757 = vor.u32 %v4755, %v4756
        %v4758 = vshll.u32 2475754826, %v4752
        %v4759 = vshrl.u32 2131351028, %v4753
        %v4760 = vor.u32 %v4758, %v4759
        %v4761 = vshll.u32 2131351028, %v4752
        %v4762 = vshrl.u32 2102212464, %v4753
        %v4763 = vor.u32 %v4761, %v4762
        %v4764 = vshll.u32 2102212464, %v4752
        %v4765 = vshrl.u32 920167782, %v4753
        %v4766 = vor.u32 %v4764, %v4765
        %v4767 = vshll.u32 920167782, %v4752
        %v4768 = vshrl.u32 1326507024, %v4753
        %v4769 = vor.u32 %v4767, %v4768
        %vm4770 = vcmp.lt.s32.totalorder %v4751, 1
        %vm4771 = vcmp.lt.s32.totalorder %v4751, 2
        %vm4772 = vcmp.lt.s32.totalorder %v4751, 3
        %vm4773 = vcmp.lt.s32.totalorder %v4751, 4
        %v4774 = vsel %vm4770, %v4754, %v4757
        %v4775 = vsel %vm4773, %v4763, 2102212464
        %v4776 = vsel %vm4772, %v4760, %v4775
        %v4777 = vsel %vm4771, %v4774, %v4776
        %v4778 = vsel %vm4770, %v4757, %v4760
        %v4779 = vsel %vm4773, %v4766, 920167782
        %v4780 = vsel %vm4772, %v4763, %v4779
        %v4781 = vsel %vm4771, %v4778, %v4780
        %v4782 = vsel %vm4770, %v4760, %v4763
        %v4783 = vsel %vm4773, %v4769, 1326507024
        %v4784 = vsel %vm4772, %v4766, %v4783
        %v4785 = vsel %vm4771, %v4782, %v4784
        %v4786 = vshll.u32 %v4746, 8
        %v4787 = vand.u32 %v4786, 65535
        %v4788 = vshrl.u32 %v4786, 16
        %v4789 = vand.u32 %v4785, 65535
        %v4790 = vshrl.u32 %v4785, 16
        %v4791 = vmul.u32 %v4787, %v4789
        %v4792 = vmul.u32 %v4787, %v4790
        %v4793 = vmul.u32 %v4788, %v4789
        %v4794 = vmul.u32 %v4788, %v4790
        %v4795 = vshll.u32 %v4792, 16
        %v4796 = vshrl.u32 %v4792, 16
        %v4797 = vshll.u32 %v4793, 16
        %v4798 = vshrl.u32 %v4793, 16
        %vm4799 = vc.u32 %v4791, %v4795
        %v4800 = vsel %vm4799, 1, 0
        %v4801 = vadd.s32 %v4791, %v4795
        %v4802 = vadd.s32 %v4794, %v4800
        %vm4803 = vc.u32 %v4801, %v4797
        %v4804 = vsel %vm4803, 1, 0
        %v4805 = vadd.s32 %v4801, %v4797
        %v4806 = vadd.s32 %v4802, %v4804
        %v4807 = vadd.s32 %v4806, %v4796
        %v4808 = vadd.s32 %v4807, %v4798
        %v4809 = vand.u32 %v4786, 65535
        %v4810 = vshrl.u32 %v4786, 16
        %v4811 = vand.u32 %v4781, 65535
        %v4812 = vshrl.u32 %v4781, 16
        %v4813 = vmul.u32 %v4809, %v4811
        %v4814 = vmul.u32 %v4809, %v4812
        %v4815 = vmul.u32 %v4810, %v4811
        %v4816 = vmul.u32 %v4810, %v4812
        %v4817 = vshll.u32 %v4814, 16
        %v4818 = vshrl.u32 %v4814, 16
        %v4819 = vshll.u32 %v4815, 16
        %v4820 = vshrl.u32 %v4815, 16
        %vm4821 = vc.u32 %v4813, %v4817
        %v4822 = vsel %vm4821, 1, 0
        %v4823 = vadd.s32 %v4813, %v4817
        %v4824 = vadd.s32 %v4816, %v4822
        %vm4825 = vc.u32 %v4823, %v4819
        %v4826 = vsel %vm4825, 1, 0
        %v4827 = vadd.s32 %v4823, %v4819
        %v4828 = vadd.s32 %v4824, %v4826
        %v4829 = vadd.s32 %v4828, %v4818
        %v4830 = vadd.s32 %v4829, %v4820
        %v4831 = vmul.u32 %v4786, %v4777
        %v4832 = vadd.s32 %v4808, %v4827
        %vm4833 = vc.u32 %v4808, %v4827
        %v4834 = vadd.s32 %v4830, 1
        %v4835 = vsel %vm4833, %v4834, %v4830
        %v4836 = vadd.s32 %v4831, %v4835
        %v4837 = vadd.s32 %v4836, 536870912
        %v4838 = vshrl.u32 %v4837, 30
        %v4839 = vshll.u32 %v4838, 30
        %v4840 = vsub.s32 %v4836, %v4839
        %vm4841 = vcmp.lt.s32.totalorder %v4840, 0
        %v4842 = vsub.s32 0, %v4840
        %v4843 = vsel %vm4841, %v4842, %v4840
        %v4844 = vclz %v4843
        %v4845 = vsub.s32 %v4844, 2
        %vm4846 = vcmp.gt.s32.totalorder 0, %v4845
        %v4847 = vsel %vm4846, 0, %v4845
        %v4848 = vsub.s32 32, %v4847
        %v4849 = vshll.u32 %v4840, %v4847
        %v4850 = vshrl.u32 %v4832, %v4848
        %v4851 = vor.u32 %v4849, %v4850
        %v4852 = vsub.s32 4294967266, %v4847
        %v4853 = vadd.s32 %v4852, 127
        %v4854 = vshll.u32 %v4853, 23
        %v4855 = vor.u32 4788187, %v4854
        %v4856 = vand.u32 2147483647, %v4855
        %v4858 = vcvt.s32.f32 %v4851
        %v4859 = vmul.f32 %v4858, %v4856
        %v4860 = vxor.u32 %v4859, 2147483648
        %v4861 = vsel %vm4740, %v4860, %v4859
        %v4862 = vsub.s32 4, %v4838
        %v4863 = vsel %vm4740, %v4862, %v4838
        %v4864 = vsel %vm4739, %v410, %v4861
        %v4865 = vsel %vm4739, 0, %v4863
        %v4866 = vmul.f32 %v4864, %v4864
        %v4867 = vmul.f32 %v4866, -0.001358992
        %v4868 = vadd.f32 %v4867, 0.041655596
        %v4869 = vmul.f32 %v4866, %v4868
        %v4870 = vadd.f32 %v4869, -0.4999988
        %v4871 = vmul.f32 %v4866, %v4870
        %v4872 = vadd.f32 1.0, %v4871
        %v4873 = vmul.f32 %v4864, %v4864
        %v4874 = vmul.f32 %v4873, -0.00019511016
        %v4875 = vadd.f32 %v4874, 0.008332121
        %v4876 = vmul.f32 %v4873, %v4875
        %v4877 = vadd.f32 %v4876, -0.16666654
        %v4878 = vmul.f32 %v4873, %v4877
        %v4879 = vadd.f32 %v4878, 1.0
        %v4880 = vmul.f32 %v4879, %v4864
        %vm4881 = vweird.f32 %v410
        %v4882 = vadd.s32 %v4865, 3
        %v4883 = vand.u32 %v4882, 3
        %vm4884 = vcmp.lt.s32.totalorder %v4883, 2
        %vm4885 = vcmp.eq.s32.totalorder %v4883, 0
        %v4886 = vxor.u32 %v4880, 2147483648
        %v4887 = vsel %vm4885, %v4872, %v4886
        %vm4888 = vcmp.eq.s32.totalorder %v4883, 2
        %v4889 = vxor.u32 %v4872, 2147483648
        %v4890 = vsel %vm4888, %v4889, %v4880
        %v4891 = vsel %vm4884, %v4887, %v4890
        %v4892 = vsel %vm4881, nan, %v4891
        %v4893 = vand.u32 2147483647, %v411
        %vm4894 = vcmp.le.f32.partialorder %v4893, 0.7853982
        %vm4895 = vcmp.lt.s32.totalorder %v411, 0
        %v4896 = vand.u32 %v411, 2139095040
        %v4897 = vshrl.u32 %v4896, 23
        %v4898 = vsub.s32 %v4897, 127
        %v4899 = vand.u32 2147483647, %v411
        %v4900 = vand.u32 %v4899, 8388607
        %v4901 = vor.u32 %v4900, 8388608
        %v4902 = vsub.s32 0, %v4901
        %v4903 = vadd.s32 %v4898, 1
        %vm4904 = vcmp.gt.s32.totalorder %v4903, 0
        %v4905 = vsel %vm4904, %v4903, 0
        %v4906 = vshrl.u32 %v4905, 5
        %v4907 = vand.u32 %v4905, 31
        %v4908 = vsub.s32 32, %v4907
        %v4909 = vshrl.u32 683565275, %v4908
        %v4910 = vshll.u32 683565275, %v4907
        %v4911 = vshrl.u32 2475754826, %v4908
        %v4912 = vor.u32 %v4910, %v4911
        %v4913 = vshll.u32 2475754826, %v4907
        %v4914 = vshrl.u32 2131351028, %v4908
        %v4915 = vor.u32 %v4913, %v4914
        %v4916 = vshll.u32 2131351028, %v4907
        %v4917 = vshrl.u32 2102212464, %v4908
        %v4918 = vor.u32 %v4916, %v4917
        %v4919 = vshll.u32 2102212464, %v4907
        %v4920 = vshrl.u32 920167782, %v4908
        %v4921 = vor.u32 %v4919, %v4920
        %v4922 = vshll.u32 920167782, %v4907
        %v4923 = vshrl.u32 1326507024, %v4908
        %v4924 = vor.u32 %v4922, %v4923
        %vm4925 = vcmp.lt.s32.totalorder %v4906, 1
        %vm4926 = vcmp.lt.s32.totalorder %v4906, 2
        %vm4927 = vcmp.lt.s32.totalorder %v4906, 3
        %vm4928 = vcmp.lt.s32.totalorder %v4906, 4
        %v4929 = vsel %vm4925, %v4909, %v4912
        %v4930 = vsel %vm4928, %v4918, 2102212464
        %v4931 = vsel %vm4927, %v4915, %v4930
        %v4932 = vsel %vm4926, %v4929, %v4931
        %v4933 = vsel %vm4925, %v4912, %v4915
        %v4934 = vsel %vm4928, %v4921, 920167782
        %v4935 = vsel %vm4927, %v4918, %v4934
        %v4936 = vsel %vm4926, %v4933, %v4935
        %v4937 = vsel %vm4925, %v4915, %v4918
        %v4938 = vsel %vm4928, %v4924, 1326507024
        %v4939 = vsel %vm4927, %v4921, %v4938
        %v4940 = vsel %vm4926, %v4937, %v4939
        %v4941 = vshll.u32 %v4901, 8
        %v4942 = vand.u32 %v4941, 65535
        %v4943 = vshrl.u32 %v4941, 16
        %v4944 = vand.u32 %v4940, 65535
        %v4945 = vshrl.u32 %v4940, 16
        %v4946 = vmul.u32 %v4942, %v4944
        %v4947 = vmul.u32 %v4942, %v4945
        %v4948 = vmul.u32 %v4943, %v4944
        %v4949 = vmul.u32 %v4943, %v4945
        %v4950 = vshll.u32 %v4947, 16
        %v4951 = vshrl.u32 %v4947, 16
        %v4952 = vshll.u32 %v4948, 16
        %v4953 = vshrl.u32 %v4948, 16
        %vm4954 = vc.u32 %v4946, %v4950
        %v4955 = vsel %vm4954, 1, 0
        %v4956 = vadd.s32 %v4946, %v4950
        %v4957 = vadd.s32 %v4949, %v4955
        %vm4958 = vc.u32 %v4956, %v4952
        %v4959 = vsel %vm4958, 1, 0
        %v4960 = vadd.s32 %v4956, %v4952
        %v4961 = vadd.s32 %v4957, %v4959
        %v4962 = vadd.s32 %v4961, %v4951
        %v4963 = vadd.s32 %v4962, %v4953
        %v4964 = vand.u32 %v4941, 65535
        %v4965 = vshrl.u32 %v4941, 16
        %v4966 = vand.u32 %v4936, 65535
        %v4967 = vshrl.u32 %v4936, 16
        %v4968 = vmul.u32 %v4964, %v4966
        %v4969 = vmul.u32 %v4964, %v4967
        %v4970 = vmul.u32 %v4965, %v4966
        %v4971 = vmul.u32 %v4965, %v4967
        %v4972 = vshll.u32 %v4969, 16
        %v4973 = vshrl.u32 %v4969, 16
        %v4974 = vshll.u32 %v4970, 16
        %v4975 = vshrl.u32 %v4970, 16
        %vm4976 = vc.u32 %v4968, %v4972
        %v4977 = vsel %vm4976, 1, 0
        %v4978 = vadd.s32 %v4968, %v4972
        %v4979 = vadd.s32 %v4971, %v4977
        %vm4980 = vc.u32 %v4978, %v4974
        %v4981 = vsel %vm4980, 1, 0
        %v4982 = vadd.s32 %v4978, %v4974
        %v4983 = vadd.s32 %v4979, %v4981
        %v4984 = vadd.s32 %v4983, %v4973
        %v4985 = vadd.s32 %v4984, %v4975
        %v4986 = vmul.u32 %v4941, %v4932
        %v4987 = vadd.s32 %v4963, %v4982
        %vm4988 = vc.u32 %v4963, %v4982
        %v4989 = vadd.s32 %v4985, 1
        %v4990 = vsel %vm4988, %v4989, %v4985
        %v4991 = vadd.s32 %v4986, %v4990
        %v4992 = vadd.s32 %v4991, 536870912
        %v4993 = vshrl.u32 %v4992, 30
        %v4994 = vshll.u32 %v4993, 30
        %v4995 = vsub.s32 %v4991, %v4994
        %vm4996 = vcmp.lt.s32.totalorder %v4995, 0
        %v4997 = vsub.s32 0, %v4995
        %v4998 = vsel %vm4996, %v4997, %v4995
        %v4999 = vclz %v4998
        %v5000 = vsub.s32 %v4999, 2
        %vm5001 = vcmp.gt.s32.totalorder 0, %v5000
        %v5002 = vsel %vm5001, 0, %v5000
        %v5003 = vsub.s32 32, %v5002
        %v5004 = vshll.u32 %v4995, %v5002
        %v5005 = vshrl.u32 %v4987, %v5003
        %v5006 = vor.u32 %v5004, %v5005
        %v5007 = vsub.s32 4294967266, %v5002
        %v5008 = vadd.s32 %v5007, 127
        %v5009 = vshll.u32 %v5008, 23
        %v5010 = vor.u32 4788187, %v5009
        %v5011 = vand.u32 2147483647, %v5010
        %v5013 = vcvt.s32.f32 %v5006
        %v5014 = vmul.f32 %v5013, %v5011
        %v5015 = vxor.u32 %v5014, 2147483648
        %v5016 = vsel %vm4895, %v5015, %v5014
        %v5017 = vsub.s32 4, %v4993
        %v5018 = vsel %vm4895, %v5017, %v4993
        %v5019 = vsel %vm4894, %v411, %v5016
        %v5020 = vsel %vm4894, 0, %v5018
        %v5021 = vmul.f32 %v5019, %v5019
        %v5022 = vmul.f32 %v5021, -0.001358992
        %v5023 = vadd.f32 %v5022, 0.041655596
        %v5024 = vmul.f32 %v5021, %v5023
        %v5025 = vadd.f32 %v5024, -0.4999988
        %v5026 = vmul.f32 %v5021, %v5025
        %v5027 = vadd.f32 1.0, %v5026
        %v5028 = vmul.f32 %v5019, %v5019
        %v5029 = vmul.f32 %v5028, -0.00019511016
        %v5030 = vadd.f32 %v5029, 0.008332121
        %v5031 = vmul.f32 %v5028, %v5030
        %v5032 = vadd.f32 %v5031, -0.16666654
        %v5033 = vmul.f32 %v5028, %v5032
        %v5034 = vadd.f32 %v5033, 1.0
        %v5035 = vmul.f32 %v5034, %v5019
        %vm5036 = vweird.f32 %v411
        %v5037 = vadd.s32 %v5020, 3
        %v5038 = vand.u32 %v5037, 3
        %vm5039 = vcmp.lt.s32.totalorder %v5038, 2
        %vm5040 = vcmp.eq.s32.totalorder %v5038, 0
        %v5041 = vxor.u32 %v5035, 2147483648
        %v5042 = vsel %vm5040, %v5027, %v5041
        %vm5043 = vcmp.eq.s32.totalorder %v5038, 2
        %v5044 = vxor.u32 %v5027, 2147483648
        %v5045 = vsel %vm5043, %v5044, %v5035
        %v5046 = vsel %vm5039, %v5042, %v5045
        %v5047 = vsel %vm5036, nan, %v5046
        %v5048 = vand.u32 2147483647, %v412
        %vm5049 = vcmp.le.f32.partialorder %v5048, 0.7853982
        %vm5050 = vcmp.lt.s32.totalorder %v412, 0
        %v5051 = vand.u32 %v412, 2139095040
        %v5052 = vshrl.u32 %v5051, 23
        %v5053 = vsub.s32 %v5052, 127
        %v5054 = vand.u32 2147483647, %v412
        %v5055 = vand.u32 %v5054, 8388607
        %v5056 = vor.u32 %v5055, 8388608
        %v5057 = vsub.s32 0, %v5056
        %v5058 = vadd.s32 %v5053, 1
        %vm5059 = vcmp.gt.s32.totalorder %v5058, 0
        %v5060 = vsel %vm5059, %v5058, 0
        %v5061 = vshrl.u32 %v5060, 5
        %v5062 = vand.u32 %v5060, 31
        %v5063 = vsub.s32 32, %v5062
        %v5064 = vshrl.u32 683565275, %v5063
        %v5065 = vshll.u32 683565275, %v5062
        %v5066 = vshrl.u32 2475754826, %v5063
        %v5067 = vor.u32 %v5065, %v5066
        %v5068 = vshll.u32 2475754826, %v5062
        %v5069 = vshrl.u32 2131351028, %v5063
        %v5070 = vor.u32 %v5068, %v5069
        %v5071 = vshll.u32 2131351028, %v5062
        %v5072 = vshrl.u32 2102212464, %v5063
        %v5073 = vor.u32 %v5071, %v5072
        %v5074 = vshll.u32 2102212464, %v5062
        %v5075 = vshrl.u32 920167782, %v5063
        %v5076 = vor.u32 %v5074, %v5075
        %v5077 = vshll.u32 920167782, %v5062
        %v5078 = vshrl.u32 1326507024, %v5063
        %v5079 = vor.u32 %v5077, %v5078
        %vm5080 = vcmp.lt.s32.totalorder %v5061, 1
        %vm5081 = vcmp.lt.s32.totalorder %v5061, 2
        %vm5082 = vcmp.lt.s32.totalorder %v5061, 3
        %vm5083 = vcmp.lt.s32.totalorder %v5061, 4
        %v5084 = vsel %vm5080, %v5064, %v5067
        %v5085 = vsel %vm5083, %v5073, 2102212464
        %v5086 = vsel %vm5082, %v5070, %v5085
        %v5087 = vsel %vm5081, %v5084, %v5086
        %v5088 = vsel %vm5080, %v5067, %v5070
        %v5089 = vsel %vm5083, %v5076, 920167782
        %v5090 = vsel %vm5082, %v5073, %v5089
        %v5091 = vsel %vm5081, %v5088, %v5090
        %v5092 = vsel %vm5080, %v5070, %v5073
        %v5093 = vsel %vm5083, %v5079, 1326507024
        %v5094 = vsel %vm5082, %v5076, %v5093
        %v5095 = vsel %vm5081, %v5092, %v5094
        %v5096 = vshll.u32 %v5056, 8
        %v5097 = vand.u32 %v5096, 65535
        %v5098 = vshrl.u32 %v5096, 16
        %v5099 = vand.u32 %v5095, 65535
        %v5100 = vshrl.u32 %v5095, 16
        %v5101 = vmul.u32 %v5097, %v5099
        %v5102 = vmul.u32 %v5097, %v5100
        %v5103 = vmul.u32 %v5098, %v5099
        %v5104 = vmul.u32 %v5098, %v5100
        %v5105 = vshll.u32 %v5102, 16
        %v5106 = vshrl.u32 %v5102, 16
        %v5107 = vshll.u32 %v5103, 16
        %v5108 = vshrl.u32 %v5103, 16
        %vm5109 = vc.u32 %v5101, %v5105
        %v5110 = vsel %vm5109, 1, 0
        %v5111 = vadd.s32 %v5101, %v5105
        %v5112 = vadd.s32 %v5104, %v5110
        %vm5113 = vc.u32 %v5111, %v5107
        %v5114 = vsel %vm5113, 1, 0
        %v5115 = vadd.s32 %v5111, %v5107
        %v5116 = vadd.s32 %v5112, %v5114
        %v5117 = vadd.s32 %v5116, %v5106
        %v5118 = vadd.s32 %v5117, %v5108
        %v5119 = vand.u32 %v5096, 65535
        %v5120 = vshrl.u32 %v5096, 16
        %v5121 = vand.u32 %v5091, 65535
        %v5122 = vshrl.u32 %v5091, 16
        %v5123 = vmul.u32 %v5119, %v5121
        %v5124 = vmul.u32 %v5119, %v5122
        %v5125 = vmul.u32 %v5120, %v5121
        %v5126 = vmul.u32 %v5120, %v5122
        %v5127 = vshll.u32 %v5124, 16
        %v5128 = vshrl.u32 %v5124, 16
        %v5129 = vshll.u32 %v5125, 16
        %v5130 = vshrl.u32 %v5125, 16
        %vm5131 = vc.u32 %v5123, %v5127
        %v5132 = vsel %vm5131, 1, 0
        %v5133 = vadd.s32 %v5123, %v5127
        %v5134 = vadd.s32 %v5126, %v5132
        %vm5135 = vc.u32 %v5133, %v5129
        %v5136 = vsel %vm5135, 1, 0
        %v5137 = vadd.s32 %v5133, %v5129
        %v5138 = vadd.s32 %v5134, %v5136
        %v5139 = vadd.s32 %v5138, %v5128
        %v5140 = vadd.s32 %v5139, %v5130
        %v5141 = vmul.u32 %v5096, %v5087
        %v5142 = vadd.s32 %v5118, %v5137
        %vm5143 = vc.u32 %v5118, %v5137
        %v5144 = vadd.s32 %v5140, 1
        %v5145 = vsel %vm5143, %v5144, %v5140
        %v5146 = vadd.s32 %v5141, %v5145
        %v5147 = vadd.s32 %v5146, 536870912
        %v5148 = vshrl.u32 %v5147, 30
        %v5149 = vshll.u32 %v5148, 30
        %v5150 = vsub.s32 %v5146, %v5149
        %vm5151 = vcmp.lt.s32.totalorder %v5150, 0
        %v5152 = vsub.s32 0, %v5150
        %v5153 = vsel %vm5151, %v5152, %v5150
        %v5154 = vclz %v5153
        %v5155 = vsub.s32 %v5154, 2
        %vm5156 = vcmp.gt.s32.totalorder 0, %v5155
        %v5157 = vsel %vm5156, 0, %v5155
        %v5158 = vsub.s32 32, %v5157
        %v5159 = vshll.u32 %v5150, %v5157
        %v5160 = vshrl.u32 %v5142, %v5158
        %v5161 = vor.u32 %v5159, %v5160
        %v5162 = vsub.s32 4294967266, %v5157
        %v5163 = vadd.s32 %v5162, 127
        %v5164 = vshll.u32 %v5163, 23
        %v5165 = vor.u32 4788187, %v5164
        %v5166 = vand.u32 2147483647, %v5165
        %v5168 = vcvt.s32.f32 %v5161
        %v5169 = vmul.f32 %v5168, %v5166
        %v5170 = vxor.u32 %v5169, 2147483648
        %v5171 = vsel %vm5050, %v5170, %v5169
        %v5172 = vsub.s32 4, %v5148
        %v5173 = vsel %vm5050, %v5172, %v5148
        %v5174 = vsel %vm5049, %v412, %v5171
        %v5175 = vsel %vm5049, 0, %v5173
        %v5176 = vmul.f32 %v5174, %v5174
        %v5177 = vmul.f32 %v5176, -0.001358992
        %v5178 = vadd.f32 %v5177, 0.041655596
        %v5179 = vmul.f32 %v5176, %v5178
        %v5180 = vadd.f32 %v5179, -0.4999988
        %v5181 = vmul.f32 %v5176, %v5180
        %v5182 = vadd.f32 1.0, %v5181
        %v5183 = vmul.f32 %v5174, %v5174
        %v5184 = vmul.f32 %v5183, -0.00019511016
        %v5185 = vadd.f32 %v5184, 0.008332121
        %v5186 = vmul.f32 %v5183, %v5185
        %v5187 = vadd.f32 %v5186, -0.16666654
        %v5188 = vmul.f32 %v5183, %v5187
        %v5189 = vadd.f32 %v5188, 1.0
        %v5190 = vmul.f32 %v5189, %v5174
        %vm5191 = vweird.f32 %v412
        %v5192 = vadd.s32 %v5175, 3
        %v5193 = vand.u32 %v5192, 3
        %vm5194 = vcmp.lt.s32.totalorder %v5193, 2
        %vm5195 = vcmp.eq.s32.totalorder %v5193, 0
        %v5196 = vxor.u32 %v5190, 2147483648
        %v5197 = vsel %vm5195, %v5182, %v5196
        %vm5198 = vcmp.eq.s32.totalorder %v5193, 2
        %v5199 = vxor.u32 %v5182, 2147483648
        %v5200 = vsel %vm5198, %v5199, %v5190
        %v5201 = vsel %vm5194, %v5197, %v5200
        %v5202 = vsel %vm5191, nan, %v5201
        %v5203 = vand.u32 2147483647, %v413
        %vm5204 = vcmp.le.f32.partialorder %v5203, 0.7853982
        %vm5205 = vcmp.lt.s32.totalorder %v413, 0
        %v5206 = vand.u32 %v413, 2139095040
        %v5207 = vshrl.u32 %v5206, 23
        %v5208 = vsub.s32 %v5207, 127
        %v5209 = vand.u32 2147483647, %v413
        %v5210 = vand.u32 %v5209, 8388607
        %v5211 = vor.u32 %v5210, 8388608
        %v5212 = vsub.s32 0, %v5211
        %v5213 = vadd.s32 %v5208, 1
        %vm5214 = vcmp.gt.s32.totalorder %v5213, 0
        %v5215 = vsel %vm5214, %v5213, 0
        %v5216 = vshrl.u32 %v5215, 5
        %v5217 = vand.u32 %v5215, 31
        %v5218 = vsub.s32 32, %v5217
        %v5219 = vshrl.u32 683565275, %v5218
        %v5220 = vshll.u32 683565275, %v5217
        %v5221 = vshrl.u32 2475754826, %v5218
        %v5222 = vor.u32 %v5220, %v5221
        %v5223 = vshll.u32 2475754826, %v5217
        %v5224 = vshrl.u32 2131351028, %v5218
        %v5225 = vor.u32 %v5223, %v5224
        %v5226 = vshll.u32 2131351028, %v5217
        %v5227 = vshrl.u32 2102212464, %v5218
        %v5228 = vor.u32 %v5226, %v5227
        %v5229 = vshll.u32 2102212464, %v5217
        %v5230 = vshrl.u32 920167782, %v5218
        %v5231 = vor.u32 %v5229, %v5230
        %v5232 = vshll.u32 920167782, %v5217
        %v5233 = vshrl.u32 1326507024, %v5218
        %v5234 = vor.u32 %v5232, %v5233
        %vm5235 = vcmp.lt.s32.totalorder %v5216, 1
        %vm5236 = vcmp.lt.s32.totalorder %v5216, 2
        %vm5237 = vcmp.lt.s32.totalorder %v5216, 3
        %vm5238 = vcmp.lt.s32.totalorder %v5216, 4
        %v5239 = vsel %vm5235, %v5219, %v5222
        %v5240 = vsel %vm5238, %v5228, 2102212464
        %v5241 = vsel %vm5237, %v5225, %v5240
        %v5242 = vsel %vm5236, %v5239, %v5241
        %v5243 = vsel %vm5235, %v5222, %v5225
        %v5244 = vsel %vm5238, %v5231, 920167782
        %v5245 = vsel %vm5237, %v5228, %v5244
        %v5246 = vsel %vm5236, %v5243, %v5245
        %v5247 = vsel %vm5235, %v5225, %v5228
        %v5248 = vsel %vm5238, %v5234, 1326507024
        %v5249 = vsel %vm5237, %v5231, %v5248
        %v5250 = vsel %vm5236, %v5247, %v5249
        %v5251 = vshll.u32 %v5211, 8
        %v5252 = vand.u32 %v5251, 65535
        %v5253 = vshrl.u32 %v5251, 16
        %v5254 = vand.u32 %v5250, 65535
        %v5255 = vshrl.u32 %v5250, 16
        %v5256 = vmul.u32 %v5252, %v5254
        %v5257 = vmul.u32 %v5252, %v5255
        %v5258 = vmul.u32 %v5253, %v5254
        %v5259 = vmul.u32 %v5253, %v5255
        %v5260 = vshll.u32 %v5257, 16
        %v5261 = vshrl.u32 %v5257, 16
        %v5262 = vshll.u32 %v5258, 16
        %v5263 = vshrl.u32 %v5258, 16
        %vm5264 = vc.u32 %v5256, %v5260
        %v5265 = vsel %vm5264, 1, 0
        %v5266 = vadd.s32 %v5256, %v5260
        %v5267 = vadd.s32 %v5259, %v5265
        %vm5268 = vc.u32 %v5266, %v5262
        %v5269 = vsel %vm5268, 1, 0
        %v5270 = vadd.s32 %v5266, %v5262
        %v5271 = vadd.s32 %v5267, %v5269
        %v5272 = vadd.s32 %v5271, %v5261
        %v5273 = vadd.s32 %v5272, %v5263
        %v5274 = vand.u32 %v5251, 65535
        %v5275 = vshrl.u32 %v5251, 16
        %v5276 = vand.u32 %v5246, 65535
        %v5277 = vshrl.u32 %v5246, 16
        %v5278 = vmul.u32 %v5274, %v5276
        %v5279 = vmul.u32 %v5274, %v5277
        %v5280 = vmul.u32 %v5275, %v5276
        %v5281 = vmul.u32 %v5275, %v5277
        %v5282 = vshll.u32 %v5279, 16
        %v5283 = vshrl.u32 %v5279, 16
        %v5284 = vshll.u32 %v5280, 16
        %v5285 = vshrl.u32 %v5280, 16
        %vm5286 = vc.u32 %v5278, %v5282
        %v5287 = vsel %vm5286, 1, 0
        %v5288 = vadd.s32 %v5278, %v5282
        %v5289 = vadd.s32 %v5281, %v5287
        %vm5290 = vc.u32 %v5288, %v5284
        %v5291 = vsel %vm5290, 1, 0
        %v5292 = vadd.s32 %v5288, %v5284
        %v5293 = vadd.s32 %v5289, %v5291
        %v5294 = vadd.s32 %v5293, %v5283
        %v5295 = vadd.s32 %v5294, %v5285
        %v5296 = vmul.u32 %v5251, %v5242
        %v5297 = vadd.s32 %v5273, %v5292
        %vm5298 = vc.u32 %v5273, %v5292
        %v5299 = vadd.s32 %v5295, 1
        %v5300 = vsel %vm5298, %v5299, %v5295
        %v5301 = vadd.s32 %v5296, %v5300
        %v5302 = vadd.s32 %v5301, 536870912
        %v5303 = vshrl.u32 %v5302, 30
        %v5304 = vshll.u32 %v5303, 30
        %v5305 = vsub.s32 %v5301, %v5304
        %vm5306 = vcmp.lt.s32.totalorder %v5305, 0
        %v5307 = vsub.s32 0, %v5305
        %v5308 = vsel %vm5306, %v5307, %v5305
        %v5309 = vclz %v5308
        %v5310 = vsub.s32 %v5309, 2
        %vm5311 = vcmp.gt.s32.totalorder 0, %v5310
        %v5312 = vsel %vm5311, 0, %v5310
        %v5313 = vsub.s32 32, %v5312
        %v5314 = vshll.u32 %v5305, %v5312
        %v5315 = vshrl.u32 %v5297, %v5313
        %v5316 = vor.u32 %v5314, %v5315
        %v5317 = vsub.s32 4294967266, %v5312
        %v5318 = vadd.s32 %v5317, 127
        %v5319 = vshll.u32 %v5318, 23
        %v5320 = vor.u32 4788187, %v5319
        %v5321 = vand.u32 2147483647, %v5320
        %v5323 = vcvt.s32.f32 %v5316
        %v5324 = vmul.f32 %v5323, %v5321
        %v5325 = vxor.u32 %v5324, 2147483648
        %v5326 = vsel %vm5205, %v5325, %v5324
        %v5327 = vsub.s32 4, %v5303
        %v5328 = vsel %vm5205, %v5327, %v5303
        %v5329 = vsel %vm5204, %v413, %v5326
        %v5330 = vsel %vm5204, 0, %v5328
        %v5331 = vmul.f32 %v5329, %v5329
        %v5332 = vmul.f32 %v5331, -0.001358992
        %v5333 = vadd.f32 %v5332, 0.041655596
        %v5334 = vmul.f32 %v5331, %v5333
        %v5335 = vadd.f32 %v5334, -0.4999988
        %v5336 = vmul.f32 %v5331, %v5335
        %v5337 = vadd.f32 1.0, %v5336
        %v5338 = vmul.f32 %v5329, %v5329
        %v5339 = vmul.f32 %v5338, -0.00019511016
        %v5340 = vadd.f32 %v5339, 0.008332121
        %v5341 = vmul.f32 %v5338, %v5340
        %v5342 = vadd.f32 %v5341, -0.16666654
        %v5343 = vmul.f32 %v5338, %v5342
        %v5344 = vadd.f32 %v5343, 1.0
        %v5345 = vmul.f32 %v5344, %v5329
        %vm5346 = vweird.f32 %v413
        %v5347 = vadd.s32 %v5330, 3
        %v5348 = vand.u32 %v5347, 3
        %vm5349 = vcmp.lt.s32.totalorder %v5348, 2
        %vm5350 = vcmp.eq.s32.totalorder %v5348, 0
        %v5351 = vxor.u32 %v5345, 2147483648
        %v5352 = vsel %vm5350, %v5337, %v5351
        %vm5353 = vcmp.eq.s32.totalorder %v5348, 2
        %v5354 = vxor.u32 %v5337, 2147483648
        %v5355 = vsel %vm5353, %v5354, %v5345
        %v5356 = vsel %vm5349, %v5352, %v5355
        %v5357 = vsel %vm5346, nan, %v5356
        %v5358 = vpack.c.bf16 %v721, %v567
        %v5359 = vpack.c.bf16 %v1029, %v875
        %v5360 = vpack.c.bf16 %v1337, %v1183
        %v5361 = vpack.c.bf16 %v1645, %v1491
        %v5362 = vpack.c.bf16 %v1953, %v1799
        %v5363 = vpack.c.bf16 %v2261, %v2107
        %v5364 = vpack.c.bf16 %v2569, %v2415
        %v5365 = vpack.c.bf16 %v2877, %v2723
        %v5366 = vpack.c.bf16 %v3187, %v3032
        %v5367 = vpack.c.bf16 %v3497, %v3342
        %v5368 = vpack.c.bf16 %v3807, %v3652
        %v5369 = vpack.c.bf16 %v4117, %v3962
        %v5370 = vpack.c.bf16 %v4427, %v4272
        %v5371 = vpack.c.bf16 %v4737, %v4582
        %v5372 = vpack.c.bf16 %v5047, %v4892
        %v5373 = vpack.c.bf16 %v5357, %v5202
        %v5374 = vld [vmem:[#allocation5] sm:$0xff]
        %v5375 = vld [vmem:[#allocation5 + $0x8] sm:$0xff]
        %v5376 = vld [vmem:[#allocation5 + $0x10] sm:$0xff]
        %v5377 = vld [vmem:[#allocation5 + $0x18] sm:$0xff]
        %v5378 = vld [vmem:[#allocation5 + $0x20] sm:$0xff]
        %v5379 = vld [vmem:[#allocation5 + $0x28] sm:$0xff]
        %v5380 = vld [vmem:[#allocation5 + $0x30] sm:$0xff]
        %v5381 = vld [vmem:[#allocation5 + $0x38] sm:$0xff]
        %v5382 = vld [vmem:[#allocation5 + $0x40] sm:$0xff]
        %v5383 = vld [vmem:[#allocation5 + $0x48] sm:$0xff]
        %v5384 = vld [vmem:[#allocation5 + $0x50] sm:$0xff]
        %v5385 = vld [vmem:[#allocation5 + $0x58] sm:$0xff]
        %v5386 = vld [vmem:[#allocation5 + $0x60] sm:$0xff]
        %v5387 = vld [vmem:[#allocation5 + $0x68] sm:$0xff]
        %v5388 = vld [vmem:[#allocation5 + $0x70] sm:$0xff]
        %v5389 = vld [vmem:[#allocation5 + $0x78] sm:$0xff]
        %v5390 = vld [vmem:[#allocation5 + $0x80] sm:$0xff]
        %v5391 = vld [vmem:[#allocation5 + $0x88] sm:$0xff]
        %v5392 = vld [vmem:[#allocation5 + $0x90] sm:$0xff]
        %v5393 = vld [vmem:[#allocation5 + $0x98] sm:$0xff]
        %v5394 = vld [vmem:[#allocation5 + $0xa0] sm:$0xff]
        %v5395 = vld [vmem:[#allocation5 + $0xa8] sm:$0xff]
        %v5396 = vld [vmem:[#allocation5 + $0xb0] sm:$0xff]
        %v5397 = vld [vmem:[#allocation5 + $0xb8] sm:$0xff]
        %v5398 = vld [vmem:[#allocation5 + $0xc0] sm:$0xff]
        %v5399 = vld [vmem:[#allocation5 + $0xc8] sm:$0xff]
        %v5400 = vld [vmem:[#allocation5 + $0xd0] sm:$0xff]
        %v5401 = vld [vmem:[#allocation5 + $0xd8] sm:$0xff]
        %v5402 = vld [vmem:[#allocation5 + $0xe0] sm:$0xff]
        %v5403 = vld [vmem:[#allocation5 + $0xe8] sm:$0xff]
        %v5404 = vld [vmem:[#allocation5 + $0xf0] sm:$0xff]
        %v5405 = vld [vmem:[#allocation5 + $0xf8] sm:$0xff]
        %v5438 = vunpack.c.l.b16 %v5374
        %v5439 = vunpack.c.h.b16 %v5374
        %v5440 = vunpack.c.l.b16 %v5375
        %v5441 = vunpack.c.h.b16 %v5375
        %v5442 = vunpack.c.l.b16 %v5376
        %v5443 = vunpack.c.h.b16 %v5376
        %v5444 = vunpack.c.l.b16 %v5377
        %v5445 = vunpack.c.h.b16 %v5377
        %v5446 = vunpack.c.l.b16 %v5378
        %v5447 = vunpack.c.h.b16 %v5378
        %v5448 = vunpack.c.l.b16 %v5379
        %v5449 = vunpack.c.h.b16 %v5379
        %v5450 = vunpack.c.l.b16 %v5380
        %v5451 = vunpack.c.h.b16 %v5380
        %v5452 = vunpack.c.l.b16 %v5381
        %v5453 = vunpack.c.h.b16 %v5381
        %v5454 = vunpack.c.l.b16 %v5382
        %v5455 = vunpack.c.h.b16 %v5382
        %v5456 = vunpack.c.l.b16 %v5383
        %v5457 = vunpack.c.h.b16 %v5383
        %v5458 = vunpack.c.l.b16 %v5384
        %v5459 = vunpack.c.h.b16 %v5384
        %v5460 = vunpack.c.l.b16 %v5385
        %v5461 = vunpack.c.h.b16 %v5385
        %v5462 = vunpack.c.l.b16 %v5386
        %v5463 = vunpack.c.h.b16 %v5386
        %v5464 = vunpack.c.l.b16 %v5387
        %v5465 = vunpack.c.h.b16 %v5387
        %v5466 = vunpack.c.l.b16 %v5388
        %v5467 = vunpack.c.h.b16 %v5388
        %v5468 = vunpack.c.l.b16 %v5389
        %v5469 = vunpack.c.h.b16 %v5389
        %v5470 = vunpack.c.l.b16 %v5390
        %v5471 = vunpack.c.h.b16 %v5390
        %v5472 = vunpack.c.l.b16 %v5391
        %v5473 = vunpack.c.h.b16 %v5391
        %v5474 = vunpack.c.l.b16 %v5392
        %v5475 = vunpack.c.h.b16 %v5392
        %v5476 = vunpack.c.l.b16 %v5393
        %v5477 = vunpack.c.h.b16 %v5393
        %v5478 = vunpack.c.l.b16 %v5394
        %v5479 = vunpack.c.h.b16 %v5394
        %v5480 = vunpack.c.l.b16 %v5395
        %v5481 = vunpack.c.h.b16 %v5395
        %v5482 = vunpack.c.l.b16 %v5396
        %v5483 = vunpack.c.h.b16 %v5396
        %v5484 = vunpack.c.l.b16 %v5397
        %v5485 = vunpack.c.h.b16 %v5397
        %v5486 = vunpack.c.l.b16 %v5398
        %v5487 = vunpack.c.h.b16 %v5398
        %v5488 = vunpack.c.l.b16 %v5399
        %v5489 = vunpack.c.h.b16 %v5399
        %v5490 = vunpack.c.l.b16 %v5400
        %v5491 = vunpack.c.h.b16 %v5400
        %v5492 = vunpack.c.l.b16 %v5401
        %v5493 = vunpack.c.h.b16 %v5401
        %v5494 = vunpack.c.l.b16 %v5402
        %v5495 = vunpack.c.h.b16 %v5402
        %v5496 = vunpack.c.l.b16 %v5403
        %v5497 = vunpack.c.h.b16 %v5403
        %v5498 = vunpack.c.l.b16 %v5404
        %v5499 = vunpack.c.h.b16 %v5404
        %v5500 = vunpack.c.l.b16 %v5405
        %v5501 = vunpack.c.h.b16 %v5405
        %v5502 = vpack.c.b16 %v5440, %v5438
        %v5503 = vpack.c.b16 %v5441, %v5439
        %v5504 = vpack.c.b16 %v5444, %v5442
        %v5505 = vpack.c.b16 %v5445, %v5443
        %v5506 = vpack.c.b16 %v5448, %v5446
        %v5507 = vpack.c.b16 %v5449, %v5447
        %v5508 = vpack.c.b16 %v5452, %v5450
        %v5509 = vpack.c.b16 %v5453, %v5451
        %v5510 = vpack.c.b16 %v5456, %v5454
        %v5511 = vpack.c.b16 %v5457, %v5455
        %v5512 = vpack.c.b16 %v5460, %v5458
        %v5513 = vpack.c.b16 %v5461, %v5459
        %v5514 = vpack.c.b16 %v5464, %v5462
        %v5515 = vpack.c.b16 %v5465, %v5463
        %v5516 = vpack.c.b16 %v5468, %v5466
        %v5517 = vpack.c.b16 %v5469, %v5467
        %v5518 = vpack.c.b16 %v5472, %v5470
        %v5519 = vpack.c.b16 %v5473, %v5471
        %v5520 = vpack.c.b16 %v5476, %v5474
        %v5521 = vpack.c.b16 %v5477, %v5475
        %v5522 = vpack.c.b16 %v5480, %v5478
        %v5523 = vpack.c.b16 %v5481, %v5479
        %v5524 = vpack.c.b16 %v5484, %v5482
        %v5525 = vpack.c.b16 %v5485, %v5483
        %v5526 = vpack.c.b16 %v5488, %v5486
        %v5527 = vpack.c.b16 %v5489, %v5487
        %v5528 = vpack.c.b16 %v5492, %v5490
        %v5529 = vpack.c.b16 %v5493, %v5491
        %v5530 = vpack.c.b16 %v5496, %v5494
        %v5531 = vpack.c.b16 %v5497, %v5495
        %v5532 = vpack.c.b16 %v5500, %v5498
        %v5533 = vpack.c.b16 %v5501, %v5499
        %5566 = vmatpush.bf16.msra.mxu0 %v5365
        %5567 = vmatpush.bf16.msra.mxu0 %v5364
        %5568 = vmatpush.bf16.msra.mxu0 %v5363
        %5569 = vmatpush.bf16.msra.mxu0 %v5362
        %5570 = vmatpush.bf16.msra.mxu0 %v5361
        %5571 = vmatpush.bf16.msra.mxu0 %v5360
        %5572 = vmatpush.bf16.msra.mxu0 %v5359
        %5573 = vmatpush.bf16.msra.mxu0 %v5358
        %5574 = vmatmul.bf16.gmra.mxu0 %v5502
        %v5575 = vpop.f32.mrf.mxu0
        %v5576 = vadd.f32 0.0, %v5575
        %v5577 = vpop.f32.mrf.mxu0
        %v5578 = vadd.f32 0.0, %v5577
        %5579 = vmatmul.bf16.gmra.mxu0 %v5504
        %v5580 = vpop.f32.mrf.mxu0
        %v5581 = vadd.f32 0.0, %v5580
        %v5582 = vpop.f32.mrf.mxu0
        %v5583 = vadd.f32 0.0, %v5582
        %5584 = vmatmul.bf16.gmra.mxu0 %v5506
        %v5585 = vpop.f32.mrf.mxu0
        %v5586 = vadd.f32 0.0, %v5585
        %v5587 = vpop.f32.mrf.mxu0
        %v5588 = vadd.f32 0.0, %v5587
        %5589 = vmatmul.bf16.gmra.mxu0 %v5508
        %v5590 = vpop.f32.mrf.mxu0
        %v5591 = vadd.f32 0.0, %v5590
        %v5592 = vpop.f32.mrf.mxu0
        %v5593 = vadd.f32 0.0, %v5592
        %5594 = vmatmul.bf16.gmra.mxu0 %v5510
        %v5595 = vpop.f32.mrf.mxu0
        %v5596 = vadd.f32 0.0, %v5595
        %v5597 = vpop.f32.mrf.mxu0
        %v5598 = vadd.f32 0.0, %v5597
        %5599 = vmatmul.bf16.gmra.mxu0 %v5512
        %v5600 = vpop.f32.mrf.mxu0
        %v5601 = vadd.f32 0.0, %v5600
        %v5602 = vpop.f32.mrf.mxu0
        %v5603 = vadd.f32 0.0, %v5602
        %5604 = vmatmul.bf16.gmra.mxu0 %v5514
        %v5605 = vpop.f32.mrf.mxu0
        %v5606 = vadd.f32 0.0, %v5605
        %v5607 = vpop.f32.mrf.mxu0
        %v5608 = vadd.f32 0.0, %v5607
        %5609 = vmatmul.bf16.gmra.mxu0 %v5516
        %v5610 = vpop.f32.mrf.mxu0
        %v5611 = vadd.f32 0.0, %v5610
        %v5612 = vpop.f32.mrf.mxu0
        %v5613 = vadd.f32 0.0, %v5612
        %5614 = vmatmul.bf16.gmra.mxu0 %v5518
        %v5615 = vpop.f32.mrf.mxu0
        %v5616 = vadd.f32 0.0, %v5615
        %v5617 = vpop.f32.mrf.mxu0
        %v5618 = vadd.f32 0.0, %v5617
        %5619 = vmatmul.bf16.gmra.mxu0 %v5520
        %v5620 = vpop.f32.mrf.mxu0
        %v5621 = vadd.f32 0.0, %v5620
        %v5622 = vpop.f32.mrf.mxu0
        %v5623 = vadd.f32 0.0, %v5622
        %5624 = vmatmul.bf16.gmra.mxu0 %v5522
        %v5625 = vpop.f32.mrf.mxu0
        %v5626 = vadd.f32 0.0, %v5625
        %v5627 = vpop.f32.mrf.mxu0
        %v5628 = vadd.f32 0.0, %v5627
        %5629 = vmatmul.bf16.gmra.mxu0 %v5524
        %v5630 = vpop.f32.mrf.mxu0
        %v5631 = vadd.f32 0.0, %v5630
        %v5632 = vpop.f32.mrf.mxu0
        %v5633 = vadd.f32 0.0, %v5632
        %5634 = vmatmul.bf16.gmra.mxu0 %v5526
        %v5635 = vpop.f32.mrf.mxu0
        %v5636 = vadd.f32 0.0, %v5635
        %v5637 = vpop.f32.mrf.mxu0
        %v5638 = vadd.f32 0.0, %v5637
        %5639 = vmatmul.bf16.gmra.mxu0 %v5528
        %v5640 = vpop.f32.mrf.mxu0
        %v5641 = vadd.f32 0.0, %v5640
        %v5642 = vpop.f32.mrf.mxu0
        %v5643 = vadd.f32 0.0, %v5642
        %5644 = vmatmul.bf16.gmra.mxu0 %v5530
        %v5645 = vpop.f32.mrf.mxu0
        %v5646 = vadd.f32 0.0, %v5645
        %v5647 = vpop.f32.mrf.mxu0
        %v5648 = vadd.f32 0.0, %v5647
        %5649 = vmatmul.bf16.gmra.mxu0 %v5532
        %v5650 = vpop.f32.mrf.mxu0
        %v5651 = vadd.f32 0.0, %v5650
        %v5652 = vpop.f32.mrf.mxu0
        %v5653 = vadd.f32 0.0, %v5652
        %5654 = vdwg.mxu0
        %5655 = vmatpush.bf16.msra.mxu0 %v5373
        %5656 = vmatpush.bf16.msra.mxu0 %v5372
        %5657 = vmatpush.bf16.msra.mxu0 %v5371
        %5658 = vmatpush.bf16.msra.mxu0 %v5370
        %5659 = vmatpush.bf16.msra.mxu0 %v5369
        %5660 = vmatpush.bf16.msra.mxu0 %v5368
        %5661 = vmatpush.bf16.msra.mxu0 %v5367
        %5662 = vmatpush.bf16.msra.mxu0 %v5366
        %5663 = vmatmul.bf16.gmra.mxu0 %v5503
        %v5664 = vpop.f32.mrf.mxu0
        %v5665 = vadd.f32 %v5576, %v5664
        %v5666 = vpop.f32.mrf.mxu0
        %v5667 = vadd.f32 %v5578, %v5666
        %5668 = vmatmul.bf16.gmra.mxu0 %v5505
        %v5669 = vpop.f32.mrf.mxu0
        %v5670 = vadd.f32 %v5581, %v5669
        %v5671 = vpop.f32.mrf.mxu0
        %v5672 = vadd.f32 %v5583, %v5671
        %5673 = vmatmul.bf16.gmra.mxu0 %v5507
        %v5674 = vpop.f32.mrf.mxu0
        %v5675 = vadd.f32 %v5586, %v5674
        %v5676 = vpop.f32.mrf.mxu0
        %v5677 = vadd.f32 %v5588, %v5676
        %5678 = vmatmul.bf16.gmra.mxu0 %v5509
        %v5679 = vpop.f32.mrf.mxu0
        %v5680 = vadd.f32 %v5591, %v5679
        %v5681 = vpop.f32.mrf.mxu0
        %v5682 = vadd.f32 %v5593, %v5681
        %5683 = vmatmul.bf16.gmra.mxu0 %v5511
        %v5684 = vpop.f32.mrf.mxu0
        %v5685 = vadd.f32 %v5596, %v5684
        %v5686 = vpop.f32.mrf.mxu0
        %v5687 = vadd.f32 %v5598, %v5686
        %5688 = vmatmul.bf16.gmra.mxu0 %v5513
        %v5689 = vpop.f32.mrf.mxu0
        %v5690 = vadd.f32 %v5601, %v5689
        %v5691 = vpop.f32.mrf.mxu0
        %v5692 = vadd.f32 %v5603, %v5691
        %5693 = vmatmul.bf16.gmra.mxu0 %v5515
        %v5694 = vpop.f32.mrf.mxu0
        %v5695 = vadd.f32 %v5606, %v5694
        %v5696 = vpop.f32.mrf.mxu0
        %v5697 = vadd.f32 %v5608, %v5696
        %5698 = vmatmul.bf16.gmra.mxu0 %v5517
        %v5699 = vpop.f32.mrf.mxu0
        %v5700 = vadd.f32 %v5611, %v5699
        %v5701 = vpop.f32.mrf.mxu0
        %v5702 = vadd.f32 %v5613, %v5701
        %5703 = vmatmul.bf16.gmra.mxu0 %v5519
        %v5704 = vpop.f32.mrf.mxu0
        %v5705 = vadd.f32 %v5616, %v5704
        %v5706 = vpop.f32.mrf.mxu0
        %v5707 = vadd.f32 %v5618, %v5706
        %5708 = vmatmul.bf16.gmra.mxu0 %v5521
        %v5709 = vpop.f32.mrf.mxu0
        %v5710 = vadd.f32 %v5621, %v5709
        %v5711 = vpop.f32.mrf.mxu0
        %v5712 = vadd.f32 %v5623, %v5711
        %5713 = vmatmul.bf16.gmra.mxu0 %v5523
        %v5714 = vpop.f32.mrf.mxu0
        %v5715 = vadd.f32 %v5626, %v5714
        %v5716 = vpop.f32.mrf.mxu0
        %v5717 = vadd.f32 %v5628, %v5716
        %5718 = vmatmul.bf16.gmra.mxu0 %v5525
        %v5719 = vpop.f32.mrf.mxu0
        %v5720 = vadd.f32 %v5631, %v5719
        %v5721 = vpop.f32.mrf.mxu0
        %v5722 = vadd.f32 %v5633, %v5721
        %5723 = vmatmul.bf16.gmra.mxu0 %v5527
        %v5724 = vpop.f32.mrf.mxu0
        %v5725 = vadd.f32 %v5636, %v5724
        %v5726 = vpop.f32.mrf.mxu0
        %v5727 = vadd.f32 %v5638, %v5726
        %5728 = vmatmul.bf16.gmra.mxu0 %v5529
        %v5729 = vpop.f32.mrf.mxu0
        %v5730 = vadd.f32 %v5641, %v5729
        %v5731 = vpop.f32.mrf.mxu0
        %v5732 = vadd.f32 %v5643, %v5731
        %5733 = vmatmul.bf16.gmra.mxu0 %v5531
        %v5734 = vpop.f32.mrf.mxu0
        %v5735 = vadd.f32 %v5646, %v5734
        %v5736 = vpop.f32.mrf.mxu0
        %v5737 = vadd.f32 %v5648, %v5736
        %5738 = vmatmul.bf16.gmra.mxu0 %v5533
        %v5739 = vpop.f32.mrf.mxu0
        %v5740 = vadd.f32 %v5651, %v5739
        %v5741 = vpop.f32.mrf.mxu0
        %v5742 = vadd.f32 %v5653, %v5741
        %5743 = vdwg.mxu0
        %v5744 = vpack.c.bf16 %v5665, %v5665
        %v5745 = vpack.c.bf16 %v5667, %v5667
        %v5746 = vpack.c.bf16 %v5670, %v5670
        %v5747 = vpack.c.bf16 %v5672, %v5672
        %v5748 = vpack.c.bf16 %v5675, %v5675
        %v5749 = vpack.c.bf16 %v5677, %v5677
        %v5750 = vpack.c.bf16 %v5680, %v5680
        %v5751 = vpack.c.bf16 %v5682, %v5682
        %v5752 = vpack.c.bf16 %v5685, %v5685
        %v5753 = vpack.c.bf16 %v5687, %v5687
        %v5754 = vpack.c.bf16 %v5690, %v5690
        %v5755 = vpack.c.bf16 %v5692, %v5692
        %v5756 = vpack.c.bf16 %v5695, %v5695
        %v5757 = vpack.c.bf16 %v5697, %v5697
        %v5758 = vpack.c.bf16 %v5700, %v5700
        %v5759 = vpack.c.bf16 %v5702, %v5702
        %v5760 = vpack.c.bf16 %v5705, %v5705
        %v5761 = vpack.c.bf16 %v5707, %v5707
        %v5762 = vpack.c.bf16 %v5710, %v5710
        %v5763 = vpack.c.bf16 %v5712, %v5712
        %v5764 = vpack.c.bf16 %v5715, %v5715
        %v5765 = vpack.c.bf16 %v5717, %v5717
        %v5766 = vpack.c.bf16 %v5720, %v5720
        %v5767 = vpack.c.bf16 %v5722, %v5722
        %v5768 = vpack.c.bf16 %v5725, %v5725
        %v5769 = vpack.c.bf16 %v5727, %v5727
        %v5770 = vpack.c.bf16 %v5730, %v5730
        %v5771 = vpack.c.bf16 %v5732, %v5732
        %v5772 = vpack.c.bf16 %v5735, %v5735
        %v5773 = vpack.c.bf16 %v5737, %v5737
        %v5774 = vpack.c.bf16 %v5740, %v5740
        %v5775 = vpack.c.bf16 %v5742, %v5742
        %v5792 = vunpack.c.l.b16 %v5744
        %v5793 = vunpack.c.l.b16 %v5745
        %v5794 = vunpack.c.l.b16 %v5746
        %v5795 = vunpack.c.l.b16 %v5747
        %v5796 = vunpack.c.l.b16 %v5748
        %v5797 = vunpack.c.l.b16 %v5749
        %v5798 = vunpack.c.l.b16 %v5750
        %v5799 = vunpack.c.l.b16 %v5751
        %v5800 = vunpack.c.l.b16 %v5752
        %v5801 = vunpack.c.l.b16 %v5753
        %v5802 = vunpack.c.l.b16 %v5754
        %v5803 = vunpack.c.l.b16 %v5755
        %v5804 = vunpack.c.l.b16 %v5756
        %v5805 = vunpack.c.l.b16 %v5757
        %v5806 = vunpack.c.l.b16 %v5758
        %v5807 = vunpack.c.l.b16 %v5759
        %v5808 = vpack.c.b16 %v5793, %v5792
        %v5809 = vpack.c.b16 %v5795, %v5794
        %v5810 = vpack.c.b16 %v5797, %v5796
        %v5811 = vpack.c.b16 %v5799, %v5798
        %v5812 = vpack.c.b16 %v5801, %v5800
        %v5813 = vpack.c.b16 %v5803, %v5802
        %v5814 = vpack.c.b16 %v5805, %v5804
        %v5815 = vpack.c.b16 %v5807, %v5806
        %v5840 = vunpack.c.l.b16 %v5760
        %v5841 = vunpack.c.l.b16 %v5761
        %v5842 = vunpack.c.l.b16 %v5762
        %v5843 = vunpack.c.l.b16 %v5763
        %v5844 = vunpack.c.l.b16 %v5764
        %v5845 = vunpack.c.l.b16 %v5765
        %v5846 = vunpack.c.l.b16 %v5766
        %v5847 = vunpack.c.l.b16 %v5767
        %v5848 = vunpack.c.l.b16 %v5768
        %v5849 = vunpack.c.l.b16 %v5769
        %v5850 = vunpack.c.l.b16 %v5770
        %v5851 = vunpack.c.l.b16 %v5771
        %v5852 = vunpack.c.l.b16 %v5772
        %v5853 = vunpack.c.l.b16 %v5773
        %v5854 = vunpack.c.l.b16 %v5774
        %v5855 = vunpack.c.l.b16 %v5775
        %v5856 = vpack.c.b16 %v5841, %v5840
        %v5857 = vpack.c.b16 %v5843, %v5842
        %v5858 = vpack.c.b16 %v5845, %v5844
        %v5859 = vpack.c.b16 %v5847, %v5846
        %v5860 = vpack.c.b16 %v5849, %v5848
        %v5861 = vpack.c.b16 %v5851, %v5850
        %v5862 = vpack.c.b16 %v5853, %v5852
        %v5863 = vpack.c.b16 %v5855, %v5854
        %v5872 = vld [vmem:[#allocation7] sm:$0xff]
        %v5873 = vld [vmem:[#allocation7 + $0x8] sm:$0xff]
        %v5874 = vld [vmem:[#allocation7 + $0x10] sm:$0xff]
        %v5875 = vld [vmem:[#allocation7 + $0x18] sm:$0xff]
        %v5876 = vld [vmem:[#allocation7 + $0x20] sm:$0xff]
        %v5877 = vld [vmem:[#allocation7 + $0x28] sm:$0xff]
        %v5878 = vld [vmem:[#allocation7 + $0x30] sm:$0xff]
        %v5879 = vld [vmem:[#allocation7 + $0x38] sm:$0xff]
        %v5880 = vld [vmem:[#allocation7 + $0x40] sm:$0xff]
        %v5881 = vld [vmem:[#allocation7 + $0x48] sm:$0xff]
        %v5882 = vld [vmem:[#allocation7 + $0x50] sm:$0xff]
        %v5883 = vld [vmem:[#allocation7 + $0x58] sm:$0xff]
        %v5884 = vld [vmem:[#allocation7 + $0x60] sm:$0xff]
        %v5885 = vld [vmem:[#allocation7 + $0x68] sm:$0xff]
        %v5886 = vld [vmem:[#allocation7 + $0x70] sm:$0xff]
        %v5887 = vld [vmem:[#allocation7 + $0x78] sm:$0xff]
        %v5888 = vld [vmem:[#allocation7 + $0x80] sm:$0xff]
        %v5889 = vld [vmem:[#allocation7 + $0x88] sm:$0xff]
        %v5890 = vld [vmem:[#allocation7 + $0x90] sm:$0xff]
        %v5891 = vld [vmem:[#allocation7 + $0x98] sm:$0xff]
        %v5892 = vld [vmem:[#allocation7 + $0xa0] sm:$0xff]
        %v5893 = vld [vmem:[#allocation7 + $0xa8] sm:$0xff]
        %v5894 = vld [vmem:[#allocation7 + $0xb0] sm:$0xff]
        %v5895 = vld [vmem:[#allocation7 + $0xb8] sm:$0xff]
        %v5896 = vld [vmem:[#allocation7 + $0xc0] sm:$0xff]
        %v5897 = vld [vmem:[#allocation7 + $0xc8] sm:$0xff]
        %v5898 = vld [vmem:[#allocation7 + $0xd0] sm:$0xff]
        %v5899 = vld [vmem:[#allocation7 + $0xd8] sm:$0xff]
        %v5900 = vld [vmem:[#allocation7 + $0xe0] sm:$0xff]
        %v5901 = vld [vmem:[#allocation7 + $0xe8] sm:$0xff]
        %v5902 = vld [vmem:[#allocation7 + $0xf0] sm:$0xff]
        %v5903 = vld [vmem:[#allocation7 + $0xf8] sm:$0xff]
        %v5936 = vunpack.c.l.b16 %v5872
        %v5937 = vunpack.c.h.b16 %v5872
        %v5938 = vunpack.c.l.b16 %v5873
        %v5939 = vunpack.c.h.b16 %v5873
        %v5940 = vunpack.c.l.b16 %v5874
        %v5941 = vunpack.c.h.b16 %v5874
        %v5942 = vunpack.c.l.b16 %v5875
        %v5943 = vunpack.c.h.b16 %v5875
        %v5944 = vunpack.c.l.b16 %v5876
        %v5945 = vunpack.c.h.b16 %v5876
        %v5946 = vunpack.c.l.b16 %v5877
        %v5947 = vunpack.c.h.b16 %v5877
        %v5948 = vunpack.c.l.b16 %v5878
        %v5949 = vunpack.c.h.b16 %v5878
        %v5950 = vunpack.c.l.b16 %v5879
        %v5951 = vunpack.c.h.b16 %v5879
        %v5952 = vunpack.c.l.b16 %v5880
        %v5953 = vunpack.c.h.b16 %v5880
        %v5954 = vunpack.c.l.b16 %v5881
        %v5955 = vunpack.c.h.b16 %v5881
        %v5956 = vunpack.c.l.b16 %v5882
        %v5957 = vunpack.c.h.b16 %v5882
        %v5958 = vunpack.c.l.b16 %v5883
        %v5959 = vunpack.c.h.b16 %v5883
        %v5960 = vunpack.c.l.b16 %v5884
        %v5961 = vunpack.c.h.b16 %v5884
        %v5962 = vunpack.c.l.b16 %v5885
        %v5963 = vunpack.c.h.b16 %v5885
        %v5964 = vunpack.c.l.b16 %v5886
        %v5965 = vunpack.c.h.b16 %v5886
        %v5966 = vunpack.c.l.b16 %v5887
        %v5967 = vunpack.c.h.b16 %v5887
        %v5968 = vunpack.c.l.b16 %v5888
        %v5969 = vunpack.c.h.b16 %v5888
        %v5970 = vunpack.c.l.b16 %v5889
        %v5971 = vunpack.c.h.b16 %v5889
        %v5972 = vunpack.c.l.b16 %v5890
        %v5973 = vunpack.c.h.b16 %v5890
        %v5974 = vunpack.c.l.b16 %v5891
        %v5975 = vunpack.c.h.b16 %v5891
        %v5976 = vunpack.c.l.b16 %v5892
        %v5977 = vunpack.c.h.b16 %v5892
        %v5978 = vunpack.c.l.b16 %v5893
        %v5979 = vunpack.c.h.b16 %v5893
        %v5980 = vunpack.c.l.b16 %v5894
        %v5981 = vunpack.c.h.b16 %v5894
        %v5982 = vunpack.c.l.b16 %v5895
        %v5983 = vunpack.c.h.b16 %v5895
        %v5984 = vunpack.c.l.b16 %v5896
        %v5985 = vunpack.c.h.b16 %v5896
        %v5986 = vunpack.c.l.b16 %v5897
        %v5987 = vunpack.c.h.b16 %v5897
        %v5988 = vunpack.c.l.b16 %v5898
        %v5989 = vunpack.c.h.b16 %v5898
        %v5990 = vunpack.c.l.b16 %v5899
        %v5991 = vunpack.c.h.b16 %v5899
        %v5992 = vunpack.c.l.b16 %v5900
        %v5993 = vunpack.c.h.b16 %v5900
        %v5994 = vunpack.c.l.b16 %v5901
        %v5995 = vunpack.c.h.b16 %v5901
        %v5996 = vunpack.c.l.b16 %v5902
        %v5997 = vunpack.c.h.b16 %v5902
        %v5998 = vunpack.c.l.b16 %v5903
        %v5999 = vunpack.c.h.b16 %v5903
        %v6000 = vpack.c.b16 %v5938, %v5936
        %v6001 = vpack.c.b16 %v5939, %v5937
        %v6002 = vpack.c.b16 %v5942, %v5940
        %v6003 = vpack.c.b16 %v5943, %v5941
        %v6004 = vpack.c.b16 %v5946, %v5944
        %v6005 = vpack.c.b16 %v5947, %v5945
        %v6006 = vpack.c.b16 %v5950, %v5948
        %v6007 = vpack.c.b16 %v5951, %v5949
        %v6008 = vpack.c.b16 %v5954, %v5952
        %v6009 = vpack.c.b16 %v5955, %v5953
        %v6010 = vpack.c.b16 %v5958, %v5956
        %v6011 = vpack.c.b16 %v5959, %v5957
        %v6012 = vpack.c.b16 %v5962, %v5960
        %v6013 = vpack.c.b16 %v5963, %v5961
        %v6014 = vpack.c.b16 %v5966, %v5964
        %v6015 = vpack.c.b16 %v5967, %v5965
        %v6016 = vpack.c.b16 %v5970, %v5968
        %v6017 = vpack.c.b16 %v5971, %v5969
        %v6018 = vpack.c.b16 %v5974, %v5972
        %v6019 = vpack.c.b16 %v5975, %v5973
        %v6020 = vpack.c.b16 %v5978, %v5976
        %v6021 = vpack.c.b16 %v5979, %v5977
        %v6022 = vpack.c.b16 %v5982, %v5980
        %v6023 = vpack.c.b16 %v5983, %v5981
        %v6024 = vpack.c.b16 %v5986, %v5984
        %v6025 = vpack.c.b16 %v5987, %v5985
        %v6026 = vpack.c.b16 %v5990, %v5988
        %v6027 = vpack.c.b16 %v5991, %v5989
        %v6028 = vpack.c.b16 %v5994, %v5992
        %v6029 = vpack.c.b16 %v5995, %v5993
        %v6030 = vpack.c.b16 %v5998, %v5996
        %v6031 = vpack.c.b16 %v5999, %v5997
        %6064 = vmatpush.bf16.msra.mxu0 %v6014
        %6065 = vmatpush.bf16.msra.mxu0 %v6012
        %6066 = vmatpush.bf16.msra.mxu0 %v6010
        %6067 = vmatpush.bf16.msra.mxu0 %v6008
        %6068 = vmatpush.bf16.msra.mxu0 %v6006
        %6069 = vmatpush.bf16.msra.mxu0 %v6004
        %6070 = vmatpush.bf16.msra.mxu0 %v6002
        %6071 = vmatpush.bf16.msra.mxu0 %v6000
        %6072 = vmatmul.bf16.gmra.mxu0 %v5808
        %v6073 = vpop.f32.mrf.mxu0
        %v6074 = vadd.f32 0.0, %v6073
        %v6075 = vpop.f32.mrf.mxu0
        %v6076 = vadd.f32 0.0, %v6075
        %6077 = vmatmul.bf16.gmra.mxu0 %v5809
        %v6078 = vpop.f32.mrf.mxu0
        %v6079 = vadd.f32 0.0, %v6078
        %v6080 = vpop.f32.mrf.mxu0
        %v6081 = vadd.f32 0.0, %v6080
        %6082 = vmatmul.bf16.gmra.mxu0 %v5810
        %v6083 = vpop.f32.mrf.mxu0
        %v6084 = vadd.f32 0.0, %v6083
        %v6085 = vpop.f32.mrf.mxu0
        %v6086 = vadd.f32 0.0, %v6085
        %6087 = vmatmul.bf16.gmra.mxu0 %v5811
        %v6088 = vpop.f32.mrf.mxu0
        %v6089 = vadd.f32 0.0, %v6088
        %v6090 = vpop.f32.mrf.mxu0
        %v6091 = vadd.f32 0.0, %v6090
        %6092 = vmatmul.bf16.gmra.mxu0 %v5812
        %v6093 = vpop.f32.mrf.mxu0
        %v6094 = vadd.f32 0.0, %v6093
        %v6095 = vpop.f32.mrf.mxu0
        %v6096 = vadd.f32 0.0, %v6095
        %6097 = vmatmul.bf16.gmra.mxu0 %v5813
        %v6098 = vpop.f32.mrf.mxu0
        %v6099 = vadd.f32 0.0, %v6098
        %v6100 = vpop.f32.mrf.mxu0
        %v6101 = vadd.f32 0.0, %v6100
        %6102 = vmatmul.bf16.gmra.mxu0 %v5814
        %v6103 = vpop.f32.mrf.mxu0
        %v6104 = vadd.f32 0.0, %v6103
        %v6105 = vpop.f32.mrf.mxu0
        %v6106 = vadd.f32 0.0, %v6105
        %6107 = vmatmul.bf16.gmra.mxu0 %v5815
        %v6108 = vpop.f32.mrf.mxu0
        %v6109 = vadd.f32 0.0, %v6108
        %v6110 = vpop.f32.mrf.mxu0
        %v6111 = vadd.f32 0.0, %v6110
        %6112 = vdwg.mxu0
        %6113 = vmatpush.bf16.msra.mxu0 %v6030
        %6114 = vmatpush.bf16.msra.mxu0 %v6028
        %6115 = vmatpush.bf16.msra.mxu0 %v6026
        %6116 = vmatpush.bf16.msra.mxu0 %v6024
        %6117 = vmatpush.bf16.msra.mxu0 %v6022
        %6118 = vmatpush.bf16.msra.mxu0 %v6020
        %6119 = vmatpush.bf16.msra.mxu0 %v6018
        %6120 = vmatpush.bf16.msra.mxu0 %v6016
        %6121 = vmatmul.bf16.gmra.mxu0 %v5856
        %v6122 = vpop.f32.mrf.mxu0
        %v6123 = vadd.f32 %v6074, %v6122
        %v6124 = vpop.f32.mrf.mxu0
        %v6125 = vadd.f32 %v6076, %v6124
        %6126 = vmatmul.bf16.gmra.mxu0 %v5857
        %v6127 = vpop.f32.mrf.mxu0
        %v6128 = vadd.f32 %v6079, %v6127
        %v6129 = vpop.f32.mrf.mxu0
        %v6130 = vadd.f32 %v6081, %v6129
        %6131 = vmatmul.bf16.gmra.mxu0 %v5858
        %v6132 = vpop.f32.mrf.mxu0
        %v6133 = vadd.f32 %v6084, %v6132
        %v6134 = vpop.f32.mrf.mxu0
        %v6135 = vadd.f32 %v6086, %v6134
        %6136 = vmatmul.bf16.gmra.mxu0 %v5859
        %v6137 = vpop.f32.mrf.mxu0
        %v6138 = vadd.f32 %v6089, %v6137
        %v6139 = vpop.f32.mrf.mxu0
        %v6140 = vadd.f32 %v6091, %v6139
        %6141 = vmatmul.bf16.gmra.mxu0 %v5860
        %v6142 = vpop.f32.mrf.mxu0
        %v6143 = vadd.f32 %v6094, %v6142
        %v6144 = vpop.f32.mrf.mxu0
        %v6145 = vadd.f32 %v6096, %v6144
        %6146 = vmatmul.bf16.gmra.mxu0 %v5861
        %v6147 = vpop.f32.mrf.mxu0
        %v6148 = vadd.f32 %v6099, %v6147
        %v6149 = vpop.f32.mrf.mxu0
        %v6150 = vadd.f32 %v6101, %v6149
        %6151 = vmatmul.bf16.gmra.mxu0 %v5862
        %v6152 = vpop.f32.mrf.mxu0
        %v6153 = vadd.f32 %v6104, %v6152
        %v6154 = vpop.f32.mrf.mxu0
        %v6155 = vadd.f32 %v6106, %v6154
        %6156 = vmatmul.bf16.gmra.mxu0 %v5863
        %v6157 = vpop.f32.mrf.mxu0
        %v6158 = vadd.f32 %v6109, %v6157
        %v6159 = vpop.f32.mrf.mxu0
        %v6160 = vadd.f32 %v6111, %v6159
        %6161 = vdwg.mxu0
        %6162 = vmatpush.bf16.msra.mxu0 %v6015
        %6163 = vmatpush.bf16.msra.mxu0 %v6013
        %6164 = vmatpush.bf16.msra.mxu0 %v6011
        %6165 = vmatpush.bf16.msra.mxu0 %v6009
        %6166 = vmatpush.bf16.msra.mxu0 %v6007
        %6167 = vmatpush.bf16.msra.mxu0 %v6005
        %6168 = vmatpush.bf16.msra.mxu0 %v6003
        %6169 = vmatpush.bf16.msra.mxu0 %v6001
        %6170 = vmatmul.bf16.gmra.mxu0 %v5808
        %v6171 = vpop.f32.mrf.mxu0
        %v6172 = vadd.f32 0.0, %v6171
        %v6173 = vpop.f32.mrf.mxu0
        %v6174 = vadd.f32 0.0, %v6173
        %6175 = vmatmul.bf16.gmra.mxu0 %v5809
        %v6176 = vpop.f32.mrf.mxu0
        %v6177 = vadd.f32 0.0, %v6176
        %v6178 = vpop.f32.mrf.mxu0
        %v6179 = vadd.f32 0.0, %v6178
        %6180 = vmatmul.bf16.gmra.mxu0 %v5810
        %v6181 = vpop.f32.mrf.mxu0
        %v6182 = vadd.f32 0.0, %v6181
        %v6183 = vpop.f32.mrf.mxu0
        %v6184 = vadd.f32 0.0, %v6183
        %6185 = vmatmul.bf16.gmra.mxu0 %v5811
        %v6186 = vpop.f32.mrf.mxu0
        %v6187 = vadd.f32 0.0, %v6186
        %v6188 = vpop.f32.mrf.mxu0
        %v6189 = vadd.f32 0.0, %v6188
        %6190 = vmatmul.bf16.gmra.mxu0 %v5812
        %v6191 = vpop.f32.mrf.mxu0
        %v6192 = vadd.f32 0.0, %v6191
        %v6193 = vpop.f32.mrf.mxu0
        %v6194 = vadd.f32 0.0, %v6193
        %6195 = vmatmul.bf16.gmra.mxu0 %v5813
        %v6196 = vpop.f32.mrf.mxu0
        %v6197 = vadd.f32 0.0, %v6196
        %v6198 = vpop.f32.mrf.mxu0
        %v6199 = vadd.f32 0.0, %v6198
        %6200 = vmatmul.bf16.gmra.mxu0 %v5814
        %v6201 = vpop.f32.mrf.mxu0
        %v6202 = vadd.f32 0.0, %v6201
        %v6203 = vpop.f32.mrf.mxu0
        %v6204 = vadd.f32 0.0, %v6203
        %6205 = vmatmul.bf16.gmra.mxu0 %v5815
        %v6206 = vpop.f32.mrf.mxu0
        %v6207 = vadd.f32 0.0, %v6206
        %v6208 = vpop.f32.mrf.mxu0
        %v6209 = vadd.f32 0.0, %v6208
        %6210 = vdwg.mxu0
        %6211 = vmatpush.bf16.msra.mxu0 %v6031
        %6212 = vmatpush.bf16.msra.mxu0 %v6029
        %6213 = vmatpush.bf16.msra.mxu0 %v6027
        %6214 = vmatpush.bf16.msra.mxu0 %v6025
        %6215 = vmatpush.bf16.msra.mxu0 %v6023
        %6216 = vmatpush.bf16.msra.mxu0 %v6021
        %6217 = vmatpush.bf16.msra.mxu0 %v6019
        %6218 = vmatpush.bf16.msra.mxu0 %v6017
        %6219 = vmatmul.bf16.gmra.mxu0 %v5856
        %v6220 = vpop.f32.mrf.mxu0
        %v6221 = vadd.f32 %v6172, %v6220
        %v6222 = vpop.f32.mrf.mxu0
        %v6223 = vadd.f32 %v6174, %v6222
        %6224 = vmatmul.bf16.gmra.mxu0 %v5857
        %v6225 = vpop.f32.mrf.mxu0
        %v6226 = vadd.f32 %v6177, %v6225
        %v6227 = vpop.f32.mrf.mxu0
        %v6228 = vadd.f32 %v6179, %v6227
        %6229 = vmatmul.bf16.gmra.mxu0 %v5858
        %v6230 = vpop.f32.mrf.mxu0
        %v6231 = vadd.f32 %v6182, %v6230
        %v6232 = vpop.f32.mrf.mxu0
        %v6233 = vadd.f32 %v6184, %v6232
        %6234 = vmatmul.bf16.gmra.mxu0 %v5859
        %v6235 = vpop.f32.mrf.mxu0
        %v6236 = vadd.f32 %v6187, %v6235
        %v6237 = vpop.f32.mrf.mxu0
        %v6238 = vadd.f32 %v6189, %v6237
        %6239 = vmatmul.bf16.gmra.mxu0 %v5860
        %v6240 = vpop.f32.mrf.mxu0
        %v6241 = vadd.f32 %v6192, %v6240
        %v6242 = vpop.f32.mrf.mxu0
        %v6243 = vadd.f32 %v6194, %v6242
        %6244 = vmatmul.bf16.gmra.mxu0 %v5861
        %v6245 = vpop.f32.mrf.mxu0
        %v6246 = vadd.f32 %v6197, %v6245
        %v6247 = vpop.f32.mrf.mxu0
        %v6248 = vadd.f32 %v6199, %v6247
        %6249 = vmatmul.bf16.gmra.mxu0 %v5862
        %v6250 = vpop.f32.mrf.mxu0
        %v6251 = vadd.f32 %v6202, %v6250
        %v6252 = vpop.f32.mrf.mxu0
        %v6253 = vadd.f32 %v6204, %v6252
        %6254 = vmatmul.bf16.gmra.mxu0 %v5863
        %v6255 = vpop.f32.mrf.mxu0
        %v6256 = vadd.f32 %v6207, %v6255
        %v6257 = vpop.f32.mrf.mxu0
        %v6258 = vadd.f32 %v6209, %v6257
        %6259 = vdwg.mxu0
        %v6260 = vld [vmem:[#allocation11] sm:$0xff]
        %v6261 = vld [vmem:[#allocation11 + $0x8] sm:$0xff]
        %v6262 = vld [vmem:[#allocation11 + $0x10] sm:$0xff]
        %v6263 = vld [vmem:[#allocation11 + $0x18] sm:$0xff]
        %v6264 = vld [vmem:[#allocation11 + $0x20] sm:$0xff]
        %v6265 = vld [vmem:[#allocation11 + $0x28] sm:$0xff]
        %v6266 = vld [vmem:[#allocation11 + $0x30] sm:$0xff]
        %v6267 = vld [vmem:[#allocation11 + $0x38] sm:$0xff]
        %v6268 = vld [vmem:[#allocation11 + $0x40] sm:$0xff]
        %v6269 = vld [vmem:[#allocation11 + $0x48] sm:$0xff]
        %v6270 = vld [vmem:[#allocation11 + $0x50] sm:$0xff]
        %v6271 = vld [vmem:[#allocation11 + $0x58] sm:$0xff]
        %v6272 = vld [vmem:[#allocation11 + $0x60] sm:$0xff]
        %v6273 = vld [vmem:[#allocation11 + $0x68] sm:$0xff]
        %v6274 = vld [vmem:[#allocation11 + $0x70] sm:$0xff]
        %v6275 = vld [vmem:[#allocation11 + $0x78] sm:$0xff]
        %v6276 = vld [vmem:[#allocation11 + $0x80] sm:$0xff]
        %v6277 = vld [vmem:[#allocation11 + $0x88] sm:$0xff]
        %v6278 = vld [vmem:[#allocation11 + $0x90] sm:$0xff]
        %v6279 = vld [vmem:[#allocation11 + $0x98] sm:$0xff]
        %v6280 = vld [vmem:[#allocation11 + $0xa0] sm:$0xff]
        %v6281 = vld [vmem:[#allocation11 + $0xa8] sm:$0xff]
        %v6282 = vld [vmem:[#allocation11 + $0xb0] sm:$0xff]
        %v6283 = vld [vmem:[#allocation11 + $0xb8] sm:$0xff]
        %v6284 = vld [vmem:[#allocation11 + $0xc0] sm:$0xff]
        %v6285 = vld [vmem:[#allocation11 + $0xc8] sm:$0xff]
        %v6286 = vld [vmem:[#allocation11 + $0xd0] sm:$0xff]
        %v6287 = vld [vmem:[#allocation11 + $0xd8] sm:$0xff]
        %v6288 = vld [vmem:[#allocation11 + $0xe0] sm:$0xff]
        %v6289 = vld [vmem:[#allocation11 + $0xe8] sm:$0xff]
        %v6290 = vld [vmem:[#allocation11 + $0xf0] sm:$0xff]
        %v6291 = vld [vmem:[#allocation11 + $0xf8] sm:$0xff]
        %v6292 = vmul.f32 %v6123, %v6260
        %v6293 = vmul.f32 %v6221, %v6261
        %v6294 = vmul.f32 %v6125, %v6262
        %v6295 = vmul.f32 %v6223, %v6263
        %v6296 = vmul.f32 %v6128, %v6264
        %v6297 = vmul.f32 %v6226, %v6265
        %v6298 = vmul.f32 %v6130, %v6266
        %v6299 = vmul.f32 %v6228, %v6267
        %v6300 = vmul.f32 %v6133, %v6268
        %v6301 = vmul.f32 %v6231, %v6269
        %v6302 = vmul.f32 %v6135, %v6270
        %v6303 = vmul.f32 %v6233, %v6271
        %v6304 = vmul.f32 %v6138, %v6272
        %v6305 = vmul.f32 %v6236, %v6273
        %v6306 = vmul.f32 %v6140, %v6274
        %v6307 = vmul.f32 %v6238, %v6275
        %v6308 = vmul.f32 %v6143, %v6276
        %v6309 = vmul.f32 %v6241, %v6277
        %v6310 = vmul.f32 %v6145, %v6278
        %v6311 = vmul.f32 %v6243, %v6279
        %v6312 = vmul.f32 %v6148, %v6280
        %v6313 = vmul.f32 %v6246, %v6281
        %v6314 = vmul.f32 %v6150, %v6282
        %v6315 = vmul.f32 %v6248, %v6283
        %v6316 = vmul.f32 %v6153, %v6284
        %v6317 = vmul.f32 %v6251, %v6285
        %v6318 = vmul.f32 %v6155, %v6286
        %v6319 = vmul.f32 %v6253, %v6287
        %v6320 = vmul.f32 %v6158, %v6288
        %v6321 = vmul.f32 %v6256, %v6289
        %v6322 = vmul.f32 %v6160, %v6290
        %v6323 = vmul.f32 %v6258, %v6291
        %v6324 = vld [vmem:[#allocation13] sm:$0xff]
        %v6325 = vld [vmem:[#allocation13 + $0x8] sm:$0xff]
        %v6326 = vld [vmem:[#allocation13 + $0x10] sm:$0xff]
        %v6327 = vld [vmem:[#allocation13 + $0x18] sm:$0xff]
        %v6328 = vld [vmem:[#allocation13 + $0x20] sm:$0xff]
        %v6329 = vld [vmem:[#allocation13 + $0x28] sm:$0xff]
        %v6330 = vld [vmem:[#allocation13 + $0x30] sm:$0xff]
        %v6331 = vld [vmem:[#allocation13 + $0x38] sm:$0xff]
        %v6332 = vld [vmem:[#allocation13 + $0x40] sm:$0xff]
        %v6333 = vld [vmem:[#allocation13 + $0x48] sm:$0xff]
        %v6334 = vld [vmem:[#allocation13 + $0x50] sm:$0xff]
        %v6335 = vld [vmem:[#allocation13 + $0x58] sm:$0xff]
        %v6336 = vld [vmem:[#allocation13 + $0x60] sm:$0xff]
        %v6337 = vld [vmem:[#allocation13 + $0x68] sm:$0xff]
        %v6338 = vld [vmem:[#allocation13 + $0x70] sm:$0xff]
        %v6339 = vld [vmem:[#allocation13 + $0x78] sm:$0xff]
        %v6340 = vld [vmem:[#allocation13 + $0x80] sm:$0xff]
        %v6341 = vld [vmem:[#allocation13 + $0x88] sm:$0xff]
        %v6342 = vld [vmem:[#allocation13 + $0x90] sm:$0xff]
        %v6343 = vld [vmem:[#allocation13 + $0x98] sm:$0xff]
        %v6344 = vld [vmem:[#allocation13 + $0xa0] sm:$0xff]
        %v6345 = vld [vmem:[#allocation13 + $0xa8] sm:$0xff]
        %v6346 = vld [vmem:[#allocation13 + $0xb0] sm:$0xff]
        %v6347 = vld [vmem:[#allocation13 + $0xb8] sm:$0xff]
        %v6348 = vld [vmem:[#allocation13 + $0xc0] sm:$0xff]
        %v6349 = vld [vmem:[#allocation13 + $0xc8] sm:$0xff]
        %v6350 = vld [vmem:[#allocation13 + $0xd0] sm:$0xff]
        %v6351 = vld [vmem:[#allocation13 + $0xd8] sm:$0xff]
        %v6352 = vld [vmem:[#allocation13 + $0xe0] sm:$0xff]
        %v6353 = vld [vmem:[#allocation13 + $0xe8] sm:$0xff]
        %v6354 = vld [vmem:[#allocation13 + $0xf0] sm:$0xff]
        %v6355 = vld [vmem:[#allocation13 + $0xf8] sm:$0xff]
        %v6356 = vmul.f32 %v6221, %v6324
        %v6357 = vmul.f32 %v6123, %v6325
        %v6358 = vmul.f32 %v6223, %v6326
        %v6359 = vmul.f32 %v6125, %v6327
        %v6360 = vmul.f32 %v6226, %v6328
        %v6361 = vmul.f32 %v6128, %v6329
        %v6362 = vmul.f32 %v6228, %v6330
        %v6363 = vmul.f32 %v6130, %v6331
        %v6364 = vmul.f32 %v6231, %v6332
        %v6365 = vmul.f32 %v6133, %v6333
        %v6366 = vmul.f32 %v6233, %v6334
        %v6367 = vmul.f32 %v6135, %v6335
        %v6368 = vmul.f32 %v6236, %v6336
        %v6369 = vmul.f32 %v6138, %v6337
        %v6370 = vmul.f32 %v6238, %v6338
        %v6371 = vmul.f32 %v6140, %v6339
        %v6372 = vmul.f32 %v6241, %v6340
        %v6373 = vmul.f32 %v6143, %v6341
        %v6374 = vmul.f32 %v6243, %v6342
        %v6375 = vmul.f32 %v6145, %v6343
        %v6376 = vmul.f32 %v6246, %v6344
        %v6377 = vmul.f32 %v6148, %v6345
        %v6378 = vmul.f32 %v6248, %v6346
        %v6379 = vmul.f32 %v6150, %v6347
        %v6380 = vmul.f32 %v6251, %v6348
        %v6381 = vmul.f32 %v6153, %v6349
        %v6382 = vmul.f32 %v6253, %v6350
        %v6383 = vmul.f32 %v6155, %v6351
        %v6384 = vmul.f32 %v6256, %v6352
        %v6385 = vmul.f32 %v6158, %v6353
        %v6386 = vmul.f32 %v6258, %v6354
        %v6387 = vmul.f32 %v6160, %v6355
        %v6388 = vadd.f32 %v6292, %v6356
        %v6389 = vadd.f32 %v6293, %v6357
        %v6390 = vadd.f32 %v6294, %v6358
        %v6391 = vadd.f32 %v6295, %v6359
        %v6392 = vadd.f32 %v6296, %v6360
        %v6393 = vadd.f32 %v6297, %v6361
        %v6394 = vadd.f32 %v6298, %v6362
        %v6395 = vadd.f32 %v6299, %v6363
        %v6396 = vadd.f32 %v6300, %v6364
        %v6397 = vadd.f32 %v6301, %v6365
        %v6398 = vadd.f32 %v6302, %v6366
        %v6399 = vadd.f32 %v6303, %v6367
        %v6400 = vadd.f32 %v6304, %v6368
        %v6401 = vadd.f32 %v6305, %v6369
        %v6402 = vadd.f32 %v6306, %v6370
        %v6403 = vadd.f32 %v6307, %v6371
        %v6404 = vadd.f32 %v6308, %v6372
        %v6405 = vadd.f32 %v6309, %v6373
        %v6406 = vadd.f32 %v6310, %v6374
        %v6407 = vadd.f32 %v6311, %v6375
        %v6408 = vadd.f32 %v6312, %v6376
        %v6409 = vadd.f32 %v6313, %v6377
        %v6410 = vadd.f32 %v6314, %v6378
        %v6411 = vadd.f32 %v6315, %v6379
        %v6412 = vadd.f32 %v6316, %v6380
        %v6413 = vadd.f32 %v6317, %v6381
        %v6414 = vadd.f32 %v6318, %v6382
        %v6415 = vadd.f32 %v6319, %v6383
        %v6416 = vadd.f32 %v6320, %v6384
        %v6417 = vadd.f32 %v6321, %v6385
        %v6418 = vadd.f32 %v6322, %v6386
        %v6419 = vadd.f32 %v6323, %v6387
        %v6420 = vpack.c.bf16 %v6390, %v6388
        %v6421 = vpack.c.bf16 %v6391, %v6389
        %v6422 = vpack.c.bf16 %v6394, %v6392
        %v6423 = vpack.c.bf16 %v6395, %v6393
        %v6424 = vpack.c.bf16 %v6398, %v6396
        %v6425 = vpack.c.bf16 %v6399, %v6397
        %v6426 = vpack.c.bf16 %v6402, %v6400
        %v6427 = vpack.c.bf16 %v6403, %v6401
        %v6428 = vpack.c.bf16 %v6406, %v6404
        %v6429 = vpack.c.bf16 %v6407, %v6405
        %v6430 = vpack.c.bf16 %v6410, %v6408
        %v6431 = vpack.c.bf16 %v6411, %v6409
        %v6432 = vpack.c.bf16 %v6414, %v6412
        %v6433 = vpack.c.bf16 %v6415, %v6413
        %v6434 = vpack.c.bf16 %v6418, %v6416
        %v6435 = vpack.c.bf16 %v6419, %v6417
        %v6436 = vld [vmem:[#allocation10] sm:$0xff]
        %v6437 = vld [vmem:[#allocation10 + $0x8] sm:$0xff]
        %v6438 = vld [vmem:[#allocation10 + $0x10] sm:$0xff]
        %v6439 = vld [vmem:[#allocation10 + $0x18] sm:$0xff]
        %v6440 = vld [vmem:[#allocation10 + $0x20] sm:$0xff]
        %v6441 = vld [vmem:[#allocation10 + $0x28] sm:$0xff]
        %v6442 = vld [vmem:[#allocation10 + $0x30] sm:$0xff]
        %v6443 = vld [vmem:[#allocation10 + $0x38] sm:$0xff]
        %v6444 = vld [vmem:[#allocation10 + $0x40] sm:$0xff]
        %v6445 = vld [vmem:[#allocation10 + $0x48] sm:$0xff]
        %v6446 = vld [vmem:[#allocation10 + $0x50] sm:$0xff]
        %v6447 = vld [vmem:[#allocation10 + $0x58] sm:$0xff]
        %v6448 = vld [vmem:[#allocation10 + $0x60] sm:$0xff]
        %v6449 = vld [vmem:[#allocation10 + $0x68] sm:$0xff]
        %v6450 = vld [vmem:[#allocation10 + $0x70] sm:$0xff]
        %v6451 = vld [vmem:[#allocation10 + $0x78] sm:$0xff]
        %v6452 = vld [vmem:[#allocation10 + $0x80] sm:$0xff]
        %v6453 = vld [vmem:[#allocation10 + $0x88] sm:$0xff]
        %v6454 = vld [vmem:[#allocation10 + $0x90] sm:$0xff]
        %v6455 = vld [vmem:[#allocation10 + $0x98] sm:$0xff]
        %v6456 = vld [vmem:[#allocation10 + $0xa0] sm:$0xff]
        %v6457 = vld [vmem:[#allocation10 + $0xa8] sm:$0xff]
        %v6458 = vld [vmem:[#allocation10 + $0xb0] sm:$0xff]
        %v6459 = vld [vmem:[#allocation10 + $0xb8] sm:$0xff]
        %v6460 = vld [vmem:[#allocation10 + $0xc0] sm:$0xff]
        %v6461 = vld [vmem:[#allocation10 + $0xc8] sm:$0xff]
        %v6462 = vld [vmem:[#allocation10 + $0xd0] sm:$0xff]
        %v6463 = vld [vmem:[#allocation10 + $0xd8] sm:$0xff]
        %v6464 = vld [vmem:[#allocation10 + $0xe0] sm:$0xff]
        %v6465 = vld [vmem:[#allocation10 + $0xe8] sm:$0xff]
        %v6466 = vld [vmem:[#allocation10 + $0xf0] sm:$0xff]
        %v6467 = vld [vmem:[#allocation10 + $0xf8] sm:$0xff]
        %v6500 = vunpack.c.l.b16 %v6436
        %v6501 = vunpack.c.h.b16 %v6436
        %v6502 = vunpack.c.l.b16 %v6437
        %v6503 = vunpack.c.h.b16 %v6437
        %v6504 = vunpack.c.l.b16 %v6438
        %v6505 = vunpack.c.h.b16 %v6438
        %v6506 = vunpack.c.l.b16 %v6439
        %v6507 = vunpack.c.h.b16 %v6439
        %v6508 = vunpack.c.l.b16 %v6440
        %v6509 = vunpack.c.h.b16 %v6440
        %v6510 = vunpack.c.l.b16 %v6441
        %v6511 = vunpack.c.h.b16 %v6441
        %v6512 = vunpack.c.l.b16 %v6442
        %v6513 = vunpack.c.h.b16 %v6442
        %v6514 = vunpack.c.l.b16 %v6443
        %v6515 = vunpack.c.h.b16 %v6443
        %v6516 = vunpack.c.l.b16 %v6444
        %v6517 = vunpack.c.h.b16 %v6444
        %v6518 = vunpack.c.l.b16 %v6445
        %v6519 = vunpack.c.h.b16 %v6445
        %v6520 = vunpack.c.l.b16 %v6446
        %v6521 = vunpack.c.h.b16 %v6446
        %v6522 = vunpack.c.l.b16 %v6447
        %v6523 = vunpack.c.h.b16 %v6447
        %v6524 = vunpack.c.l.b16 %v6448
        %v6525 = vunpack.c.h.b16 %v6448
        %v6526 = vunpack.c.l.b16 %v6449
        %v6527 = vunpack.c.h.b16 %v6449
        %v6528 = vunpack.c.l.b16 %v6450
        %v6529 = vunpack.c.h.b16 %v6450
        %v6530 = vunpack.c.l.b16 %v6451
        %v6531 = vunpack.c.h.b16 %v6451
        %v6532 = vunpack.c.l.b16 %v6452
        %v6533 = vunpack.c.h.b16 %v6452
        %v6534 = vunpack.c.l.b16 %v6453
        %v6535 = vunpack.c.h.b16 %v6453
        %v6536 = vunpack.c.l.b16 %v6454
        %v6537 = vunpack.c.h.b16 %v6454
        %v6538 = vunpack.c.l.b16 %v6455
        %v6539 = vunpack.c.h.b16 %v6455
        %v6540 = vunpack.c.l.b16 %v6456
        %v6541 = vunpack.c.h.b16 %v6456
        %v6542 = vunpack.c.l.b16 %v6457
        %v6543 = vunpack.c.h.b16 %v6457
        %v6544 = vunpack.c.l.b16 %v6458
        %v6545 = vunpack.c.h.b16 %v6458
        %v6546 = vunpack.c.l.b16 %v6459
        %v6547 = vunpack.c.h.b16 %v6459
        %v6548 = vunpack.c.l.b16 %v6460
        %v6549 = vunpack.c.h.b16 %v6460
        %v6550 = vunpack.c.l.b16 %v6461
        %v6551 = vunpack.c.h.b16 %v6461
        %v6552 = vunpack.c.l.b16 %v6462
        %v6553 = vunpack.c.h.b16 %v6462
        %v6554 = vunpack.c.l.b16 %v6463
        %v6555 = vunpack.c.h.b16 %v6463
        %v6556 = vunpack.c.l.b16 %v6464
        %v6557 = vunpack.c.h.b16 %v6464
        %v6558 = vunpack.c.l.b16 %v6465
        %v6559 = vunpack.c.h.b16 %v6465
        %v6560 = vunpack.c.l.b16 %v6466
        %v6561 = vunpack.c.h.b16 %v6466
        %v6562 = vunpack.c.l.b16 %v6467
        %v6563 = vunpack.c.h.b16 %v6467
        %v6564 = vpack.c.b16 %v6502, %v6500
        %v6565 = vpack.c.b16 %v6503, %v6501
        %v6566 = vpack.c.b16 %v6506, %v6504
        %v6567 = vpack.c.b16 %v6507, %v6505
        %v6568 = vpack.c.b16 %v6510, %v6508
        %v6569 = vpack.c.b16 %v6511, %v6509
        %v6570 = vpack.c.b16 %v6514, %v6512
        %v6571 = vpack.c.b16 %v6515, %v6513
        %v6572 = vpack.c.b16 %v6518, %v6516
        %v6573 = vpack.c.b16 %v6519, %v6517
        %v6574 = vpack.c.b16 %v6522, %v6520
        %v6575 = vpack.c.b16 %v6523, %v6521
        %v6576 = vpack.c.b16 %v6526, %v6524
        %v6577 = vpack.c.b16 %v6527, %v6525
        %v6578 = vpack.c.b16 %v6530, %v6528
        %v6579 = vpack.c.b16 %v6531, %v6529
        %v6580 = vpack.c.b16 %v6534, %v6532
        %v6581 = vpack.c.b16 %v6535, %v6533
        %v6582 = vpack.c.b16 %v6538, %v6536
        %v6583 = vpack.c.b16 %v6539, %v6537
        %v6584 = vpack.c.b16 %v6542, %v6540
        %v6585 = vpack.c.b16 %v6543, %v6541
        %v6586 = vpack.c.b16 %v6546, %v6544
        %v6587 = vpack.c.b16 %v6547, %v6545
        %v6588 = vpack.c.b16 %v6550, %v6548
        %v6589 = vpack.c.b16 %v6551, %v6549
        %v6590 = vpack.c.b16 %v6554, %v6552
        %v6591 = vpack.c.b16 %v6555, %v6553
        %v6592 = vpack.c.b16 %v6558, %v6556
        %v6593 = vpack.c.b16 %v6559, %v6557
        %v6594 = vpack.c.b16 %v6562, %v6560
        %v6595 = vpack.c.b16 %v6563, %v6561
        %6628 = vmatpush.bf16.msra.mxu0 %v6578
        %6629 = vmatpush.bf16.msra.mxu0 %v6576
        %6630 = vmatpush.bf16.msra.mxu0 %v6574
        %6631 = vmatpush.bf16.msra.mxu0 %v6572
        %6632 = vmatpush.bf16.msra.mxu0 %v6570
        %6633 = vmatpush.bf16.msra.mxu0 %v6568
        %6634 = vmatpush.bf16.msra.mxu0 %v6566
        %6635 = vmatpush.bf16.msra.mxu0 %v6564
        %6636 = vmatmul.bf16.gmra.mxu0 %v6420
        %v6637 = vpop.f32.mrf.mxu0
        %v6638 = vadd.f32 0.0, %v6637
        %v6639 = vpop.f32.mrf.mxu0
        %v6640 = vadd.f32 0.0, %v6639
        %6641 = vmatmul.bf16.gmra.mxu0 %v6422
        %v6642 = vpop.f32.mrf.mxu0
        %v6643 = vadd.f32 0.0, %v6642
        %v6644 = vpop.f32.mrf.mxu0
        %v6645 = vadd.f32 0.0, %v6644
        %6646 = vmatmul.bf16.gmra.mxu0 %v6424
        %v6647 = vpop.f32.mrf.mxu0
        %v6648 = vadd.f32 0.0, %v6647
        %v6649 = vpop.f32.mrf.mxu0
        %v6650 = vadd.f32 0.0, %v6649
        %6651 = vmatmul.bf16.gmra.mxu0 %v6426
        %v6652 = vpop.f32.mrf.mxu0
        %v6653 = vadd.f32 0.0, %v6652
        %v6654 = vpop.f32.mrf.mxu0
        %v6655 = vadd.f32 0.0, %v6654
        %6656 = vmatmul.bf16.gmra.mxu0 %v6428
        %v6657 = vpop.f32.mrf.mxu0
        %v6658 = vadd.f32 0.0, %v6657
        %v6659 = vpop.f32.mrf.mxu0
        %v6660 = vadd.f32 0.0, %v6659
        %6661 = vmatmul.bf16.gmra.mxu0 %v6430
        %v6662 = vpop.f32.mrf.mxu0
        %v6663 = vadd.f32 0.0, %v6662
        %v6664 = vpop.f32.mrf.mxu0
        %v6665 = vadd.f32 0.0, %v6664
        %6666 = vmatmul.bf16.gmra.mxu0 %v6432
        %v6667 = vpop.f32.mrf.mxu0
        %v6668 = vadd.f32 0.0, %v6667
        %v6669 = vpop.f32.mrf.mxu0
        %v6670 = vadd.f32 0.0, %v6669
        %6671 = vmatmul.bf16.gmra.mxu0 %v6434
        %v6672 = vpop.f32.mrf.mxu0
        %v6673 = vadd.f32 0.0, %v6672
        %v6674 = vpop.f32.mrf.mxu0
        %v6675 = vadd.f32 0.0, %v6674
        %6676 = vdwg.mxu0
        %6677 = vmatpush.bf16.msra.mxu0 %v6594
        %6678 = vmatpush.bf16.msra.mxu0 %v6592
        %6679 = vmatpush.bf16.msra.mxu0 %v6590
        %6680 = vmatpush.bf16.msra.mxu0 %v6588
        %6681 = vmatpush.bf16.msra.mxu0 %v6586
        %6682 = vmatpush.bf16.msra.mxu0 %v6584
        %6683 = vmatpush.bf16.msra.mxu0 %v6582
        %6684 = vmatpush.bf16.msra.mxu0 %v6580
        %6685 = vmatmul.bf16.gmra.mxu0 %v6421
        %v6686 = vpop.f32.mrf.mxu0
        %v6687 = vadd.f32 %v6638, %v6686
        %v6688 = vpop.f32.mrf.mxu0
        %v6689 = vadd.f32 %v6640, %v6688
        %6690 = vmatmul.bf16.gmra.mxu0 %v6423
        %v6691 = vpop.f32.mrf.mxu0
        %v6692 = vadd.f32 %v6643, %v6691
        %v6693 = vpop.f32.mrf.mxu0
        %v6694 = vadd.f32 %v6645, %v6693
        %6695 = vmatmul.bf16.gmra.mxu0 %v6425
        %v6696 = vpop.f32.mrf.mxu0
        %v6697 = vadd.f32 %v6648, %v6696
        %v6698 = vpop.f32.mrf.mxu0
        %v6699 = vadd.f32 %v6650, %v6698
        %6700 = vmatmul.bf16.gmra.mxu0 %v6427
        %v6701 = vpop.f32.mrf.mxu0
        %v6702 = vadd.f32 %v6653, %v6701
        %v6703 = vpop.f32.mrf.mxu0
        %v6704 = vadd.f32 %v6655, %v6703
        %6705 = vmatmul.bf16.gmra.mxu0 %v6429
        %v6706 = vpop.f32.mrf.mxu0
        %v6707 = vadd.f32 %v6658, %v6706
        %v6708 = vpop.f32.mrf.mxu0
        %v6709 = vadd.f32 %v6660, %v6708
        %6710 = vmatmul.bf16.gmra.mxu0 %v6431
        %v6711 = vpop.f32.mrf.mxu0
        %v6712 = vadd.f32 %v6663, %v6711
        %v6713 = vpop.f32.mrf.mxu0
        %v6714 = vadd.f32 %v6665, %v6713
        %6715 = vmatmul.bf16.gmra.mxu0 %v6433
        %v6716 = vpop.f32.mrf.mxu0
        %v6717 = vadd.f32 %v6668, %v6716
        %v6718 = vpop.f32.mrf.mxu0
        %v6719 = vadd.f32 %v6670, %v6718
        %6720 = vmatmul.bf16.gmra.mxu0 %v6435
        %v6721 = vpop.f32.mrf.mxu0
        %v6722 = vadd.f32 %v6673, %v6721
        %v6723 = vpop.f32.mrf.mxu0
        %v6724 = vadd.f32 %v6675, %v6723
        %6725 = vdwg.mxu0
        %6726 = vmatpush.bf16.msra.mxu0 %v6579
        %6727 = vmatpush.bf16.msra.mxu0 %v6577
        %6728 = vmatpush.bf16.msra.mxu0 %v6575
        %6729 = vmatpush.bf16.msra.mxu0 %v6573
        %6730 = vmatpush.bf16.msra.mxu0 %v6571
        %6731 = vmatpush.bf16.msra.mxu0 %v6569
        %6732 = vmatpush.bf16.msra.mxu0 %v6567
        %6733 = vmatpush.bf16.msra.mxu0 %v6565
        %6734 = vmatmul.bf16.gmra.mxu0 %v6420
        %v6735 = vpop.f32.mrf.mxu0
        %v6736 = vadd.f32 0.0, %v6735
        %v6737 = vpop.f32.mrf.mxu0
        %v6738 = vadd.f32 0.0, %v6737
        %6739 = vmatmul.bf16.gmra.mxu0 %v6422
        %v6740 = vpop.f32.mrf.mxu0
        %v6741 = vadd.f32 0.0, %v6740
        %v6742 = vpop.f32.mrf.mxu0
        %v6743 = vadd.f32 0.0, %v6742
        %6744 = vmatmul.bf16.gmra.mxu0 %v6424
        %v6745 = vpop.f32.mrf.mxu0
        %v6746 = vadd.f32 0.0, %v6745
        %v6747 = vpop.f32.mrf.mxu0
        %v6748 = vadd.f32 0.0, %v6747
        %6749 = vmatmul.bf16.gmra.mxu0 %v6426
        %v6750 = vpop.f32.mrf.mxu0
        %v6751 = vadd.f32 0.0, %v6750
        %v6752 = vpop.f32.mrf.mxu0
        %v6753 = vadd.f32 0.0, %v6752
        %6754 = vmatmul.bf16.gmra.mxu0 %v6428
        %v6755 = vpop.f32.mrf.mxu0
        %v6756 = vadd.f32 0.0, %v6755
        %v6757 = vpop.f32.mrf.mxu0
        %v6758 = vadd.f32 0.0, %v6757
        %6759 = vmatmul.bf16.gmra.mxu0 %v6430
        %v6760 = vpop.f32.mrf.mxu0
        %v6761 = vadd.f32 0.0, %v6760
        %v6762 = vpop.f32.mrf.mxu0
        %v6763 = vadd.f32 0.0, %v6762
        %6764 = vmatmul.bf16.gmra.mxu0 %v6432
        %v6765 = vpop.f32.mrf.mxu0
        %v6766 = vadd.f32 0.0, %v6765
        %v6767 = vpop.f32.mrf.mxu0
        %v6768 = vadd.f32 0.0, %v6767
        %6769 = vmatmul.bf16.gmra.mxu0 %v6434
        %v6770 = vpop.f32.mrf.mxu0
        %v6771 = vadd.f32 0.0, %v6770
        %v6772 = vpop.f32.mrf.mxu0
        %v6773 = vadd.f32 0.0, %v6772
        %6774 = vdwg.mxu0
        %6775 = vmatpush.bf16.msra.mxu0 %v6595
        %6776 = vmatpush.bf16.msra.mxu0 %v6593
        %6777 = vmatpush.bf16.msra.mxu0 %v6591
        %6778 = vmatpush.bf16.msra.mxu0 %v6589
        %6779 = vmatpush.bf16.msra.mxu0 %v6587
        %6780 = vmatpush.bf16.msra.mxu0 %v6585
        %6781 = vmatpush.bf16.msra.mxu0 %v6583
        %6782 = vmatpush.bf16.msra.mxu0 %v6581
        %6783 = vmatmul.bf16.gmra.mxu0 %v6421
        %v6784 = vpop.f32.mrf.mxu0
        %v6785 = vadd.f32 %v6736, %v6784
        %v6786 = vpop.f32.mrf.mxu0
        %v6787 = vadd.f32 %v6738, %v6786
        %6788 = vmatmul.bf16.gmra.mxu0 %v6423
        %v6789 = vpop.f32.mrf.mxu0
        %v6790 = vadd.f32 %v6741, %v6789
        %v6791 = vpop.f32.mrf.mxu0
        %v6792 = vadd.f32 %v6743, %v6791
        %6793 = vmatmul.bf16.gmra.mxu0 %v6425
        %v6794 = vpop.f32.mrf.mxu0
        %v6795 = vadd.f32 %v6746, %v6794
        %v6796 = vpop.f32.mrf.mxu0
        %v6797 = vadd.f32 %v6748, %v6796
        %6798 = vmatmul.bf16.gmra.mxu0 %v6427
        %v6799 = vpop.f32.mrf.mxu0
        %v6800 = vadd.f32 %v6751, %v6799
        %v6801 = vpop.f32.mrf.mxu0
        %v6802 = vadd.f32 %v6753, %v6801
        %6803 = vmatmul.bf16.gmra.mxu0 %v6429
        %v6804 = vpop.f32.mrf.mxu0
        %v6805 = vadd.f32 %v6756, %v6804
        %v6806 = vpop.f32.mrf.mxu0
        %v6807 = vadd.f32 %v6758, %v6806
        %6808 = vmatmul.bf16.gmra.mxu0 %v6431
        %v6809 = vpop.f32.mrf.mxu0
        %v6810 = vadd.f32 %v6761, %v6809
        %v6811 = vpop.f32.mrf.mxu0
        %v6812 = vadd.f32 %v6763, %v6811
        %6813 = vmatmul.bf16.gmra.mxu0 %v6433
        %v6814 = vpop.f32.mrf.mxu0
        %v6815 = vadd.f32 %v6766, %v6814
        %v6816 = vpop.f32.mrf.mxu0
        %v6817 = vadd.f32 %v6768, %v6816
        %6818 = vmatmul.bf16.gmra.mxu0 %v6435
        %v6819 = vpop.f32.mrf.mxu0
        %v6820 = vadd.f32 %v6771, %v6819
        %v6821 = vpop.f32.mrf.mxu0
        %v6822 = vadd.f32 %v6773, %v6821
        %6823 = vdwg.mxu0
        %v6824 = vpack.c.bf16 %v6785, %v6687
        %v6825 = vpack.c.bf16 %v6787, %v6689
        %v6826 = vpack.c.bf16 %v6790, %v6692
        %v6827 = vpack.c.bf16 %v6792, %v6694
        %v6828 = vpack.c.bf16 %v6795, %v6697
        %v6829 = vpack.c.bf16 %v6797, %v6699
        %v6830 = vpack.c.bf16 %v6800, %v6702
        %v6831 = vpack.c.bf16 %v6802, %v6704
        %v6832 = vpack.c.bf16 %v6805, %v6707
        %v6833 = vpack.c.bf16 %v6807, %v6709
        %v6834 = vpack.c.bf16 %v6810, %v6712
        %v6835 = vpack.c.bf16 %v6812, %v6714
        %v6836 = vpack.c.bf16 %v6815, %v6717
        %v6837 = vpack.c.bf16 %v6817, %v6719
        %v6838 = vpack.c.bf16 %v6820, %v6722
        %v6839 = vpack.c.bf16 %v6822, %v6724
        %v6856 = vunpack.c.l.b16 %v6824
        %v6857 = vunpack.c.l.b16 %v6825
        %v6858 = vunpack.c.l.b16 %v6826
        %v6859 = vunpack.c.l.b16 %v6827
        %v6860 = vunpack.c.l.b16 %v6828
        %v6861 = vunpack.c.l.b16 %v6829
        %v6862 = vunpack.c.l.b16 %v6830
        %v6863 = vunpack.c.l.b16 %v6831
        %v6864 = vunpack.c.l.b16 %v6832
        %v6865 = vunpack.c.l.b16 %v6833
        %v6866 = vunpack.c.l.b16 %v6834
        %v6867 = vunpack.c.l.b16 %v6835
        %v6868 = vunpack.c.l.b16 %v6836
        %v6869 = vunpack.c.l.b16 %v6837
        %v6870 = vunpack.c.l.b16 %v6838
        %v6871 = vunpack.c.l.b16 %v6839
        %v6872 = vpack.c.b16 %v6857, %v6856
        %v6873 = vpack.c.b16 %v6859, %v6858
        %v6874 = vpack.c.b16 %v6861, %v6860
        %v6875 = vpack.c.b16 %v6863, %v6862
        %v6876 = vpack.c.b16 %v6865, %v6864
        %v6877 = vpack.c.b16 %v6867, %v6866
        %v6878 = vpack.c.b16 %v6869, %v6868
        %v6879 = vpack.c.b16 %v6871, %v6870
        %v6888 = vunpack.c.h.b16 %v6824
        %v6889 = vunpack.c.h.b16 %v6825
        %v6890 = vunpack.c.h.b16 %v6826
        %v6891 = vunpack.c.h.b16 %v6827
        %v6892 = vunpack.c.h.b16 %v6828
        %v6893 = vunpack.c.h.b16 %v6829
        %v6894 = vunpack.c.h.b16 %v6830
        %v6895 = vunpack.c.h.b16 %v6831
        %v6896 = vunpack.c.h.b16 %v6832
        %v6897 = vunpack.c.h.b16 %v6833
        %v6898 = vunpack.c.h.b16 %v6834
        %v6899 = vunpack.c.h.b16 %v6835
        %v6900 = vunpack.c.h.b16 %v6836
        %v6901 = vunpack.c.h.b16 %v6837
        %v6902 = vunpack.c.h.b16 %v6838
        %v6903 = vunpack.c.h.b16 %v6839
        %v6904 = vpack.c.b16 %v6889, %v6888
        %v6905 = vpack.c.b16 %v6891, %v6890
        %v6906 = vpack.c.b16 %v6893, %v6892
        %v6907 = vpack.c.b16 %v6895, %v6894
        %v6908 = vpack.c.b16 %v6897, %v6896
        %v6909 = vpack.c.b16 %v6899, %v6898
        %v6910 = vpack.c.b16 %v6901, %v6900
        %v6911 = vpack.c.b16 %v6903, %v6902
        %v6920 = vld [vmem:[#allocation8] sm:$0xff]
        %v6921 = vld [vmem:[#allocation8 + $0x8] sm:$0xff]
        %v6922 = vld [vmem:[#allocation8 + $0x10] sm:$0xff]
        %v6923 = vld [vmem:[#allocation8 + $0x18] sm:$0xff]
        %v6924 = vld [vmem:[#allocation8 + $0x20] sm:$0xff]
        %v6925 = vld [vmem:[#allocation8 + $0x28] sm:$0xff]
        %v6926 = vld [vmem:[#allocation8 + $0x30] sm:$0xff]
        %v6927 = vld [vmem:[#allocation8 + $0x38] sm:$0xff]
        %v6928 = vld [vmem:[#allocation8 + $0x40] sm:$0xff]
        %v6929 = vld [vmem:[#allocation8 + $0x48] sm:$0xff]
        %v6930 = vld [vmem:[#allocation8 + $0x50] sm:$0xff]
        %v6931 = vld [vmem:[#allocation8 + $0x58] sm:$0xff]
        %v6932 = vld [vmem:[#allocation8 + $0x60] sm:$0xff]
        %v6933 = vld [vmem:[#allocation8 + $0x68] sm:$0xff]
        %v6934 = vld [vmem:[#allocation8 + $0x70] sm:$0xff]
        %v6935 = vld [vmem:[#allocation8 + $0x78] sm:$0xff]
        %v6936 = vld [vmem:[#allocation8 + $0x80] sm:$0xff]
        %v6937 = vld [vmem:[#allocation8 + $0x88] sm:$0xff]
        %v6938 = vld [vmem:[#allocation8 + $0x90] sm:$0xff]
        %v6939 = vld [vmem:[#allocation8 + $0x98] sm:$0xff]
        %v6940 = vld [vmem:[#allocation8 + $0xa0] sm:$0xff]
        %v6941 = vld [vmem:[#allocation8 + $0xa8] sm:$0xff]
        %v6942 = vld [vmem:[#allocation8 + $0xb0] sm:$0xff]
        %v6943 = vld [vmem:[#allocation8 + $0xb8] sm:$0xff]
        %v6944 = vld [vmem:[#allocation8 + $0xc0] sm:$0xff]
        %v6945 = vld [vmem:[#allocation8 + $0xc8] sm:$0xff]
        %v6946 = vld [vmem:[#allocation8 + $0xd0] sm:$0xff]
        %v6947 = vld [vmem:[#allocation8 + $0xd8] sm:$0xff]
        %v6948 = vld [vmem:[#allocation8 + $0xe0] sm:$0xff]
        %v6949 = vld [vmem:[#allocation8 + $0xe8] sm:$0xff]
        %v6950 = vld [vmem:[#allocation8 + $0xf0] sm:$0xff]
        %v6951 = vld [vmem:[#allocation8 + $0xf8] sm:$0xff]
        %v6984 = vunpack.c.l.b16 %v6920
        %v6985 = vunpack.c.h.b16 %v6920
        %v6986 = vunpack.c.l.b16 %v6921
        %v6987 = vunpack.c.h.b16 %v6921
        %v6988 = vunpack.c.l.b16 %v6922
        %v6989 = vunpack.c.h.b16 %v6922
        %v6990 = vunpack.c.l.b16 %v6923
        %v6991 = vunpack.c.h.b16 %v6923
        %v6992 = vunpack.c.l.b16 %v6924
        %v6993 = vunpack.c.h.b16 %v6924
        %v6994 = vunpack.c.l.b16 %v6925
        %v6995 = vunpack.c.h.b16 %v6925
        %v6996 = vunpack.c.l.b16 %v6926
        %v6997 = vunpack.c.h.b16 %v6926
        %v6998 = vunpack.c.l.b16 %v6927
        %v6999 = vunpack.c.h.b16 %v6927
        %v7000 = vunpack.c.l.b16 %v6928
        %v7001 = vunpack.c.h.b16 %v6928
        %v7002 = vunpack.c.l.b16 %v6929
        %v7003 = vunpack.c.h.b16 %v6929
        %v7004 = vunpack.c.l.b16 %v6930
        %v7005 = vunpack.c.h.b16 %v6930
        %v7006 = vunpack.c.l.b16 %v6931
        %v7007 = vunpack.c.h.b16 %v6931
        %v7008 = vunpack.c.l.b16 %v6932
        %v7009 = vunpack.c.h.b16 %v6932
        %v7010 = vunpack.c.l.b16 %v6933
        %v7011 = vunpack.c.h.b16 %v6933
        %v7012 = vunpack.c.l.b16 %v6934
        %v7013 = vunpack.c.h.b16 %v6934
        %v7014 = vunpack.c.l.b16 %v6935
        %v7015 = vunpack.c.h.b16 %v6935
        %v7016 = vunpack.c.l.b16 %v6936
        %v7017 = vunpack.c.h.b16 %v6936
        %v7018 = vunpack.c.l.b16 %v6937
        %v7019 = vunpack.c.h.b16 %v6937
        %v7020 = vunpack.c.l.b16 %v6938
        %v7021 = vunpack.c.h.b16 %v6938
        %v7022 = vunpack.c.l.b16 %v6939
        %v7023 = vunpack.c.h.b16 %v6939
        %v7024 = vunpack.c.l.b16 %v6940
        %v7025 = vunpack.c.h.b16 %v6940
        %v7026 = vunpack.c.l.b16 %v6941
        %v7027 = vunpack.c.h.b16 %v6941
        %v7028 = vunpack.c.l.b16 %v6942
        %v7029 = vunpack.c.h.b16 %v6942
        %v7030 = vunpack.c.l.b16 %v6943
        %v7031 = vunpack.c.h.b16 %v6943
        %v7032 = vunpack.c.l.b16 %v6944
        %v7033 = vunpack.c.h.b16 %v6944
        %v7034 = vunpack.c.l.b16 %v6945
        %v7035 = vunpack.c.h.b16 %v6945
        %v7036 = vunpack.c.l.b16 %v6946
        %v7037 = vunpack.c.h.b16 %v6946
        %v7038 = vunpack.c.l.b16 %v6947
        %v7039 = vunpack.c.h.b16 %v6947
        %v7040 = vunpack.c.l.b16 %v6948
        %v7041 = vunpack.c.h.b16 %v6948
        %v7042 = vunpack.c.l.b16 %v6949
        %v7043 = vunpack.c.h.b16 %v6949
        %v7044 = vunpack.c.l.b16 %v6950
        %v7045 = vunpack.c.h.b16 %v6950
        %v7046 = vunpack.c.l.b16 %v6951
        %v7047 = vunpack.c.h.b16 %v6951
        %v7048 = vpack.c.b16 %v6986, %v6984
        %v7049 = vpack.c.b16 %v6987, %v6985
        %v7050 = vpack.c.b16 %v6990, %v6988
        %v7051 = vpack.c.b16 %v6991, %v6989
        %v7052 = vpack.c.b16 %v6994, %v6992
        %v7053 = vpack.c.b16 %v6995, %v6993
        %v7054 = vpack.c.b16 %v6998, %v6996
        %v7055 = vpack.c.b16 %v6999, %v6997
        %v7056 = vpack.c.b16 %v7002, %v7000
        %v7057 = vpack.c.b16 %v7003, %v7001
        %v7058 = vpack.c.b16 %v7006, %v7004
        %v7059 = vpack.c.b16 %v7007, %v7005
        %v7060 = vpack.c.b16 %v7010, %v7008
        %v7061 = vpack.c.b16 %v7011, %v7009
        %v7062 = vpack.c.b16 %v7014, %v7012
        %v7063 = vpack.c.b16 %v7015, %v7013
        %v7064 = vpack.c.b16 %v7018, %v7016
        %v7065 = vpack.c.b16 %v7019, %v7017
        %v7066 = vpack.c.b16 %v7022, %v7020
        %v7067 = vpack.c.b16 %v7023, %v7021
        %v7068 = vpack.c.b16 %v7026, %v7024
        %v7069 = vpack.c.b16 %v7027, %v7025
        %v7070 = vpack.c.b16 %v7030, %v7028
        %v7071 = vpack.c.b16 %v7031, %v7029
        %v7072 = vpack.c.b16 %v7034, %v7032
        %v7073 = vpack.c.b16 %v7035, %v7033
        %v7074 = vpack.c.b16 %v7038, %v7036
        %v7075 = vpack.c.b16 %v7039, %v7037
        %v7076 = vpack.c.b16 %v7042, %v7040
        %v7077 = vpack.c.b16 %v7043, %v7041
        %v7078 = vpack.c.b16 %v7046, %v7044
        %v7079 = vpack.c.b16 %v7047, %v7045
        %7112 = vmatpush.bf16.msra.mxu0 %v6879
        %7113 = vmatpush.bf16.msra.mxu0 %v6878
        %7114 = vmatpush.bf16.msra.mxu0 %v6877
        %7115 = vmatpush.bf16.msra.mxu0 %v6876
        %7116 = vmatpush.bf16.msra.mxu0 %v6875
        %7117 = vmatpush.bf16.msra.mxu0 %v6874
        %7118 = vmatpush.bf16.msra.mxu0 %v6873
        %7119 = vmatpush.bf16.msra.mxu0 %v6872
        %7120 = vmatmul.bf16.gmra.mxu0 %v7048
        %v7121 = vpop.f32.mrf.mxu0
        %v7122 = vadd.f32 0.0, %v7121
        %v7123 = vpop.f32.mrf.mxu0
        %v7124 = vadd.f32 0.0, %v7123
        %7125 = vmatmul.bf16.gmra.mxu0 %v7050
        %v7126 = vpop.f32.mrf.mxu0
        %v7127 = vadd.f32 0.0, %v7126
        %v7128 = vpop.f32.mrf.mxu0
        %v7129 = vadd.f32 0.0, %v7128
        %7130 = vmatmul.bf16.gmra.mxu0 %v7052
        %v7131 = vpop.f32.mrf.mxu0
        %v7132 = vadd.f32 0.0, %v7131
        %v7133 = vpop.f32.mrf.mxu0
        %v7134 = vadd.f32 0.0, %v7133
        %7135 = vmatmul.bf16.gmra.mxu0 %v7054
        %v7136 = vpop.f32.mrf.mxu0
        %v7137 = vadd.f32 0.0, %v7136
        %v7138 = vpop.f32.mrf.mxu0
        %v7139 = vadd.f32 0.0, %v7138
        %7140 = vmatmul.bf16.gmra.mxu0 %v7056
        %v7141 = vpop.f32.mrf.mxu0
        %v7142 = vadd.f32 0.0, %v7141
        %v7143 = vpop.f32.mrf.mxu0
        %v7144 = vadd.f32 0.0, %v7143
        %7145 = vmatmul.bf16.gmra.mxu0 %v7058
        %v7146 = vpop.f32.mrf.mxu0
        %v7147 = vadd.f32 0.0, %v7146
        %v7148 = vpop.f32.mrf.mxu0
        %v7149 = vadd.f32 0.0, %v7148
        %7150 = vmatmul.bf16.gmra.mxu0 %v7060
        %v7151 = vpop.f32.mrf.mxu0
        %v7152 = vadd.f32 0.0, %v7151
        %v7153 = vpop.f32.mrf.mxu0
        %v7154 = vadd.f32 0.0, %v7153
        %7155 = vmatmul.bf16.gmra.mxu0 %v7062
        %v7156 = vpop.f32.mrf.mxu0
        %v7157 = vadd.f32 0.0, %v7156
        %v7158 = vpop.f32.mrf.mxu0
        %v7159 = vadd.f32 0.0, %v7158
        %7160 = vmatmul.bf16.gmra.mxu0 %v7064
        %v7161 = vpop.f32.mrf.mxu0
        %v7162 = vadd.f32 0.0, %v7161
        %v7163 = vpop.f32.mrf.mxu0
        %v7164 = vadd.f32 0.0, %v7163
        %7165 = vmatmul.bf16.gmra.mxu0 %v7066
        %v7166 = vpop.f32.mrf.mxu0
        %v7167 = vadd.f32 0.0, %v7166
        %v7168 = vpop.f32.mrf.mxu0
        %v7169 = vadd.f32 0.0, %v7168
        %7170 = vmatmul.bf16.gmra.mxu0 %v7068
        %v7171 = vpop.f32.mrf.mxu0
        %v7172 = vadd.f32 0.0, %v7171
        %v7173 = vpop.f32.mrf.mxu0
        %v7174 = vadd.f32 0.0, %v7173
        %7175 = vmatmul.bf16.gmra.mxu0 %v7070
        %v7176 = vpop.f32.mrf.mxu0
        %v7177 = vadd.f32 0.0, %v7176
        %v7178 = vpop.f32.mrf.mxu0
        %v7179 = vadd.f32 0.0, %v7178
        %7180 = vmatmul.bf16.gmra.mxu0 %v7072
        %v7181 = vpop.f32.mrf.mxu0
        %v7182 = vadd.f32 0.0, %v7181
        %v7183 = vpop.f32.mrf.mxu0
        %v7184 = vadd.f32 0.0, %v7183
        %7185 = vmatmul.bf16.gmra.mxu0 %v7074
        %v7186 = vpop.f32.mrf.mxu0
        %v7187 = vadd.f32 0.0, %v7186
        %v7188 = vpop.f32.mrf.mxu0
        %v7189 = vadd.f32 0.0, %v7188
        %7190 = vmatmul.bf16.gmra.mxu0 %v7076
        %v7191 = vpop.f32.mrf.mxu0
        %v7192 = vadd.f32 0.0, %v7191
        %v7193 = vpop.f32.mrf.mxu0
        %v7194 = vadd.f32 0.0, %v7193
        %7195 = vmatmul.bf16.gmra.mxu0 %v7078
        %v7196 = vpop.f32.mrf.mxu0
        %v7197 = vadd.f32 0.0, %v7196
        %v7198 = vpop.f32.mrf.mxu0
        %v7199 = vadd.f32 0.0, %v7198
        %7200 = vdwg.mxu0
        %7201 = vmatpush.bf16.msra.mxu0 %v6911
        %7202 = vmatpush.bf16.msra.mxu0 %v6910
        %7203 = vmatpush.bf16.msra.mxu0 %v6909
        %7204 = vmatpush.bf16.msra.mxu0 %v6908
        %7205 = vmatpush.bf16.msra.mxu0 %v6907
        %7206 = vmatpush.bf16.msra.mxu0 %v6906
        %7207 = vmatpush.bf16.msra.mxu0 %v6905
        %7208 = vmatpush.bf16.msra.mxu0 %v6904
        %7209 = vmatmul.bf16.gmra.mxu0 %v7049
        %v7210 = vpop.f32.mrf.mxu0
        %v7211 = vadd.f32 %v7122, %v7210
        %v7212 = vpop.f32.mrf.mxu0
        %v7213 = vadd.f32 %v7124, %v7212
        %7214 = vmatmul.bf16.gmra.mxu0 %v7051
        %v7215 = vpop.f32.mrf.mxu0
        %v7216 = vadd.f32 %v7127, %v7215
        %v7217 = vpop.f32.mrf.mxu0
        %v7218 = vadd.f32 %v7129, %v7217
        %7219 = vmatmul.bf16.gmra.mxu0 %v7053
        %v7220 = vpop.f32.mrf.mxu0
        %v7221 = vadd.f32 %v7132, %v7220
        %v7222 = vpop.f32.mrf.mxu0
        %v7223 = vadd.f32 %v7134, %v7222
        %7224 = vmatmul.bf16.gmra.mxu0 %v7055
        %v7225 = vpop.f32.mrf.mxu0
        %v7226 = vadd.f32 %v7137, %v7225
        %v7227 = vpop.f32.mrf.mxu0
        %v7228 = vadd.f32 %v7139, %v7227
        %7229 = vmatmul.bf16.gmra.mxu0 %v7057
        %v7230 = vpop.f32.mrf.mxu0
        %v7231 = vadd.f32 %v7142, %v7230
        %v7232 = vpop.f32.mrf.mxu0
        %v7233 = vadd.f32 %v7144, %v7232
        %7234 = vmatmul.bf16.gmra.mxu0 %v7059
        %v7235 = vpop.f32.mrf.mxu0
        %v7236 = vadd.f32 %v7147, %v7235
        %v7237 = vpop.f32.mrf.mxu0
        %v7238 = vadd.f32 %v7149, %v7237
        %7239 = vmatmul.bf16.gmra.mxu0 %v7061
        %v7240 = vpop.f32.mrf.mxu0
        %v7241 = vadd.f32 %v7152, %v7240
        %v7242 = vpop.f32.mrf.mxu0
        %v7243 = vadd.f32 %v7154, %v7242
        %7244 = vmatmul.bf16.gmra.mxu0 %v7063
        %v7245 = vpop.f32.mrf.mxu0
        %v7246 = vadd.f32 %v7157, %v7245
        %v7247 = vpop.f32.mrf.mxu0
        %v7248 = vadd.f32 %v7159, %v7247
        %7249 = vmatmul.bf16.gmra.mxu0 %v7065
        %v7250 = vpop.f32.mrf.mxu0
        %v7251 = vadd.f32 %v7162, %v7250
        %v7252 = vpop.f32.mrf.mxu0
        %v7253 = vadd.f32 %v7164, %v7252
        %7254 = vmatmul.bf16.gmra.mxu0 %v7067
        %v7255 = vpop.f32.mrf.mxu0
        %v7256 = vadd.f32 %v7167, %v7255
        %v7257 = vpop.f32.mrf.mxu0
        %v7258 = vadd.f32 %v7169, %v7257
        %7259 = vmatmul.bf16.gmra.mxu0 %v7069
        %v7260 = vpop.f32.mrf.mxu0
        %v7261 = vadd.f32 %v7172, %v7260
        %v7262 = vpop.f32.mrf.mxu0
        %v7263 = vadd.f32 %v7174, %v7262
        %7264 = vmatmul.bf16.gmra.mxu0 %v7071
        %v7265 = vpop.f32.mrf.mxu0
        %v7266 = vadd.f32 %v7177, %v7265
        %v7267 = vpop.f32.mrf.mxu0
        %v7268 = vadd.f32 %v7179, %v7267
        %7269 = vmatmul.bf16.gmra.mxu0 %v7073
        %v7270 = vpop.f32.mrf.mxu0
        %v7271 = vadd.f32 %v7182, %v7270
        %v7272 = vpop.f32.mrf.mxu0
        %v7273 = vadd.f32 %v7184, %v7272
        %7274 = vmatmul.bf16.gmra.mxu0 %v7075
        %v7275 = vpop.f32.mrf.mxu0
        %v7276 = vadd.f32 %v7187, %v7275
        %v7277 = vpop.f32.mrf.mxu0
        %v7278 = vadd.f32 %v7189, %v7277
        %7279 = vmatmul.bf16.gmra.mxu0 %v7077
        %v7280 = vpop.f32.mrf.mxu0
        %v7281 = vadd.f32 %v7192, %v7280
        %v7282 = vpop.f32.mrf.mxu0
        %v7283 = vadd.f32 %v7194, %v7282
        %7284 = vmatmul.bf16.gmra.mxu0 %v7079
        %v7285 = vpop.f32.mrf.mxu0
        %v7286 = vadd.f32 %v7197, %v7285
        %v7287 = vpop.f32.mrf.mxu0
        %v7288 = vadd.f32 %v7199, %v7287
        %7289 = vdwg.mxu0
        %v7290 = vmul.f32 %v7211, %v7211
        %v7291 = vmul.f32 %v7213, %v7213
        %v7292 = vmul.f32 %v7216, %v7216
        %v7293 = vmul.f32 %v7218, %v7218
        %v7294 = vmul.f32 %v7221, %v7221
        %v7295 = vmul.f32 %v7223, %v7223
        %v7296 = vmul.f32 %v7226, %v7226
        %v7297 = vmul.f32 %v7228, %v7228
        %v7298 = vmul.f32 %v7231, %v7231
        %v7299 = vmul.f32 %v7233, %v7233
        %v7300 = vmul.f32 %v7236, %v7236
        %v7301 = vmul.f32 %v7238, %v7238
        %v7302 = vmul.f32 %v7241, %v7241
        %v7303 = vmul.f32 %v7243, %v7243
        %v7304 = vmul.f32 %v7246, %v7246
        %v7305 = vmul.f32 %v7248, %v7248
        %v7306 = vmul.f32 %v7251, %v7251
        %v7307 = vmul.f32 %v7253, %v7253
        %v7308 = vmul.f32 %v7256, %v7256
        %v7309 = vmul.f32 %v7258, %v7258
        %v7310 = vmul.f32 %v7261, %v7261
        %v7311 = vmul.f32 %v7263, %v7263
        %v7312 = vmul.f32 %v7266, %v7266
        %v7313 = vmul.f32 %v7268, %v7268
        %v7314 = vmul.f32 %v7271, %v7271
        %v7315 = vmul.f32 %v7273, %v7273
        %v7316 = vmul.f32 %v7276, %v7276
        %v7317 = vmul.f32 %v7278, %v7278
        %v7318 = vmul.f32 %v7281, %v7281
        %v7319 = vmul.f32 %v7283, %v7283
        %v7320 = vmul.f32 %v7286, %v7286
        %v7321 = vmul.f32 %v7288, %v7288
        %v7322 = vadd.f32 %v7290, %v7306
        %v7323 = vadd.f32 %v7291, %v7307
        %v7324 = vadd.f32 %v7292, %v7308
        %v7325 = vadd.f32 %v7293, %v7309
        %v7326 = vadd.f32 %v7294, %v7310
        %v7327 = vadd.f32 %v7295, %v7311
        %v7328 = vadd.f32 %v7296, %v7312
        %v7329 = vadd.f32 %v7297, %v7313
        %v7330 = vadd.f32 %v7298, %v7314
        %v7331 = vadd.f32 %v7299, %v7315
        %v7332 = vadd.f32 %v7300, %v7316
        %v7333 = vadd.f32 %v7301, %v7317
        %v7334 = vadd.f32 %v7302, %v7318
        %v7335 = vadd.f32 %v7303, %v7319
        %v7336 = vadd.f32 %v7304, %v7320
        %v7337 = vadd.f32 %v7305, %v7321
        %7338 = vst [vmem:[%s397] sm:$0xff] %v7322
        %7339 = vst [vmem:[%s397 + $0x8] sm:$0xff] %v7323
        %7340 = vst [vmem:[%s397 + $0x10] sm:$0xff] %v7324
        %7341 = vst [vmem:[%s397 + $0x18] sm:$0xff] %v7325
        %7342 = vst [vmem:[%s397 + $0x20] sm:$0xff] %v7326
        %7343 = vst [vmem:[%s397 + $0x28] sm:$0xff] %v7327
        %7344 = vst [vmem:[%s397 + $0x30] sm:$0xff] %v7328
        %7345 = vst [vmem:[%s397 + $0x38] sm:$0xff] %v7329
        %7346 = vst [vmem:[%s397 + $0x40] sm:$0xff] %v7330
        %7347 = vst [vmem:[%s397 + $0x48] sm:$0xff] %v7331
        %7348 = vst [vmem:[%s397 + $0x50] sm:$0xff] %v7332
        %7349 = vst [vmem:[%s397 + $0x58] sm:$0xff] %v7333
        %7350 = vst [vmem:[%s397 + $0x60] sm:$0xff] %v7334
        %7351 = vst [vmem:[%s397 + $0x68] sm:$0xff] %v7335
        %7352 = vst [vmem:[%s397 + $0x70] sm:$0xff] %v7336
        %7353 = vst [vmem:[%s397 + $0x78] sm:$0xff] %v7337
        %s7354 = sand.u32 %s187, 1
        %s7355 = scalar_lea.sflag [#allocation4], %s7354
        %s7356 = sand.u32 %s187, 1
        %s7357 = smul.addr %s7356, 128
        %s7358 = scalar_lea.vmem [#allocation14], %s7357
        // Predicated region
        $region77: #{run.1} parent=47 // pred_check
          %p7359 = pneg %p197
        $region78: #{run.1} parent=47 // pred_check_branch
          %7361 = sbr.rel (%p7359) target = $region80
        $region79: #{run.1} parent=47 // pred_region
          %7363 = vsyncadd %s7355, 0
          %s7364 = smul.addr %s27, 16
          %s7365 = smul.addr %s7364, 8
          %s7366 = scalar_lea.hbm %s7, %s7365
          %s7367 = sshll.u32 %s7358, 4
          %s7368 = int_to_ptr.vmem [resolvable:$true] %s7367
          %s7369 = sshll.u32 %s7366, 4
          %s7370 = int_to_ptr.hbm [resolvable:$true] %s7369
          %7375 = dma.vmem_to_hbm [thread:$0]  %s7368, 2048, %s7370, %s7355, 128, 128, 8
        $region80: #{run.1} parent=47 // pred_fallthru
          _
      $region48: #{run.1} parent=5 // pred_fallthru
        _
      %p7376 = scmp.le.s32.totalorder 2, %s22
      // Predicated region
      $region81: #{run.1} parent=5 // pred_check
        %p7377 = pneg %p7376
      $region82: #{run.1} parent=5 // pred_check_branch
        %7379 = sbr.rel (%p7377) target = $region84
      $region83: #{run.1} parent=5 // pred_region
        %s7380 = ssub.s32 %s22, 2
        // Predicated region
        $region85: #{run.1} parent=83 // pred_check
          %p7381 = pneg %p203
        $region86: #{run.1} parent=83 // pred_check_branch
          %7383 = sbr.rel (%p7381) target = $region88
        $region87: #{run.1} parent=83 // pred_region
          %s7384 = sand.u32 %s188, 1
          %s7385 = scalar_lea.sflag [#allocation4], %s7384
          %s7386 = sand.u32 %s188, 1
          %s7387 = smul.addr %s7386, 128
          %s7388 = scalar_lea.vmem [#allocation14], %s7387
          %7390 = dma.done %s7385, 2048
        $region88: #{run.1} parent=83 // pred_fallthru
          _
      $region84: #{run.1} parent=5 // pred_fallthru
        _
    $region6: #{run.1} parent=1 // loop_footer
      %s26 = sadd.s32 1, %s22
    $region7: #{run.1} parent=1 // loop_footer_branch
      %21 = sbr.rel target = $region3
    $region8: #{run.1} parent=1 // loop_exit
      _
    %7391 = vsyncpa [#allocation3], 1
    %s7392 = scalar_lea.sflag [#allocation3], 1
    %7393 = vsyncpa %s7392, 1
    %7394 = vsyncpa [#allocation6], 1
    %7395 = vsyncpa [#allocation9], 1
    %7396 = vsyncpa [#allocation12], 1
    %7397 = vsyncpa [#allocation4], 1
    %s7398 = scalar_lea.sflag [#allocation4], 1
    %7399 = vsyncpa %s7398, 1

</llo_original>
